<compile_context>
chip_gen: v6e
topology: v6e:2x2x1
jax: 0.10.0
libtpu: 0.0.40
codegen_flags: <defaults>
</compile_context>

<pallas_src>
import functools

import jax
import jax.numpy as jnp
from jax.experimental import pallas as pl
from jax.experimental.pallas import tpu as pltpu

_BN_EPS = 1e-5
_DW_OFF = 8   # sublane-aligned offset used for the in-kernel spatial-pad scratch


def _round_up(x, m):
    return ((x + m - 1) // m) * m


def _cp(c):
    """Channel padding: every channel dim is a multiple of 128 (lane-dense stores)."""
    return _round_up(max(int(c), 1), 128)


def _default_vmem_limit():
    # Generation-aware scoped-VMEM limit: ~96 MiB on 128-MiB parts (v5e/v6e),
    # ~48 MiB on the 64-MiB v7x part.  Fallback keeps us safe everywhere.
    try:
        cap = int(pltpu.get_tpu_info().vmem_capacity_bytes)
    except Exception:  # noqa: BLE001 - best-effort hardware query
        cap = 64 * 1024 * 1024
    return min(max(32 * 1024 * 1024, (cap * 3) // 4), 100 * 1024 * 1024)


_VMEM_LIMIT = _default_vmem_limit()


def _cparams(*sem):
    return pltpu.CompilerParams(
        dimension_semantics=sem if sem else None,
        vmem_limit_bytes=_VMEM_LIMIT)


# ----------------------------------------------------------------------------
# Pallas kernels
# ----------------------------------------------------------------------------

def _mm_stats_k1_kernel(x_ref, w_ref, o_ref, st_ref):
    """Single-K-tile matmul + fused per-column BN statistics (no acc scratch)."""
    a = jnp.dot(x_ref[...], w_ref[...], preferred_element_type=jnp.float32)
    o_ref[...] = a.astype(o_ref.dtype)
    st_ref[0, 0:1, :] = jnp.sum(a, axis=0, keepdims=True)
    st_ref[0, 1:2, :] = jnp.sum(a * a, axis=0, keepdims=True)


def _mm_stats_kernel(x_ref, w_ref, o_ref, st_ref, acc_ref):
    """Tiled matmul (bf16 MXU, f32 accumulate) + fused per-column BN statistics.

    grid = (M tiles, N tiles, K tiles); K is the innermost (reduction) axis.
    """
    k = pl.program_id(2)

    @pl.when(k == 0)
    def _init():
        acc_ref[...] = jnp.zeros_like(acc_ref)

    acc_ref[...] += jnp.dot(x_ref[...], w_ref[...],
                            preferred_element_type=jnp.float32)

    @pl.when(k == pl.num_programs(2) - 1)
    def _finalize():
        a = acc_ref[...]
        o_ref[...] = a.astype(o_ref.dtype)
        st_ref[0, 0:1, :] = jnp.sum(a, axis=0, keepdims=True)
        st_ref[0, 1:2, :] = jnp.sum(a * a, axis=0, keepdims=True)


def _bn_act_kernel(x_ref, sc_ref, sh_ref, o_ref, *, apply_swish):
    # BN reduced to affine (scale/shift precomputed from fused batch stats), opt. swish.
    y = x_ref[...].astype(jnp.float32) * sc_ref[...] + sh_ref[...]
    if apply_swish:
        y = y * jax.nn.sigmoid(y)
    o_ref[...] = y.astype(o_ref.dtype)


def _bn_add_kernel(x_ref, sc_ref, sh_ref, r_ref, o_ref):
    # BN affine fused with the MBConv residual add.
    y = x_ref[...].astype(jnp.float32) * sc_ref[...] + sh_ref[...]
    o_ref[...] = (y + r_ref[...].astype(jnp.float32)).astype(o_ref.dtype)


def _dw_s1_kernel(x_ref, sc_ref, sh_ref, w_ref, o_ref, st_ref, pbuf,
                  *, k, pad, apply_act):
    """Depthwise KxK conv, stride 1, fully fused:
       raw (pre-BN) activation -> BN1 affine + swish -> zero spatial border in a VMEM
       scratch -> KxK taps via shifted slices -> output + BN2 partial statistics.
      x_ref: (1, H, W, C) bf16 raw activation    sc/sh: (1, C) f32
      w_ref: (k*k, C) f32 depthwise taps
      o_ref: (1, H, W, C) bf16                  st_ref: (1, 2, C) f32
      pbuf:  (H + 2*pad, W + 2*_DW_OFF, C) f32 scratch (aligned interior store).
    """
    h, w, c = x_ref.shape[1], x_ref.shape[2], x_ref.shape[3]
    pbuf[...] = jnp.zeros_like(pbuf)
    y = x_ref[0].astype(jnp.float32)
    if apply_act:
        y = y * sc_ref[0] + sh_ref[0]
        y = y * jax.nn.sigmoid(y)
    pbuf[pad:pad + h, _DW_OFF:_DW_OFF + w, :] = y

    acc = jnp.zeros((h, w, c), jnp.float32)
    for kh in range(k):
        for kw in range(k):
            c0 = _DW_OFF - pad + kw
            acc = acc + pbuf[kh:kh + h, c0:c0 + w, :] * w_ref[kh * k + kw, :]
    o_ref[0] = acc.astype(o_ref.dtype)
    flat = acc.reshape(h * w, c)
    st_ref[0, 0:1, :] = jnp.sum(flat, axis=0, keepdims=True)
    st_ref[0, 1:2, :] = jnp.sum(flat * flat, axis=0, keepdims=True)


def _dw_phase_kernel(p_ref, m_ref, sc_ref, sh_ref, w_ref, o_ref, st_ref, abuf,
                     *, k, stride, hout, wout, apply_act):
    """Depthwise KxK conv, stride > 1, on the stride-phase decomposed RAW activation.
    BN1 affine + swish + spatial-pad mask are applied per phase into a VMEM scratch,
    then the K*K taps are static slices of the activated phases.  Emits BN2 stats.
      p_ref: (1, s*s, Hph, Wph, C) bf16   m_ref: (s*s, Hph, Wph, 1) f32 validity mask
      w_ref: (k*k, C) f32
      o_ref: (1, hout, wout, C) bf16      st_ref: (1, 2, C) f32
      abuf:  (s*s, Hph, Wph, C) f32 scratch.
    """
    c = p_ref.shape[-1]
    for rh in range(stride):
        for rw in range(stride):
            p = rh * stride + rw
            y = p_ref[0, p].astype(jnp.float32)
            if apply_act:
                y = y * sc_ref[0] + sh_ref[0]
                y = y * jax.nn.sigmoid(y)
                y = y * m_ref[p]          # zero post-activation values at spatial pad
            abuf[p] = y

    acc = jnp.zeros((hout, wout, c), jnp.float32)
    for kh in range(k):
        for kw in range(k):
            rh, qh = kh % stride, kh // stride
            rw, qw = kw % stride, kw // stride
            tap = abuf[rh * stride + rw, qh:qh + hout, qw:qw + wout, :]
            acc = acc + tap * w_ref[kh * k + kw, :]
    o_ref[0] = acc.astype(o_ref.dtype)
    flat = acc.reshape(hout * wout, c)
    st_ref[0, 0:1, :] = jnp.sum(flat, axis=0, keepdims=True)
    st_ref[0, 1:2, :] = jnp.sum(flat * flat, axis=0, keepdims=True)


def _se_bn_swish_kernel(x_ref, sc_ref, sh_ref, w1_ref, b1_ref, w2_ref, b2_ref, o_ref):
    """Fused: BN2 affine + swish, SE squeeze/excite, sigmoid gate. One image / grid step."""
    x = x_ref[0].astype(jnp.float32) * sc_ref[...] + sh_ref[...]   # (HW, C)
    x = x * jax.nn.sigmoid(x)                                      # swish(bn2(conv2))
    pooled = jnp.mean(x, axis=0, keepdims=True)                    # (1, C) global avg pool
    s = jnp.dot(pooled, w1_ref[...], preferred_element_type=jnp.float32) + b1_ref[...]
    s = s * jax.nn.sigmoid(s)                                      # swish
    s = jnp.dot(s, w2_ref[...], preferred_element_type=jnp.float32) + b2_ref[...]
    g = jax.nn.sigmoid(s)                                          # gate (1, C)
    o_ref[0] = (x * g).astype(o_ref.dtype)


def _head_kernel(x_ref, w_ref, b_ref, o_ref):
    # Global average pool + final Linear (with bias).
    pooled = jnp.mean(x_ref[...].astype(jnp.float32), axis=1)      # (N, C)
    o_ref[...] = jnp.dot(pooled, w_ref[...],
                         preferred_element_type=jnp.float32) + b_ref[...]


# ----------------------------------------------------------------------------
# Wrappers (tiling decisions + minimal JAX glue)
# ----------------------------------------------------------------------------

def _matmul_stats(x, w):
    """x:(M,K) bf16, w:(K,N) bf16 -> (out (M,N) bf16, col_sum (N,), col_ssq (N,)).

    K and N are padded to 128 multiples (lane-dense output stores, no masked vst);
    M is padded with zero rows to a fixed large tile.  Zero rows/cols are free for the
    fused BN statistics.  gk == 1 takes the accumulator-free fast-path kernel.
    """
    m, k = x.shape
    _, n = w.shape

    kp, np_ = _round_up(k, 128), _round_up(n, 128)
    if kp != k:
        x = jnp.pad(x, ((0, 0), (0, kp - k)))
        w = jnp.pad(w, ((0, kp - k), (0, 0)))
    if np_ != n:
        w = jnp.pad(w, ((0, 0), (0, np_ - n)))

    tk = 512 if kp % 512 == 0 else (256 if kp % 256 == 0 else 128)
    tn = 512 if np_ % 512 == 0 else (256 if np_ % 256 == 0 else 128)
    tm = 512 if m >= 2048 else (256 if m >= 256 else _round_up(m, 8))
    mp = _round_up(m, tm)
    if mp != m:
        x = jnp.pad(x, ((0, mp - m), (0, 0)))    # zero rows: no effect on stats

    gm, gn, gk = mp // tm, np_ // tn, kp // tk
    cost = pl.CostEstimate(
        flops=2 * mp * np_ * kp,
        transcendentals=0,
        bytes_accessed=mp * kp * 2 + kp * np_ * 2 + mp * np_ * 2 + gm * 2 * np_ * 4)

    out_shape = [jax.ShapeDtypeStruct((mp, np_), jnp.bfloat16),
                 jax.ShapeDtypeStruct((gm, 2, np_), jnp.float32)]

    if gk == 1:
        out, stats = pl.pallas_call(
            _mm_stats_k1_kernel,
            grid=(gm, gn),
            in_specs=[pl.BlockSpec((tm, kp), lambda i, j: (i, 0)),
                      pl.BlockSpec((kp, tn), lambda i, j: (0, j))],
            out_specs=[pl.BlockSpec((tm, tn), lambda i, j: (i, j)),
                       pl.BlockSpec((1, 2, tn), lambda i, j: (i, 0, j))],
            out_shape=out_shape,
            compiler_params=_cparams("parallel", "parallel"),
            cost_estimate=cost,
        )(x, w)
    else:
        out, stats = pl.pallas_call(
            _mm_stats_kernel,
            grid=(gm, gn, gk),
            in_specs=[pl.BlockSpec((tm, tk), lambda i, j, kk: (i, kk)),
                      pl.BlockSpec((tk, tn), lambda i, j, kk: (kk, j))],
            out_specs=[pl.BlockSpec((tm, tn), lambda i, j, kk: (i, j)),
                       pl.BlockSpec((1, 2, tn), lambda i, j, kk: (i, 0, j))],
            out_shape=out_shape,
            scratch_shapes=[pltpu.VMEM((tm, tn), jnp.float32)],
            compiler_params=_cparams("parallel", "parallel", "arbitrary"),
            cost_estimate=cost,
        )(x, w)

    s = jnp.sum(stats, axis=0)                   # (2, Np)
    if mp != m:
        out = out[:m]
    if np_ != n:
        out = out[:, :n]
    return out, s[0, :n], s[1, :n]


def _bn_scale_shift(col_sum, col_ssq, count, gamma, beta):
    # Batch statistics (track_running_stats=False): biased variance, eps=1e-5.
    mean = col_sum / count
    var = jnp.maximum(col_ssq / count - mean * mean, 0.0)
    inv = jax.lax.rsqrt(var + _BN_EPS)
    scale = gamma * inv
    shift = beta - mean * scale
    return (scale.reshape(1, -1).astype(jnp.float32),
            shift.reshape(1, -1).astype(jnp.float32))


def _bn_act(x, scale, shift, apply_swish):
    m, c = x.shape
    tm = 512 if m >= 2048 else (256 if m >= 256 else _round_up(m, 8))
    mp = _round_up(m, tm)
    if mp != m:
        x = jnp.pad(x, ((0, mp - m), (0, 0)))
    out = pl.pallas_call(
        functools.partial(_bn_act_kernel, apply_swish=apply_swish),
        grid=(mp // tm,),
        in_specs=[pl.BlockSpec((tm, c), lambda i: (i, 0)),
                  pl.BlockSpec((1, c), lambda i: (0, 0)),
                  pl.BlockSpec((1, c), lambda i: (0, 0))],
        out_specs=pl.BlockSpec((tm, c), lambda i: (i, 0)),
        out_shape=jax.ShapeDtypeStruct((mp, c), jnp.bfloat16),
        compiler_params=_cparams("parallel"),
    )(x, scale, shift)
    return out[:m] if mp != m else out


def _bn_add(x, scale, shift, res):
    m, c = x.shape
    tm = 512 if m >= 2048 else (256 if m >= 256 else _round_up(m, 8))
    mp = _round_up(m, tm)
    if mp != m:
        x = jnp.pad(x, ((0, mp - m), (0, 0)))
        res = jnp.pad(res, ((0, mp - m), (0, 0)))
    out = pl.pallas_call(
        _bn_add_kernel,
        grid=(mp // tm,),
        in_specs=[pl.BlockSpec((tm, c), lambda i: (i, 0)),
                  pl.BlockSpec((1, c), lambda i: (0, 0)),
                  pl.BlockSpec((1, c), lambda i: (0, 0)),
                  pl.BlockSpec((tm, c), lambda i: (i, 0))],
        out_specs=pl.BlockSpec((tm, c), lambda i: (i, 0)),
        out_shape=jax.ShapeDtypeStruct((mp, c), jnp.bfloat16),
        compiler_params=_cparams("parallel"),
    )(x, scale, shift, res)
    return out[:m] if mp != m else out


def _depthwise_conv(x_nhwc, w_taps, scale, shift, stride, k, apply_act):
    """Depthwise conv (groups == C), padding 1 if k==3 else 2, with BN1 affine + swish
    applied in-kernel (when apply_act) and fused BN2 statistics on the output."""
    n, h, w, c = x_nhwc.shape
    pad = 1 if k == 3 else 2
    hout = (h + 2 * pad - k) // stride + 1
    wout = (w + 2 * pad - k) // stride + 1

    cost = pl.CostEstimate(
        flops=2 * n * hout * wout * c * k * k,
        transcendentals=(n * h * w * c) if apply_act else 0,
        bytes_accessed=(n * h * w * c + n * hout * wout * c) * 2
                       + k * k * c * 4 + n * 2 * c * 4)
    out_specs = [pl.BlockSpec((1, hout, wout, c), lambda b: (b, 0, 0, 0)),
                 pl.BlockSpec((1, 2, c), lambda b: (b, 0, 0))]
    out_shape = [jax.ShapeDtypeStruct((n, hout, wout, c), jnp.bfloat16),
                 jax.ShapeDtypeStruct((n, 2, c), jnp.float32)]

    if stride == 1:
        # No XLA-level pad / phase transpose: the 1-2 pixel zero border is realized in a
        # VMEM scratch inside the kernel (removes an HBM round trip of the activation).
        kern = functools.partial(_dw_s1_kernel, k=k, pad=pad, apply_act=apply_act)
        out, stats = pl.pallas_call(
            kern,
            grid=(n,),
            in_specs=[pl.BlockSpec((1, h, w, c), lambda b: (b, 0, 0, 0)),
                      pl.BlockSpec((1, c), lambda b: (0, 0)),
                      pl.BlockSpec((1, c), lambda b: (0, 0)),
                      pl.BlockSpec((k * k, c), lambda b: (0, 0))],
            out_specs=out_specs,
            out_shape=out_shape,
            scratch_shapes=[pltpu.VMEM((h + 2 * pad, w + 2 * _DW_OFF, c), jnp.float32)],
            compiler_params=_cparams("parallel"),
            cost_estimate=cost,
        )(x_nhwc, scale, shift, w_taps)
    else:
        # Stride-phase decomposition of the zero-padded RAW activation (1x data volume).
        hp, wp = h + 2 * pad, w + 2 * pad
        hp2, wp2 = _round_up(hp, stride), _round_up(wp, stride)
        xp = jnp.pad(x_nhwc, ((0, 0), (pad, pad + hp2 - hp), (pad, pad + wp2 - wp), (0, 0)))
        ph_h, ph_w = hp2 // stride, wp2 // stride
        phases = xp.reshape(n, ph_h, stride, ph_w, stride, c)
        phases = phases.transpose(0, 2, 4, 1, 3, 5).reshape(n, stride * stride, ph_h, ph_w, c)

        # Tiny per-phase validity mask (1 = real pixel, 0 = spatial padding), so the
        # in-kernel BN1+swish cannot leak nonzero values into the conv halo.
        qh = jnp.arange(ph_h)
        qw = jnp.arange(ph_w)
        masks = []
        for rh in range(stride):
            row_ok = ((qh * stride + rh) >= pad) & ((qh * stride + rh) < pad + h)
            for rw in range(stride):
                col_ok = ((qw * stride + rw) >= pad) & ((qw * stride + rw) < pad + w)
                masks.append((row_ok[:, None] & col_ok[None, :]).astype(jnp.float32))
        pmask = jnp.stack(masks, axis=0)[..., None]     # (s*s, ph_h, ph_w, 1)

        kern = functools.partial(_dw_phase_kernel, k=k, stride=stride,
                                 hout=hout, wout=wout, apply_act=apply_act)
        out, stats = pl.pallas_call(
            kern,
            grid=(n,),
            in_specs=[pl.BlockSpec((1, stride * stride, ph_h, ph_w, c),
                                   lambda b: (b, 0, 0, 0, 0)),
                      pl.BlockSpec((stride * stride, ph_h, ph_w, 1),
                                   lambda b: (0, 0, 0, 0)),
                      pl.BlockSpec((1, c), lambda b: (0, 0)),
                      pl.BlockSpec((1, c), lambda b: (0, 0)),
                      pl.BlockSpec((k * k, c), lambda b: (0, 0))],
            out_specs=out_specs,
            out_shape=out_shape,
            scratch_shapes=[pltpu.VMEM((stride * stride, ph_h, ph_w, c), jnp.float32)],
            compiler_params=_cparams("parallel"),
            cost_estimate=cost,
        )(phases, pmask, scale, shift, w_taps)

    s = jnp.sum(stats, axis=0)
    return out, s[0], s[1], hout, wout


def _se_bn_swish(x_nhwc, scale, shift, w1, b1, w2, b2):
    # TODO(synk): two-pass HW-tiled variant (pool accumulate, then gate) would bound
    #             VMEM on v7x at large resolutions; per-image blocks are fine here.
    n, h, w, c = x_nhwc.shape
    hw = h * w
    cse = w1.shape[1]
    xr = x_nhwc.reshape(n, hw, c)
    out = pl.pallas_call(
        _se_bn_swish_kernel,
        grid=(n,),
        in_specs=[pl.BlockSpec((1, hw, c), lambda b: (b, 0, 0)),
                  pl.BlockSpec((1, c), lambda b: (0, 0)),
                  pl.BlockSpec((1, c), lambda b: (0, 0)),
                  pl.BlockSpec((c, cse), lambda b: (0, 0)),
                  pl.BlockSpec((1, cse), lambda b: (0, 0)),
                  pl.BlockSpec((cse, c), lambda b: (0, 0)),
                  pl.BlockSpec((1, c), lambda b: (0, 0))],
        out_specs=pl.BlockSpec((1, hw, c), lambda b: (b, 0, 0)),
        out_shape=jax.ShapeDtypeStruct((n, hw, c), jnp.bfloat16),
        compiler_params=_cparams("parallel"),
    )(xr, scale, shift, w1, b1, w2, b2)
    return out.reshape(n, h, w, c)


def _head(x_nhwc, lin_w, lin_b):
    n, h, w, c = x_nhwc.shape
    num_classes = lin_w.shape[1]
    xr = x_nhwc.reshape(n, h * w, c)
    vm = pl.BlockSpec(memory_space=pltpu.MemorySpace.VMEM)
    return pl.pallas_call(
        _head_kernel,
        out_shape=jax.ShapeDtypeStruct((n, num_classes), jnp.float32),
        in_specs=[vm, vm, vm],
        out_specs=vm,
        compiler_params=_cparams(),
    )(xr, lin_w, lin_b)


def _im2col_stem(x_nhwc, k, stride, padding):
    # Only used for the 3-channel stem (K = 27 -> padded to 128 inside the matmul).
    n, h, w, c = x_nhwc.shape
    xp = jnp.pad(x_nhwc, ((0, 0), (padding, padding), (padding, padding), (0, 0)))
    hout = (h + 2 * padding - k) // stride + 1
    wout = (w + 2 * padding - k) // stride + 1
    cols = []
    for kh in range(k):
        for kw in range(k):
            cols.append(xp[:, kh:kh + stride * hout:stride,
                           kw:kw + stride * wout:stride, :])
    patches = jnp.stack(cols, axis=3)        # (N, Hout, Wout, k*k, Cin); taps (kh, kw)
    return patches.reshape(n * hout * wout, k * k * c), hout, wout


# ----------------------------------------------------------------------------
# Model definition (parameters pre-laid-out / channel-padded for the kernels)
# ----------------------------------------------------------------------------

def init_efficientnet_params(key, cfg, num_classes, scale=1.0):
    keys = iter(jax.random.split(key, 4096))

    def nrm(shape, s=0.1):
        return jax.random.normal(next(keys), shape, jnp.float32) * s

    def zpad(a, shape, dtype=jnp.float32):
        return jnp.pad(a, [(0, t - d) for d, t in zip(a.shape, shape)]).astype(dtype)

    params = {}
    in_c = int(32 * scale)
    in_cp = _cp(in_c)
    # Stem conv weight pre-reshaped: PyTorch (out,3,3,3) -> (27, out), zero-padded cols.
    params["stem_w"] = zpad(nrm((27, in_c)), (27, in_cp), jnp.bfloat16)
    params["bn1_g"] = zpad(1.0 + nrm((in_c,)), (in_cp,))
    params["bn1_b"] = zpad(nrm((in_c,)), (in_cp,))

    layers = []
    for expansion, out_channels, num_blocks, kernel_size, stride in zip(
            cfg["expansion"], cfg["out_channels"], cfg["num_blocks"],
            cfg["kernel_size"], cfg["stride"]):
        strides = [stride] + [1] * (num_blocks - 1)
        blocks = []
        for s in strides:
            out_c = int(out_channels * scale)
            out_cp = _cp(out_c)
            ch = expansion * in_c
            chp = _cp(ch)
            se_c = int(in_c * 0.25)          # se_ratio = 0.25 of the block's in_channels
            blk = {"meta": dict(expand_ratio=expansion, stride=s, k=kernel_size,
                                in_c=in_c, in_cp=in_cp, out_c=out_c, out_cp=out_cp,
                                ch=ch, chp=chp)}
            if expansion != 1:
                blk["w1"] = zpad(nrm((in_c, ch)), (in_cp, chp), jnp.bfloat16)
                blk["bn1_g"] = zpad(1.0 + nrm((ch,)), (chp,))
                blk["bn1_b"] = zpad(nrm((ch,)), (chp,))
            blk["w2"] = zpad(nrm((kernel_size * kernel_size, ch)),
                             (kernel_size * kernel_size, chp))
            blk["bn2_g"] = zpad(1.0 + nrm((ch,)), (chp,))
            blk["bn2_b"] = zpad(nrm((ch,)), (chp,))
            blk["se1_w"] = zpad(nrm((ch, se_c)), (chp, se_c))
            blk["se1_b"] = nrm((1, se_c))
            blk["se2_w"] = zpad(nrm((se_c, ch)), (se_c, chp))
            blk["se2_b"] = zpad(nrm((1, ch)), (1, chp))
            blk["w3"] = zpad(nrm((ch, out_c)), (chp, out_cp), jnp.bfloat16)
            blk["bn3_g"] = zpad(1.0 + nrm((out_c,)), (out_cp,))
            blk["bn3_b"] = zpad(nrm((out_c,)), (out_cp,))
            blocks.append(blk)
            in_c, in_cp = out_c, out_cp
        layers.append(blocks)
    params["layers"] = layers
    params["linear_w"] = zpad(nrm((in_c, num_classes)), (in_cp, num_classes))
    params["linear_b"] = nrm((1, num_classes))
    return params


def _block_forward(x, blk):
    meta = blk["meta"]
    n, h, w, _ = x.shape
    in_cp, out_cp, chp = meta["in_cp"], meta["out_cp"], meta["chp"]
    stride, k = meta["stride"], meta["k"]

    # expansion 1x1 conv + fused BN1 stats (BN1 affine + swish deferred into the DW kernel)
    if meta["expand_ratio"] == 1:
        dw_in = x
        sc1 = jnp.zeros((1, chp), jnp.float32)
        sh1 = jnp.zeros((1, chp), jnp.float32)
        apply_act = False
    else:
        y, s1, s2 = _matmul_stats(x.reshape(n * h * w, in_cp), blk["w1"])
        sc1, sh1 = _bn_scale_shift(s1, s2, n * h * w, blk["bn1_g"], blk["bn1_b"])
        dw_in = y.reshape(n, h, w, chp)
        apply_act = True

    # depthwise conv with in-kernel BN1 affine + swish, fused BN2 stats
    dwo, s1, s2, hout, wout = _depthwise_conv(dw_in, blk["w2"], sc1, sh1,
                                              stride, k, apply_act)
    sc2, sh2 = _bn_scale_shift(s1, s2, n * hout * wout, blk["bn2_g"], blk["bn2_b"])

    # bn2 affine + swish + squeeze-excitation, fused in one kernel
    gated = _se_bn_swish(dwo, sc2, sh2, blk["se1_w"], blk["se1_b"],
                         blk["se2_w"], blk["se2_b"])

    # pointwise 1x1 conv + bn3 (+ residual), stats fused in the matmul
    y, s1, s2 = _matmul_stats(gated.reshape(n * hout * wout, chp), blk["w3"])
    sc3, sh3 = _bn_scale_shift(s1, s2, n * hout * wout, blk["bn3_g"], blk["bn3_b"])
    if stride == 1 and meta["in_c"] == meta["out_c"]:
        # residual add fused into the bn3 epilogue (drop_connect skipped: inference)
        y = _bn_add(y, sc3, sh3, x.reshape(n * h * w, out_cp))
    else:
        y = _bn_act(y, sc3, sh3, apply_swish=False)
    return y.reshape(n, hout, wout, out_cp)


def efficientnet_forward(params, x_nchw):
    # Input follows PyTorch NCHW; convert once to NHWC / bf16 for the kernels.
    x = jnp.transpose(x_nchw, (0, 2, 3, 1)).astype(jnp.bfloat16)
    n = x.shape[0]

    # Stem: 3x3 stride-2 conv (im2col, K=27) + bn1 + swish.
    cols, hout, wout = _im2col_stem(x, k=3, stride=2, padding=1)
    y, s1, s2 = _matmul_stats(cols, params["stem_w"])
    sc, sh = _bn_scale_shift(s1, s2, n * hout * wout, params["bn1_g"], params["bn1_b"])
    out = _bn_act(y, sc, sh, apply_swish=True).reshape(n, hout, wout, -1)

    for stage in params["layers"]:
        for blk in stage:
            out = _block_forward(out, blk)

    logits = _head(out, params["linear_w"], params["linear_b"])
    # preds list, matching `return preds` (no early-exit classifiers).
    return [logits]


# ----------------------------------------------------------------------------
# Main
# ----------------------------------------------------------------------------

if __name__ == "__main__":
    cfg = {
        "expansion": [1, 2],
        "out_channels": [16, 24],
        "num_blocks": [1, 2],
        "kernel_size": [3, 3],
        "stride": [1, 2],
        "dropout_rate": 0.2,        # training-only, unused at inference
        "drop_connect_rate": 0.2,   # training-only, unused at inference
    }
    num_classes = 10

    key = jax.random.PRNGKey(0)
    key_x, key_p = jax.random.split(key)
    x = jax.random.normal(key_x, (2, 3, 16, 16), jnp.float32)  # NCHW like PyTorch

    params = init_efficientnet_params(key_p, cfg, num_classes, scale=1.0)

    fwd = jax.jit(lambda inp: efficientnet_forward(params, inp))
    preds = fwd(x)
    logits = jax.block_until_ready(preds[-1])
    assert logits.shape == (2, num_classes), logits.shape
    assert bool(jnp.all(jnp.isfinite(logits)))
    print("KERNEL_OK")
</pallas_src>

<mosaic_0001>
module attributes {stable_mosaic.version = 11 : i64} {
  func.func @_bn_act_kernel(%arg0: i32, %arg1: memref<128x128xbf16, #tpu.memory_space<vmem>>, %arg2: memref<1x128xf32, #tpu.memory_space<vmem>>, %arg3: memref<1x128xf32, #tpu.memory_space<vmem>>, %arg4: memref<128x128xbf16, #tpu.memory_space<vmem>>) attributes {dimension_semantics = [#tpu.dimension_semantics<parallel>], iteration_bounds = array<i64: 1>, scalar_prefetch = 0 : i64, scratch_operands = 0 : i64, tpu.core_type = #tpu.core_type<tc>, window_params = [{transform_indices = @transform_0, window_bounds = array<i64: 128, 128>}, {pipeline_mode = #tpu.pipeline_mode<synchronous>, transform_indices = @transform_1, window_bounds = array<i64: 1, 128>}, {pipeline_mode = #tpu.pipeline_mode<synchronous>, transform_indices = @transform_2, window_bounds = array<i64: 1, 128>}, {transform_indices = @transform_3, window_bounds = array<i64: 128, 128>}]} {
    %c0 = arith.constant 0 : index
    %c0_0 = arith.constant 0 : index
    %0 = vector.load %arg1[%c0, %c0_0] : memref<128x128xbf16, #tpu.memory_space<vmem>>, vector<128x128xbf16>
    %1 = arith.extf %0 : vector<128x128xbf16> to vector<128x128xf32>
    %c0_1 = arith.constant 0 : index
    %c0_2 = arith.constant 0 : index
    %2 = vector.load %arg2[%c0_1, %c0_2] : memref<1x128xf32, #tpu.memory_space<vmem>>, vector<1x128xf32>
    %3 = vector.broadcast %2 : vector<1x128xf32> to vector<128x128xf32>
    %4 = arith.mulf %1, %3 : vector<128x128xf32>
    %c0_3 = arith.constant 0 : index
    %c0_4 = arith.constant 0 : index
    %5 = vector.load %arg3[%c0_3, %c0_4] : memref<1x128xf32, #tpu.memory_space<vmem>>, vector<1x128xf32>
    %6 = vector.broadcast %5 : vector<1x128xf32> to vector<128x128xf32>
    %7 = arith.addf %4, %6 : vector<128x128xf32>
    %8 = arith.negf %7 : vector<128x128xf32>
    %9 = math.exp %8 : vector<128x128xf32>
    %cst = arith.constant 1.000000e+00 : f32
    %10 = vector.broadcast %cst : f32 to vector<128x128xf32>
    %11 = arith.addf %10, %9 : vector<128x128xf32>
    %12 = arith.divf %10, %11 : vector<128x128xf32>
    %13 = arith.mulf %7, %12 : vector<128x128xf32>
    %14 = arith.truncf %13 : vector<128x128xf32> to vector<128x128xbf16>
    %c0_5 = arith.constant 0 : index
    %c0_6 = arith.constant 0 : index
    %15 = vector.load %arg4[%c0_5, %c0_6] : memref<128x128xbf16, #tpu.memory_space<vmem>>, vector<128x128xbf16>
    tpu.vector_store %arg4[%c0_5, %c0_6], %14 {strides = array<i32>} : memref<128x128xbf16, #tpu.memory_space<vmem>>, vector<128x128xbf16>,
    return
  }
  func.func @transform_0(%arg0: i32) -> (i32, i32) {
    %c0_i32 = arith.constant 0 : i32
    %c0_i32_0 = arith.constant 0 : i32
    return %arg0, %c0_i32 : i32, i32
  }
  func.func @transform_1(%arg0: i32) -> (i32, i32) {
    %c0_i32 = arith.constant 0 : i32
    %c0_i32_0 = arith.constant 0 : i32
    %c0_i32_1 = arith.constant 0 : i32
    return %c0_i32, %c0_i32_0 : i32, i32
  }
  func.func @transform_2(%arg0: i32) -> (i32, i32) {
    %c0_i32 = arith.constant 0 : i32
    %c0_i32_0 = arith.constant 0 : i32
    %c0_i32_1 = arith.constant 0 : i32
    return %c0_i32, %c0_i32_0 : i32, i32
  }
  func.func @transform_3(%arg0: i32) -> (i32, i32) {
    %c0_i32 = arith.constant 0 : i32
    %c0_i32_0 = arith.constant 0 : i32
    return %arg0, %c0_i32 : i32, i32
  }
}

module attributes {stable_mosaic.version = 11 : i64} {
  func.func @_mm_stats_k1_kernel(%arg0: i32, %arg1: i32, %arg2: memref<128x128xbf16, #tpu.memory_space<vmem>>, %arg3: memref<128x128xbf16, #tpu.memory_space<vmem>>, %arg4: memref<128x128xbf16, #tpu.memory_space<vmem>>, %arg5: memref<1x2x128xf32, #tpu.memory_space<vmem>>) attributes {dimension_semantics = [#tpu.dimension_semantics<parallel>, #tpu.dimension_semantics<parallel>], iteration_bounds = array<i64: 1, 1>, scalar_prefetch = 0 : i64, scratch_operands = 0 : i64, tpu.core_type = #tpu.core_type<tc>, window_params = [{transform_indices = @transform_0, window_bounds = array<i64: 128, 128>}, {transform_indices = @transform_1, window_bounds = array<i64: 128, 128>}, {transform_indices = @transform_2, window_bounds = array<i64: 128, 128>}, {transform_indices = @transform_3, window_bounds = array<i64: 1, 2, 128>}]} {
    %c0 = arith.constant 0 : index
    %c0_0 = arith.constant 0 : index
    %0 = vector.load %arg2[%c0, %c0_0] : memref<128x128xbf16, #tpu.memory_space<vmem>>, vector<128x128xbf16>
    %c0_1 = arith.constant 0 : index
    %c0_2 = arith.constant 0 : index
    %1 = vector.load %arg3[%c0_1, %c0_2] : memref<128x128xbf16, #tpu.memory_space<vmem>>, vector<128x128xbf16>
    %cst = arith.constant dense<0.000000e+00> : vector<128x128xf32>
    %2 = tpu.matmul %0, %1, %cst {dimension_numbers = #tpu.dot_dimension_numbers<[1], [0], [0], [1], [0, 0, 1, 1], [], []>} : vector<128x128xbf16>, vector<128x128xbf16>, vector<128x128xf32> -> vector<128x128xf32>
    %3 = arith.truncf %2 : vector<128x128xf32> to vector<128x128xbf16>
    %c0_3 = arith.constant 0 : index
    %c0_4 = arith.constant 0 : index
    %4 = vector.load %arg4[%c0_3, %c0_4] : memref<128x128xbf16, #tpu.memory_space<vmem>>, vector<128x128xbf16>
    tpu.vector_store %arg4[%c0_3, %c0_4], %3 {strides = array<i32>} : memref<128x128xbf16, #tpu.memory_space<vmem>>, vector<128x128xbf16>,
    %cst_5 = arith.constant dense<0.000000e+00> : vector<128xf32>
    %5 = vector.multi_reduction <add>, %2, %cst_5 [0] : vector<128x128xf32> to vector<128xf32>
    %6 = vector.shape_cast %5 : vector<128xf32> to vector<1x128xf32>
    %c0_6 = arith.constant 0 : index
    %c0_7 = arith.constant 0 : index
    %c0_8 = arith.constant 0 : index
    %7 = vector.load %arg5[%c0_6, %c0_7, %c0_8] : memref<1x2x128xf32, #tpu.memory_space<vmem>>, vector<1x1x128xf32>
    %8 = vector.shape_cast %7 : vector<1x1x128xf32> to vector<1x128xf32>
    %9 = vector.shape_cast %6 : vector<1x128xf32> to vector<1x1x128xf32>
    tpu.vector_store %arg5[%c0_6, %c0_7, %c0_8], %9 {strides = array<i32>} : memref<1x2x128xf32, #tpu.memory_space<vmem>>, vector<1x1x128xf32>,
    %10 = arith.mulf %2, %2 : vector<128x128xf32>
    %cst_9 = arith.constant dense<0.000000e+00> : vector<128xf32>
    %11 = vector.multi_reduction <add>, %10, %cst_9 [0] : vector<128x128xf32> to vector<128xf32>
    %12 = vector.shape_cast %11 : vector<128xf32> to vector<1x128xf32>
    %c0_10 = arith.constant 0 : index
    %c1 = arith.constant 1 : index
    %c0_11 = arith.constant 0 : index
    %13 = vector.load %arg5[%c0_10, %c1, %c0_11] : memref<1x2x128xf32, #tpu.memory_space<vmem>>, vector<1x1x128xf32>
    %14 = vector.shape_cast %13 : vector<1x1x128xf32> to vector<1x128xf32>
    %15 = vector.shape_cast %12 : vector<1x128xf32> to vector<1x1x128xf32>
    tpu.vector_store %arg5[%c0_10, %c1, %c0_11], %15 {strides = array<i32>} : memref<1x2x128xf32, #tpu.memory_space<vmem>>, vector<1x1x128xf32>,
    return
  }
  func.func @transform_0(%arg0: i32, %arg1: i32) -> (i32, i32) {
    %c0_i32 = arith.constant 0 : i32
    %c0_i32_0 = arith.constant 0 : i32
    return %arg0, %c0_i32 : i32, i32
  }
  func.func @transform_1(%arg0: i32, %arg1: i32) -> (i32, i32) {
    %c0_i32 = arith.constant 0 : i32
    %c0_i32_0 = arith.constant 0 : i32
    return %c0_i32, %arg1 : i32, i32
  }
  func.func @transform_2(%arg0: i32, %arg1: i32) -> (i32, i32) {
    %c0_i32 = arith.constant 0 : i32
    return %arg0, %arg1 : i32, i32
  }
  func.func @transform_3(%arg0: i32, %arg1: i32) -> (i32, i32, i32) {
    %c0_i32 = arith.constant 0 : i32
    %c0_i32_0 = arith.constant 0 : i32
    return %arg0, %c0_i32, %arg1 : i32, i32, i32
  }
}

module attributes {stable_mosaic.version = 11 : i64} {
  func.func @_dw_s1_kernel(%arg0: i32, %arg1: memref<1x8x8x128xbf16, #tpu.memory_space<vmem>>, %arg2: memref<1x128xf32, #tpu.memory_space<vmem>>, %arg3: memref<1x128xf32, #tpu.memory_space<vmem>>, %arg4: memref<9x128xf32, #tpu.memory_space<vmem>>, %arg5: memref<1x8x8x128xbf16, #tpu.memory_space<vmem>>, %arg6: memref<1x2x128xf32, #tpu.memory_space<vmem>>, %arg7: memref<10x24x128xf32, #tpu.memory_space<vmem>>) attributes {dimension_semantics = [#tpu.dimension_semantics<parallel>], iteration_bounds = array<i64: 2>, scalar_prefetch = 0 : i64, scratch_operands = 1 : i64, tpu.core_type = #tpu.core_type<tc>, window_params = [{transform_indices = @transform_0, window_bounds = array<i64: 1, 8, 8, 128>}, {pipeline_mode = #tpu.pipeline_mode<synchronous>, transform_indices = @transform_1, window_bounds = array<i64: 1, 128>}, {pipeline_mode = #tpu.pipeline_mode<synchronous>, transform_indices = @transform_2, window_bounds = array<i64: 1, 128>}, {pipeline_mode = #tpu.pipeline_mode<synchronous>, transform_indices = @transform_3, window_bounds = array<i64: 9, 128>}, {transform_indices = @transform_4, window_bounds = array<i64: 1, 8, 8, 128>}, {transform_indices = @transform_5, window_bounds = array<i64: 1, 2, 128>}]} {
    %cst = arith.constant 0.000000e+00 : f32
    %0 = vector.broadcast %cst : f32 to vector<10x24x128xf32>
    %c0 = arith.constant 0 : index
    %c0_0 = arith.constant 0 : index
    %c0_1 = arith.constant 0 : index
    %1 = vector.load %arg7[%c0, %c0_0, %c0_1] : memref<10x24x128xf32, #tpu.memory_space<vmem>>, vector<10x24x128xf32>
    tpu.vector_store %arg7[%c0, %c0_0, %c0_1], %0 {strides = array<i32>} : memref<10x24x128xf32, #tpu.memory_space<vmem>>, vector<10x24x128xf32>,
    %c0_2 = arith.constant 0 : index
    %c0_3 = arith.constant 0 : index
    %c0_4 = arith.constant 0 : index
    %c0_5 = arith.constant 0 : index
    %2 = vector.load %arg1[%c0_2, %c0_3, %c0_4, %c0_5] : memref<1x8x8x128xbf16, #tpu.memory_space<vmem>>, vector<1x8x8x128xbf16>
    %3 = vector.shape_cast %2 : vector<1x8x8x128xbf16> to vector<8x8x128xbf16>
    %4 = arith.extf %3 : vector<8x8x128xbf16> to vector<8x8x128xf32>
    %c1 = arith.constant 1 : index
    %c8 = arith.constant 8 : index
    %c0_6 = arith.constant 0 : index
    %5 = vector.load %arg7[%c1, %c8, %c0_6] : memref<10x24x128xf32, #tpu.memory_space<vmem>>, vector<8x8x128xf32>
    tpu.vector_store %arg7[%c1, %c8, %c0_6], %4 {strides = array<i32>} : memref<10x24x128xf32, #tpu.memory_space<vmem>>, vector<8x8x128xf32>,
    %cst_7 = arith.constant 0.000000e+00 : f32
    %6 = vector.broadcast %cst_7 : f32 to vector<8x8x128xf32>
    %c0_8 = arith.constant 0 : index
    %c7 = arith.constant 7 : index
    %c0_9 = arith.constant 0 : index
    %7 = vector.load %arg7[%c0_8, %c7, %c0_9] : memref<10x24x128xf32, #tpu.memory_space<vmem>>, vector<8x8x128xf32>
    %c0_10 = arith.constant 0 : index
    %c0_11 = arith.constant 0 : index
    %8 = vector.load %arg4[%c0_10, %c0_11] : memref<9x128xf32, #tpu.memory_space<vmem>>, vector<1x128xf32>
    %9 = vector.shape_cast %8 : vector<1x128xf32> to vector<128xf32>
    %10 = vector.shape_cast %9 : vector<128xf32> to vector<1x1x128xf32>
    %11 = vector.broadcast %10 : vector<1x1x128xf32> to vector<8x8x128xf32>
    %12 = arith.mulf %7, %11 : vector<8x8x128xf32>
    %13 = arith.addf %6, %12 : vector<8x8x128xf32>
    %c0_12 = arith.constant 0 : index
    %c8_13 = arith.constant 8 : index
    %c0_14 = arith.constant 0 : index
    %14 = vector.load %arg7[%c0_12, %c8_13, %c0_14] : memref<10x24x128xf32, #tpu.memory_space<vmem>>, vector<8x8x128xf32>
    %c1_15 = arith.constant 1 : index
    %c0_16 = arith.constant 0 : index
    %15 = vector.load %arg4[%c1_15, %c0_16] : memref<9x128xf32, #tpu.memory_space<vmem>>, vector<1x128xf32>
    %16 = vector.shape_cast %15 : vector<1x128xf32> to vector<128xf32>
    %17 = vector.shape_cast %16 : vector<128xf32> to vector<1x1x128xf32>
    %18 = vector.broadcast %17 : vector<1x1x128xf32> to vector<8x8x128xf32>
    %19 = arith.mulf %14, %18 : vector<8x8x128xf32>
    %20 = arith.addf %13, %19 : vector<8x8x128xf32>
    %c0_17 = arith.constant 0 : index
    %c9 = arith.constant 9 : index
    %c0_18 = arith.constant 0 : index
    %21 = vector.load %arg7[%c0_17, %c9, %c0_18] : memref<10x24x128xf32, #tpu.memory_space<vmem>>, vector<8x8x128xf32>
    %c2 = arith.constant 2 : index
    %c0_19 = arith.constant 0 : index
    %22 = vector.load %arg4[%c2, %c0_19] : memref<9x128xf32, #tpu.memory_space<vmem>>, vector<1x128xf32>
    %23 = vector.shape_cast %22 : vector<1x128xf32> to vector<128xf32>
    %24 = vector.shape_cast %23 : vector<128xf32> to vector<1x1x128xf32>
    %25 = vector.broadcast %24 : vector<1x1x128xf32> to vector<8x8x128xf32>
    %26 = arith.mulf %21, %25 : vector<8x8x128xf32>
    %27 = arith.addf %20, %26 : vector<8x8x128xf32>
    %c1_20 = arith.constant 1 : index
    %c7_21 = arith.constant 7 : index
    %c0_22 = arith.constant 0 : index
    %28 = vector.load %arg7[%c1_20, %c7_21, %c0_22] : memref<10x24x128xf32, #tpu.memory_space<vmem>>, vector<8x8x128xf32>
    %c3 = arith.constant 3 : index
    %c0_23 = arith.constant 0 : index
    %29 = vector.load %arg4[%c3, %c0_23] : memref<9x128xf32, #tpu.memory_space<vmem>>, vector<1x128xf32>
    %30 = vector.shape_cast %29 : vector<1x128xf32> to vector<128xf32>
    %31 = vector.shape_cast %30 : vector<128xf32> to vector<1x1x128xf32>
    %32 = vector.broadcast %31 : vector<1x1x128xf32> to vector<8x8x128xf32>
    %33 = arith.mulf %28, %32 : vector<8x8x128xf32>
    %34 = arith.addf %27, %33 : vector<8x8x128xf32>
    %c1_24 = arith.constant 1 : index
    %c8_25 = arith.constant 8 : index
    %c0_26 = arith.constant 0 : index
    %35 = vector.load %arg7[%c1_24, %c8_25, %c0_26] : memref<10x24x128xf32, #tpu.memory_space<vmem>>, vector<8x8x128xf32>
    %c4 = arith.constant 4 : index
    %c0_27 = arith.constant 0 : index
    %36 = vector.load %arg4[%c4, %c0_27] : memref<9x128xf32, #tpu.memory_space<vmem>>, vector<1x128xf32>
    %37 = vector.shape_cast %36 : vector<1x128xf32> to vector<128xf32>
    %38 = vector.shape_cast %37 : vector<128xf32> to vector<1x1x128xf32>
    %39 = vector.broadcast %38 : vector<1x1x128xf32> to vector<8x8x128xf32>
    %40 = arith.mulf %35, %39 : vector<8x8x128xf32>
    %41 = arith.addf %34, %40 : vector<8x8x128xf32>
    %c1_28 = arith.constant 1 : index
    %c9_29 = arith.constant 9 : index
    %c0_30 = arith.constant 0 : index
    %42 = vector.load %arg7[%c1_28, %c9_29, %c0_30] : memref<10x24x128xf32, #tpu.memory_space<vmem>>, vector<8x8x128xf32>
    %c5 = arith.constant 5 : index
    %c0_31 = arith.constant 0 : index
    %43 = vector.load %arg4[%c5, %c0_31] : memref<9x128xf32, #tpu.memory_space<vmem>>, vector<1x128xf32>
    %44 = vector.shape_cast %43 : vector<1x128xf32> to vector<128xf32>
    %45 = vector.shape_cast %44 : vector<128xf32> to vector<1x1x128xf32>
    %46 = vector.broadcast %45 : vector<1x1x128xf32> to vector<8x8x128xf32>
    %47 = arith.mulf %42, %46 : vector<8x8x128xf32>
    %48 = arith.addf %41, %47 : vector<8x8x128xf32>
    %c2_32 = arith.constant 2 : index
    %c7_33 = arith.constant 7 : index
    %c0_34 = arith.constant 0 : index
    %49 = vector.load %arg7[%c2_32, %c7_33, %c0_34] : memref<10x24x128xf32, #tpu.memory_space<vmem>>, vector<8x8x128xf32>
    %c6 = arith.constant 6 : index
    %c0_35 = arith.constant 0 : index
    %50 = vector.load %arg4[%c6, %c0_35] : memref<9x128xf32, #tpu.memory_space<vmem>>, vector<1x128xf32>
    %51 = vector.shape_cast %50 : vector<1x128xf32> to vector<128xf32>
    %52 = vector.shape_cast %51 : vector<128xf32> to vector<1x1x128xf32>
    %53 = vector.broadcast %52 : vector<1x1x128xf32> to vector<8x8x128xf32>
    %54 = arith.mulf %49, %53 : vector<8x8x128xf32>
    %55 = arith.addf %48, %54 : vector<8x8x128xf32>
    %c2_36 = arith.constant 2 : index
    %c8_37 = arith.constant 8 : index
    %c0_38 = arith.constant 0 : index
    %56 = vector.load %arg7[%c2_36, %c8_37, %c0_38] : memref<10x24x128xf32, #tpu.memory_space<vmem>>, vector<8x8x128xf32>
    %c7_39 = arith.constant 7 : index
    %c0_40 = arith.constant 0 : index
    %57 = vector.load %arg4[%c7_39, %c0_40] : memref<9x128xf32, #tpu.memory_space<vmem>>, vector<1x128xf32>
    %58 = vector.shape_cast %57 : vector<1x128xf32> to vector<128xf32>
    %59 = vector.shape_cast %58 : vector<128xf32> to vector<1x1x128xf32>
    %60 = vector.broadcast %59 : vector<1x1x128xf32> to vector<8x8x128xf32>
    %61 = arith.mulf %56, %60 : vector<8x8x128xf32>
    %62 = arith.addf %55, %61 : vector<8x8x128xf32>
    %c2_41 = arith.constant 2 : index
    %c9_42 = arith.constant 9 : index
    %c0_43 = arith.constant 0 : index
    %63 = vector.load %arg7[%c2_41, %c9_42, %c0_43] : memref<10x24x128xf32, #tpu.memory_space<vmem>>, vector<8x8x128xf32>
    %c8_44 = arith.constant 8 : index
    %c0_45 = arith.constant 0 : index
    %64 = vector.load %arg4[%c8_44, %c0_45] : memref<9x128xf32, #tpu.memory_space<vmem>>, vector<1x128xf32>
    %65 = vector.shape_cast %64 : vector<1x128xf32> to vector<128xf32>
    %66 = vector.shape_cast %65 : vector<128xf32> to vector<1x1x128xf32>
    %67 = vector.broadcast %66 : vector<1x1x128xf32> to vector<8x8x128xf32>
    %68 = arith.mulf %63, %67 : vector<8x8x128xf32>
    %69 = arith.addf %62, %68 : vector<8x8x128xf32>
    %70 = arith.truncf %69 : vector<8x8x128xf32> to vector<8x8x128xbf16>
    %c0_46 = arith.constant 0 : index
    %c0_47 = arith.constant 0 : index
    %c0_48 = arith.constant 0 : index
    %c0_49 = arith.constant 0 : index
    %71 = vector.load %arg5[%c0_46, %c0_47, %c0_48, %c0_49] : memref<1x8x8x128xbf16, #tpu.memory_space<vmem>>, vector<1x8x8x128xbf16>
    %72 = vector.shape_cast %71 : vector<1x8x8x128xbf16> to vector<8x8x128xbf16>
    %73 = vector.shape_cast %70 : vector<8x8x128xbf16> to vector<1x8x8x128xbf16>
    tpu.vector_store %arg5[%c0_46, %c0_47, %c0_48, %c0_49], %73 {strides = array<i32>} : memref<1x8x8x128xbf16, #tpu.memory_space<vmem>>, vector<1x8x8x128xbf16>,
    %74 = vector.shape_cast %69 : vector<8x8x128xf32> to vector<64x128xf32>
    %cst_50 = arith.constant dense<0.000000e+00> : vector<128xf32>
    %75 = vector.multi_reduction <add>, %74, %cst_50 [0] : vector<64x128xf32> to vector<128xf32>
    %76 = vector.shape_cast %75 : vector<128xf32> to vector<1x128xf32>
    %c0_51 = arith.constant 0 : index
    %c0_52 = arith.constant 0 : index
    %c0_53 = arith.constant 0 : index
    %77 = vector.load %arg6[%c0_51, %c0_52, %c0_53] : memref<1x2x128xf32, #tpu.memory_space<vmem>>, vector<1x1x128xf32>
    %78 = vector.shape_cast %77 : vector<1x1x128xf32> to vector<1x128xf32>
    %79 = vector.shape_cast %76 : vector<1x128xf32> to vector<1x1x128xf32>
    tpu.vector_store %arg6[%c0_51, %c0_52, %c0_53], %79 {strides = array<i32>} : memref<1x2x128xf32, #tpu.memory_space<vmem>>, vector<1x1x128xf32>,
    %80 = arith.mulf %74, %74 : vector<64x128xf32>
    %cst_54 = arith.constant dense<0.000000e+00> : vector<128xf32>
    %81 = vector.multi_reduction <add>, %80, %cst_54 [0] : vector<64x128xf32> to vector<128xf32>
    %82 = vector.shape_cast %81 : vector<128xf32> to vector<1x128xf32>
    %c0_55 = arith.constant 0 : index
    %c1_56 = arith.constant 1 : index
    %c0_57 = arith.constant 0 : index
    %83 = vector.load %arg6[%c0_55, %c1_56, %c0_57] : memref<1x2x128xf32, #tpu.memory_space<vmem>>, vector<1x1x128xf32>
    %84 = vector.shape_cast %83 : vector<1x1x128xf32> to vector<1x128xf32>
    %85 = vector.shape_cast %82 : vector<1x128xf32> to vector<1x1x128xf32>
    tpu.vector_store %arg6[%c0_55, %c1_56, %c0_57], %85 {strides = array<i32>} : memref<1x2x128xf32, #tpu.memory_space<vmem>>, vector<1x1x128xf32>,
    return
  }
  func.func @transform_0(%arg0: i32) -> (i32, i32, i32, i32) {
    %c0_i32 = arith.constant 0 : i32
    %c0_i32_0 = arith.constant 0 : i32
    %c0_i32_1 = arith.constant 0 : i32
    %c0_i32_2 = arith.constant 0 : i32
    return %arg0, %c0_i32, %c0_i32_0, %c0_i32_1 : i32, i32, i32, i32
  }
  func.func @transform_1(%arg0: i32) -> (i32, i32) {
    %c0_i32 = arith.constant 0 : i32
    %c0_i32_0 = arith.constant 0 : i32
    %c0_i32_1 = arith.constant 0 : i32
    return %c0_i32, %c0_i32_0 : i32, i32
  }
  func.func @transform_2(%arg0: i32) -> (i32, i32) {
    %c0_i32 = arith.constant 0 : i32
    %c0_i32_0 = arith.constant 0 : i32
    %c0_i32_1 = arith.constant 0 : i32
    return %c0_i32, %c0_i32_0 : i32, i32
  }
  func.func @transform_3(%arg0: i32) -> (i32, i32) {
    %c0_i32 = arith.constant 0 : i32
    %c0_i32_0 = arith.constant 0 : i32
    %c0_i32_1 = arith.constant 0 : i32
    return %c0_i32, %c0_i32_0 : i32, i32
  }
  func.func @transform_4(%arg0: i32) -> (i32, i32, i32, i32) {
    %c0_i32 = arith.constant 0 : i32
    %c0_i32_0 = arith.constant 0 : i32
    %c0_i32_1 = arith.constant 0 : i32
    %c0_i32_2 = arith.constant 0 : i32
    return %arg0, %c0_i32, %c0_i32_0, %c0_i32_1 : i32, i32, i32, i32
  }
  func.func @transform_5(%arg0: i32) -> (i32, i32, i32) {
    %c0_i32 = arith.constant 0 : i32
    %c0_i32_0 = arith.constant 0 : i32
    %c0_i32_1 = arith.constant 0 : i32
    return %arg0, %c0_i32, %c0_i32_0 : i32, i32, i32
  }
}

module attributes {stable_mosaic.version = 11 : i64} {
  func.func @_se_bn_swish_kernel(%arg0: i32, %arg1: memref<1x64x128xbf16, #tpu.memory_space<vmem>>, %arg2: memref<1x128xf32, #tpu.memory_space<vmem>>, %arg3: memref<1x128xf32, #tpu.memory_space<vmem>>, %arg4: memref<128x8xf32, #tpu.memory_space<vmem>>, %arg5: memref<1x8xf32, #tpu.memory_space<vmem>>, %arg6: memref<8x128xf32, #tpu.memory_space<vmem>>, %arg7: memref<1x128xf32, #tpu.memory_space<vmem>>, %arg8: memref<1x64x128xbf16, #tpu.memory_space<vmem>>) attributes {dimension_semantics = [#tpu.dimension_semantics<parallel>], iteration_bounds = array<i64: 2>, scalar_prefetch = 0 : i64, scratch_operands = 0 : i64, tpu.core_type = #tpu.core_type<tc>, window_params = [{transform_indices = @transform_0, window_bounds = array<i64: 1, 64, 128>}, {pipeline_mode = #tpu.pipeline_mode<synchronous>, transform_indices = @transform_1, window_bounds = array<i64: 1, 128>}, {pipeline_mode = #tpu.pipeline_mode<synchronous>, transform_indices = @transform_2, window_bounds = array<i64: 1, 128>}, {pipeline_mode = #tpu.pipeline_mode<synchronous>, transform_indices = @transform_3, window_bounds = array<i64: 128, 8>}, {pipeline_mode = #tpu.pipeline_mode<synchronous>, transform_indices = @transform_4, window_bounds = array<i64: 1, 8>}, {pipeline_mode = #tpu.pipeline_mode<synchronous>, transform_indices = @transform_5, window_bounds = array<i64: 8, 128>}, {pipeline_mode = #tpu.pipeline_mode<synchronous>, transform_indices = @transform_6, window_bounds = array<i64: 1, 128>}, {transform_indices = @transform_7, window_bounds = array<i64: 1, 64, 128>}]} {
    %c0 = arith.constant 0 : index
    %c0_0 = arith.constant 0 : index
    %c0_1 = arith.constant 0 : index
    %0 = vector.load %arg1[%c0, %c0_0, %c0_1] : memref<1x64x128xbf16, #tpu.memory_space<vmem>>, vector<1x64x128xbf16>
    %1 = vector.shape_cast %0 : vector<1x64x128xbf16> to vector<64x128xbf16>
    %2 = arith.extf %1 : vector<64x128xbf16> to vector<64x128xf32>
    %c0_2 = arith.constant 0 : index
    %c0_3 = arith.constant 0 : index
    %3 = vector.load %arg2[%c0_2, %c0_3] : memref<1x128xf32, #tpu.memory_space<vmem>>, vector<1x128xf32>
    %4 = vector.broadcast %3 : vector<1x128xf32> to vector<64x128xf32>
    %5 = arith.mulf %2, %4 : vector<64x128xf32>
    %c0_4 = arith.constant 0 : index
    %c0_5 = arith.constant 0 : index
    %6 = vector.load %arg3[%c0_4, %c0_5] : memref<1x128xf32, #tpu.memory_space<vmem>>, vector<1x128xf32>
    %7 = vector.broadcast %6 : vector<1x128xf32> to vector<64x128xf32>
    %8 = arith.addf %5, %7 : vector<64x128xf32>
    %9 = arith.negf %8 : vector<64x128xf32>
    %10 = math.exp %9 : vector<64x128xf32>
    %cst = arith.constant 1.000000e+00 : f32
    %11 = vector.broadcast %cst : f32 to vector<64x128xf32>
    %12 = arith.addf %11, %10 : vector<64x128xf32>
    %13 = arith.divf %11, %12 : vector<64x128xf32>
    %14 = arith.mulf %8, %13 : vector<64x128xf32>
    %cst_6 = arith.constant dense<0.000000e+00> : vector<128xf32>
    %15 = vector.multi_reduction <add>, %14, %cst_6 [0] : vector<64x128xf32> to vector<128xf32>
    %16 = vector.shape_cast %15 : vector<128xf32> to vector<1x128xf32>
    %cst_7 = arith.constant 6.400000e+01 : f32
    %17 = vector.broadcast %cst_7 : f32 to vector<1x128xf32>
    %18 = arith.divf %16, %17 : vector<1x128xf32>
    %c0_8 = arith.constant 0 : index
    %c0_9 = arith.constant 0 : index
    %19 = vector.load %arg4[%c0_8, %c0_9] : memref<128x8xf32, #tpu.memory_space<vmem>>, vector<128x8xf32>
    %cst_10 = arith.constant dense<0.000000e+00> : vector<1x8xf32>
    %20 = tpu.matmul %18, %19, %cst_10 {dimension_numbers = #tpu.dot_dimension_numbers<[1], [0], [0], [1], [0, 0, 1, 1], [], []>} : vector<1x128xf32>, vector<128x8xf32>, vector<1x8xf32> -> vector<1x8xf32>
    %c0_11 = arith.constant 0 : index
    %c0_12 = arith.constant 0 : index
    %21 = vector.load %arg5[%c0_11, %c0_12] : memref<1x8xf32, #tpu.memory_space<vmem>>, vector<1x8xf32>
    %22 = arith.addf %20, %21 : vector<1x8xf32>
    %23 = arith.negf %22 : vector<1x8xf32>
    %24 = math.exp %23 : vector<1x8xf32>
    %cst_13 = arith.constant 1.000000e+00 : f32
    %25 = vector.broadcast %cst_13 : f32 to vector<1x8xf32>
    %26 = arith.addf %25, %24 : vector<1x8xf32>
    %27 = arith.divf %25, %26 : vector<1x8xf32>
    %28 = arith.mulf %22, %27 : vector<1x8xf32>
    %c0_14 = arith.constant 0 : index
    %c0_15 = arith.constant 0 : index
    %29 = vector.load %arg6[%c0_14, %c0_15] : memref<8x128xf32, #tpu.memory_space<vmem>>, vector<8x128xf32>
    %cst_16 = arith.constant dense<0.000000e+00> : vector<1x128xf32>
    %30 = tpu.matmul %28, %29, %cst_16 {dimension_numbers = #tpu.dot_dimension_numbers<[1], [0], [0], [1], [0, 0, 1, 1], [], []>} : vector<1x8xf32>, vector<8x128xf32>, vector<1x128xf32> -> vector<1x128xf32>
    %c0_17 = arith.constant 0 : index
    %c0_18 = arith.constant 0 : index
    %31 = vector.load %arg7[%c0_17, %c0_18] : memref<1x128xf32, #tpu.memory_space<vmem>>, vector<1x128xf32>
    %32 = arith.addf %30, %31 : vector<1x128xf32>
    %33 = arith.negf %32 : vector<1x128xf32>
    %34 = math.exp %33 : vector<1x128xf32>
    %cst_19 = arith.constant 1.000000e+00 : f32
    %35 = vector.broadcast %cst_19 : f32 to vector<1x128xf32>
    %36 = arith.addf %35, %34 : vector<1x128xf32>
    %37 = arith.divf %35, %36 : vector<1x128xf32>
    %38 = vector.broadcast %37 : vector<1x128xf32> to vector<64x128xf32>
    %39 = arith.mulf %14, %38 : vector<64x128xf32>
    %40 = arith.truncf %39 : vector<64x128xf32> to vector<64x128xbf16>
    %c0_20 = arith.constant 0 : index
    %c0_21 = arith.constant 0 : index
    %c0_22 = arith.constant 0 : index
    %41 = vector.load %arg8[%c0_20, %c0_21, %c0_22] : memref<1x64x128xbf16, #tpu.memory_space<vmem>>, vector<1x64x128xbf16>
    %42 = vector.shape_cast %41 : vector<1x64x128xbf16> to vector<64x128xbf16>
    %43 = vector.shape_cast %40 : vector<64x128xbf16> to vector<1x64x128xbf16>
    tpu.vector_store %arg8[%c0_20, %c0_21, %c0_22], %43 {strides = array<i32>} : memref<1x64x128xbf16, #tpu.memory_space<vmem>>, vector<1x64x128xbf16>,
    return
  }
  func.func @transform_0(%arg0: i32) -> (i32, i32, i32) {
    %c0_i32 = arith.constant 0 : i32
    %c0_i32_0 = arith.constant 0 : i32
    %c0_i32_1 = arith.constant 0 : i32
    return %arg0, %c0_i32, %c0_i32_0 : i32, i32, i32
  }
  func.func @transform_1(%arg0: i32) -> (i32, i32) {
    %c0_i32 = arith.constant 0 : i32
    %c0_i32_0 = arith.constant 0 : i32
    %c0_i32_1 = arith.constant 0 : i32
    return %c0_i32, %c0_i32_0 : i32, i32
  }
  func.func @transform_2(%arg0: i32) -> (i32, i32) {
    %c0_i32 = arith.constant 0 : i32
    %c0_i32_0 = arith.constant 0 : i32
    %c0_i32_1 = arith.constant 0 : i32
    return %c0_i32, %c0_i32_0 : i32, i32
  }
  func.func @transform_3(%arg0: i32) -> (i32, i32) {
    %c0_i32 = arith.constant 0 : i32
    %c0_i32_0 = arith.constant 0 : i32
    %c0_i32_1 = arith.constant 0 : i32
    return %c0_i32, %c0_i32_0 : i32, i32
  }
  func.func @transform_4(%arg0: i32) -> (i32, i32) {
    %c0_i32 = arith.constant 0 : i32
    %c0_i32_0 = arith.constant 0 : i32
    %c0_i32_1 = arith.constant 0 : i32
    return %c0_i32, %c0_i32_0 : i32, i32
  }
  func.func @transform_5(%arg0: i32) -> (i32, i32) {
    %c0_i32 = arith.constant 0 : i32
    %c0_i32_0 = arith.constant 0 : i32
    %c0_i32_1 = arith.constant 0 : i32
    return %c0_i32, %c0_i32_0 : i32, i32
  }
  func.func @transform_6(%arg0: i32) -> (i32, i32) {
    %c0_i32 = arith.constant 0 : i32
    %c0_i32_0 = arith.constant 0 : i32
    %c0_i32_1 = arith.constant 0 : i32
    return %c0_i32, %c0_i32_0 : i32, i32
  }
  func.func @transform_7(%arg0: i32) -> (i32, i32, i32) {
    %c0_i32 = arith.constant 0 : i32
    %c0_i32_0 = arith.constant 0 : i32
    %c0_i32_1 = arith.constant 0 : i32
    return %arg0, %c0_i32, %c0_i32_0 : i32, i32, i32
  }
}

module attributes {stable_mosaic.version = 11 : i64} {
  func.func @_bn_act_kernel(%arg0: i32, %arg1: memref<128x128xbf16, #tpu.memory_space<vmem>>, %arg2: memref<1x128xf32, #tpu.memory_space<vmem>>, %arg3: memref<1x128xf32, #tpu.memory_space<vmem>>, %arg4: memref<128x128xbf16, #tpu.memory_space<vmem>>) attributes {dimension_semantics = [#tpu.dimension_semantics<parallel>], iteration_bounds = array<i64: 1>, scalar_prefetch = 0 : i64, scratch_operands = 0 : i64, tpu.core_type = #tpu.core_type<tc>, window_params = [{transform_indices = @transform_0, window_bounds = array<i64: 128, 128>}, {pipeline_mode = #tpu.pipeline_mode<synchronous>, transform_indices = @transform_1, window_bounds = array<i64: 1, 128>}, {pipeline_mode = #tpu.pipeline_mode<synchronous>, transform_indices = @transform_2, window_bounds = array<i64: 1, 128>}, {transform_indices = @transform_3, window_bounds = array<i64: 128, 128>}]} {
    %c0 = arith.constant 0 : index
    %c0_0 = arith.constant 0 : index
    %0 = vector.load %arg1[%c0, %c0_0] : memref<128x128xbf16, #tpu.memory_space<vmem>>, vector<128x128xbf16>
    %1 = arith.extf %0 : vector<128x128xbf16> to vector<128x128xf32>
    %c0_1 = arith.constant 0 : index
    %c0_2 = arith.constant 0 : index
    %2 = vector.load %arg2[%c0_1, %c0_2] : memref<1x128xf32, #tpu.memory_space<vmem>>, vector<1x128xf32>
    %3 = vector.broadcast %2 : vector<1x128xf32> to vector<128x128xf32>
    %4 = arith.mulf %1, %3 : vector<128x128xf32>
    %c0_3 = arith.constant 0 : index
    %c0_4 = arith.constant 0 : index
    %5 = vector.load %arg3[%c0_3, %c0_4] : memref<1x128xf32, #tpu.memory_space<vmem>>, vector<1x128xf32>
    %6 = vector.broadcast %5 : vector<1x128xf32> to vector<128x128xf32>
    %7 = arith.addf %4, %6 : vector<128x128xf32>
    %8 = arith.truncf %7 : vector<128x128xf32> to vector<128x128xbf16>
    %c0_5 = arith.constant 0 : index
    %c0_6 = arith.constant 0 : index
    %9 = vector.load %arg4[%c0_5, %c0_6] : memref<128x128xbf16, #tpu.memory_space<vmem>>, vector<128x128xbf16>
    tpu.vector_store %arg4[%c0_5, %c0_6], %8 {strides = array<i32>} : memref<128x128xbf16, #tpu.memory_space<vmem>>, vector<128x128xbf16>,
    return
  }
  func.func @transform_0(%arg0: i32) -> (i32, i32) {
    %c0_i32 = arith.constant 0 : i32
    %c0_i32_0 = arith.constant 0 : i32
    return %arg0, %c0_i32 : i32, i32
  }
  func.func @transform_1(%arg0: i32) -> (i32, i32) {
    %c0_i32 = arith.constant 0 : i32
    %c0_i32_0 = arith.constant 0 : i32
    %c0_i32_1 = arith.constant 0 : i32
    return %c0_i32, %c0_i32_0 : i32, i32
  }
  func.func @transform_2(%arg0: i32) -> (i32, i32) {
    %c0_i32 = arith.constant 0 : i32
    %c0_i32_0 = arith.constant 0 : i32
    %c0_i32_1 = arith.constant 0 : i32
    return %c0_i32, %c0_i32_0 : i32, i32
  }
  func.func @transform_3(%arg0: i32) -> (i32, i32) {
    %c0_i32 = arith.constant 0 : i32
    %c0_i32_0 = arith.constant 0 : i32
    return %arg0, %c0_i32 : i32, i32
  }
}

module attributes {stable_mosaic.version = 11 : i64} {
  func.func @_mm_stats_k1_kernel(%arg0: i32, %arg1: i32, %arg2: memref<32x128xbf16, #tpu.memory_space<vmem>>, %arg3: memref<128x128xbf16, #tpu.memory_space<vmem>>, %arg4: memref<32x128xbf16, #tpu.memory_space<vmem>>, %arg5: memref<1x2x128xf32, #tpu.memory_space<vmem>>) attributes {dimension_semantics = [#tpu.dimension_semantics<parallel>, #tpu.dimension_semantics<parallel>], iteration_bounds = array<i64: 1, 1>, scalar_prefetch = 0 : i64, scratch_operands = 0 : i64, tpu.core_type = #tpu.core_type<tc>, window_params = [{transform_indices = @transform_0, window_bounds = array<i64: 32, 128>}, {transform_indices = @transform_1, window_bounds = array<i64: 128, 128>}, {transform_indices = @transform_2, window_bounds = array<i64: 32, 128>}, {transform_indices = @transform_3, window_bounds = array<i64: 1, 2, 128>}]} {
    %c0 = arith.constant 0 : index
    %c0_0 = arith.constant 0 : index
    %0 = vector.load %arg2[%c0, %c0_0] : memref<32x128xbf16, #tpu.memory_space<vmem>>, vector<32x128xbf16>
    %c0_1 = arith.constant 0 : index
    %c0_2 = arith.constant 0 : index
    %1 = vector.load %arg3[%c0_1, %c0_2] : memref<128x128xbf16, #tpu.memory_space<vmem>>, vector<128x128xbf16>
    %cst = arith.constant dense<0.000000e+00> : vector<32x128xf32>
    %2 = tpu.matmul %0, %1, %cst {dimension_numbers = #tpu.dot_dimension_numbers<[1], [0], [0], [1], [0, 0, 1, 1], [], []>} : vector<32x128xbf16>, vector<128x128xbf16>, vector<32x128xf32> -> vector<32x128xf32>
    %3 = arith.truncf %2 : vector<32x128xf32> to vector<32x128xbf16>
    %c0_3 = arith.constant 0 : index
    %c0_4 = arith.constant 0 : index
    %4 = vector.load %arg4[%c0_3, %c0_4] : memref<32x128xbf16, #tpu.memory_space<vmem>>, vector<32x128xbf16>
    tpu.vector_store %arg4[%c0_3, %c0_4], %3 {strides = array<i32>} : memref<32x128xbf16, #tpu.memory_space<vmem>>, vector<32x128xbf16>,
    %cst_5 = arith.constant dense<0.000000e+00> : vector<128xf32>
    %5 = vector.multi_reduction <add>, %2, %cst_5 [0] : vector<32x128xf32> to vector<128xf32>
    %6 = vector.shape_cast %5 : vector<128xf32> to vector<1x128xf32>
    %c0_6 = arith.constant 0 : index
    %c0_7 = arith.constant 0 : index
    %c0_8 = arith.constant 0 : index
    %7 = vector.load %arg5[%c0_6, %c0_7, %c0_8] : memref<1x2x128xf32, #tpu.memory_space<vmem>>, vector<1x1x128xf32>
    %8 = vector.shape_cast %7 : vector<1x1x128xf32> to vector<1x128xf32>
    %9 = vector.shape_cast %6 : vector<1x128xf32> to vector<1x1x128xf32>
    tpu.vector_store %arg5[%c0_6, %c0_7, %c0_8], %9 {strides = array<i32>} : memref<1x2x128xf32, #tpu.memory_space<vmem>>, vector<1x1x128xf32>,
    %10 = arith.mulf %2, %2 : vector<32x128xf32>
    %cst_9 = arith.constant dense<0.000000e+00> : vector<128xf32>
    %11 = vector.multi_reduction <add>, %10, %cst_9 [0] : vector<32x128xf32> to vector<128xf32>
    %12 = vector.shape_cast %11 : vector<128xf32> to vector<1x128xf32>
    %c0_10 = arith.constant 0 : index
    %c1 = arith.constant 1 : index
    %c0_11 = arith.constant 0 : index
    %13 = vector.load %arg5[%c0_10, %c1, %c0_11] : memref<1x2x128xf32, #tpu.memory_space<vmem>>, vector<1x1x128xf32>
    %14 = vector.shape_cast %13 : vector<1x1x128xf32> to vector<1x128xf32>
    %15 = vector.shape_cast %12 : vector<1x128xf32> to vector<1x1x128xf32>
    tpu.vector_store %arg5[%c0_10, %c1, %c0_11], %15 {strides = array<i32>} : memref<1x2x128xf32, #tpu.memory_space<vmem>>, vector<1x1x128xf32>,
    return
  }
  func.func @transform_0(%arg0: i32, %arg1: i32) -> (i32, i32) {
    %c0_i32 = arith.constant 0 : i32
    %c0_i32_0 = arith.constant 0 : i32
    return %arg0, %c0_i32 : i32, i32
  }
  func.func @transform_1(%arg0: i32, %arg1: i32) -> (i32, i32) {
    %c0_i32 = arith.constant 0 : i32
    %c0_i32_0 = arith.constant 0 : i32
    return %c0_i32, %arg1 : i32, i32
  }
  func.func @transform_2(%arg0: i32, %arg1: i32) -> (i32, i32) {
    %c0_i32 = arith.constant 0 : i32
    return %arg0, %arg1 : i32, i32
  }
  func.func @transform_3(%arg0: i32, %arg1: i32) -> (i32, i32, i32) {
    %c0_i32 = arith.constant 0 : i32
    %c0_i32_0 = arith.constant 0 : i32
    return %arg0, %c0_i32, %arg1 : i32, i32, i32
  }
}

module attributes {stable_mosaic.version = 11 : i64} {
  func.func @_dw_phase_kernel(%arg0: i32, %arg1: memref<1x4x5x5x128xbf16, #tpu.memory_space<vmem>>, %arg2: memref<4x5x5x1xf32, #tpu.memory_space<vmem>>, %arg3: memref<1x128xf32, #tpu.memory_space<vmem>>, %arg4: memref<1x128xf32, #tpu.memory_space<vmem>>, %arg5: memref<9x128xf32, #tpu.memory_space<vmem>>, %arg6: memref<1x4x4x128xbf16, #tpu.memory_space<vmem>>, %arg7: memref<1x2x128xf32, #tpu.memory_space<vmem>>, %arg8: memref<4x5x5x128xf32, #tpu.memory_space<vmem>>) attributes {dimension_semantics = [#tpu.dimension_semantics<parallel>], iteration_bounds = array<i64: 2>, scalar_prefetch = 0 : i64, scratch_operands = 1 : i64, tpu.core_type = #tpu.core_type<tc>, window_params = [{transform_indices = @transform_0, window_bounds = array<i64: 1, 4, 5, 5, 128>}, {pipeline_mode = #tpu.pipeline_mode<synchronous>, transform_indices = @transform_1, window_bounds = array<i64: 4, 5, 5, 1>}, {pipeline_mode = #tpu.pipeline_mode<synchronous>, transform_indices = @transform_2, window_bounds = array<i64: 1, 128>}, {pipeline_mode = #tpu.pipeline_mode<synchronous>, transform_indices = @transform_3, window_bounds = array<i64: 1, 128>}, {pipeline_mode = #tpu.pipeline_mode<synchronous>, transform_indices = @transform_4, window_bounds = array<i64: 9, 128>}, {transform_indices = @transform_5, window_bounds = array<i64: 1, 4, 4, 128>}, {transform_indices = @transform_6, window_bounds = array<i64: 1, 2, 128>}]} {
    %c0 = arith.constant 0 : index
    %c0_0 = arith.constant 0 : index
    %c0_1 = arith.constant 0 : index
    %c0_2 = arith.constant 0 : index
    %c0_3 = arith.constant 0 : index
    %0 = vector.load %arg1[%c0, %c0_0, %c0_1, %c0_2, %c0_3] : memref<1x4x5x5x128xbf16, #tpu.memory_space<vmem>>, vector<1x1x5x5x128xbf16>
    %1 = vector.shape_cast %0 : vector<1x1x5x5x128xbf16> to vector<5x5x128xbf16>
    %2 = arith.extf %1 : vector<5x5x128xbf16> to vector<5x5x128xf32>
    %c0_4 = arith.constant 0 : index
    %c0_5 = arith.constant 0 : index
    %3 = vector.load %arg3[%c0_4, %c0_5] : memref<1x128xf32, #tpu.memory_space<vmem>>, vector<1x128xf32>
    %4 = vector.shape_cast %3 : vector<1x128xf32> to vector<128xf32>
    %5 = vector.shape_cast %4 : vector<128xf32> to vector<1x1x128xf32>
    %6 = vector.broadcast %5 : vector<1x1x128xf32> to vector<5x5x128xf32>
    %7 = arith.mulf %2, %6 : vector<5x5x128xf32>
    %c0_6 = arith.constant 0 : index
    %c0_7 = arith.constant 0 : index
    %8 = vector.load %arg4[%c0_6, %c0_7] : memref<1x128xf32, #tpu.memory_space<vmem>>, vector<1x128xf32>
    %9 = vector.shape_cast %8 : vector<1x128xf32> to vector<128xf32>
    %10 = vector.shape_cast %9 : vector<128xf32> to vector<1x1x128xf32>
    %11 = vector.broadcast %10 : vector<1x1x128xf32> to vector<5x5x128xf32>
    %12 = arith.addf %7, %11 : vector<5x5x128xf32>
    %13 = arith.negf %12 : vector<5x5x128xf32>
    %14 = math.exp %13 : vector<5x5x128xf32>
    %cst = arith.constant 1.000000e+00 : f32
    %15 = vector.broadcast %cst : f32 to vector<5x5x128xf32>
    %16 = arith.addf %15, %14 : vector<5x5x128xf32>
    %17 = arith.divf %15, %16 : vector<5x5x128xf32>
    %18 = arith.mulf %12, %17 : vector<5x5x128xf32>
    %c0_8 = arith.constant 0 : index
    %c0_9 = arith.constant 0 : index
    %c0_10 = arith.constant 0 : index
    %c0_11 = arith.constant 0 : index
    %19 = vector.load %arg2[%c0_8, %c0_9, %c0_10, %c0_11] : memref<4x5x5x1xf32, #tpu.memory_space<vmem>>, vector<1x5x5x1xf32>
    %20 = vector.shape_cast %19 : vector<1x5x5x1xf32> to vector<5x5x1xf32>
    %21 = vector.broadcast %20 : vector<5x5x1xf32> to vector<5x5x128xf32>
    %22 = arith.mulf %18, %21 : vector<5x5x128xf32>
    %c0_12 = arith.constant 0 : index
    %c0_13 = arith.constant 0 : index
    %c0_14 = arith.constant 0 : index
    %c0_15 = arith.constant 0 : index
    %23 = vector.load %arg8[%c0_12, %c0_13, %c0_14, %c0_15] : memref<4x5x5x128xf32, #tpu.memory_space<vmem>>, vector<1x5x5x128xf32>
    %24 = vector.shape_cast %23 : vector<1x5x5x128xf32> to vector<5x5x128xf32>
    %25 = vector.shape_cast %22 : vector<5x5x128xf32> to vector<1x5x5x128xf32>
    tpu.vector_store %arg8[%c0_12, %c0_13, %c0_14, %c0_15], %25 {strides = array<i32>} : memref<4x5x5x128xf32, #tpu.memory_space<vmem>>, vector<1x5x5x128xf32>,
    %c0_16 = arith.constant 0 : index
    %c1 = arith.constant 1 : index
    %c0_17 = arith.constant 0 : index
    %c0_18 = arith.constant 0 : index
    %c0_19 = arith.constant 0 : index
    %26 = vector.load %arg1[%c0_16, %c1, %c0_17, %c0_18, %c0_19] : memref<1x4x5x5x128xbf16, #tpu.memory_space<vmem>>, vector<1x1x5x5x128xbf16>
    %27 = vector.shape_cast %26 : vector<1x1x5x5x128xbf16> to vector<5x5x128xbf16>
    %28 = arith.extf %27 : vector<5x5x128xbf16> to vector<5x5x128xf32>
    %c0_20 = arith.constant 0 : index
    %c0_21 = arith.constant 0 : index
    %29 = vector.load %arg3[%c0_20, %c0_21] : memref<1x128xf32, #tpu.memory_space<vmem>>, vector<1x128xf32>
    %30 = vector.shape_cast %29 : vector<1x128xf32> to vector<128xf32>
    %31 = vector.shape_cast %30 : vector<128xf32> to vector<1x1x128xf32>
    %32 = vector.broadcast %31 : vector<1x1x128xf32> to vector<5x5x128xf32>
    %33 = arith.mulf %28, %32 : vector<5x5x128xf32>
    %c0_22 = arith.constant 0 : index
    %c0_23 = arith.constant 0 : index
    %34 = vector.load %arg4[%c0_22, %c0_23] : memref<1x128xf32, #tpu.memory_space<vmem>>, vector<1x128xf32>
    %35 = vector.shape_cast %34 : vector<1x128xf32> to vector<128xf32>
    %36 = vector.shape_cast %35 : vector<128xf32> to vector<1x1x128xf32>
    %37 = vector.broadcast %36 : vector<1x1x128xf32> to vector<5x5x128xf32>
    %38 = arith.addf %33, %37 : vector<5x5x128xf32>
    %39 = arith.negf %38 : vector<5x5x128xf32>
    %40 = math.exp %39 : vector<5x5x128xf32>
    %cst_24 = arith.constant 1.000000e+00 : f32
    %41 = vector.broadcast %cst_24 : f32 to vector<5x5x128xf32>
    %42 = arith.addf %41, %40 : vector<5x5x128xf32>
    %43 = arith.divf %41, %42 : vector<5x5x128xf32>
    %44 = arith.mulf %38, %43 : vector<5x5x128xf32>
    %c1_25 = arith.constant 1 : index
    %c0_26 = arith.constant 0 : index
    %c0_27 = arith.constant 0 : index
    %c0_28 = arith.constant 0 : index
    %45 = vector.load %arg2[%c1_25, %c0_26, %c0_27, %c0_28] : memref<4x5x5x1xf32, #tpu.memory_space<vmem>>, vector<1x5x5x1xf32>
    %46 = vector.shape_cast %45 : vector<1x5x5x1xf32> to vector<5x5x1xf32>
    %47 = vector.broadcast %46 : vector<5x5x1xf32> to vector<5x5x128xf32>
    %48 = arith.mulf %44, %47 : vector<5x5x128xf32>
    %c1_29 = arith.constant 1 : index
    %c0_30 = arith.constant 0 : index
    %c0_31 = arith.constant 0 : index
    %c0_32 = arith.constant 0 : index
    %49 = vector.load %arg8[%c1_29, %c0_30, %c0_31, %c0_32] : memref<4x5x5x128xf32, #tpu.memory_space<vmem>>, vector<1x5x5x128xf32>
    %50 = vector.shape_cast %49 : vector<1x5x5x128xf32> to vector<5x5x128xf32>
    %51 = vector.shape_cast %48 : vector<5x5x128xf32> to vector<1x5x5x128xf32>
    tpu.vector_store %arg8[%c1_29, %c0_30, %c0_31, %c0_32], %51 {strides = array<i32>} : memref<4x5x5x128xf32, #tpu.memory_space<vmem>>, vector<1x5x5x128xf32>,
    %c0_33 = arith.constant 0 : index
    %c2 = arith.constant 2 : index
    %c0_34 = arith.constant 0 : index
    %c0_35 = arith.constant 0 : index
    %c0_36 = arith.constant 0 : index
    %52 = vector.load %arg1[%c0_33, %c2, %c0_34, %c0_35, %c0_36] : memref<1x4x5x5x128xbf16, #tpu.memory_space<vmem>>, vector<1x1x5x5x128xbf16>
    %53 = vector.shape_cast %52 : vector<1x1x5x5x128xbf16> to vector<5x5x128xbf16>
    %54 = arith.extf %53 : vector<5x5x128xbf16> to vector<5x5x128xf32>
    %c0_37 = arith.constant 0 : index
    %c0_38 = arith.constant 0 : index
    %55 = vector.load %arg3[%c0_37, %c0_38] : memref<1x128xf32, #tpu.memory_space<vmem>>, vector<1x128xf32>
    %56 = vector.shape_cast %55 : vector<1x128xf32> to vector<128xf32>
    %57 = vector.shape_cast %56 : vector<128xf32> to vector<1x1x128xf32>
    %58 = vector.broadcast %57 : vector<1x1x128xf32> to vector<5x5x128xf32>
    %59 = arith.mulf %54, %58 : vector<5x5x128xf32>
    %c0_39 = arith.constant 0 : index
    %c0_40 = arith.constant 0 : index
    %60 = vector.load %arg4[%c0_39, %c0_40] : memref<1x128xf32, #tpu.memory_space<vmem>>, vector<1x128xf32>
    %61 = vector.shape_cast %60 : vector<1x128xf32> to vector<128xf32>
    %62 = vector.shape_cast %61 : vector<128xf32> to vector<1x1x128xf32>
    %63 = vector.broadcast %62 : vector<1x1x128xf32> to vector<5x5x128xf32>
    %64 = arith.addf %59, %63 : vector<5x5x128xf32>
    %65 = arith.negf %64 : vector<5x5x128xf32>
    %66 = math.exp %65 : vector<5x5x128xf32>
    %cst_41 = arith.constant 1.000000e+00 : f32
    %67 = vector.broadcast %cst_41 : f32 to vector<5x5x128xf32>
    %68 = arith.addf %67, %66 : vector<5x5x128xf32>
    %69 = arith.divf %67, %68 : vector<5x5x128xf32>
    %70 = arith.mulf %64, %69 : vector<5x5x128xf32>
    %c2_42 = arith.constant 2 : index
    %c0_43 = arith.constant 0 : index
    %c0_44 = arith.constant 0 : index
    %c0_45 = arith.constant 0 : index
    %71 = vector.load %arg2[%c2_42, %c0_43, %c0_44, %c0_45] : memref<4x5x5x1xf32, #tpu.memory_space<vmem>>, vector<1x5x5x1xf32>
    %72 = vector.shape_cast %71 : vector<1x5x5x1xf32> to vector<5x5x1xf32>
    %73 = vector.broadcast %72 : vector<5x5x1xf32> to vector<5x5x128xf32>
    %74 = arith.mulf %70, %73 : vector<5x5x128xf32>
    %c2_46 = arith.constant 2 : index
    %c0_47 = arith.constant 0 : index
    %c0_48 = arith.constant 0 : index
    %c0_49 = arith.constant 0 : index
    %75 = vector.load %arg8[%c2_46, %c0_47, %c0_48, %c0_49] : memref<4x5x5x128xf32, #tpu.memory_space<vmem>>, vector<1x5x5x128xf32>
    %76 = vector.shape_cast %75 : vector<1x5x5x128xf32> to vector<5x5x128xf32>
    %77 = vector.shape_cast %74 : vector<5x5x128xf32> to vector<1x5x5x128xf32>
    tpu.vector_store %arg8[%c2_46, %c0_47, %c0_48, %c0_49], %77 {strides = array<i32>} : memref<4x5x5x128xf32, #tpu.memory_space<vmem>>, vector<1x5x5x128xf32>,
    %c0_50 = arith.constant 0 : index
    %c3 = arith.constant 3 : index
    %c0_51 = arith.constant 0 : index
    %c0_52 = arith.constant 0 : index
    %c0_53 = arith.constant 0 : index
    %78 = vector.load %arg1[%c0_50, %c3, %c0_51, %c0_52, %c0_53] : memref<1x4x5x5x128xbf16, #tpu.memory_space<vmem>>, vector<1x1x5x5x128xbf16>
    %79 = vector.shape_cast %78 : vector<1x1x5x5x128xbf16> to vector<5x5x128xbf16>
    %80 = arith.extf %79 : vector<5x5x128xbf16> to vector<5x5x128xf32>
    %c0_54 = arith.constant 0 : index
    %c0_55 = arith.constant 0 : index
    %81 = vector.load %arg3[%c0_54, %c0_55] : memref<1x128xf32, #tpu.memory_space<vmem>>, vector<1x128xf32>
    %82 = vector.shape_cast %81 : vector<1x128xf32> to vector<128xf32>
    %83 = vector.shape_cast %82 : vector<128xf32> to vector<1x1x128xf32>
    %84 = vector.broadcast %83 : vector<1x1x128xf32> to vector<5x5x128xf32>
    %85 = arith.mulf %80, %84 : vector<5x5x128xf32>
    %c0_56 = arith.constant 0 : index
    %c0_57 = arith.constant 0 : index
    %86 = vector.load %arg4[%c0_56, %c0_57] : memref<1x128xf32, #tpu.memory_space<vmem>>, vector<1x128xf32>
    %87 = vector.shape_cast %86 : vector<1x128xf32> to vector<128xf32>
    %88 = vector.shape_cast %87 : vector<128xf32> to vector<1x1x128xf32>
    %89 = vector.broadcast %88 : vector<1x1x128xf32> to vector<5x5x128xf32>
    %90 = arith.addf %85, %89 : vector<5x5x128xf32>
    %91 = arith.negf %90 : vector<5x5x128xf32>
    %92 = math.exp %91 : vector<5x5x128xf32>
    %cst_58 = arith.constant 1.000000e+00 : f32
    %93 = vector.broadcast %cst_58 : f32 to vector<5x5x128xf32>
    %94 = arith.addf %93, %92 : vector<5x5x128xf32>
    %95 = arith.divf %93, %94 : vector<5x5x128xf32>
    %96 = arith.mulf %90, %95 : vector<5x5x128xf32>
    %c3_59 = arith.constant 3 : index
    %c0_60 = arith.constant 0 : index
    %c0_61 = arith.constant 0 : index
    %c0_62 = arith.constant 0 : index
    %97 = vector.load %arg2[%c3_59, %c0_60, %c0_61, %c0_62] : memref<4x5x5x1xf32, #tpu.memory_space<vmem>>, vector<1x5x5x1xf32>
    %98 = vector.shape_cast %97 : vector<1x5x5x1xf32> to vector<5x5x1xf32>
    %99 = vector.broadcast %98 : vector<5x5x1xf32> to vector<5x5x128xf32>
    %100 = arith.mulf %96, %99 : vector<5x5x128xf32>
    %c3_63 = arith.constant 3 : index
    %c0_64 = arith.constant 0 : index
    %c0_65 = arith.constant 0 : index
    %c0_66 = arith.constant 0 : index
    %101 = vector.load %arg8[%c3_63, %c0_64, %c0_65, %c0_66] : memref<4x5x5x128xf32, #tpu.memory_space<vmem>>, vector<1x5x5x128xf32>
    %102 = vector.shape_cast %101 : vector<1x5x5x128xf32> to vector<5x5x128xf32>
    %103 = vector.shape_cast %100 : vector<5x5x128xf32> to vector<1x5x5x128xf32>
    tpu.vector_store %arg8[%c3_63, %c0_64, %c0_65, %c0_66], %103 {strides = array<i32>} : memref<4x5x5x128xf32, #tpu.memory_space<vmem>>, vector<1x5x5x128xf32>,
    %cst_67 = arith.constant 0.000000e+00 : f32
    %104 = vector.broadcast %cst_67 : f32 to vector<4x4x128xf32>
    %c0_68 = arith.constant 0 : index
    %c0_69 = arith.constant 0 : index
    %c0_70 = arith.constant 0 : index
    %c0_71 = arith.constant 0 : index
    %105 = vector.load %arg8[%c0_68, %c0_69, %c0_70, %c0_71] : memref<4x5x5x128xf32, #tpu.memory_space<vmem>>, vector<1x4x4x128xf32>
    %106 = vector.shape_cast %105 : vector<1x4x4x128xf32> to vector<4x4x128xf32>
    %c0_72 = arith.constant 0 : index
    %c0_73 = arith.constant 0 : index
    %107 = vector.load %arg5[%c0_72, %c0_73] : memref<9x128xf32, #tpu.memory_space<vmem>>, vector<1x128xf32>
    %108 = vector.shape_cast %107 : vector<1x128xf32> to vector<128xf32>
    %109 = vector.shape_cast %108 : vector<128xf32> to vector<1x1x128xf32>
    %110 = vector.broadcast %109 : vector<1x1x128xf32> to vector<4x4x128xf32>
    %111 = arith.mulf %106, %110 : vector<4x4x128xf32>
    %112 = arith.addf %104, %111 : vector<4x4x128xf32>
    %c1_74 = arith.constant 1 : index
    %c0_75 = arith.constant 0 : index
    %c0_76 = arith.constant 0 : index
    %c0_77 = arith.constant 0 : index
    %113 = vector.load %arg8[%c1_74, %c0_75, %c0_76, %c0_77] : memref<4x5x5x128xf32, #tpu.memory_space<vmem>>, vector<1x4x4x128xf32>
    %114 = vector.shape_cast %113 : vector<1x4x4x128xf32> to vector<4x4x128xf32>
    %c1_78 = arith.constant 1 : index
    %c0_79 = arith.constant 0 : index
    %115 = vector.load %arg5[%c1_78, %c0_79] : memref<9x128xf32, #tpu.memory_space<vmem>>, vector<1x128xf32>
    %116 = vector.shape_cast %115 : vector<1x128xf32> to vector<128xf32>
    %117 = vector.shape_cast %116 : vector<128xf32> to vector<1x1x128xf32>
    %118 = vector.broadcast %117 : vector<1x1x128xf32> to vector<4x4x128xf32>
    %119 = arith.mulf %114, %118 : vector<4x4x128xf32>
    %120 = arith.addf %112, %119 : vector<4x4x128xf32>
    %c0_80 = arith.constant 0 : index
    %c0_81 = arith.constant 0 : index
    %c1_82 = arith.constant 1 : index
    %c0_83 = arith.constant 0 : index
    %121 = vector.load %arg8[%c0_80, %c0_81, %c1_82, %c0_83] : memref<4x5x5x128xf32, #tpu.memory_space<vmem>>, vector<1x4x4x128xf32>
    %122 = vector.shape_cast %121 : vector<1x4x4x128xf32> to vector<4x4x128xf32>
    %c2_84 = arith.constant 2 : index
    %c0_85 = arith.constant 0 : index
    %123 = vector.load %arg5[%c2_84, %c0_85] : memref<9x128xf32, #tpu.memory_space<vmem>>, vector<1x128xf32>
    %124 = vector.shape_cast %123 : vector<1x128xf32> to vector<128xf32>
    %125 = vector.shape_cast %124 : vector<128xf32> to vector<1x1x128xf32>
    %126 = vector.broadcast %125 : vector<1x1x128xf32> to vector<4x4x128xf32>
    %127 = arith.mulf %122, %126 : vector<4x4x128xf32>
    %128 = arith.addf %120, %127 : vector<4x4x128xf32>
    %c2_86 = arith.constant 2 : index
    %c0_87 = arith.constant 0 : index
    %c0_88 = arith.constant 0 : index
    %c0_89 = arith.constant 0 : index
    %129 = vector.load %arg8[%c2_86, %c0_87, %c0_88, %c0_89] : memref<4x5x5x128xf32, #tpu.memory_space<vmem>>, vector<1x4x4x128xf32>
    %130 = vector.shape_cast %129 : vector<1x4x4x128xf32> to vector<4x4x128xf32>
    %c3_90 = arith.constant 3 : index
    %c0_91 = arith.constant 0 : index
    %131 = vector.load %arg5[%c3_90, %c0_91] : memref<9x128xf32, #tpu.memory_space<vmem>>, vector<1x128xf32>
    %132 = vector.shape_cast %131 : vector<1x128xf32> to vector<128xf32>
    %133 = vector.shape_cast %132 : vector<128xf32> to vector<1x1x128xf32>
    %134 = vector.broadcast %133 : vector<1x1x128xf32> to vector<4x4x128xf32>
    %135 = arith.mulf %130, %134 : vector<4x4x128xf32>
    %136 = arith.addf %128, %135 : vector<4x4x128xf32>
    %c3_92 = arith.constant 3 : index
    %c0_93 = arith.constant 0 : index
    %c0_94 = arith.constant 0 : index
    %c0_95 = arith.constant 0 : index
    %137 = vector.load %arg8[%c3_92, %c0_93, %c0_94, %c0_95] : memref<4x5x5x128xf32, #tpu.memory_space<vmem>>, vector<1x4x4x128xf32>
    %138 = vector.shape_cast %137 : vector<1x4x4x128xf32> to vector<4x4x128xf32>
    %c4 = arith.constant 4 : index
    %c0_96 = arith.constant 0 : index
    %139 = vector.load %arg5[%c4, %c0_96] : memref<9x128xf32, #tpu.memory_space<vmem>>, vector<1x128xf32>
    %140 = vector.shape_cast %139 : vector<1x128xf32> to vector<128xf32>
    %141 = vector.shape_cast %140 : vector<128xf32> to vector<1x1x128xf32>
    %142 = vector.broadcast %141 : vector<1x1x128xf32> to vector<4x4x128xf32>
    %143 = arith.mulf %138, %142 : vector<4x4x128xf32>
    %144 = arith.addf %136, %143 : vector<4x4x128xf32>
    %c2_97 = arith.constant 2 : index
    %c0_98 = arith.constant 0 : index
    %c1_99 = arith.constant 1 : index
    %c0_100 = arith.constant 0 : index
    %145 = vector.load %arg8[%c2_97, %c0_98, %c1_99, %c0_100] : memref<4x5x5x128xf32, #tpu.memory_space<vmem>>, vector<1x4x4x128xf32>
    %146 = vector.shape_cast %145 : vector<1x4x4x128xf32> to vector<4x4x128xf32>
    %c5 = arith.constant 5 : index
    %c0_101 = arith.constant 0 : index
    %147 = vector.load %arg5[%c5, %c0_101] : memref<9x128xf32, #tpu.memory_space<vmem>>, vector<1x128xf32>
    %148 = vector.shape_cast %147 : vector<1x128xf32> to vector<128xf32>
    %149 = vector.shape_cast %148 : vector<128xf32> to vector<1x1x128xf32>
    %150 = vector.broadcast %149 : vector<1x1x128xf32> to vector<4x4x128xf32>
    %151 = arith.mulf %146, %150 : vector<4x4x128xf32>
    %152 = arith.addf %144, %151 : vector<4x4x128xf32>
    %c0_102 = arith.constant 0 : index
    %c1_103 = arith.constant 1 : index
    %c0_104 = arith.constant 0 : index
    %c0_105 = arith.constant 0 : index
    %153 = vector.load %arg8[%c0_102, %c1_103, %c0_104, %c0_105] : memref<4x5x5x128xf32, #tpu.memory_space<vmem>>, vector<1x4x4x128xf32>
    %154 = vector.shape_cast %153 : vector<1x4x4x128xf32> to vector<4x4x128xf32>
    %c6 = arith.constant 6 : index
    %c0_106 = arith.constant 0 : index
    %155 = vector.load %arg5[%c6, %c0_106] : memref<9x128xf32, #tpu.memory_space<vmem>>, vector<1x128xf32>
    %156 = vector.shape_cast %155 : vector<1x128xf32> to vector<128xf32>
    %157 = vector.shape_cast %156 : vector<128xf32> to vector<1x1x128xf32>
    %158 = vector.broadcast %157 : vector<1x1x128xf32> to vector<4x4x128xf32>
    %159 = arith.mulf %154, %158 : vector<4x4x128xf32>
    %160 = arith.addf %152, %159 : vector<4x4x128xf32>
    %c1_107 = arith.constant 1 : index
    %c1_108 = arith.constant 1 : index
    %c0_109 = arith.constant 0 : index
    %c0_110 = arith.constant 0 : index
    %161 = vector.load %arg8[%c1_107, %c1_108, %c0_109, %c0_110] : memref<4x5x5x128xf32, #tpu.memory_space<vmem>>, vector<1x4x4x128xf32>
    %162 = vector.shape_cast %161 : vector<1x4x4x128xf32> to vector<4x4x128xf32>
    %c7 = arith.constant 7 : index
    %c0_111 = arith.constant 0 : index
    %163 = vector.load %arg5[%c7, %c0_111] : memref<9x128xf32, #tpu.memory_space<vmem>>, vector<1x128xf32>
    %164 = vector.shape_cast %163 : vector<1x128xf32> to vector<128xf32>
    %165 = vector.shape_cast %164 : vector<128xf32> to vector<1x1x128xf32>
    %166 = vector.broadcast %165 : vector<1x1x128xf32> to vector<4x4x128xf32>
    %167 = arith.mulf %162, %166 : vector<4x4x128xf32>
    %168 = arith.addf %160, %167 : vector<4x4x128xf32>
    %c0_112 = arith.constant 0 : index
    %c1_113 = arith.constant 1 : index
    %c1_114 = arith.constant 1 : index
    %c0_115 = arith.constant 0 : index
    %169 = vector.load %arg8[%c0_112, %c1_113, %c1_114, %c0_115] : memref<4x5x5x128xf32, #tpu.memory_space<vmem>>, vector<1x4x4x128xf32>
    %170 = vector.shape_cast %169 : vector<1x4x4x128xf32> to vector<4x4x128xf32>
    %c8 = arith.constant 8 : index
    %c0_116 = arith.constant 0 : index
    %171 = vector.load %arg5[%c8, %c0_116] : memref<9x128xf32, #tpu.memory_space<vmem>>, vector<1x128xf32>
    %172 = vector.shape_cast %171 : vector<1x128xf32> to vector<128xf32>
    %173 = vector.shape_cast %172 : vector<128xf32> to vector<1x1x128xf32>
    %174 = vector.broadcast %173 : vector<1x1x128xf32> to vector<4x4x128xf32>
    %175 = arith.mulf %170, %174 : vector<4x4x128xf32>
    %176 = arith.addf %168, %175 : vector<4x4x128xf32>
    %177 = arith.truncf %176 : vector<4x4x128xf32> to vector<4x4x128xbf16>
    %c0_117 = arith.constant 0 : index
    %c0_118 = arith.constant 0 : index
    %c0_119 = arith.constant 0 : index
    %c0_120 = arith.constant 0 : index
    %178 = vector.load %arg6[%c0_117, %c0_118, %c0_119, %c0_120] : memref<1x4x4x128xbf16, #tpu.memory_space<vmem>>, vector<1x4x4x128xbf16>
    %179 = vector.shape_cast %178 : vector<1x4x4x128xbf16> to vector<4x4x128xbf16>
    %180 = vector.shape_cast %177 : vector<4x4x128xbf16> to vector<1x4x4x128xbf16>
    tpu.vector_store %arg6[%c0_117, %c0_118, %c0_119, %c0_120], %180 {strides = array<i32>} : memref<1x4x4x128xbf16, #tpu.memory_space<vmem>>, vector<1x4x4x128xbf16>,
    %181 = vector.shape_cast %176 : vector<4x4x128xf32> to vector<16x128xf32>
    %cst_121 = arith.constant dense<0.000000e+00> : vector<128xf32>
    %182 = vector.multi_reduction <add>, %181, %cst_121 [0] : vector<16x128xf32> to vector<128xf32>
    %183 = vector.shape_cast %182 : vector<128xf32> to vector<1x128xf32>
    %c0_122 = arith.constant 0 : index
    %c0_123 = arith.constant 0 : index
    %c0_124 = arith.constant 0 : index
    %184 = vector.load %arg7[%c0_122, %c0_123, %c0_124] : memref<1x2x128xf32, #tpu.memory_space<vmem>>, vector<1x1x128xf32>
    %185 = vector.shape_cast %184 : vector<1x1x128xf32> to vector<1x128xf32>
    %186 = vector.shape_cast %183 : vector<1x128xf32> to vector<1x1x128xf32>
    tpu.vector_store %arg7[%c0_122, %c0_123, %c0_124], %186 {strides = array<i32>} : memref<1x2x128xf32, #tpu.memory_space<vmem>>, vector<1x1x128xf32>,
    %187 = arith.mulf %181, %181 : vector<16x128xf32>
    %cst_125 = arith.constant dense<0.000000e+00> : vector<128xf32>
    %188 = vector.multi_reduction <add>, %187, %cst_125 [0] : vector<16x128xf32> to vector<128xf32>
    %189 = vector.shape_cast %188 : vector<128xf32> to vector<1x128xf32>
    %c0_126 = arith.constant 0 : index
    %c1_127 = arith.constant 1 : index
    %c0_128 = arith.constant 0 : index
    %190 = vector.load %arg7[%c0_126, %c1_127, %c0_128] : memref<1x2x128xf32, #tpu.memory_space<vmem>>, vector<1x1x128xf32>
    %191 = vector.shape_cast %190 : vector<1x1x128xf32> to vector<1x128xf32>
    %192 = vector.shape_cast %189 : vector<1x128xf32> to vector<1x1x128xf32>
    tpu.vector_store %arg7[%c0_126, %c1_127, %c0_128], %192 {strides = array<i32>} : memref<1x2x128xf32, #tpu.memory_space<vmem>>, vector<1x1x128xf32>,
    return
  }
  func.func @transform_0(%arg0: i32) -> (i32, i32, i32, i32, i32) {
    %c0_i32 = arith.constant 0 : i32
    %c0_i32_0 = arith.constant 0 : i32
    %c0_i32_1 = arith.constant 0 : i32
    %c0_i32_2 = arith.constant 0 : i32
    %c0_i32_3 = arith.constant 0 : i32
    return %arg0, %c0_i32, %c0_i32_0, %c0_i32_1, %c0_i32_2 : i32, i32, i32, i32, i32
  }
  func.func @transform_1(%arg0: i32) -> (i32, i32, i32, i32) {
    %c0_i32 = arith.constant 0 : i32
    %c0_i32_0 = arith.constant 0 : i32
    %c0_i32_1 = arith.constant 0 : i32
    %c0_i32_2 = arith.constant 0 : i32
    %c0_i32_3 = arith.constant 0 : i32
    return %c0_i32, %c0_i32_0, %c0_i32_1, %c0_i32_2 : i32, i32, i32, i32
  }
  func.func @transform_2(%arg0: i32) -> (i32, i32) {
    %c0_i32 = arith.constant 0 : i32
    %c0_i32_0 = arith.constant 0 : i32
    %c0_i32_1 = arith.constant 0 : i32
    return %c0_i32, %c0_i32_0 : i32, i32
  }
  func.func @transform_3(%arg0: i32) -> (i32, i32) {
    %c0_i32 = arith.constant 0 : i32
    %c0_i32_0 = arith.constant 0 : i32
    %c0_i32_1 = arith.constant 0 : i32
    return %c0_i32, %c0_i32_0 : i32, i32
  }
  func.func @transform_4(%arg0: i32) -> (i32, i32) {
    %c0_i32 = arith.constant 0 : i32
    %c0_i32_0 = arith.constant 0 : i32
    %c0_i32_1 = arith.constant 0 : i32
    return %c0_i32, %c0_i32_0 : i32, i32
  }
  func.func @transform_5(%arg0: i32) -> (i32, i32, i32, i32) {
    %c0_i32 = arith.constant 0 : i32
    %c0_i32_0 = arith.constant 0 : i32
    %c0_i32_1 = arith.constant 0 : i32
    %c0_i32_2 = arith.constant 0 : i32
    return %arg0, %c0_i32, %c0_i32_0, %c0_i32_1 : i32, i32, i32, i32
  }
  func.func @transform_6(%arg0: i32) -> (i32, i32, i32) {
    %c0_i32 = arith.constant 0 : i32
    %c0_i32_0 = arith.constant 0 : i32
    %c0_i32_1 = arith.constant 0 : i32
    return %arg0, %c0_i32, %c0_i32_0 : i32, i32, i32
  }
}

module attributes {stable_mosaic.version = 11 : i64} {
  func.func @_se_bn_swish_kernel(%arg0: i32, %arg1: memref<1x16x128xbf16, #tpu.memory_space<vmem>>, %arg2: memref<1x128xf32, #tpu.memory_space<vmem>>, %arg3: memref<1x128xf32, #tpu.memory_space<vmem>>, %arg4: memref<128x4xf32, #tpu.memory_space<vmem>>, %arg5: memref<1x4xf32, #tpu.memory_space<vmem>>, %arg6: memref<4x128xf32, #tpu.memory_space<vmem>>, %arg7: memref<1x128xf32, #tpu.memory_space<vmem>>, %arg8: memref<1x16x128xbf16, #tpu.memory_space<vmem>>) attributes {dimension_semantics = [#tpu.dimension_semantics<parallel>], iteration_bounds = array<i64: 2>, scalar_prefetch = 0 : i64, scratch_operands = 0 : i64, tpu.core_type = #tpu.core_type<tc>, window_params = [{transform_indices = @transform_0, window_bounds = array<i64: 1, 16, 128>}, {pipeline_mode = #tpu.pipeline_mode<synchronous>, transform_indices = @transform_1, window_bounds = array<i64: 1, 128>}, {pipeline_mode = #tpu.pipeline_mode<synchronous>, transform_indices = @transform_2, window_bounds = array<i64: 1, 128>}, {pipeline_mode = #tpu.pipeline_mode<synchronous>, transform_indices = @transform_3, window_bounds = array<i64: 128, 4>}, {pipeline_mode = #tpu.pipeline_mode<synchronous>, transform_indices = @transform_4, window_bounds = array<i64: 1, 4>}, {pipeline_mode = #tpu.pipeline_mode<synchronous>, transform_indices = @transform_5, window_bounds = array<i64: 4, 128>}, {pipeline_mode = #tpu.pipeline_mode<synchronous>, transform_indices = @transform_6, window_bounds = array<i64: 1, 128>}, {transform_indices = @transform_7, window_bounds = array<i64: 1, 16, 128>}]} {
    %c0 = arith.constant 0 : index
    %c0_0 = arith.constant 0 : index
    %c0_1 = arith.constant 0 : index
    %0 = vector.load %arg1[%c0, %c0_0, %c0_1] : memref<1x16x128xbf16, #tpu.memory_space<vmem>>, vector<1x16x128xbf16>
    %1 = vector.shape_cast %0 : vector<1x16x128xbf16> to vector<16x128xbf16>
    %2 = arith.extf %1 : vector<16x128xbf16> to vector<16x128xf32>
    %c0_2 = arith.constant 0 : index
    %c0_3 = arith.constant 0 : index
    %3 = vector.load %arg2[%c0_2, %c0_3] : memref<1x128xf32, #tpu.memory_space<vmem>>, vector<1x128xf32>
    %4 = vector.broadcast %3 : vector<1x128xf32> to vector<16x128xf32>
    %5 = arith.mulf %2, %4 : vector<16x128xf32>
    %c0_4 = arith.constant 0 : index
    %c0_5 = arith.constant 0 : index
    %6 = vector.load %arg3[%c0_4, %c0_5] : memref<1x128xf32, #tpu.memory_space<vmem>>, vector<1x128xf32>
    %7 = vector.broadcast %6 : vector<1x128xf32> to vector<16x128xf32>
    %8 = arith.addf %5, %7 : vector<16x128xf32>
    %9 = arith.negf %8 : vector<16x128xf32>
    %10 = math.exp %9 : vector<16x128xf32>
    %cst = arith.constant 1.000000e+00 : f32
    %11 = vector.broadcast %cst : f32 to vector<16x128xf32>
    %12 = arith.addf %11, %10 : vector<16x128xf32>
    %13 = arith.divf %11, %12 : vector<16x128xf32>
    %14 = arith.mulf %8, %13 : vector<16x128xf32>
    %cst_6 = arith.constant dense<0.000000e+00> : vector<128xf32>
    %15 = vector.multi_reduction <add>, %14, %cst_6 [0] : vector<16x128xf32> to vector<128xf32>
    %16 = vector.shape_cast %15 : vector<128xf32> to vector<1x128xf32>
    %cst_7 = arith.constant 1.600000e+01 : f32
    %17 = vector.broadcast %cst_7 : f32 to vector<1x128xf32>
    %18 = arith.divf %16, %17 : vector<1x128xf32>
    %c0_8 = arith.constant 0 : index
    %c0_9 = arith.constant 0 : index
    %19 = vector.load %arg4[%c0_8, %c0_9] : memref<128x4xf32, #tpu.memory_space<vmem>>, vector<128x4xf32>
    %cst_10 = arith.constant dense<0.000000e+00> : vector<1x4xf32>
    %20 = tpu.matmul %18, %19, %cst_10 {dimension_numbers = #tpu.dot_dimension_numbers<[1], [0], [0], [1], [0, 0, 1, 1], [], []>} : vector<1x128xf32>, vector<128x4xf32>, vector<1x4xf32> -> vector<1x4xf32>
    %c0_11 = arith.constant 0 : index
    %c0_12 = arith.constant 0 : index
    %21 = vector.load %arg5[%c0_11, %c0_12] : memref<1x4xf32, #tpu.memory_space<vmem>>, vector<1x4xf32>
    %22 = arith.addf %20, %21 : vector<1x4xf32>
    %23 = arith.negf %22 : vector<1x4xf32>
    %24 = math.exp %23 : vector<1x4xf32>
    %cst_13 = arith.constant 1.000000e+00 : f32
    %25 = vector.broadcast %cst_13 : f32 to vector<1x4xf32>
    %26 = arith.addf %25, %24 : vector<1x4xf32>
    %27 = arith.divf %25, %26 : vector<1x4xf32>
    %28 = arith.mulf %22, %27 : vector<1x4xf32>
    %c0_14 = arith.constant 0 : index
    %c0_15 = arith.constant 0 : index
    %29 = vector.load %arg6[%c0_14, %c0_15] : memref<4x128xf32, #tpu.memory_space<vmem>>, vector<4x128xf32>
    %cst_16 = arith.constant dense<0.000000e+00> : vector<1x128xf32>
    %30 = tpu.matmul %28, %29, %cst_16 {dimension_numbers = #tpu.dot_dimension_numbers<[1], [0], [0], [1], [0, 0, 1, 1], [], []>} : vector<1x4xf32>, vector<4x128xf32>, vector<1x128xf32> -> vector<1x128xf32>
    %c0_17 = arith.constant 0 : index
    %c0_18 = arith.constant 0 : index
    %31 = vector.load %arg7[%c0_17, %c0_18] : memref<1x128xf32, #tpu.memory_space<vmem>>, vector<1x128xf32>
    %32 = arith.addf %30, %31 : vector<1x128xf32>
    %33 = arith.negf %32 : vector<1x128xf32>
    %34 = math.exp %33 : vector<1x128xf32>
    %cst_19 = arith.constant 1.000000e+00 : f32
    %35 = vector.broadcast %cst_19 : f32 to vector<1x128xf32>
    %36 = arith.addf %35, %34 : vector<1x128xf32>
    %37 = arith.divf %35, %36 : vector<1x128xf32>
    %38 = vector.broadcast %37 : vector<1x128xf32> to vector<16x128xf32>
    %39 = arith.mulf %14, %38 : vector<16x128xf32>
    %40 = arith.truncf %39 : vector<16x128xf32> to vector<16x128xbf16>
    %c0_20 = arith.constant 0 : index
    %c0_21 = arith.constant 0 : index
    %c0_22 = arith.constant 0 : index
    %41 = vector.load %arg8[%c0_20, %c0_21, %c0_22] : memref<1x16x128xbf16, #tpu.memory_space<vmem>>, vector<1x16x128xbf16>
    %42 = vector.shape_cast %41 : vector<1x16x128xbf16> to vector<16x128xbf16>
    %43 = vector.shape_cast %40 : vector<16x128xbf16> to vector<1x16x128xbf16>
    tpu.vector_store %arg8[%c0_20, %c0_21, %c0_22], %43 {strides = array<i32>} : memref<1x16x128xbf16, #tpu.memory_space<vmem>>, vector<1x16x128xbf16>,
    return
  }
  func.func @transform_0(%arg0: i32) -> (i32, i32, i32) {
    %c0_i32 = arith.constant 0 : i32
    %c0_i32_0 = arith.constant 0 : i32
    %c0_i32_1 = arith.constant 0 : i32
    return %arg0, %c0_i32, %c0_i32_0 : i32, i32, i32
  }
  func.func @transform_1(%arg0: i32) -> (i32, i32) {
    %c0_i32 = arith.constant 0 : i32
    %c0_i32_0 = arith.constant 0 : i32
    %c0_i32_1 = arith.constant 0 : i32
    return %c0_i32, %c0_i32_0 : i32, i32
  }
  func.func @transform_2(%arg0: i32) -> (i32, i32) {
    %c0_i32 = arith.constant 0 : i32
    %c0_i32_0 = arith.constant 0 : i32
    %c0_i32_1 = arith.constant 0 : i32
    return %c0_i32, %c0_i32_0 : i32, i32
  }
  func.func @transform_3(%arg0: i32) -> (i32, i32) {
    %c0_i32 = arith.constant 0 : i32
    %c0_i32_0 = arith.constant 0 : i32
    %c0_i32_1 = arith.constant 0 : i32
    return %c0_i32, %c0_i32_0 : i32, i32
  }
  func.func @transform_4(%arg0: i32) -> (i32, i32) {
    %c0_i32 = arith.constant 0 : i32
    %c0_i32_0 = arith.constant 0 : i32
    %c0_i32_1 = arith.constant 0 : i32
    return %c0_i32, %c0_i32_0 : i32, i32
  }
  func.func @transform_5(%arg0: i32) -> (i32, i32) {
    %c0_i32 = arith.constant 0 : i32
    %c0_i32_0 = arith.constant 0 : i32
    %c0_i32_1 = arith.constant 0 : i32
    return %c0_i32, %c0_i32_0 : i32, i32
  }
  func.func @transform_6(%arg0: i32) -> (i32, i32) {
    %c0_i32 = arith.constant 0 : i32
    %c0_i32_0 = arith.constant 0 : i32
    %c0_i32_1 = arith.constant 0 : i32
    return %c0_i32, %c0_i32_0 : i32, i32
  }
  func.func @transform_7(%arg0: i32) -> (i32, i32, i32) {
    %c0_i32 = arith.constant 0 : i32
    %c0_i32_0 = arith.constant 0 : i32
    %c0_i32_1 = arith.constant 0 : i32
    return %arg0, %c0_i32, %c0_i32_0 : i32, i32, i32
  }
}

module attributes {stable_mosaic.version = 11 : i64} {
  func.func @_bn_act_kernel(%arg0: i32, %arg1: memref<32x128xbf16, #tpu.memory_space<vmem>>, %arg2: memref<1x128xf32, #tpu.memory_space<vmem>>, %arg3: memref<1x128xf32, #tpu.memory_space<vmem>>, %arg4: memref<32x128xbf16, #tpu.memory_space<vmem>>) attributes {dimension_semantics = [#tpu.dimension_semantics<parallel>], iteration_bounds = array<i64: 1>, scalar_prefetch = 0 : i64, scratch_operands = 0 : i64, tpu.core_type = #tpu.core_type<tc>, window_params = [{transform_indices = @transform_0, window_bounds = array<i64: 32, 128>}, {pipeline_mode = #tpu.pipeline_mode<synchronous>, transform_indices = @transform_1, window_bounds = array<i64: 1, 128>}, {pipeline_mode = #tpu.pipeline_mode<synchronous>, transform_indices = @transform_2, window_bounds = array<i64: 1, 128>}, {transform_indices = @transform_3, window_bounds = array<i64: 32, 128>}]} {
    %c0 = arith.constant 0 : index
    %c0_0 = arith.constant 0 : index
    %0 = vector.load %arg1[%c0, %c0_0] : memref<32x128xbf16, #tpu.memory_space<vmem>>, vector<32x128xbf16>
    %1 = arith.extf %0 : vector<32x128xbf16> to vector<32x128xf32>
    %c0_1 = arith.constant 0 : index
    %c0_2 = arith.constant 0 : index
    %2 = vector.load %arg2[%c0_1, %c0_2] : memref<1x128xf32, #tpu.memory_space<vmem>>, vector<1x128xf32>
    %3 = vector.broadcast %2 : vector<1x128xf32> to vector<32x128xf32>
    %4 = arith.mulf %1, %3 : vector<32x128xf32>
    %c0_3 = arith.constant 0 : index
    %c0_4 = arith.constant 0 : index
    %5 = vector.load %arg3[%c0_3, %c0_4] : memref<1x128xf32, #tpu.memory_space<vmem>>, vector<1x128xf32>
    %6 = vector.broadcast %5 : vector<1x128xf32> to vector<32x128xf32>
    %7 = arith.addf %4, %6 : vector<32x128xf32>
    %8 = arith.truncf %7 : vector<32x128xf32> to vector<32x128xbf16>
    %c0_5 = arith.constant 0 : index
    %c0_6 = arith.constant 0 : index
    %9 = vector.load %arg4[%c0_5, %c0_6] : memref<32x128xbf16, #tpu.memory_space<vmem>>, vector<32x128xbf16>
    tpu.vector_store %arg4[%c0_5, %c0_6], %8 {strides = array<i32>} : memref<32x128xbf16, #tpu.memory_space<vmem>>, vector<32x128xbf16>,
    return
  }
  func.func @transform_0(%arg0: i32) -> (i32, i32) {
    %c0_i32 = arith.constant 0 : i32
    %c0_i32_0 = arith.constant 0 : i32
    return %arg0, %c0_i32 : i32, i32
  }
  func.func @transform_1(%arg0: i32) -> (i32, i32) {
    %c0_i32 = arith.constant 0 : i32
    %c0_i32_0 = arith.constant 0 : i32
    %c0_i32_1 = arith.constant 0 : i32
    return %c0_i32, %c0_i32_0 : i32, i32
  }
  func.func @transform_2(%arg0: i32) -> (i32, i32) {
    %c0_i32 = arith.constant 0 : i32
    %c0_i32_0 = arith.constant 0 : i32
    %c0_i32_1 = arith.constant 0 : i32
    return %c0_i32, %c0_i32_0 : i32, i32
  }
  func.func @transform_3(%arg0: i32) -> (i32, i32) {
    %c0_i32 = arith.constant 0 : i32
    %c0_i32_0 = arith.constant 0 : i32
    return %arg0, %c0_i32 : i32, i32
  }
}

module attributes {stable_mosaic.version = 11 : i64} {
  func.func @_dw_s1_kernel(%arg0: i32, %arg1: memref<1x4x4x128xbf16, #tpu.memory_space<vmem>>, %arg2: memref<1x128xf32, #tpu.memory_space<vmem>>, %arg3: memref<1x128xf32, #tpu.memory_space<vmem>>, %arg4: memref<9x128xf32, #tpu.memory_space<vmem>>, %arg5: memref<1x4x4x128xbf16, #tpu.memory_space<vmem>>, %arg6: memref<1x2x128xf32, #tpu.memory_space<vmem>>, %arg7: memref<6x20x128xf32, #tpu.memory_space<vmem>>) attributes {dimension_semantics = [#tpu.dimension_semantics<parallel>], iteration_bounds = array<i64: 2>, scalar_prefetch = 0 : i64, scratch_operands = 1 : i64, tpu.core_type = #tpu.core_type<tc>, window_params = [{transform_indices = @transform_0, window_bounds = array<i64: 1, 4, 4, 128>}, {pipeline_mode = #tpu.pipeline_mode<synchronous>, transform_indices = @transform_1, window_bounds = array<i64: 1, 128>}, {pipeline_mode = #tpu.pipeline_mode<synchronous>, transform_indices = @transform_2, window_bounds = array<i64: 1, 128>}, {pipeline_mode = #tpu.pipeline_mode<synchronous>, transform_indices = @transform_3, window_bounds = array<i64: 9, 128>}, {transform_indices = @transform_4, window_bounds = array<i64: 1, 4, 4, 128>}, {transform_indices = @transform_5, window_bounds = array<i64: 1, 2, 128>}]} {
    %cst = arith.constant 0.000000e+00 : f32
    %0 = vector.broadcast %cst : f32 to vector<6x20x128xf32>
    %c0 = arith.constant 0 : index
    %c0_0 = arith.constant 0 : index
    %c0_1 = arith.constant 0 : index
    %1 = vector.load %arg7[%c0, %c0_0, %c0_1] : memref<6x20x128xf32, #tpu.memory_space<vmem>>, vector<6x20x128xf32>
    tpu.vector_store %arg7[%c0, %c0_0, %c0_1], %0 {strides = array<i32>} : memref<6x20x128xf32, #tpu.memory_space<vmem>>, vector<6x20x128xf32>,
    %c0_2 = arith.constant 0 : index
    %c0_3 = arith.constant 0 : index
    %c0_4 = arith.constant 0 : index
    %c0_5 = arith.constant 0 : index
    %2 = vector.load %arg1[%c0_2, %c0_3, %c0_4, %c0_5] : memref<1x4x4x128xbf16, #tpu.memory_space<vmem>>, vector<1x4x4x128xbf16>
    %3 = vector.shape_cast %2 : vector<1x4x4x128xbf16> to vector<4x4x128xbf16>
    %4 = arith.extf %3 : vector<4x4x128xbf16> to vector<4x4x128xf32>
    %c0_6 = arith.constant 0 : index
    %c0_7 = arith.constant 0 : index
    %5 = vector.load %arg2[%c0_6, %c0_7] : memref<1x128xf32, #tpu.memory_space<vmem>>, vector<1x128xf32>
    %6 = vector.shape_cast %5 : vector<1x128xf32> to vector<128xf32>
    %7 = vector.shape_cast %6 : vector<128xf32> to vector<1x1x128xf32>
    %8 = vector.broadcast %7 : vector<1x1x128xf32> to vector<4x4x128xf32>
    %9 = arith.mulf %4, %8 : vector<4x4x128xf32>
    %c0_8 = arith.constant 0 : index
    %c0_9 = arith.constant 0 : index
    %10 = vector.load %arg3[%c0_8, %c0_9] : memref<1x128xf32, #tpu.memory_space<vmem>>, vector<1x128xf32>
    %11 = vector.shape_cast %10 : vector<1x128xf32> to vector<128xf32>
    %12 = vector.shape_cast %11 : vector<128xf32> to vector<1x1x128xf32>
    %13 = vector.broadcast %12 : vector<1x1x128xf32> to vector<4x4x128xf32>
    %14 = arith.addf %9, %13 : vector<4x4x128xf32>
    %15 = arith.negf %14 : vector<4x4x128xf32>
    %16 = math.exp %15 : vector<4x4x128xf32>
    %cst_10 = arith.constant 1.000000e+00 : f32
    %17 = vector.broadcast %cst_10 : f32 to vector<4x4x128xf32>
    %18 = arith.addf %17, %16 : vector<4x4x128xf32>
    %19 = arith.divf %17, %18 : vector<4x4x128xf32>
    %20 = arith.mulf %14, %19 : vector<4x4x128xf32>
    %c1 = arith.constant 1 : index
    %c8 = arith.constant 8 : index
    %c0_11 = arith.constant 0 : index
    %21 = vector.load %arg7[%c1, %c8, %c0_11] : memref<6x20x128xf32, #tpu.memory_space<vmem>>, vector<4x4x128xf32>
    tpu.vector_store %arg7[%c1, %c8, %c0_11], %20 {strides = array<i32>} : memref<6x20x128xf32, #tpu.memory_space<vmem>>, vector<4x4x128xf32>,
    %cst_12 = arith.constant 0.000000e+00 : f32
    %22 = vector.broadcast %cst_12 : f32 to vector<4x4x128xf32>
    %c0_13 = arith.constant 0 : index
    %c7 = arith.constant 7 : index
    %c0_14 = arith.constant 0 : index
    %23 = vector.load %arg7[%c0_13, %c7, %c0_14] : memref<6x20x128xf32, #tpu.memory_space<vmem>>, vector<4x4x128xf32>
    %c0_15 = arith.constant 0 : index
    %c0_16 = arith.constant 0 : index
    %24 = vector.load %arg4[%c0_15, %c0_16] : memref<9x128xf32, #tpu.memory_space<vmem>>, vector<1x128xf32>
    %25 = vector.shape_cast %24 : vector<1x128xf32> to vector<128xf32>
    %26 = vector.shape_cast %25 : vector<128xf32> to vector<1x1x128xf32>
    %27 = vector.broadcast %26 : vector<1x1x128xf32> to vector<4x4x128xf32>
    %28 = arith.mulf %23, %27 : vector<4x4x128xf32>
    %29 = arith.addf %22, %28 : vector<4x4x128xf32>
    %c0_17 = arith.constant 0 : index
    %c8_18 = arith.constant 8 : index
    %c0_19 = arith.constant 0 : index
    %30 = vector.load %arg7[%c0_17, %c8_18, %c0_19] : memref<6x20x128xf32, #tpu.memory_space<vmem>>, vector<4x4x128xf32>
    %c1_20 = arith.constant 1 : index
    %c0_21 = arith.constant 0 : index
    %31 = vector.load %arg4[%c1_20, %c0_21] : memref<9x128xf32, #tpu.memory_space<vmem>>, vector<1x128xf32>
    %32 = vector.shape_cast %31 : vector<1x128xf32> to vector<128xf32>
    %33 = vector.shape_cast %32 : vector<128xf32> to vector<1x1x128xf32>
    %34 = vector.broadcast %33 : vector<1x1x128xf32> to vector<4x4x128xf32>
    %35 = arith.mulf %30, %34 : vector<4x4x128xf32>
    %36 = arith.addf %29, %35 : vector<4x4x128xf32>
    %c0_22 = arith.constant 0 : index
    %c9 = arith.constant 9 : index
    %c0_23 = arith.constant 0 : index
    %37 = vector.load %arg7[%c0_22, %c9, %c0_23] : memref<6x20x128xf32, #tpu.memory_space<vmem>>, vector<4x4x128xf32>
    %c2 = arith.constant 2 : index
    %c0_24 = arith.constant 0 : index
    %38 = vector.load %arg4[%c2, %c0_24] : memref<9x128xf32, #tpu.memory_space<vmem>>, vector<1x128xf32>
    %39 = vector.shape_cast %38 : vector<1x128xf32> to vector<128xf32>
    %40 = vector.shape_cast %39 : vector<128xf32> to vector<1x1x128xf32>
    %41 = vector.broadcast %40 : vector<1x1x128xf32> to vector<4x4x128xf32>
    %42 = arith.mulf %37, %41 : vector<4x4x128xf32>
    %43 = arith.addf %36, %42 : vector<4x4x128xf32>
    %c1_25 = arith.constant 1 : index
    %c7_26 = arith.constant 7 : index
    %c0_27 = arith.constant 0 : index
    %44 = vector.load %arg7[%c1_25, %c7_26, %c0_27] : memref<6x20x128xf32, #tpu.memory_space<vmem>>, vector<4x4x128xf32>
    %c3 = arith.constant 3 : index
    %c0_28 = arith.constant 0 : index
    %45 = vector.load %arg4[%c3, %c0_28] : memref<9x128xf32, #tpu.memory_space<vmem>>, vector<1x128xf32>
    %46 = vector.shape_cast %45 : vector<1x128xf32> to vector<128xf32>
    %47 = vector.shape_cast %46 : vector<128xf32> to vector<1x1x128xf32>
    %48 = vector.broadcast %47 : vector<1x1x128xf32> to vector<4x4x128xf32>
    %49 = arith.mulf %44, %48 : vector<4x4x128xf32>
    %50 = arith.addf %43, %49 : vector<4x4x128xf32>
    %c1_29 = arith.constant 1 : index
    %c8_30 = arith.constant 8 : index
    %c0_31 = arith.constant 0 : index
    %51 = vector.load %arg7[%c1_29, %c8_30, %c0_31] : memref<6x20x128xf32, #tpu.memory_space<vmem>>, vector<4x4x128xf32>
    %c4 = arith.constant 4 : index
    %c0_32 = arith.constant 0 : index
    %52 = vector.load %arg4[%c4, %c0_32] : memref<9x128xf32, #tpu.memory_space<vmem>>, vector<1x128xf32>
    %53 = vector.shape_cast %52 : vector<1x128xf32> to vector<128xf32>
    %54 = vector.shape_cast %53 : vector<128xf32> to vector<1x1x128xf32>
    %55 = vector.broadcast %54 : vector<1x1x128xf32> to vector<4x4x128xf32>
    %56 = arith.mulf %51, %55 : vector<4x4x128xf32>
    %57 = arith.addf %50, %56 : vector<4x4x128xf32>
    %c1_33 = arith.constant 1 : index
    %c9_34 = arith.constant 9 : index
    %c0_35 = arith.constant 0 : index
    %58 = vector.load %arg7[%c1_33, %c9_34, %c0_35] : memref<6x20x128xf32, #tpu.memory_space<vmem>>, vector<4x4x128xf32>
    %c5 = arith.constant 5 : index
    %c0_36 = arith.constant 0 : index
    %59 = vector.load %arg4[%c5, %c0_36] : memref<9x128xf32, #tpu.memory_space<vmem>>, vector<1x128xf32>
    %60 = vector.shape_cast %59 : vector<1x128xf32> to vector<128xf32>
    %61 = vector.shape_cast %60 : vector<128xf32> to vector<1x1x128xf32>
    %62 = vector.broadcast %61 : vector<1x1x128xf32> to vector<4x4x128xf32>
    %63 = arith.mulf %58, %62 : vector<4x4x128xf32>
    %64 = arith.addf %57, %63 : vector<4x4x128xf32>
    %c2_37 = arith.constant 2 : index
    %c7_38 = arith.constant 7 : index
    %c0_39 = arith.constant 0 : index
    %65 = vector.load %arg7[%c2_37, %c7_38, %c0_39] : memref<6x20x128xf32, #tpu.memory_space<vmem>>, vector<4x4x128xf32>
    %c6 = arith.constant 6 : index
    %c0_40 = arith.constant 0 : index
    %66 = vector.load %arg4[%c6, %c0_40] : memref<9x128xf32, #tpu.memory_space<vmem>>, vector<1x128xf32>
    %67 = vector.shape_cast %66 : vector<1x128xf32> to vector<128xf32>
    %68 = vector.shape_cast %67 : vector<128xf32> to vector<1x1x128xf32>
    %69 = vector.broadcast %68 : vector<1x1x128xf32> to vector<4x4x128xf32>
    %70 = arith.mulf %65, %69 : vector<4x4x128xf32>
    %71 = arith.addf %64, %70 : vector<4x4x128xf32>
    %c2_41 = arith.constant 2 : index
    %c8_42 = arith.constant 8 : index
    %c0_43 = arith.constant 0 : index
    %72 = vector.load %arg7[%c2_41, %c8_42, %c0_43] : memref<6x20x128xf32, #tpu.memory_space<vmem>>, vector<4x4x128xf32>
    %c7_44 = arith.constant 7 : index
    %c0_45 = arith.constant 0 : index
    %73 = vector.load %arg4[%c7_44, %c0_45] : memref<9x128xf32, #tpu.memory_space<vmem>>, vector<1x128xf32>
    %74 = vector.shape_cast %73 : vector<1x128xf32> to vector<128xf32>
    %75 = vector.shape_cast %74 : vector<128xf32> to vector<1x1x128xf32>
    %76 = vector.broadcast %75 : vector<1x1x128xf32> to vector<4x4x128xf32>
    %77 = arith.mulf %72, %76 : vector<4x4x128xf32>
    %78 = arith.addf %71, %77 : vector<4x4x128xf32>
    %c2_46 = arith.constant 2 : index
    %c9_47 = arith.constant 9 : index
    %c0_48 = arith.constant 0 : index
    %79 = vector.load %arg7[%c2_46, %c9_47, %c0_48] : memref<6x20x128xf32, #tpu.memory_space<vmem>>, vector<4x4x128xf32>
    %c8_49 = arith.constant 8 : index
    %c0_50 = arith.constant 0 : index
    %80 = vector.load %arg4[%c8_49, %c0_50] : memref<9x128xf32, #tpu.memory_space<vmem>>, vector<1x128xf32>
    %81 = vector.shape_cast %80 : vector<1x128xf32> to vector<128xf32>
    %82 = vector.shape_cast %81 : vector<128xf32> to vector<1x1x128xf32>
    %83 = vector.broadcast %82 : vector<1x1x128xf32> to vector<4x4x128xf32>
    %84 = arith.mulf %79, %83 : vector<4x4x128xf32>
    %85 = arith.addf %78, %84 : vector<4x4x128xf32>
    %86 = arith.truncf %85 : vector<4x4x128xf32> to vector<4x4x128xbf16>
    %c0_51 = arith.constant 0 : index
    %c0_52 = arith.constant 0 : index
    %c0_53 = arith.constant 0 : index
    %c0_54 = arith.constant 0 : index
    %87 = vector.load %arg5[%c0_51, %c0_52, %c0_53, %c0_54] : memref<1x4x4x128xbf16, #tpu.memory_space<vmem>>, vector<1x4x4x128xbf16>
    %88 = vector.shape_cast %87 : vector<1x4x4x128xbf16> to vector<4x4x128xbf16>
    %89 = vector.shape_cast %86 : vector<4x4x128xbf16> to vector<1x4x4x128xbf16>
    tpu.vector_store %arg5[%c0_51, %c0_52, %c0_53, %c0_54], %89 {strides = array<i32>} : memref<1x4x4x128xbf16, #tpu.memory_space<vmem>>, vector<1x4x4x128xbf16>,
    %90 = vector.shape_cast %85 : vector<4x4x128xf32> to vector<16x128xf32>
    %cst_55 = arith.constant dense<0.000000e+00> : vector<128xf32>
    %91 = vector.multi_reduction <add>, %90, %cst_55 [0] : vector<16x128xf32> to vector<128xf32>
    %92 = vector.shape_cast %91 : vector<128xf32> to vector<1x128xf32>
    %c0_56 = arith.constant 0 : index
    %c0_57 = arith.constant 0 : index
    %c0_58 = arith.constant 0 : index
    %93 = vector.load %arg6[%c0_56, %c0_57, %c0_58] : memref<1x2x128xf32, #tpu.memory_space<vmem>>, vector<1x1x128xf32>
    %94 = vector.shape_cast %93 : vector<1x1x128xf32> to vector<1x128xf32>
    %95 = vector.shape_cast %92 : vector<1x128xf32> to vector<1x1x128xf32>
    tpu.vector_store %arg6[%c0_56, %c0_57, %c0_58], %95 {strides = array<i32>} : memref<1x2x128xf32, #tpu.memory_space<vmem>>, vector<1x1x128xf32>,
    %96 = arith.mulf %90, %90 : vector<16x128xf32>
    %cst_59 = arith.constant dense<0.000000e+00> : vector<128xf32>
    %97 = vector.multi_reduction <add>, %96, %cst_59 [0] : vector<16x128xf32> to vector<128xf32>
    %98 = vector.shape_cast %97 : vector<128xf32> to vector<1x128xf32>
    %c0_60 = arith.constant 0 : index
    %c1_61 = arith.constant 1 : index
    %c0_62 = arith.constant 0 : index
    %99 = vector.load %arg6[%c0_60, %c1_61, %c0_62] : memref<1x2x128xf32, #tpu.memory_space<vmem>>, vector<1x1x128xf32>
    %100 = vector.shape_cast %99 : vector<1x1x128xf32> to vector<1x128xf32>
    %101 = vector.shape_cast %98 : vector<1x128xf32> to vector<1x1x128xf32>
    tpu.vector_store %arg6[%c0_60, %c1_61, %c0_62], %101 {strides = array<i32>} : memref<1x2x128xf32, #tpu.memory_space<vmem>>, vector<1x1x128xf32>,
    return
  }
  func.func @transform_0(%arg0: i32) -> (i32, i32, i32, i32) {
    %c0_i32 = arith.constant 0 : i32
    %c0_i32_0 = arith.constant 0 : i32
    %c0_i32_1 = arith.constant 0 : i32
    %c0_i32_2 = arith.constant 0 : i32
    return %arg0, %c0_i32, %c0_i32_0, %c0_i32_1 : i32, i32, i32, i32
  }
  func.func @transform_1(%arg0: i32) -> (i32, i32) {
    %c0_i32 = arith.constant 0 : i32
    %c0_i32_0 = arith.constant 0 : i32
    %c0_i32_1 = arith.constant 0 : i32
    return %c0_i32, %c0_i32_0 : i32, i32
  }
  func.func @transform_2(%arg0: i32) -> (i32, i32) {
    %c0_i32 = arith.constant 0 : i32
    %c0_i32_0 = arith.constant 0 : i32
    %c0_i32_1 = arith.constant 0 : i32
    return %c0_i32, %c0_i32_0 : i32, i32
  }
  func.func @transform_3(%arg0: i32) -> (i32, i32) {
    %c0_i32 = arith.constant 0 : i32
    %c0_i32_0 = arith.constant 0 : i32
    %c0_i32_1 = arith.constant 0 : i32
    return %c0_i32, %c0_i32_0 : i32, i32
  }
  func.func @transform_4(%arg0: i32) -> (i32, i32, i32, i32) {
    %c0_i32 = arith.constant 0 : i32
    %c0_i32_0 = arith.constant 0 : i32
    %c0_i32_1 = arith.constant 0 : i32
    %c0_i32_2 = arith.constant 0 : i32
    return %arg0, %c0_i32, %c0_i32_0, %c0_i32_1 : i32, i32, i32, i32
  }
  func.func @transform_5(%arg0: i32) -> (i32, i32, i32) {
    %c0_i32 = arith.constant 0 : i32
    %c0_i32_0 = arith.constant 0 : i32
    %c0_i32_1 = arith.constant 0 : i32
    return %arg0, %c0_i32, %c0_i32_0 : i32, i32, i32
  }
}

module attributes {stable_mosaic.version = 11 : i64} {
  func.func @_se_bn_swish_kernel(%arg0: i32, %arg1: memref<1x16x128xbf16, #tpu.memory_space<vmem>>, %arg2: memref<1x128xf32, #tpu.memory_space<vmem>>, %arg3: memref<1x128xf32, #tpu.memory_space<vmem>>, %arg4: memref<128x6xf32, #tpu.memory_space<vmem>>, %arg5: memref<1x6xf32, #tpu.memory_space<vmem>>, %arg6: memref<6x128xf32, #tpu.memory_space<vmem>>, %arg7: memref<1x128xf32, #tpu.memory_space<vmem>>, %arg8: memref<1x16x128xbf16, #tpu.memory_space<vmem>>) attributes {dimension_semantics = [#tpu.dimension_semantics<parallel>], iteration_bounds = array<i64: 2>, scalar_prefetch = 0 : i64, scratch_operands = 0 : i64, tpu.core_type = #tpu.core_type<tc>, window_params = [{transform_indices = @transform_0, window_bounds = array<i64: 1, 16, 128>}, {pipeline_mode = #tpu.pipeline_mode<synchronous>, transform_indices = @transform_1, window_bounds = array<i64: 1, 128>}, {pipeline_mode = #tpu.pipeline_mode<synchronous>, transform_indices = @transform_2, window_bounds = array<i64: 1, 128>}, {pipeline_mode = #tpu.pipeline_mode<synchronous>, transform_indices = @transform_3, window_bounds = array<i64: 128, 6>}, {pipeline_mode = #tpu.pipeline_mode<synchronous>, transform_indices = @transform_4, window_bounds = array<i64: 1, 6>}, {pipeline_mode = #tpu.pipeline_mode<synchronous>, transform_indices = @transform_5, window_bounds = array<i64: 6, 128>}, {pipeline_mode = #tpu.pipeline_mode<synchronous>, transform_indices = @transform_6, window_bounds = array<i64: 1, 128>}, {transform_indices = @transform_7, window_bounds = array<i64: 1, 16, 128>}]} {
    %c0 = arith.constant 0 : index
    %c0_0 = arith.constant 0 : index
    %c0_1 = arith.constant 0 : index
    %0 = vector.load %arg1[%c0, %c0_0, %c0_1] : memref<1x16x128xbf16, #tpu.memory_space<vmem>>, vector<1x16x128xbf16>
    %1 = vector.shape_cast %0 : vector<1x16x128xbf16> to vector<16x128xbf16>
    %2 = arith.extf %1 : vector<16x128xbf16> to vector<16x128xf32>
    %c0_2 = arith.constant 0 : index
    %c0_3 = arith.constant 0 : index
    %3 = vector.load %arg2[%c0_2, %c0_3] : memref<1x128xf32, #tpu.memory_space<vmem>>, vector<1x128xf32>
    %4 = vector.broadcast %3 : vector<1x128xf32> to vector<16x128xf32>
    %5 = arith.mulf %2, %4 : vector<16x128xf32>
    %c0_4 = arith.constant 0 : index
    %c0_5 = arith.constant 0 : index
    %6 = vector.load %arg3[%c0_4, %c0_5] : memref<1x128xf32, #tpu.memory_space<vmem>>, vector<1x128xf32>
    %7 = vector.broadcast %6 : vector<1x128xf32> to vector<16x128xf32>
    %8 = arith.addf %5, %7 : vector<16x128xf32>
    %9 = arith.negf %8 : vector<16x128xf32>
    %10 = math.exp %9 : vector<16x128xf32>
    %cst = arith.constant 1.000000e+00 : f32
    %11 = vector.broadcast %cst : f32 to vector<16x128xf32>
    %12 = arith.addf %11, %10 : vector<16x128xf32>
    %13 = arith.divf %11, %12 : vector<16x128xf32>
    %14 = arith.mulf %8, %13 : vector<16x128xf32>
    %cst_6 = arith.constant dense<0.000000e+00> : vector<128xf32>
    %15 = vector.multi_reduction <add>, %14, %cst_6 [0] : vector<16x128xf32> to vector<128xf32>
    %16 = vector.shape_cast %15 : vector<128xf32> to vector<1x128xf32>
    %cst_7 = arith.constant 1.600000e+01 : f32
    %17 = vector.broadcast %cst_7 : f32 to vector<1x128xf32>
    %18 = arith.divf %16, %17 : vector<1x128xf32>
    %c0_8 = arith.constant 0 : index
    %c0_9 = arith.constant 0 : index
    %19 = vector.load %arg4[%c0_8, %c0_9] : memref<128x6xf32, #tpu.memory_space<vmem>>, vector<128x6xf32>
    %cst_10 = arith.constant dense<0.000000e+00> : vector<1x6xf32>
    %20 = tpu.matmul %18, %19, %cst_10 {dimension_numbers = #tpu.dot_dimension_numbers<[1], [0], [0], [1], [0, 0, 1, 1], [], []>} : vector<1x128xf32>, vector<128x6xf32>, vector<1x6xf32> -> vector<1x6xf32>
    %c0_11 = arith.constant 0 : index
    %c0_12 = arith.constant 0 : index
    %21 = vector.load %arg5[%c0_11, %c0_12] : memref<1x6xf32, #tpu.memory_space<vmem>>, vector<1x6xf32>
    %22 = arith.addf %20, %21 : vector<1x6xf32>
    %23 = arith.negf %22 : vector<1x6xf32>
    %24 = math.exp %23 : vector<1x6xf32>
    %cst_13 = arith.constant 1.000000e+00 : f32
    %25 = vector.broadcast %cst_13 : f32 to vector<1x6xf32>
    %26 = arith.addf %25, %24 : vector<1x6xf32>
    %27 = arith.divf %25, %26 : vector<1x6xf32>
    %28 = arith.mulf %22, %27 : vector<1x6xf32>
    %c0_14 = arith.constant 0 : index
    %c0_15 = arith.constant 0 : index
    %29 = vector.load %arg6[%c0_14, %c0_15] : memref<6x128xf32, #tpu.memory_space<vmem>>, vector<6x128xf32>
    %cst_16 = arith.constant dense<0.000000e+00> : vector<1x128xf32>
    %30 = tpu.matmul %28, %29, %cst_16 {dimension_numbers = #tpu.dot_dimension_numbers<[1], [0], [0], [1], [0, 0, 1, 1], [], []>} : vector<1x6xf32>, vector<6x128xf32>, vector<1x128xf32> -> vector<1x128xf32>
    %c0_17 = arith.constant 0 : index
    %c0_18 = arith.constant 0 : index
    %31 = vector.load %arg7[%c0_17, %c0_18] : memref<1x128xf32, #tpu.memory_space<vmem>>, vector<1x128xf32>
    %32 = arith.addf %30, %31 : vector<1x128xf32>
    %33 = arith.negf %32 : vector<1x128xf32>
    %34 = math.exp %33 : vector<1x128xf32>
    %cst_19 = arith.constant 1.000000e+00 : f32
    %35 = vector.broadcast %cst_19 : f32 to vector<1x128xf32>
    %36 = arith.addf %35, %34 : vector<1x128xf32>
    %37 = arith.divf %35, %36 : vector<1x128xf32>
    %38 = vector.broadcast %37 : vector<1x128xf32> to vector<16x128xf32>
    %39 = arith.mulf %14, %38 : vector<16x128xf32>
    %40 = arith.truncf %39 : vector<16x128xf32> to vector<16x128xbf16>
    %c0_20 = arith.constant 0 : index
    %c0_21 = arith.constant 0 : index
    %c0_22 = arith.constant 0 : index
    %41 = vector.load %arg8[%c0_20, %c0_21, %c0_22] : memref<1x16x128xbf16, #tpu.memory_space<vmem>>, vector<1x16x128xbf16>
    %42 = vector.shape_cast %41 : vector<1x16x128xbf16> to vector<16x128xbf16>
    %43 = vector.shape_cast %40 : vector<16x128xbf16> to vector<1x16x128xbf16>
    tpu.vector_store %arg8[%c0_20, %c0_21, %c0_22], %43 {strides = array<i32>} : memref<1x16x128xbf16, #tpu.memory_space<vmem>>, vector<1x16x128xbf16>,
    return
  }
  func.func @transform_0(%arg0: i32) -> (i32, i32, i32) {
    %c0_i32 = arith.constant 0 : i32
    %c0_i32_0 = arith.constant 0 : i32
    %c0_i32_1 = arith.constant 0 : i32
    return %arg0, %c0_i32, %c0_i32_0 : i32, i32, i32
  }
  func.func @transform_1(%arg0: i32) -> (i32, i32) {
    %c0_i32 = arith.constant 0 : i32
    %c0_i32_0 = arith.constant 0 : i32
    %c0_i32_1 = arith.constant 0 : i32
    return %c0_i32, %c0_i32_0 : i32, i32
  }
  func.func @transform_2(%arg0: i32) -> (i32, i32) {
    %c0_i32 = arith.constant 0 : i32
    %c0_i32_0 = arith.constant 0 : i32
    %c0_i32_1 = arith.constant 0 : i32
    return %c0_i32, %c0_i32_0 : i32, i32
  }
  func.func @transform_3(%arg0: i32) -> (i32, i32) {
    %c0_i32 = arith.constant 0 : i32
    %c0_i32_0 = arith.constant 0 : i32
    %c0_i32_1 = arith.constant 0 : i32
    return %c0_i32, %c0_i32_0 : i32, i32
  }
  func.func @transform_4(%arg0: i32) -> (i32, i32) {
    %c0_i32 = arith.constant 0 : i32
    %c0_i32_0 = arith.constant 0 : i32
    %c0_i32_1 = arith.constant 0 : i32
    return %c0_i32, %c0_i32_0 : i32, i32
  }
  func.func @transform_5(%arg0: i32) -> (i32, i32) {
    %c0_i32 = arith.constant 0 : i32
    %c0_i32_0 = arith.constant 0 : i32
    %c0_i32_1 = arith.constant 0 : i32
    return %c0_i32, %c0_i32_0 : i32, i32
  }
  func.func @transform_6(%arg0: i32) -> (i32, i32) {
    %c0_i32 = arith.constant 0 : i32
    %c0_i32_0 = arith.constant 0 : i32
    %c0_i32_1 = arith.constant 0 : i32
    return %c0_i32, %c0_i32_0 : i32, i32
  }
  func.func @transform_7(%arg0: i32) -> (i32, i32, i32) {
    %c0_i32 = arith.constant 0 : i32
    %c0_i32_0 = arith.constant 0 : i32
    %c0_i32_1 = arith.constant 0 : i32
    return %arg0, %c0_i32, %c0_i32_0 : i32, i32, i32
  }
}

module attributes {stable_mosaic.version = 11 : i64} {
  func.func @_bn_add_kernel(%arg0: i32, %arg1: memref<32x128xbf16, #tpu.memory_space<vmem>>, %arg2: memref<1x128xf32, #tpu.memory_space<vmem>>, %arg3: memref<1x128xf32, #tpu.memory_space<vmem>>, %arg4: memref<32x128xbf16, #tpu.memory_space<vmem>>, %arg5: memref<32x128xbf16, #tpu.memory_space<vmem>>) attributes {dimension_semantics = [#tpu.dimension_semantics<parallel>], iteration_bounds = array<i64: 1>, scalar_prefetch = 0 : i64, scratch_operands = 0 : i64, tpu.core_type = #tpu.core_type<tc>, window_params = [{transform_indices = @transform_0, window_bounds = array<i64: 32, 128>}, {pipeline_mode = #tpu.pipeline_mode<synchronous>, transform_indices = @transform_1, window_bounds = array<i64: 1, 128>}, {pipeline_mode = #tpu.pipeline_mode<synchronous>, transform_indices = @transform_2, window_bounds = array<i64: 1, 128>}, {transform_indices = @transform_3, window_bounds = array<i64: 32, 128>}, {transform_indices = @transform_4, window_bounds = array<i64: 32, 128>}]} {
    %c0 = arith.constant 0 : index
    %c0_0 = arith.constant 0 : index
    %0 = vector.load %arg1[%c0, %c0_0] : memref<32x128xbf16, #tpu.memory_space<vmem>>, vector<32x128xbf16>
    %1 = arith.extf %0 : vector<32x128xbf16> to vector<32x128xf32>
    %c0_1 = arith.constant 0 : index
    %c0_2 = arith.constant 0 : index
    %2 = vector.load %arg2[%c0_1, %c0_2] : memref<1x128xf32, #tpu.memory_space<vmem>>, vector<1x128xf32>
    %3 = vector.broadcast %2 : vector<1x128xf32> to vector<32x128xf32>
    %4 = arith.mulf %1, %3 : vector<32x128xf32>
    %c0_3 = arith.constant 0 : index
    %c0_4 = arith.constant 0 : index
    %5 = vector.load %arg3[%c0_3, %c0_4] : memref<1x128xf32, #tpu.memory_space<vmem>>, vector<1x128xf32>
    %6 = vector.broadcast %5 : vector<1x128xf32> to vector<32x128xf32>
    %7 = arith.addf %4, %6 : vector<32x128xf32>
    %c0_5 = arith.constant 0 : index
    %c0_6 = arith.constant 0 : index
    %8 = vector.load %arg4[%c0_5, %c0_6] : memref<32x128xbf16, #tpu.memory_space<vmem>>, vector<32x128xbf16>
    %9 = arith.extf %8 : vector<32x128xbf16> to vector<32x128xf32>
    %10 = arith.addf %7, %9 : vector<32x128xf32>
    %11 = arith.truncf %10 : vector<32x128xf32> to vector<32x128xbf16>
    %c0_7 = arith.constant 0 : index
    %c0_8 = arith.constant 0 : index
    %12 = vector.load %arg5[%c0_7, %c0_8] : memref<32x128xbf16, #tpu.memory_space<vmem>>, vector<32x128xbf16>
    tpu.vector_store %arg5[%c0_7, %c0_8], %11 {strides = array<i32>} : memref<32x128xbf16, #tpu.memory_space<vmem>>, vector<32x128xbf16>,
    return
  }
  func.func @transform_0(%arg0: i32) -> (i32, i32) {
    %c0_i32 = arith.constant 0 : i32
    %c0_i32_0 = arith.constant 0 : i32
    return %arg0, %c0_i32 : i32, i32
  }
  func.func @transform_1(%arg0: i32) -> (i32, i32) {
    %c0_i32 = arith.constant 0 : i32
    %c0_i32_0 = arith.constant 0 : i32
    %c0_i32_1 = arith.constant 0 : i32
    return %c0_i32, %c0_i32_0 : i32, i32
  }
  func.func @transform_2(%arg0: i32) -> (i32, i32) {
    %c0_i32 = arith.constant 0 : i32
    %c0_i32_0 = arith.constant 0 : i32
    %c0_i32_1 = arith.constant 0 : i32
    return %c0_i32, %c0_i32_0 : i32, i32
  }
  func.func @transform_3(%arg0: i32) -> (i32, i32) {
    %c0_i32 = arith.constant 0 : i32
    %c0_i32_0 = arith.constant 0 : i32
    return %arg0, %c0_i32 : i32, i32
  }
  func.func @transform_4(%arg0: i32) -> (i32, i32) {
    %c0_i32 = arith.constant 0 : i32
    %c0_i32_0 = arith.constant 0 : i32
    return %arg0, %c0_i32 : i32, i32
  }
}

module attributes {stable_mosaic.version = 11 : i64} {
  func.func @_head_kernel(%arg0: memref<2x16x128xbf16, #tpu.memory_space<vmem>>, %arg1: memref<128x10xf32, #tpu.memory_space<vmem>>, %arg2: memref<1x10xf32, #tpu.memory_space<vmem>>, %arg3: memref<2x10xf32, #tpu.memory_space<vmem>>) attributes {dimension_semantics = [], scalar_prefetch = 0 : i64, scratch_operands = 0 : i64, tpu.core_type = #tpu.core_type<tc>} {
    %c0 = arith.constant 0 : index
    %c0_0 = arith.constant 0 : index
    %c0_1 = arith.constant 0 : index
    %0 = vector.load %arg0[%c0, %c0_0, %c0_1] : memref<2x16x128xbf16, #tpu.memory_space<vmem>>, vector<2x16x128xbf16>
    %1 = arith.extf %0 : vector<2x16x128xbf16> to vector<2x16x128xf32>
    %cst = arith.constant dense<0.000000e+00> : vector<2x128xf32>
    %2 = vector.multi_reduction <add>, %1, %cst [1] : vector<2x16x128xf32> to vector<2x128xf32>
    %cst_2 = arith.constant 1.600000e+01 : f32
    %3 = vector.broadcast %cst_2 : f32 to vector<2x128xf32>
    %4 = arith.divf %2, %3 : vector<2x128xf32>
    %c0_3 = arith.constant 0 : index
    %c0_4 = arith.constant 0 : index
    %5 = vector.load %arg1[%c0_3, %c0_4] : memref<128x10xf32, #tpu.memory_space<vmem>>, vector<128x10xf32>
    %cst_5 = arith.constant dense<0.000000e+00> : vector<2x10xf32>
    %6 = tpu.matmul %4, %5, %cst_5 {dimension_numbers = #tpu.dot_dimension_numbers<[1], [0], [0], [1], [0, 0, 1, 1], [], []>} : vector<2x128xf32>, vector<128x10xf32>, vector<2x10xf32> -> vector<2x10xf32>
    %c0_6 = arith.constant 0 : index
    %c0_7 = arith.constant 0 : index
    %7 = vector.load %arg2[%c0_6, %c0_7] : memref<1x10xf32, #tpu.memory_space<vmem>>, vector<1x10xf32>
    %8 = vector.broadcast %7 : vector<1x10xf32> to vector<2x10xf32>
    %9 = arith.addf %6, %8 : vector<2x10xf32>
    %c0_8 = arith.constant 0 : index
    %c0_9 = arith.constant 0 : index
    %10 = vector.load %arg3[%c0_8, %c0_9] : memref<2x10xf32, #tpu.memory_space<vmem>>, vector<2x10xf32>
    tpu.vector_store %arg3[%c0_8, %c0_9], %9 {strides = array<i32>} : memref<2x10xf32, #tpu.memory_space<vmem>>, vector<2x10xf32>,
    return
  }
}

</mosaic_0001>

<llo_original>
// kernel: _lambda_.18
$region0: #{_lambda_.18}
  #allocation0 [shape = 'u32[]', space=smem, size = 0x4, offset = 0x4, fixed_abs, tag = 'smem constant byte address 0x4 - core index']
  #allocation1 [shape = 'u32[144,128]{1,0:T(1,128)}', space=vmem, size = 0x12000, scoped, tag = 'internal scratch']
  %s0 = inlined_call_operand.vmem [shape: bf16[128,128], index: 0, kind: input, shape index: {}]
  %s1 = inlined_call_operand.vmem [shape: f32[1,128], index: 1, kind: input, shape index: {}]
  %s2 = inlined_call_operand.vmem [shape: f32[1,128], index: 2, kind: input, shape index: {}]
  %s3 = inlined_call_operand.vmem [shape: bf16[128,128], index: 3, kind: output, shape index: {}]
  %s4 = sld [smem:[#allocation0]]
  $region22: #{_lambda_.18} parent=0
    _
  %s6 = ssub.s32 1, %s4
  %s7 = scalar_select 0, %s6, %s4
  // Predicated region
  $region2: #{_lambda_.18} parent=0 // pred_check
    _
  $region3: #{_lambda_.18} parent=0 // pred_check_branch
    %9 = sbr.rel (0) target = $region5
  $region4: #{_lambda_.18} parent=0 // pred_region
    _
  $region5: #{_lambda_.18} parent=0 // pred_fallthru
    _
  // Predicated region
  $region6: #{_lambda_.18} parent=0 // pred_check
    _
  $region7: #{_lambda_.18} parent=0 // pred_check_branch
    %11 = sbr.rel (0) target = $region9
  $region8: #{_lambda_.18} parent=0 // pred_region
    _
  $region9: #{_lambda_.18} parent=0 // pred_fallthru
    _
  // Predicated region
  $region10: #{_lambda_.18} parent=0 // pred_check
    _
  $region11: #{_lambda_.18} parent=0 // pred_check_branch
    %13 = sbr.rel (0) target = $region13
  $region12: #{_lambda_.18} parent=0 // pred_region
    _
  $region13: #{_lambda_.18} parent=0 // pred_fallthru
    _
  %v14 = vld [vmem:[%s0] sm:$0xf]
  %v15 = vld [vmem:[%s0 + $0x4] sm:$0xf]
  %v16 = vld [vmem:[%s0 + $0x8] sm:$0xf]
  %v17 = vld [vmem:[%s0 + $0xc] sm:$0xf]
  %v18 = vld [vmem:[%s0 + $0x10] sm:$0xf]
  %v19 = vld [vmem:[%s0 + $0x14] sm:$0xf]
  %v20 = vld [vmem:[%s0 + $0x18] sm:$0xf]
  %v21 = vld [vmem:[%s0 + $0x1c] sm:$0xf]
  %v22 = vld [vmem:[%s0 + $0x20] sm:$0xf]
  %v23 = vld [vmem:[%s0 + $0x24] sm:$0xf]
  %v24 = vld [vmem:[%s0 + $0x28] sm:$0xf]
  %v25 = vld [vmem:[%s0 + $0x2c] sm:$0xf]
  %v26 = vld [vmem:[%s0 + $0x30] sm:$0xf]
  %v27 = vld [vmem:[%s0 + $0x34] sm:$0xf]
  %v28 = vld [vmem:[%s0 + $0x38] sm:$0xf]
  %v29 = vld [vmem:[%s0 + $0x3c] sm:$0xf]
  %v30 = vunpack.c.l.bf16 %v14
  %v31 = vunpack.c.l.bf16 %v15
  %v32 = vunpack.c.l.bf16 %v16
  %v33 = vunpack.c.l.bf16 %v17
  %v34 = vunpack.c.l.bf16 %v18
  %v35 = vunpack.c.l.bf16 %v19
  %v36 = vunpack.c.l.bf16 %v20
  %v37 = vunpack.c.l.bf16 %v21
  %v38 = vunpack.c.l.bf16 %v22
  %v39 = vunpack.c.l.bf16 %v23
  %v40 = vunpack.c.l.bf16 %v24
  %v41 = vunpack.c.l.bf16 %v25
  %v42 = vunpack.c.l.bf16 %v26
  %v43 = vunpack.c.l.bf16 %v27
  %v44 = vunpack.c.l.bf16 %v28
  %v45 = vunpack.c.l.bf16 %v29
  %v46 = vld [vmem:[%s1] sm:$0x1]
  %v48 = vlaneseq
  %v49 = vshrl.u32 %v48, 7
  %v50 = vsub.s32 0, %v49
  %v51 = vrot.slane %v46, %v50
  %v53 = vmul.f32 %v30, %v51
  %v54 = vmul.f32 %v31, %v51
  %v55 = vmul.f32 %v32, %v51
  %v56 = vmul.f32 %v33, %v51
  %v57 = vmul.f32 %v34, %v51
  %v58 = vmul.f32 %v35, %v51
  %v59 = vmul.f32 %v36, %v51
  %v60 = vmul.f32 %v37, %v51
  %v61 = vmul.f32 %v38, %v51
  %v62 = vmul.f32 %v39, %v51
  %v63 = vmul.f32 %v40, %v51
  %v64 = vmul.f32 %v41, %v51
  %v65 = vmul.f32 %v42, %v51
  %v66 = vmul.f32 %v43, %v51
  %v67 = vmul.f32 %v44, %v51
  %v68 = vmul.f32 %v45, %v51
  %v69 = vld [vmem:[%s2] sm:$0x1]
  %v71 = vlaneseq
  %v72 = vshrl.u32 %v71, 7
  %v73 = vsub.s32 0, %v72
  %v74 = vrot.slane %v69, %v73
  %v76 = vadd.f32 %v53, %v74
  %v77 = vadd.f32 %v54, %v74
  %v78 = vadd.f32 %v55, %v74
  %v79 = vadd.f32 %v56, %v74
  %v80 = vadd.f32 %v57, %v74
  %v81 = vadd.f32 %v58, %v74
  %v82 = vadd.f32 %v59, %v74
  %v83 = vadd.f32 %v60, %v74
  %v84 = vadd.f32 %v61, %v74
  %v85 = vadd.f32 %v62, %v74
  %v86 = vadd.f32 %v63, %v74
  %v87 = vadd.f32 %v64, %v74
  %v88 = vadd.f32 %v65, %v74
  %v89 = vadd.f32 %v66, %v74
  %v90 = vadd.f32 %v67, %v74
  %v91 = vadd.f32 %v68, %v74
  %v92 = vxor.u32 %v76, 2147483648
  %v93 = vxor.u32 %v77, 2147483648
  %v94 = vxor.u32 %v78, 2147483648
  %v95 = vxor.u32 %v79, 2147483648
  %v96 = vxor.u32 %v80, 2147483648
  %v97 = vxor.u32 %v81, 2147483648
  %v98 = vxor.u32 %v82, 2147483648
  %v99 = vxor.u32 %v83, 2147483648
  %v100 = vxor.u32 %v84, 2147483648
  %v101 = vxor.u32 %v85, 2147483648
  %v102 = vxor.u32 %v86, 2147483648
  %v103 = vxor.u32 %v87, 2147483648
  %v104 = vxor.u32 %v88, 2147483648
  %v105 = vxor.u32 %v89, 2147483648
  %v106 = vxor.u32 %v90, 2147483648
  %v107 = vxor.u32 %v91, 2147483648
  %v108 = vmul.f32 %v92, 1.442695
  %v109 = vpow.pop %v108
  %v110 = vmul.f32 %v93, 1.442695
  %v111 = vpow.pop %v110
  %v112 = vmul.f32 %v94, 1.442695
  %v113 = vpow.pop %v112
  %v114 = vmul.f32 %v95, 1.442695
  %v115 = vpow.pop %v114
  %v116 = vmul.f32 %v96, 1.442695
  %v117 = vpow.pop %v116
  %v118 = vmul.f32 %v97, 1.442695
  %v119 = vpow.pop %v118
  %v120 = vmul.f32 %v98, 1.442695
  %v121 = vpow.pop %v120
  %v122 = vmul.f32 %v99, 1.442695
  %v123 = vpow.pop %v122
  %v124 = vmul.f32 %v100, 1.442695
  %v125 = vpow.pop %v124
  %v126 = vmul.f32 %v101, 1.442695
  %v127 = vpow.pop %v126
  %v128 = vmul.f32 %v102, 1.442695
  %v129 = vpow.pop %v128
  %v130 = vmul.f32 %v103, 1.442695
  %v131 = vpow.pop %v130
  %v132 = vmul.f32 %v104, 1.442695
  %v133 = vpow.pop %v132
  %v134 = vmul.f32 %v105, 1.442695
  %v135 = vpow.pop %v134
  %v136 = vmul.f32 %v106, 1.442695
  %v137 = vpow.pop %v136
  %v138 = vmul.f32 %v107, 1.442695
  %v139 = vpow.pop %v138
  %v140 = vadd.f32 %v109, 1.0
  %v141 = vadd.f32 %v111, 1.0
  %v142 = vadd.f32 %v113, 1.0
  %v143 = vadd.f32 %v115, 1.0
  %v144 = vadd.f32 %v117, 1.0
  %v145 = vadd.f32 %v119, 1.0
  %v146 = vadd.f32 %v121, 1.0
  %v147 = vadd.f32 %v123, 1.0
  %v148 = vadd.f32 %v125, 1.0
  %v149 = vadd.f32 %v127, 1.0
  %v150 = vadd.f32 %v129, 1.0
  %v151 = vadd.f32 %v131, 1.0
  %v152 = vadd.f32 %v133, 1.0
  %v153 = vadd.f32 %v135, 1.0
  %v154 = vadd.f32 %v137, 1.0
  %v155 = vadd.f32 %v139, 1.0
  %v156 = vrcp.pop %v140
  %v157 = vmul.f32 1.0, %v156
  %v158 = vrcp.pop %v141
  %v159 = vmul.f32 1.0, %v158
  %v160 = vrcp.pop %v142
  %v161 = vmul.f32 1.0, %v160
  %v162 = vrcp.pop %v143
  %v163 = vmul.f32 1.0, %v162
  %v164 = vrcp.pop %v144
  %v165 = vmul.f32 1.0, %v164
  %v166 = vrcp.pop %v145
  %v167 = vmul.f32 1.0, %v166
  %v168 = vrcp.pop %v146
  %v169 = vmul.f32 1.0, %v168
  %v170 = vrcp.pop %v147
  %v171 = vmul.f32 1.0, %v170
  %v172 = vrcp.pop %v148
  %v173 = vmul.f32 1.0, %v172
  %v174 = vrcp.pop %v149
  %v175 = vmul.f32 1.0, %v174
  %v176 = vrcp.pop %v150
  %v177 = vmul.f32 1.0, %v176
  %v178 = vrcp.pop %v151
  %v179 = vmul.f32 1.0, %v178
  %v180 = vrcp.pop %v152
  %v181 = vmul.f32 1.0, %v180
  %v182 = vrcp.pop %v153
  %v183 = vmul.f32 1.0, %v182
  %v184 = vrcp.pop %v154
  %v185 = vmul.f32 1.0, %v184
  %v186 = vrcp.pop %v155
  %v187 = vmul.f32 1.0, %v186
  %v188 = vmul.f32 %v76, %v157
  %v189 = vmul.f32 %v77, %v159
  %v190 = vmul.f32 %v78, %v161
  %v191 = vmul.f32 %v79, %v163
  %v192 = vmul.f32 %v80, %v165
  %v193 = vmul.f32 %v81, %v167
  %v194 = vmul.f32 %v82, %v169
  %v195 = vmul.f32 %v83, %v171
  %v196 = vmul.f32 %v84, %v173
  %v197 = vmul.f32 %v85, %v175
  %v198 = vmul.f32 %v86, %v177
  %v199 = vmul.f32 %v87, %v179
  %v200 = vmul.f32 %v88, %v181
  %v201 = vmul.f32 %v89, %v183
  %v202 = vmul.f32 %v90, %v185
  %v203 = vmul.f32 %v91, %v187
  %v204 = vpack.c.bf16 %v189, %v188
  %v205 = vpack.c.bf16 %v191, %v190
  %v206 = vpack.c.bf16 %v193, %v192
  %v207 = vpack.c.bf16 %v195, %v194
  %v208 = vpack.c.bf16 %v197, %v196
  %v209 = vpack.c.bf16 %v199, %v198
  %v210 = vpack.c.bf16 %v201, %v200
  %v211 = vpack.c.bf16 %v203, %v202
  %v220 = vunpack.c.l.b16 %v204
  %v221 = vunpack.c.h.b16 %v204
  %v222 = vunpack.c.l.b16 %v205
  %v223 = vunpack.c.h.b16 %v205
  %v224 = vunpack.c.l.b16 %v206
  %v225 = vunpack.c.h.b16 %v206
  %v226 = vunpack.c.l.b16 %v207
  %v227 = vunpack.c.h.b16 %v207
  %v228 = vunpack.c.l.b16 %v208
  %v229 = vunpack.c.h.b16 %v208
  %v230 = vunpack.c.l.b16 %v209
  %v231 = vunpack.c.h.b16 %v209
  %v232 = vunpack.c.l.b16 %v210
  %v233 = vunpack.c.h.b16 %v210
  %v234 = vunpack.c.l.b16 %v211
  %v235 = vunpack.c.h.b16 %v211
  %v236 = vpack.c.b16 %v220, %v220
  %v237 = vpack.c.b16 %v221, %v221
  %v238 = vpack.c.b16 %v222, %v222
  %v239 = vpack.c.b16 %v223, %v223
  %v240 = vpack.c.b16 %v224, %v224
  %v241 = vpack.c.b16 %v225, %v225
  %v242 = vpack.c.b16 %v226, %v226
  %v243 = vpack.c.b16 %v227, %v227
  %v244 = vpack.c.b16 %v228, %v228
  %v245 = vpack.c.b16 %v229, %v229
  %v246 = vpack.c.b16 %v230, %v230
  %v247 = vpack.c.b16 %v231, %v231
  %v248 = vpack.c.b16 %v232, %v232
  %v249 = vpack.c.b16 %v233, %v233
  %v250 = vpack.c.b16 %v234, %v234
  %v251 = vpack.c.b16 %v235, %v235
  %268 = vst [vmem:[%s3] sm:$0xf] %v236
  %269 = vst [vmem:[%s3 + $0x4] sm:$0xf] %v237
  %270 = vst [vmem:[%s3 + $0x8] sm:$0xf] %v238
  %271 = vst [vmem:[%s3 + $0xc] sm:$0xf] %v239
  %272 = vst [vmem:[%s3 + $0x10] sm:$0xf] %v240
  %273 = vst [vmem:[%s3 + $0x14] sm:$0xf] %v241
  %274 = vst [vmem:[%s3 + $0x18] sm:$0xf] %v242
  %275 = vst [vmem:[%s3 + $0x1c] sm:$0xf] %v243
  %276 = vst [vmem:[%s3 + $0x20] sm:$0xf] %v244
  %277 = vst [vmem:[%s3 + $0x24] sm:$0xf] %v245
  %278 = vst [vmem:[%s3 + $0x28] sm:$0xf] %v246
  %279 = vst [vmem:[%s3 + $0x2c] sm:$0xf] %v247
  %280 = vst [vmem:[%s3 + $0x30] sm:$0xf] %v248
  %281 = vst [vmem:[%s3 + $0x34] sm:$0xf] %v249
  %282 = vst [vmem:[%s3 + $0x38] sm:$0xf] %v250
  %283 = vst [vmem:[%s3 + $0x3c] sm:$0xf] %v251
  // Predicated region
  $region14: #{_lambda_.18} parent=0 // pred_check
    _
  $region15: #{_lambda_.18} parent=0 // pred_check_branch
    %285 = sbr.rel (0) target = $region17
  $region16: #{_lambda_.18} parent=0 // pred_region
    _
  $region17: #{_lambda_.18} parent=0 // pred_fallthru
    _
  // Predicated region
  $region18: #{_lambda_.18} parent=0 // pred_check
    _
  $region19: #{_lambda_.18} parent=0 // pred_check_branch
    %287 = sbr.rel (0) target = $region21
  $region20: #{_lambda_.18} parent=0 // pred_region
    _
  $region21: #{_lambda_.18} parent=0 // pred_fallthru
    _

// kernel: _lambda_.17
$region0: #{_lambda_.17}
  #allocation0 [shape = 'u32[]', space=smem, size = 0x4, offset = 0x4, fixed_abs, tag = 'smem constant byte address 0x4 - core index']
  #allocation1 [shape = 'u32[144,128]{1,0:T(1,128)}', space=vmem, size = 0x12000, scoped, tag = 'internal scratch']
  %s0 = inlined_call_operand.vmem [shape: bf16[128,128], index: 0, kind: input, shape index: {}]
  %s1 = inlined_call_operand.vmem [shape: bf16[128,128], index: 1, kind: input, shape index: {}]
  %s2 = inlined_call_operand.vmem [shape: bf16[128,128], index: 2, kind: output, shape index: {0}]
  %s3 = inlined_call_operand.vmem [shape: f32[1,2,128], index: 3, kind: output, shape index: {1}]
  %4 = xla_tuple %s2, %s3
  %s5 = sld [smem:[#allocation0]]
  $region26: #{_lambda_.17} parent=0
    _
  %s7 = ssub.s32 1, %s5
  %s8 = scalar_select 0, %s7, %s5
  // Predicated region
  $region2: #{_lambda_.17} parent=0 // pred_check
    _
  $region3: #{_lambda_.17} parent=0 // pred_check_branch
    %10 = sbr.rel (0) target = $region5
  $region4: #{_lambda_.17} parent=0 // pred_region
    _
  $region5: #{_lambda_.17} parent=0 // pred_fallthru
    _
  // Predicated region
  $region6: #{_lambda_.17} parent=0 // pred_check
    _
  $region7: #{_lambda_.17} parent=0 // pred_check_branch
    %12 = sbr.rel (0) target = $region9
  $region8: #{_lambda_.17} parent=0 // pred_region
    _
  $region9: #{_lambda_.17} parent=0 // pred_fallthru
    _
  %v14 = vld [vmem:[%s0] sm:$0xf]
  %v15 = vld [vmem:[%s0 + $0x4] sm:$0xf]
  %v16 = vld [vmem:[%s0 + $0x8] sm:$0xf]
  %v17 = vld [vmem:[%s0 + $0xc] sm:$0xf]
  %v18 = vld [vmem:[%s0 + $0x10] sm:$0xf]
  %v19 = vld [vmem:[%s0 + $0x14] sm:$0xf]
  %v20 = vld [vmem:[%s0 + $0x18] sm:$0xf]
  %v21 = vld [vmem:[%s0 + $0x1c] sm:$0xf]
  %v22 = vld [vmem:[%s0 + $0x20] sm:$0xf]
  %v23 = vld [vmem:[%s0 + $0x24] sm:$0xf]
  %v24 = vld [vmem:[%s0 + $0x28] sm:$0xf]
  %v25 = vld [vmem:[%s0 + $0x2c] sm:$0xf]
  %v26 = vld [vmem:[%s0 + $0x30] sm:$0xf]
  %v27 = vld [vmem:[%s0 + $0x34] sm:$0xf]
  %v28 = vld [vmem:[%s0 + $0x38] sm:$0xf]
  %v29 = vld [vmem:[%s0 + $0x3c] sm:$0xf]
  %v30 = vld [vmem:[%s1] sm:$0xf]
  %v31 = vld [vmem:[%s1 + $0x4] sm:$0xf]
  %v32 = vld [vmem:[%s1 + $0x8] sm:$0xf]
  %v33 = vld [vmem:[%s1 + $0xc] sm:$0xf]
  %v34 = vld [vmem:[%s1 + $0x10] sm:$0xf]
  %v35 = vld [vmem:[%s1 + $0x14] sm:$0xf]
  %v36 = vld [vmem:[%s1 + $0x18] sm:$0xf]
  %v37 = vld [vmem:[%s1 + $0x1c] sm:$0xf]
  %v38 = vld [vmem:[%s1 + $0x20] sm:$0xf]
  %v39 = vld [vmem:[%s1 + $0x24] sm:$0xf]
  %v40 = vld [vmem:[%s1 + $0x28] sm:$0xf]
  %v41 = vld [vmem:[%s1 + $0x2c] sm:$0xf]
  %v42 = vld [vmem:[%s1 + $0x30] sm:$0xf]
  %v43 = vld [vmem:[%s1 + $0x34] sm:$0xf]
  %v44 = vld [vmem:[%s1 + $0x38] sm:$0xf]
  %v45 = vld [vmem:[%s1 + $0x3c] sm:$0xf]
  %v62 = vunpack.c.l.b16 %v14
  %v63 = vunpack.c.l.b16 %v15
  %v64 = vunpack.c.l.b16 %v16
  %v65 = vunpack.c.l.b16 %v17
  %v66 = vunpack.c.l.b16 %v18
  %v67 = vunpack.c.l.b16 %v19
  %v68 = vunpack.c.l.b16 %v20
  %v69 = vunpack.c.l.b16 %v21
  %v70 = vunpack.c.l.b16 %v22
  %v71 = vunpack.c.l.b16 %v23
  %v72 = vunpack.c.l.b16 %v24
  %v73 = vunpack.c.l.b16 %v25
  %v74 = vunpack.c.l.b16 %v26
  %v75 = vunpack.c.l.b16 %v27
  %v76 = vunpack.c.l.b16 %v28
  %v77 = vunpack.c.l.b16 %v29
  %v78 = vpack.c.b16 %v63, %v62
  %v79 = vpack.c.b16 %v65, %v64
  %v80 = vpack.c.b16 %v67, %v66
  %v81 = vpack.c.b16 %v69, %v68
  %v82 = vpack.c.b16 %v71, %v70
  %v83 = vpack.c.b16 %v73, %v72
  %v84 = vpack.c.b16 %v75, %v74
  %v85 = vpack.c.b16 %v77, %v76
  %v110 = vunpack.c.l.b16 %v30
  %v111 = vunpack.c.l.b16 %v31
  %v112 = vunpack.c.l.b16 %v32
  %v113 = vunpack.c.l.b16 %v33
  %v114 = vunpack.c.l.b16 %v34
  %v115 = vunpack.c.l.b16 %v35
  %v116 = vunpack.c.l.b16 %v36
  %v117 = vunpack.c.l.b16 %v37
  %v118 = vunpack.c.l.b16 %v38
  %v119 = vunpack.c.l.b16 %v39
  %v120 = vunpack.c.l.b16 %v40
  %v121 = vunpack.c.l.b16 %v41
  %v122 = vunpack.c.l.b16 %v42
  %v123 = vunpack.c.l.b16 %v43
  %v124 = vunpack.c.l.b16 %v44
  %v125 = vunpack.c.l.b16 %v45
  %v126 = vpack.c.b16 %v111, %v110
  %v127 = vpack.c.b16 %v113, %v112
  %v128 = vpack.c.b16 %v115, %v114
  %v129 = vpack.c.b16 %v117, %v116
  %v130 = vpack.c.b16 %v119, %v118
  %v131 = vpack.c.b16 %v121, %v120
  %v132 = vpack.c.b16 %v123, %v122
  %v133 = vpack.c.b16 %v125, %v124
  %142 = vmatprep.subr.bf16.mxu0 0
  %143 = vmatpush1.bf16.msra.mxu0 %v133
  %144 = vmatprep.subr.bf16.mxu0 0
  %145 = vmatpush1.bf16.msra.mxu0 %v132
  %146 = vmatprep.subr.bf16.mxu0 0
  %147 = vmatpush1.bf16.msra.mxu0 %v131
  %148 = vmatprep.subr.bf16.mxu0 0
  %149 = vmatpush1.bf16.msra.mxu0 %v130
  %150 = vmatprep.subr.bf16.mxu0 0
  %151 = vmatpush1.bf16.msra.mxu0 %v129
  %152 = vmatprep.subr.bf16.mxu0 0
  %153 = vmatpush1.bf16.msra.mxu0 %v128
  %154 = vmatprep.subr.bf16.mxu0 0
  %155 = vmatpush1.bf16.msra.mxu0 %v127
  %156 = vmatprep.subr.bf16.mxu0 0
  %157 = vmatpush1.bf16.msra.mxu0 %v126
  %158 = vmatprep.subr.bf16.mxu0 0
  %159 = vmatpush2.bf16.msra.mxu0 0
  %160 = vmatprep.subr.bf16.mxu0 0
  %161 = vmatpush2.bf16.msra.mxu0 0
  %162 = vmatprep.subr.bf16.mxu0 0
  %163 = vmatpush2.bf16.msra.mxu0 0
  %164 = vmatprep.subr.bf16.mxu0 0
  %165 = vmatpush2.bf16.msra.mxu0 0
  %166 = vmatprep.subr.bf16.mxu0 0
  %167 = vmatpush2.bf16.msra.mxu0 0
  %168 = vmatprep.subr.bf16.mxu0 0
  %169 = vmatpush2.bf16.msra.mxu0 0
  %170 = vmatprep.subr.bf16.mxu0 0
  %171 = vmatpush2.bf16.msra.mxu0 0
  %172 = vmatprep.subr.bf16.mxu0 0
  %173 = vmatpush2.bf16.msra.mxu0 0
  %174 = vmatprep.mubr.bf16.mxu0 0
  %175 = vmatmul.mubr.bf16.gmra.mxu0 %v78
  %v176 = vpop.f32.mrf.mxu0
  %v177 = vadd.f32 0.0, %v176
  %v178 = vpop.f32.mrf.mxu0
  %v179 = vpop.f32.mrf.mxu0
  %v180 = vadd.f32 0.0, %v179
  %v181 = vpop.f32.mrf.mxu0
  %182 = vmatprep.mubr.bf16.mxu0 0
  %183 = vmatmul.mubr.bf16.gmra.mxu0 %v79
  %v184 = vpop.f32.mrf.mxu0
  %v185 = vadd.f32 0.0, %v184
  %v186 = vpop.f32.mrf.mxu0
  %v187 = vpop.f32.mrf.mxu0
  %v188 = vadd.f32 0.0, %v187
  %v189 = vpop.f32.mrf.mxu0
  %190 = vmatprep.mubr.bf16.mxu0 0
  %191 = vmatmul.mubr.bf16.gmra.mxu0 %v80
  %v192 = vpop.f32.mrf.mxu0
  %v193 = vadd.f32 0.0, %v192
  %v194 = vpop.f32.mrf.mxu0
  %v195 = vpop.f32.mrf.mxu0
  %v196 = vadd.f32 0.0, %v195
  %v197 = vpop.f32.mrf.mxu0
  %198 = vmatprep.mubr.bf16.mxu0 0
  %199 = vmatmul.mubr.bf16.gmra.mxu0 %v81
  %v200 = vpop.f32.mrf.mxu0
  %v201 = vadd.f32 0.0, %v200
  %v202 = vpop.f32.mrf.mxu0
  %v203 = vpop.f32.mrf.mxu0
  %v204 = vadd.f32 0.0, %v203
  %v205 = vpop.f32.mrf.mxu0
  %206 = vmatprep.mubr.bf16.mxu0 0
  %207 = vmatmul.mubr.bf16.gmra.mxu0 %v82
  %v208 = vpop.f32.mrf.mxu0
  %v209 = vadd.f32 0.0, %v208
  %v210 = vpop.f32.mrf.mxu0
  %v211 = vpop.f32.mrf.mxu0
  %v212 = vadd.f32 0.0, %v211
  %v213 = vpop.f32.mrf.mxu0
  %214 = vmatprep.mubr.bf16.mxu0 0
  %215 = vmatmul.mubr.bf16.gmra.mxu0 %v83
  %v216 = vpop.f32.mrf.mxu0
  %v217 = vadd.f32 0.0, %v216
  %v218 = vpop.f32.mrf.mxu0
  %v219 = vpop.f32.mrf.mxu0
  %v220 = vadd.f32 0.0, %v219
  %v221 = vpop.f32.mrf.mxu0
  %222 = vmatprep.mubr.bf16.mxu0 0
  %223 = vmatmul.mubr.bf16.gmra.mxu0 %v84
  %v224 = vpop.f32.mrf.mxu0
  %v225 = vadd.f32 0.0, %v224
  %v226 = vpop.f32.mrf.mxu0
  %v227 = vpop.f32.mrf.mxu0
  %v228 = vadd.f32 0.0, %v227
  %v229 = vpop.f32.mrf.mxu0
  %230 = vmatprep.mubr.bf16.mxu0 0
  %231 = vmatmul.mubr.bf16.gmra.mxu0 %v85
  %v232 = vpop.f32.mrf.mxu0
  %v233 = vadd.f32 0.0, %v232
  %v234 = vpop.f32.mrf.mxu0
  %v235 = vpop.f32.mrf.mxu0
  %v236 = vadd.f32 0.0, %v235
  %v237 = vpop.f32.mrf.mxu0
  %238 = vdwg.mxu0
  %v239 = vpack.c.bf16 %v180, %v177
  %v240 = vpack.c.bf16 %v188, %v185
  %v241 = vpack.c.bf16 %v196, %v193
  %v242 = vpack.c.bf16 %v204, %v201
  %v243 = vpack.c.bf16 %v212, %v209
  %v244 = vpack.c.bf16 %v220, %v217
  %v245 = vpack.c.bf16 %v228, %v225
  %v246 = vpack.c.bf16 %v236, %v233
  %v255 = vunpack.c.l.b16 %v239
  %v256 = vunpack.c.h.b16 %v239
  %v257 = vunpack.c.l.b16 %v240
  %v258 = vunpack.c.h.b16 %v240
  %v259 = vunpack.c.l.b16 %v241
  %v260 = vunpack.c.h.b16 %v241
  %v261 = vunpack.c.l.b16 %v242
  %v262 = vunpack.c.h.b16 %v242
  %v263 = vunpack.c.l.b16 %v243
  %v264 = vunpack.c.h.b16 %v243
  %v265 = vunpack.c.l.b16 %v244
  %v266 = vunpack.c.h.b16 %v244
  %v267 = vunpack.c.l.b16 %v245
  %v268 = vunpack.c.h.b16 %v245
  %v269 = vunpack.c.l.b16 %v246
  %v270 = vunpack.c.h.b16 %v246
  %v271 = vpack.c.b16 %v255, %v255
  %v272 = vpack.c.b16 %v256, %v256
  %v273 = vpack.c.b16 %v257, %v257
  %v274 = vpack.c.b16 %v258, %v258
  %v275 = vpack.c.b16 %v259, %v259
  %v276 = vpack.c.b16 %v260, %v260
  %v277 = vpack.c.b16 %v261, %v261
  %v278 = vpack.c.b16 %v262, %v262
  %v279 = vpack.c.b16 %v263, %v263
  %v280 = vpack.c.b16 %v264, %v264
  %v281 = vpack.c.b16 %v265, %v265
  %v282 = vpack.c.b16 %v266, %v266
  %v283 = vpack.c.b16 %v267, %v267
  %v284 = vpack.c.b16 %v268, %v268
  %v285 = vpack.c.b16 %v269, %v269
  %v286 = vpack.c.b16 %v270, %v270
  %303 = vst [vmem:[%s2] sm:$0xf] %v271
  %304 = vst [vmem:[%s2 + $0x4] sm:$0xf] %v272
  %305 = vst [vmem:[%s2 + $0x8] sm:$0xf] %v273
  %306 = vst [vmem:[%s2 + $0xc] sm:$0xf] %v274
  %307 = vst [vmem:[%s2 + $0x10] sm:$0xf] %v275
  %308 = vst [vmem:[%s2 + $0x14] sm:$0xf] %v276
  %309 = vst [vmem:[%s2 + $0x18] sm:$0xf] %v277
  %310 = vst [vmem:[%s2 + $0x1c] sm:$0xf] %v278
  %311 = vst [vmem:[%s2 + $0x20] sm:$0xf] %v279
  %312 = vst [vmem:[%s2 + $0x24] sm:$0xf] %v280
  %313 = vst [vmem:[%s2 + $0x28] sm:$0xf] %v281
  %314 = vst [vmem:[%s2 + $0x2c] sm:$0xf] %v282
  %315 = vst [vmem:[%s2 + $0x30] sm:$0xf] %v283
  %316 = vst [vmem:[%s2 + $0x34] sm:$0xf] %v284
  %317 = vst [vmem:[%s2 + $0x38] sm:$0xf] %v285
  %318 = vst [vmem:[%s2 + $0x3c] sm:$0xf] %v286
  %v319 = vadd.f32 %v177, %v180
  %v320 = vadd.f32 %v319, %v185
  %v321 = vadd.f32 %v320, %v188
  %v322 = vadd.f32 %v321, %v193
  %v323 = vadd.f32 %v322, %v196
  %v324 = vadd.f32 %v323, %v201
  %v325 = vadd.f32 %v324, %v204
  %v326 = vadd.f32 %v325, %v209
  %v327 = vadd.f32 %v326, %v212
  %v328 = vadd.f32 %v327, %v217
  %v329 = vadd.f32 %v328, %v220
  %v330 = vadd.f32 %v329, %v225
  %v331 = vadd.f32 %v330, %v228
  %v332 = vadd.f32 %v331, %v233
  %v333 = vadd.f32 %v332, %v236
  %v334 = vrot.slane %v333, 4
  %v335 = vadd.f32 %v333, %v334
  %v336 = vrot.slane %v335, 2
  %v337 = vadd.f32 %v335, %v336
  %v338 = vrot.slane %v337, 1
  %v339 = vadd.f32 %v337, %v338
  %340 = vst [vmem:[%s3] sm:$0x1] %v339
  %v341 = vmul.f32 %v177, %v177
  %v342 = vmul.f32 %v180, %v180
  %v343 = vmul.f32 %v185, %v185
  %v344 = vmul.f32 %v188, %v188
  %v345 = vmul.f32 %v193, %v193
  %v346 = vmul.f32 %v196, %v196
  %v347 = vmul.f32 %v201, %v201
  %v348 = vmul.f32 %v204, %v204
  %v349 = vmul.f32 %v209, %v209
  %v350 = vmul.f32 %v212, %v212
  %v351 = vmul.f32 %v217, %v217
  %v352 = vmul.f32 %v220, %v220
  %v353 = vmul.f32 %v225, %v225
  %v354 = vmul.f32 %v228, %v228
  %v355 = vmul.f32 %v233, %v233
  %v356 = vmul.f32 %v236, %v236
  %v357 = vadd.f32 %v341, %v342
  %v358 = vadd.f32 %v357, %v343
  %v359 = vadd.f32 %v358, %v344
  %v360 = vadd.f32 %v359, %v345
  %v361 = vadd.f32 %v360, %v346
  %v362 = vadd.f32 %v361, %v347
  %v363 = vadd.f32 %v362, %v348
  %v364 = vadd.f32 %v363, %v349
  %v365 = vadd.f32 %v364, %v350
  %v366 = vadd.f32 %v365, %v351
  %v367 = vadd.f32 %v366, %v352
  %v368 = vadd.f32 %v367, %v353
  %v369 = vadd.f32 %v368, %v354
  %v370 = vadd.f32 %v369, %v355
  %v371 = vadd.f32 %v370, %v356
  %v372 = vrot.slane %v371, 4
  %v373 = vadd.f32 %v371, %v372
  %v374 = vrot.slane %v373, 2
  %v375 = vadd.f32 %v373, %v374
  %v376 = vrot.slane %v375, 1
  %v377 = vadd.f32 %v375, %v376
  %378 = vst [vmem:[%s3 + $0x1] sm:$0x1] %v377
  // Predicated region
  $region10: #{_lambda_.17} parent=0 // pred_check
    _
  $region11: #{_lambda_.17} parent=0 // pred_check_branch
    %380 = sbr.rel (0) target = $region13
  $region12: #{_lambda_.17} parent=0 // pred_region
    _
  $region13: #{_lambda_.17} parent=0 // pred_fallthru
    _
  // Predicated region
  $region14: #{_lambda_.17} parent=0 // pred_check
    _
  $region15: #{_lambda_.17} parent=0 // pred_check_branch
    %382 = sbr.rel (0) target = $region17
  $region16: #{_lambda_.17} parent=0 // pred_region
    _
  $region17: #{_lambda_.17} parent=0 // pred_fallthru
    _
  // Predicated region
  $region18: #{_lambda_.17} parent=0 // pred_check
    _
  $region19: #{_lambda_.17} parent=0 // pred_check_branch
    %384 = sbr.rel (0) target = $region21
  $region20: #{_lambda_.17} parent=0 // pred_region
    _
  $region21: #{_lambda_.17} parent=0 // pred_fallthru
    _
  // Predicated region
  $region22: #{_lambda_.17} parent=0 // pred_check
    _
  $region23: #{_lambda_.17} parent=0 // pred_check_branch
    %386 = sbr.rel (0) target = $region25
  $region24: #{_lambda_.17} parent=0 // pred_region
    _
  $region25: #{_lambda_.17} parent=0 // pred_fallthru
    _

// kernel: _lambda_.19
$region0: #{_lambda_.19}
  #allocation0 [shape = 'u32[]', space=smem, size = 0x4, offset = 0x4, fixed_abs, tag = 'smem constant byte address 0x4 - core index']
  #allocation1 [shape = 'u32[144,128]{1,0:T(1,128)}', space=vmem, size = 0x12000, scoped, tag = 'internal scratch']
  #allocation2 [shape = 'f32[10,24,128]{2,1,0:T(8,128)}', space=vmem, size = 0x1e000, scoped, tag = 'scratch operand']
  %s0 = inlined_call_operand.vmem [shape: bf16[2,8,8,128], index: 0, kind: input, shape index: {}]
  %s1 = inlined_call_operand.vmem [shape: f32[1,128], index: 1, kind: input, shape index: {}, may-alias: {1,2}]
  %s2 = inlined_call_operand.vmem [shape: f32[1,128], index: 2, kind: input, shape index: {}, may-alias: {1,2}]
  %s3 = inlined_call_operand.vmem [shape: f32[9,128], index: 3, kind: input, shape index: {}]
  %s4 = inlined_call_operand.vmem [shape: bf16[2,8,8,128], index: 4, kind: output, shape index: {0}]
  %s5 = inlined_call_operand.vmem [shape: f32[2,2,128], index: 5, kind: output, shape index: {1}]
  %6 = xla_tuple %s4, %s5
  %s7 = sld [smem:[#allocation0]]
  $region57: #{_lambda_.19} parent=0
    _
  %s9 = ssub.s32 1, %s7
  %s10 = scalar_select 0, %s9, %s7
  loop: start=0, step=1, limit=4
  $region2: #{_lambda_.19} parent=0 // loop_pre_header
    _
  $region3: #{_lambda_.19} parent=0 // loop_header
    %s12 = sphi 0, %s16
    %p13 = scmp.ge.s32.totalorder %s12, 4
    %s22 = sphi 0, %s24
    %s25 = sphi 0, %s22
    %s26 = sphi 0, %s25
    %s42 = sphi 0, %s26
    %s46 = sphi 0, %s46
    %s48 = sphi 0, %s46
    %s49 = sphi 0, %s48
    %s63 = sphi 0, %s49
    %s67 = sphi 0, %s67
    %s69 = sphi 0, %s67
    %s70 = sphi 0, %s69
    %s84 = sphi 0, %s70
    %s88 = sphi 0, %s88
    %s90 = sphi 0, %s88
    %s91 = sphi 0, %s90
    %s105 = sphi 0, %s91
    %s111 = sphi 0, %s113
    %s114 = sphi 0, %s111
    %s115 = sphi 0, %s114
    %s131 = sphi 0, %s115
    %s137 = sphi 0, %s139
    %s140 = sphi 0, %s137
    %s141 = sphi 0, %s140
    %s157 = sphi 0, %s141
  $region4: #{_lambda_.19} parent=0 // loop_header_branch
    %15 = sbr.rel (%p13) target = $region8
  $region5: #{_lambda_.19} parent=0 // loop_body
    %s17 = ssub.s32 %s12, 1
    %s18 = ssub.s32 %s12, 2
    %s19 = sadd.s32 %s12, 1
    %s20 = ssub.s32 %s12, %s19
    %p21 = scmp.eq.s32.totalorder %s20, 0
    %s23 = sadd.s32 %s22, 1
    %s24 = scalar_select %p21, %s22, %s23
    %p27 = pneg %p21
    %p28 = scmp.eq.s32.totalorder %s12, 1
    %p29 = por %p27, %p28
    %p30 = scmp.ne.s32.totalorder %s22, %s25
    %p31 = scmp.eq.s32.totalorder %s12, 0
    %p32 = por %p30, %p31
    %p33 = scmp.ne.s32.totalorder %s22, %s25
    %p34 = scmp.eq.s32.totalorder %s17, 1
    %p35 = por %p33, %p34
    %p36 = scmp.ne.s32.totalorder %s25, %s26
    %p37 = scmp.eq.s32.totalorder %s17, 0
    %p38 = por %p36, %p37
    %p39 = scmp.ne.s32.totalorder %s25, %s26
    %p40 = scmp.eq.s32.totalorder %s18, 1
    %p41 = por %p39, %p40
    %p43 = scmp.ne.s32.totalorder %s26, %s42
    %p44 = scmp.eq.s32.totalorder %s18, 0
    %p45 = por %p43, %p44
    %s47 = sadd.s32 %s46, 1
    %p50 = scmp.eq.s32.totalorder %s12, 1
    %p51 = scmp.ne.s32.totalorder %s46, %s48
    %p52 = scmp.eq.s32.totalorder %s12, 0
    %p53 = por %p51, %p52
    %p54 = scmp.ne.s32.totalorder %s46, %s48
    %p55 = scmp.eq.s32.totalorder %s17, 1
    %p56 = por %p54, %p55
    %p57 = scmp.ne.s32.totalorder %s48, %s49
    %p58 = scmp.eq.s32.totalorder %s17, 0
    %p59 = por %p57, %p58
    %p60 = scmp.ne.s32.totalorder %s48, %s49
    %p61 = scmp.eq.s32.totalorder %s18, 1
    %p62 = por %p60, %p61
    %p64 = scmp.ne.s32.totalorder %s49, %s63
    %p65 = scmp.eq.s32.totalorder %s18, 0
    %p66 = por %p64, %p65
    %s68 = sadd.s32 %s67, 1
    %p71 = scmp.eq.s32.totalorder %s12, 1
    %p72 = scmp.ne.s32.totalorder %s67, %s69
    %p73 = scmp.eq.s32.totalorder %s12, 0
    %p74 = por %p72, %p73
    %p75 = scmp.ne.s32.totalorder %s67, %s69
    %p76 = scmp.eq.s32.totalorder %s17, 1
    %p77 = por %p75, %p76
    %p78 = scmp.ne.s32.totalorder %s69, %s70
    %p79 = scmp.eq.s32.totalorder %s17, 0
    %p80 = por %p78, %p79
    %p81 = scmp.ne.s32.totalorder %s69, %s70
    %p82 = scmp.eq.s32.totalorder %s18, 1
    %p83 = por %p81, %p82
    %p85 = scmp.ne.s32.totalorder %s70, %s84
    %p86 = scmp.eq.s32.totalorder %s18, 0
    %p87 = por %p85, %p86
    %s89 = sadd.s32 %s88, 1
    %p92 = scmp.eq.s32.totalorder %s12, 1
    %p93 = scmp.ne.s32.totalorder %s88, %s90
    %p94 = scmp.eq.s32.totalorder %s12, 0
    %p95 = por %p93, %p94
    %p96 = scmp.ne.s32.totalorder %s88, %s90
    %p97 = scmp.eq.s32.totalorder %s17, 1
    %p98 = por %p96, %p97
    %p99 = scmp.ne.s32.totalorder %s90, %s91
    %p100 = scmp.eq.s32.totalorder %s17, 0
    %p101 = por %p99, %p100
    %p102 = scmp.ne.s32.totalorder %s90, %s91
    %p103 = scmp.eq.s32.totalorder %s18, 1
    %p104 = por %p102, %p103
    %p106 = scmp.ne.s32.totalorder %s91, %s105
    %p107 = scmp.eq.s32.totalorder %s18, 0
    %p108 = por %p106, %p107
    %s109 = ssub.s32 %s12, %s19
    %p110 = scmp.eq.s32.totalorder %s109, 0
    %s112 = sadd.s32 %s111, 1
    %s113 = scalar_select %p110, %s111, %s112
    %p116 = pneg %p110
    %p117 = scmp.eq.s32.totalorder %s12, 1
    %p118 = por %p116, %p117
    %p119 = scmp.ne.s32.totalorder %s111, %s114
    %p120 = scmp.eq.s32.totalorder %s12, 0
    %p121 = por %p119, %p120
    %p122 = scmp.ne.s32.totalorder %s111, %s114
    %p123 = scmp.eq.s32.totalorder %s17, 1
    %p124 = por %p122, %p123
    %p125 = scmp.ne.s32.totalorder %s114, %s115
    %p126 = scmp.eq.s32.totalorder %s17, 0
    %p127 = por %p125, %p126
    %p128 = scmp.ne.s32.totalorder %s114, %s115
    %p129 = scmp.eq.s32.totalorder %s18, 1
    %p130 = por %p128, %p129
    %p132 = scmp.ne.s32.totalorder %s115, %s131
    %p133 = scmp.eq.s32.totalorder %s18, 0
    %p134 = por %p132, %p133
    %s135 = ssub.s32 %s12, %s19
    %p136 = scmp.eq.s32.totalorder %s135, 0
    %s138 = sadd.s32 %s137, 1
    %s139 = scalar_select %p136, %s137, %s138
    %p142 = pneg %p136
    %p143 = scmp.eq.s32.totalorder %s12, 1
    %p144 = por %p142, %p143
    %p145 = scmp.ne.s32.totalorder %s137, %s140
    %p146 = scmp.eq.s32.totalorder %s12, 0
    %p147 = por %p145, %p146
    %p148 = scmp.ne.s32.totalorder %s137, %s140
    %p149 = scmp.eq.s32.totalorder %s17, 1
    %p150 = por %p148, %p149
    %p151 = scmp.ne.s32.totalorder %s140, %s141
    %p152 = scmp.eq.s32.totalorder %s17, 0
    %p153 = por %p151, %p152
    %p154 = scmp.ne.s32.totalorder %s140, %s141
    %p155 = scmp.eq.s32.totalorder %s18, 1
    %p156 = por %p154, %p155
    %p158 = scmp.ne.s32.totalorder %s141, %s157
    %p159 = scmp.eq.s32.totalorder %s18, 0
    %p160 = por %p158, %p159
    %p161 = scmp.le.s32.totalorder 1, %s12
    %p162 = scmp.lt.s32.totalorder %s12, 3
    %p163 = pnand %p161, %p162
    %p164 = pneg %p163
    // Predicated region
    $region9: #{_lambda_.19} parent=5 // pred_check
      _
    $region10: #{_lambda_.19} parent=5 // pred_check_branch
      %166 = sbr.rel (%p163) target = $region12
    $region11: #{_lambda_.19} parent=5 // pred_region
      %s167 = ssub.s32 %s12, 1
      // Predicated region
      $region13: #{_lambda_.19} parent=11 // pred_check
        %p168 = pneg %p59
      $region14: #{_lambda_.19} parent=11 // pred_check_branch
        %170 = sbr.rel (%p168) target = $region16
      $region15: #{_lambda_.19} parent=11 // pred_region
        _
      $region16: #{_lambda_.19} parent=11 // pred_fallthru
        _
      // Predicated region
      $region17: #{_lambda_.19} parent=11 // pred_check
        %p171 = pneg %p80
      $region18: #{_lambda_.19} parent=11 // pred_check_branch
        %173 = sbr.rel (%p171) target = $region20
      $region19: #{_lambda_.19} parent=11 // pred_region
        _
      $region20: #{_lambda_.19} parent=11 // pred_fallthru
        _
      // Predicated region
      $region21: #{_lambda_.19} parent=11 // pred_check
        %p174 = pneg %p101
      $region22: #{_lambda_.19} parent=11 // pred_check_branch
        %176 = sbr.rel (%p174) target = $region24
      $region23: #{_lambda_.19} parent=11 // pred_region
        _
      $region24: #{_lambda_.19} parent=11 // pred_fallthru
        _
    $region12: #{_lambda_.19} parent=5 // pred_fallthru
      _
    %p177 = scmp.lt.s32.totalorder %s12, 2
    // Predicated region
    $region25: #{_lambda_.19} parent=5 // pred_check
      %p178 = pneg %p177
    $region26: #{_lambda_.19} parent=5 // pred_check_branch
      %180 = sbr.rel (%p178) target = $region28
    $region27: #{_lambda_.19} parent=5 // pred_region
      // Predicated region
      $region29: #{_lambda_.19} parent=27 // pred_check
        %p181 = pneg %p32
      $region30: #{_lambda_.19} parent=27 // pred_check_branch
        %183 = sbr.rel (%p181) target = $region32
      $region31: #{_lambda_.19} parent=27 // pred_region
        %p184 = scmp.lt.s32.totalorder %s12, 1
        %s185 = scalar_select %p184, %s12, 1
        %s186 = smul.addr %s185, 8
        %s187 = smul.addr %s186, 4
        %s188 = scalar_lea.vmem %s0, %s187
      $region32: #{_lambda_.19} parent=27 // pred_fallthru
        _
    $region28: #{_lambda_.19} parent=5 // pred_fallthru
      _
    %p189 = scmp.le.s32.totalorder 1, %s12
    %p190 = scmp.lt.s32.totalorder %s12, 3
    %p191 = pnand %p189, %p190
    %p192 = pneg %p191
    // Predicated region
    $region33: #{_lambda_.19} parent=5 // pred_check
      _
    $region34: #{_lambda_.19} parent=5 // pred_check_branch
      %194 = sbr.rel (%p191) target = $region36
    $region35: #{_lambda_.19} parent=5 // pred_region
      %s195 = ssub.s32 %s12, 1
      %p196 = scmp.lt.s32.totalorder %s17, 1
      %s197 = scalar_select %p196, %s17, 1
      %s198 = smul.addr %s197, 8
      %s199 = smul.addr %s198, 4
      %s200 = scalar_lea.vmem %s0, %s199
      %p201 = pneg %p38
      %p202 = pneg %p35
      %p203 = pneg %p59
      %p204 = pneg %p56
      %p205 = pneg %p80
      %p206 = pneg %p77
      %p207 = pneg %p101
      %p208 = pneg %p98
      %p209 = pneg %p127
      %p210 = pneg %p124
      %p211 = scmp.lt.s32.totalorder %s17, 1
      %s212 = scalar_select %p211, %s17, 1
      %s213 = smul.addr %s212, 8
      %s214 = smul.addr %s213, 4
      %s215 = scalar_lea.vmem %s4, %s214
      %p216 = pneg %p153
      %p217 = pneg %p150
      %p218 = scmp.lt.s32.totalorder %s17, 1
      %s219 = scalar_select %p218, %s17, 1
      %s220 = smul.addr %s219, 2
      %s221 = scalar_lea.vmem %s5, %s220
      %p222 = scmp.lt.s32.totalorder %s17, 1
      %s223 = scalar_select %p222, %s17, 1
      %s224 = smul.addr %s223, 8
      %s225 = smul.addr %s224, 4
      %s226 = scalar_lea.vmem %s0, %s225
      %p227 = scmp.lt.s32.totalorder %s17, 1
      %s228 = scalar_select %p227, %s17, 1
      %s229 = smul.addr %s228, 8
      %s230 = smul.addr %s229, 4
      %s231 = scalar_lea.vmem %s4, %s230
      %p232 = scmp.lt.s32.totalorder %s17, 1
      %s233 = scalar_select %p232, %s17, 1
      %s234 = smul.addr %s233, 2
      %s235 = scalar_lea.vmem %s5, %s234
      %236 = vst [vmem:[#allocation2] sm:$0xff] 0.0
      %237 = vst [vmem:[#allocation2 + $0x8] sm:$0xff] 0.0
      %238 = vst [vmem:[#allocation2 + $0x10] sm:$0xff] 0.0
      %239 = vst [vmem:[#allocation2 + $0x18] sm:$0xff] 0.0
      %240 = vst [vmem:[#allocation2 + $0x20] sm:$0xff] 0.0
      %241 = vst [vmem:[#allocation2 + $0x28] sm:$0xff] 0.0
      %242 = vst [vmem:[#allocation2 + $0x30] sm:$0xff] 0.0
      %243 = vst [vmem:[#allocation2 + $0x38] sm:$0xff] 0.0
      %244 = vst [vmem:[#allocation2 + $0x40] sm:$0xff] 0.0
      %245 = vst [vmem:[#allocation2 + $0x48] sm:$0xff] 0.0
      %246 = vst [vmem:[#allocation2 + $0x50] sm:$0xff] 0.0
      %247 = vst [vmem:[#allocation2 + $0x58] sm:$0xff] 0.0
      %248 = vst [vmem:[#allocation2 + $0x60] sm:$0xff] 0.0
      %249 = vst [vmem:[#allocation2 + $0x68] sm:$0xff] 0.0
      %250 = vst [vmem:[#allocation2 + $0x70] sm:$0xff] 0.0
      %251 = vst [vmem:[#allocation2 + $0x78] sm:$0xff] 0.0
      %252 = vst [vmem:[#allocation2 + $0x80] sm:$0xff] 0.0
      %253 = vst [vmem:[#allocation2 + $0x88] sm:$0xff] 0.0
      %254 = vst [vmem:[#allocation2 + $0x90] sm:$0xff] 0.0
      %255 = vst [vmem:[#allocation2 + $0x98] sm:$0xff] 0.0
      %256 = vst [vmem:[#allocation2 + $0xa0] sm:$0xff] 0.0
      %257 = vst [vmem:[#allocation2 + $0xa8] sm:$0xff] 0.0
      %258 = vst [vmem:[#allocation2 + $0xb0] sm:$0xff] 0.0
      %259 = vst [vmem:[#allocation2 + $0xb8] sm:$0xff] 0.0
      %260 = vst [vmem:[#allocation2 + $0xc0] sm:$0xff] 0.0
      %261 = vst [vmem:[#allocation2 + $0xc8] sm:$0xff] 0.0
      %262 = vst [vmem:[#allocation2 + $0xd0] sm:$0xff] 0.0
      %263 = vst [vmem:[#allocation2 + $0xd8] sm:$0xff] 0.0
      %264 = vst [vmem:[#allocation2 + $0xe0] sm:$0xff] 0.0
      %265 = vst [vmem:[#allocation2 + $0xe8] sm:$0xff] 0.0
      %v266 = vld [vmem:[%s226] sm:$0xf]
      %v267 = vld [vmem:[%s226 + $0x4] sm:$0xf]
      %v268 = vld [vmem:[%s226 + $0x8] sm:$0xf]
      %v269 = vld [vmem:[%s226 + $0xc] sm:$0xf]
      %v270 = vld [vmem:[%s226 + $0x10] sm:$0xf]
      %v271 = vld [vmem:[%s226 + $0x14] sm:$0xf]
      %v272 = vld [vmem:[%s226 + $0x18] sm:$0xf]
      %v273 = vld [vmem:[%s226 + $0x1c] sm:$0xf]
      %v274 = vunpack.c.l.bf16 %v266
      %v275 = vunpack.c.l.bf16 %v267
      %v276 = vunpack.c.l.bf16 %v268
      %v277 = vunpack.c.l.bf16 %v269
      %v278 = vunpack.c.l.bf16 %v270
      %v279 = vunpack.c.l.bf16 %v271
      %v280 = vunpack.c.l.bf16 %v272
      %v281 = vunpack.c.l.bf16 %v273
      %s282 = scalar_lea.vmem [#allocation2], 24
      %283 = vst [vmem:[%s282 + $0x8] sm:$0xff] %v274
      %284 = vst [vmem:[%s282 + $0x20] sm:$0xff] %v275
      %285 = vst [vmem:[%s282 + $0x38] sm:$0xff] %v276
      %286 = vst [vmem:[%s282 + $0x50] sm:$0xff] %v277
      %287 = vst [vmem:[%s282 + $0x68] sm:$0xff] %v278
      %288 = vst [vmem:[%s282 + $0x80] sm:$0xff] %v279
      %289 = vst [vmem:[%s282 + $0x98] sm:$0xff] %v280
      %290 = vst [vmem:[%s282 + $0xb0] sm:$0xff] %v281
      %v291 = vld [vmem:[#allocation2 + $0x7] sm:$0xff]
      %v292 = vld [vmem:[#allocation2 + $0x1f] sm:$0xff]
      %v293 = vld [vmem:[#allocation2 + $0x37] sm:$0xff]
      %v294 = vld [vmem:[#allocation2 + $0x4f] sm:$0xff]
      %v295 = vld [vmem:[#allocation2 + $0x67] sm:$0xff]
      %v296 = vld [vmem:[#allocation2 + $0x7f] sm:$0xff]
      %v297 = vld [vmem:[#allocation2 + $0x97] sm:$0xff]
      %v298 = vld [vmem:[#allocation2 + $0xaf] sm:$0xff]
      %v299 = vld [vmem:[%s3] sm:$0x1]
      %v300 = vlaneseq
      %v301 = vshrl.u32 %v300, 7
      %v302 = vsub.s32 0, %v301
      %v303 = vrot.slane %v299, %v302
      %v304 = vmul.f32 %v291, %v303
      %v305 = vmul.f32 %v292, %v303
      %v306 = vmul.f32 %v293, %v303
      %v307 = vmul.f32 %v294, %v303
      %v308 = vmul.f32 %v295, %v303
      %v309 = vmul.f32 %v296, %v303
      %v310 = vmul.f32 %v297, %v303
      %v311 = vmul.f32 %v298, %v303
      %v312 = vadd.f32 %v304, 0.0
      %v313 = vadd.f32 %v305, 0.0
      %v314 = vadd.f32 %v306, 0.0
      %v315 = vadd.f32 %v307, 0.0
      %v316 = vadd.f32 %v308, 0.0
      %v317 = vadd.f32 %v309, 0.0
      %v318 = vadd.f32 %v310, 0.0
      %v319 = vadd.f32 %v311, 0.0
      %v320 = vld [vmem:[#allocation2 + $0x8] sm:$0xff]
      %v321 = vld [vmem:[#allocation2 + $0x20] sm:$0xff]
      %v322 = vld [vmem:[#allocation2 + $0x38] sm:$0xff]
      %v323 = vld [vmem:[#allocation2 + $0x50] sm:$0xff]
      %v324 = vld [vmem:[#allocation2 + $0x68] sm:$0xff]
      %v325 = vld [vmem:[#allocation2 + $0x80] sm:$0xff]
      %v326 = vld [vmem:[#allocation2 + $0x98] sm:$0xff]
      %v327 = vld [vmem:[#allocation2 + $0xb0] sm:$0xff]
      %v328 = vld [vmem:[%s3 + $0x1] sm:$0x1]
      %v329 = vlaneseq
      %v330 = vshrl.u32 %v329, 7
      %v331 = vsub.s32 0, %v330
      %v332 = vrot.slane %v328, %v331
      %v333 = vmul.f32 %v320, %v332
      %v334 = vmul.f32 %v321, %v332
      %v335 = vmul.f32 %v322, %v332
      %v336 = vmul.f32 %v323, %v332
      %v337 = vmul.f32 %v324, %v332
      %v338 = vmul.f32 %v325, %v332
      %v339 = vmul.f32 %v326, %v332
      %v340 = vmul.f32 %v327, %v332
      %v341 = vadd.f32 %v312, %v333
      %v342 = vadd.f32 %v313, %v334
      %v343 = vadd.f32 %v314, %v335
      %v344 = vadd.f32 %v315, %v336
      %v345 = vadd.f32 %v316, %v337
      %v346 = vadd.f32 %v317, %v338
      %v347 = vadd.f32 %v318, %v339
      %v348 = vadd.f32 %v319, %v340
      %v349 = vld [vmem:[#allocation2 + $0x9] sm:$0xff]
      %v350 = vld [vmem:[#allocation2 + $0x21] sm:$0xff]
      %v351 = vld [vmem:[#allocation2 + $0x39] sm:$0xff]
      %v352 = vld [vmem:[#allocation2 + $0x51] sm:$0xff]
      %v353 = vld [vmem:[#allocation2 + $0x69] sm:$0xff]
      %v354 = vld [vmem:[#allocation2 + $0x81] sm:$0xff]
      %v355 = vld [vmem:[#allocation2 + $0x99] sm:$0xff]
      %v356 = vld [vmem:[#allocation2 + $0xb1] sm:$0xff]
      %v357 = vld [vmem:[%s3 + $0x2] sm:$0x1]
      %v358 = vlaneseq
      %v359 = vshrl.u32 %v358, 7
      %v360 = vsub.s32 0, %v359
      %v361 = vrot.slane %v357, %v360
      %v362 = vmul.f32 %v349, %v361
      %v363 = vmul.f32 %v350, %v361
      %v364 = vmul.f32 %v351, %v361
      %v365 = vmul.f32 %v352, %v361
      %v366 = vmul.f32 %v353, %v361
      %v367 = vmul.f32 %v354, %v361
      %v368 = vmul.f32 %v355, %v361
      %v369 = vmul.f32 %v356, %v361
      %v370 = vadd.f32 %v341, %v362
      %v371 = vadd.f32 %v342, %v363
      %v372 = vadd.f32 %v343, %v364
      %v373 = vadd.f32 %v344, %v365
      %v374 = vadd.f32 %v345, %v366
      %v375 = vadd.f32 %v346, %v367
      %v376 = vadd.f32 %v347, %v368
      %v377 = vadd.f32 %v348, %v369
      %v378 = vld [vmem:[%s282 + $0x7] sm:$0xff]
      %v379 = vld [vmem:[%s282 + $0x1f] sm:$0xff]
      %v380 = vld [vmem:[%s282 + $0x37] sm:$0xff]
      %v381 = vld [vmem:[%s282 + $0x4f] sm:$0xff]
      %v382 = vld [vmem:[%s282 + $0x67] sm:$0xff]
      %v383 = vld [vmem:[%s282 + $0x7f] sm:$0xff]
      %v384 = vld [vmem:[%s282 + $0x97] sm:$0xff]
      %v385 = vld [vmem:[%s282 + $0xaf] sm:$0xff]
      %v386 = vld [vmem:[%s3 + $0x3] sm:$0x1]
      %v387 = vlaneseq
      %v388 = vshrl.u32 %v387, 7
      %v389 = vsub.s32 0, %v388
      %v390 = vrot.slane %v386, %v389
      %v391 = vmul.f32 %v378, %v390
      %v392 = vmul.f32 %v379, %v390
      %v393 = vmul.f32 %v380, %v390
      %v394 = vmul.f32 %v381, %v390
      %v395 = vmul.f32 %v382, %v390
      %v396 = vmul.f32 %v383, %v390
      %v397 = vmul.f32 %v384, %v390
      %v398 = vmul.f32 %v385, %v390
      %v399 = vadd.f32 %v370, %v391
      %v400 = vadd.f32 %v371, %v392
      %v401 = vadd.f32 %v372, %v393
      %v402 = vadd.f32 %v373, %v394
      %v403 = vadd.f32 %v374, %v395
      %v404 = vadd.f32 %v375, %v396
      %v405 = vadd.f32 %v376, %v397
      %v406 = vadd.f32 %v377, %v398
      %v407 = vld [vmem:[%s282 + $0x8] sm:$0xff]
      %v408 = vld [vmem:[%s282 + $0x20] sm:$0xff]
      %v409 = vld [vmem:[%s282 + $0x38] sm:$0xff]
      %v410 = vld [vmem:[%s282 + $0x50] sm:$0xff]
      %v411 = vld [vmem:[%s282 + $0x68] sm:$0xff]
      %v412 = vld [vmem:[%s282 + $0x80] sm:$0xff]
      %v413 = vld [vmem:[%s282 + $0x98] sm:$0xff]
      %v414 = vld [vmem:[%s282 + $0xb0] sm:$0xff]
      %v415 = vld [vmem:[%s3 + $0x4] sm:$0x1]
      %v416 = vlaneseq
      %v417 = vshrl.u32 %v416, 7
      %v418 = vsub.s32 0, %v417
      %v419 = vrot.slane %v415, %v418
      %v420 = vmul.f32 %v407, %v419
      %v421 = vmul.f32 %v408, %v419
      %v422 = vmul.f32 %v409, %v419
      %v423 = vmul.f32 %v410, %v419
      %v424 = vmul.f32 %v411, %v419
      %v425 = vmul.f32 %v412, %v419
      %v426 = vmul.f32 %v413, %v419
      %v427 = vmul.f32 %v414, %v419
      %v428 = vadd.f32 %v399, %v420
      %v429 = vadd.f32 %v400, %v421
      %v430 = vadd.f32 %v401, %v422
      %v431 = vadd.f32 %v402, %v423
      %v432 = vadd.f32 %v403, %v424
      %v433 = vadd.f32 %v404, %v425
      %v434 = vadd.f32 %v405, %v426
      %v435 = vadd.f32 %v406, %v427
      %v436 = vld [vmem:[%s282 + $0x9] sm:$0xff]
      %v437 = vld [vmem:[%s282 + $0x21] sm:$0xff]
      %v438 = vld [vmem:[%s282 + $0x39] sm:$0xff]
      %v439 = vld [vmem:[%s282 + $0x51] sm:$0xff]
      %v440 = vld [vmem:[%s282 + $0x69] sm:$0xff]
      %v441 = vld [vmem:[%s282 + $0x81] sm:$0xff]
      %v442 = vld [vmem:[%s282 + $0x99] sm:$0xff]
      %v443 = vld [vmem:[%s282 + $0xb1] sm:$0xff]
      %v444 = vld [vmem:[%s3 + $0x5] sm:$0x1]
      %v445 = vlaneseq
      %v446 = vshrl.u32 %v445, 7
      %v447 = vsub.s32 0, %v446
      %v448 = vrot.slane %v444, %v447
      %v449 = vmul.f32 %v436, %v448
      %v450 = vmul.f32 %v437, %v448
      %v451 = vmul.f32 %v438, %v448
      %v452 = vmul.f32 %v439, %v448
      %v453 = vmul.f32 %v440, %v448
      %v454 = vmul.f32 %v441, %v448
      %v455 = vmul.f32 %v442, %v448
      %v456 = vmul.f32 %v443, %v448
      %v457 = vadd.f32 %v428, %v449
      %v458 = vadd.f32 %v429, %v450
      %v459 = vadd.f32 %v430, %v451
      %v460 = vadd.f32 %v431, %v452
      %v461 = vadd.f32 %v432, %v453
      %v462 = vadd.f32 %v433, %v454
      %v463 = vadd.f32 %v434, %v455
      %v464 = vadd.f32 %v435, %v456
      %s465 = scalar_lea.vmem [#allocation2], 48
      %v466 = vld [vmem:[%s465 + $0x7] sm:$0xff]
      %v467 = vld [vmem:[%s465 + $0x1f] sm:$0xff]
      %v468 = vld [vmem:[%s465 + $0x37] sm:$0xff]
      %v469 = vld [vmem:[%s465 + $0x4f] sm:$0xff]
      %v470 = vld [vmem:[%s465 + $0x67] sm:$0xff]
      %v471 = vld [vmem:[%s465 + $0x7f] sm:$0xff]
      %v472 = vld [vmem:[%s465 + $0x97] sm:$0xff]
      %v473 = vld [vmem:[%s465 + $0xaf] sm:$0xff]
      %v474 = vld [vmem:[%s3 + $0x6] sm:$0x1]
      %v475 = vlaneseq
      %v476 = vshrl.u32 %v475, 7
      %v477 = vsub.s32 0, %v476
      %v478 = vrot.slane %v474, %v477
      %v479 = vmul.f32 %v466, %v478
      %v480 = vmul.f32 %v467, %v478
      %v481 = vmul.f32 %v468, %v478
      %v482 = vmul.f32 %v469, %v478
      %v483 = vmul.f32 %v470, %v478
      %v484 = vmul.f32 %v471, %v478
      %v485 = vmul.f32 %v472, %v478
      %v486 = vmul.f32 %v473, %v478
      %v487 = vadd.f32 %v457, %v479
      %v488 = vadd.f32 %v458, %v480
      %v489 = vadd.f32 %v459, %v481
      %v490 = vadd.f32 %v460, %v482
      %v491 = vadd.f32 %v461, %v483
      %v492 = vadd.f32 %v462, %v484
      %v493 = vadd.f32 %v463, %v485
      %v494 = vadd.f32 %v464, %v486
      %v495 = vld [vmem:[%s465 + $0x8] sm:$0xff]
      %v496 = vld [vmem:[%s465 + $0x20] sm:$0xff]
      %v497 = vld [vmem:[%s465 + $0x38] sm:$0xff]
      %v498 = vld [vmem:[%s465 + $0x50] sm:$0xff]
      %v499 = vld [vmem:[%s465 + $0x68] sm:$0xff]
      %v500 = vld [vmem:[%s465 + $0x80] sm:$0xff]
      %v501 = vld [vmem:[%s465 + $0x98] sm:$0xff]
      %v502 = vld [vmem:[%s465 + $0xb0] sm:$0xff]
      %v503 = vld [vmem:[%s3 + $0x7] sm:$0x1]
      %v504 = vlaneseq
      %v505 = vshrl.u32 %v504, 7
      %v506 = vsub.s32 0, %v505
      %v507 = vrot.slane %v503, %v506
      %v508 = vmul.f32 %v495, %v507
      %v509 = vmul.f32 %v496, %v507
      %v510 = vmul.f32 %v497, %v507
      %v511 = vmul.f32 %v498, %v507
      %v512 = vmul.f32 %v499, %v507
      %v513 = vmul.f32 %v500, %v507
      %v514 = vmul.f32 %v501, %v507
      %v515 = vmul.f32 %v502, %v507
      %v516 = vadd.f32 %v487, %v508
      %v517 = vadd.f32 %v488, %v509
      %v518 = vadd.f32 %v489, %v510
      %v519 = vadd.f32 %v490, %v511
      %v520 = vadd.f32 %v491, %v512
      %v521 = vadd.f32 %v492, %v513
      %v522 = vadd.f32 %v493, %v514
      %v523 = vadd.f32 %v494, %v515
      %v524 = vld [vmem:[%s465 + $0x9] sm:$0xff]
      %v525 = vld [vmem:[%s465 + $0x21] sm:$0xff]
      %v526 = vld [vmem:[%s465 + $0x39] sm:$0xff]
      %v527 = vld [vmem:[%s465 + $0x51] sm:$0xff]
      %v528 = vld [vmem:[%s465 + $0x69] sm:$0xff]
      %v529 = vld [vmem:[%s465 + $0x81] sm:$0xff]
      %v530 = vld [vmem:[%s465 + $0x99] sm:$0xff]
      %v531 = vld [vmem:[%s465 + $0xb1] sm:$0xff]
      %v532 = vld [vmem:[%s3 + $0x8] sm:$0x1]
      %v533 = vlaneseq
      %v534 = vshrl.u32 %v533, 7
      %v535 = vsub.s32 0, %v534
      %v536 = vrot.slane %v532, %v535
      %v537 = vmul.f32 %v524, %v536
      %v538 = vmul.f32 %v525, %v536
      %v539 = vmul.f32 %v526, %v536
      %v540 = vmul.f32 %v527, %v536
      %v541 = vmul.f32 %v528, %v536
      %v542 = vmul.f32 %v529, %v536
      %v543 = vmul.f32 %v530, %v536
      %v544 = vmul.f32 %v531, %v536
      %v545 = vadd.f32 %v516, %v537
      %v546 = vadd.f32 %v517, %v538
      %v547 = vadd.f32 %v518, %v539
      %v548 = vadd.f32 %v519, %v540
      %v549 = vadd.f32 %v520, %v541
      %v550 = vadd.f32 %v521, %v542
      %v551 = vadd.f32 %v522, %v543
      %v552 = vadd.f32 %v523, %v544
      %v553 = vpack.c.bf16 %v545, %v545
      %v554 = vpack.c.bf16 %v546, %v546
      %v555 = vpack.c.bf16 %v547, %v547
      %v556 = vpack.c.bf16 %v548, %v548
      %v557 = vpack.c.bf16 %v549, %v549
      %v558 = vpack.c.bf16 %v550, %v550
      %v559 = vpack.c.bf16 %v551, %v551
      %v560 = vpack.c.bf16 %v552, %v552
      %561 = vst [vmem:[%s231] sm:$0xf] %v553
      %562 = vst [vmem:[%s231 + $0x4] sm:$0xf] %v554
      %563 = vst [vmem:[%s231 + $0x8] sm:$0xf] %v555
      %564 = vst [vmem:[%s231 + $0xc] sm:$0xf] %v556
      %565 = vst [vmem:[%s231 + $0x10] sm:$0xf] %v557
      %566 = vst [vmem:[%s231 + $0x14] sm:$0xf] %v558
      %567 = vst [vmem:[%s231 + $0x18] sm:$0xf] %v559
      %568 = vst [vmem:[%s231 + $0x1c] sm:$0xf] %v560
      %v569 = vadd.f32 %v545, %v546
      %v570 = vadd.f32 %v569, %v547
      %v571 = vadd.f32 %v570, %v548
      %v572 = vadd.f32 %v571, %v549
      %v573 = vadd.f32 %v572, %v550
      %v574 = vadd.f32 %v573, %v551
      %v575 = vadd.f32 %v574, %v552
      %v576 = vrot.slane %v575, 4
      %v577 = vadd.f32 %v575, %v576
      %v578 = vrot.slane %v577, 2
      %v579 = vadd.f32 %v577, %v578
      %v580 = vrot.slane %v579, 1
      %v581 = vadd.f32 %v579, %v580
      %582 = vst [vmem:[%s235] sm:$0x1] %v581
      %v583 = vmul.f32 %v545, %v545
      %v584 = vmul.f32 %v546, %v546
      %v585 = vmul.f32 %v547, %v547
      %v586 = vmul.f32 %v548, %v548
      %v587 = vmul.f32 %v549, %v549
      %v588 = vmul.f32 %v550, %v550
      %v589 = vmul.f32 %v551, %v551
      %v590 = vmul.f32 %v552, %v552
      %v591 = vadd.f32 %v583, %v584
      %v592 = vadd.f32 %v591, %v585
      %v593 = vadd.f32 %v592, %v586
      %v594 = vadd.f32 %v593, %v587
      %v595 = vadd.f32 %v594, %v588
      %v596 = vadd.f32 %v595, %v589
      %v597 = vadd.f32 %v596, %v590
      %v598 = vrot.slane %v597, 4
      %v599 = vadd.f32 %v597, %v598
      %v600 = vrot.slane %v599, 2
      %v601 = vadd.f32 %v599, %v600
      %v602 = vrot.slane %v601, 1
      %v603 = vadd.f32 %v601, %v602
      %604 = vst [vmem:[%s235 + $0x1] sm:$0x1] %v603
      %p605 = scmp.lt.s32.totalorder %s17, 1
      %s606 = scalar_select %p605, %s17, 1
      %s607 = smul.addr %s606, 8
      %s608 = smul.addr %s607, 4
      %s609 = scalar_lea.vmem %s4, %s608
      %p610 = scmp.lt.s32.totalorder %s17, 1
      %s611 = scalar_select %p610, %s17, 1
      %s612 = smul.addr %s611, 2
      %s613 = scalar_lea.vmem %s5, %s612
      // Predicated region
      $region37: #{_lambda_.19} parent=35 // pred_check
        %p614 = pneg %p124
      $region38: #{_lambda_.19} parent=35 // pred_check_branch
        %616 = sbr.rel (%p614) target = $region40
      $region39: #{_lambda_.19} parent=35 // pred_region
        _
      $region40: #{_lambda_.19} parent=35 // pred_fallthru
        _
      // Predicated region
      $region41: #{_lambda_.19} parent=35 // pred_check
        %p617 = pneg %p150
      $region42: #{_lambda_.19} parent=35 // pred_check_branch
        %619 = sbr.rel (%p617) target = $region44
      $region43: #{_lambda_.19} parent=35 // pred_region
        _
      $region44: #{_lambda_.19} parent=35 // pred_fallthru
        _
    $region36: #{_lambda_.19} parent=5 // pred_fallthru
      _
    %p620 = scmp.le.s32.totalorder 2, %s12
    // Predicated region
    $region45: #{_lambda_.19} parent=5 // pred_check
      %p621 = pneg %p620
    $region46: #{_lambda_.19} parent=5 // pred_check_branch
      %623 = sbr.rel (%p621) target = $region48
    $region47: #{_lambda_.19} parent=5 // pred_region
      %s624 = ssub.s32 %s12, 2
      // Predicated region
      $region49: #{_lambda_.19} parent=47 // pred_check
        %p625 = pneg %p130
      $region50: #{_lambda_.19} parent=47 // pred_check_branch
        %627 = sbr.rel (%p625) target = $region52
      $region51: #{_lambda_.19} parent=47 // pred_region
        %p628 = scmp.lt.s32.totalorder %s18, 1
        %s629 = scalar_select %p628, %s18, 1
        %s630 = smul.addr %s629, 8
        %s631 = smul.addr %s630, 4
        %s632 = scalar_lea.vmem %s4, %s631
      $region52: #{_lambda_.19} parent=47 // pred_fallthru
        _
      // Predicated region
      $region53: #{_lambda_.19} parent=47 // pred_check
        %p633 = pneg %p156
      $region54: #{_lambda_.19} parent=47 // pred_check_branch
        %635 = sbr.rel (%p633) target = $region56
      $region55: #{_lambda_.19} parent=47 // pred_region
        %p636 = scmp.lt.s32.totalorder %s18, 1
        %s637 = scalar_select %p636, %s18, 1
        %s638 = smul.addr %s637, 2
        %s639 = scalar_lea.vmem %s5, %s638
      $region56: #{_lambda_.19} parent=47 // pred_fallthru
        _
    $region48: #{_lambda_.19} parent=5 // pred_fallthru
      _
  $region6: #{_lambda_.19} parent=0 // loop_footer
    %s16 = sadd.s32 1, %s12
  $region7: #{_lambda_.19} parent=0 // loop_footer_branch
    %11 = sbr.rel target = $region3
  $region8: #{_lambda_.19} parent=0 // loop_exit
    _

// kernel: _lambda_.22
$region0: #{_lambda_.22}
  #allocation0 [shape = 'u32[]', space=smem, size = 0x4, offset = 0x4, fixed_abs, tag = 'smem constant byte address 0x4 - core index']
  #allocation1 [shape = 'u32[144,128]{1,0:T(1,128)}', space=vmem, size = 0x12000, scoped, tag = 'internal scratch']
  %s0 = inlined_call_operand.vmem [shape: bf16[128,128], index: 0, kind: input, shape index: {}]
  %s1 = inlined_call_operand.vmem [shape: f32[1,128], index: 1, kind: input, shape index: {}]
  %s2 = inlined_call_operand.vmem [shape: f32[1,128], index: 2, kind: input, shape index: {}]
  %s3 = inlined_call_operand.vmem [shape: bf16[128,128], index: 3, kind: output, shape index: {}]
  %s4 = sld [smem:[#allocation0]]
  $region22: #{_lambda_.22} parent=0
    _
  %s6 = ssub.s32 1, %s4
  %s7 = scalar_select 0, %s6, %s4
  // Predicated region
  $region2: #{_lambda_.22} parent=0 // pred_check
    _
  $region3: #{_lambda_.22} parent=0 // pred_check_branch
    %9 = sbr.rel (0) target = $region5
  $region4: #{_lambda_.22} parent=0 // pred_region
    _
  $region5: #{_lambda_.22} parent=0 // pred_fallthru
    _
  // Predicated region
  $region6: #{_lambda_.22} parent=0 // pred_check
    _
  $region7: #{_lambda_.22} parent=0 // pred_check_branch
    %11 = sbr.rel (0) target = $region9
  $region8: #{_lambda_.22} parent=0 // pred_region
    _
  $region9: #{_lambda_.22} parent=0 // pred_fallthru
    _
  // Predicated region
  $region10: #{_lambda_.22} parent=0 // pred_check
    _
  $region11: #{_lambda_.22} parent=0 // pred_check_branch
    %13 = sbr.rel (0) target = $region13
  $region12: #{_lambda_.22} parent=0 // pred_region
    _
  $region13: #{_lambda_.22} parent=0 // pred_fallthru
    _
  %v14 = vld [vmem:[%s0] sm:$0xf]
  %v15 = vld [vmem:[%s0 + $0x4] sm:$0xf]
  %v16 = vld [vmem:[%s0 + $0x8] sm:$0xf]
  %v17 = vld [vmem:[%s0 + $0xc] sm:$0xf]
  %v18 = vld [vmem:[%s0 + $0x10] sm:$0xf]
  %v19 = vld [vmem:[%s0 + $0x14] sm:$0xf]
  %v20 = vld [vmem:[%s0 + $0x18] sm:$0xf]
  %v21 = vld [vmem:[%s0 + $0x1c] sm:$0xf]
  %v22 = vld [vmem:[%s0 + $0x20] sm:$0xf]
  %v23 = vld [vmem:[%s0 + $0x24] sm:$0xf]
  %v24 = vld [vmem:[%s0 + $0x28] sm:$0xf]
  %v25 = vld [vmem:[%s0 + $0x2c] sm:$0xf]
  %v26 = vld [vmem:[%s0 + $0x30] sm:$0xf]
  %v27 = vld [vmem:[%s0 + $0x34] sm:$0xf]
  %v28 = vld [vmem:[%s0 + $0x38] sm:$0xf]
  %v29 = vld [vmem:[%s0 + $0x3c] sm:$0xf]
  %v30 = vunpack.c.l.bf16 %v14
  %v31 = vunpack.c.l.bf16 %v15
  %v32 = vunpack.c.l.bf16 %v16
  %v33 = vunpack.c.l.bf16 %v17
  %v34 = vunpack.c.l.bf16 %v18
  %v35 = vunpack.c.l.bf16 %v19
  %v36 = vunpack.c.l.bf16 %v20
  %v37 = vunpack.c.l.bf16 %v21
  %v38 = vunpack.c.l.bf16 %v22
  %v39 = vunpack.c.l.bf16 %v23
  %v40 = vunpack.c.l.bf16 %v24
  %v41 = vunpack.c.l.bf16 %v25
  %v42 = vunpack.c.l.bf16 %v26
  %v43 = vunpack.c.l.bf16 %v27
  %v44 = vunpack.c.l.bf16 %v28
  %v45 = vunpack.c.l.bf16 %v29
  %v46 = vld [vmem:[%s1] sm:$0x1]
  %v48 = vlaneseq
  %v49 = vshrl.u32 %v48, 7
  %v50 = vsub.s32 0, %v49
  %v51 = vrot.slane %v46, %v50
  %v53 = vmul.f32 %v30, %v51
  %v54 = vmul.f32 %v31, %v51
  %v55 = vmul.f32 %v32, %v51
  %v56 = vmul.f32 %v33, %v51
  %v57 = vmul.f32 %v34, %v51
  %v58 = vmul.f32 %v35, %v51
  %v59 = vmul.f32 %v36, %v51
  %v60 = vmul.f32 %v37, %v51
  %v61 = vmul.f32 %v38, %v51
  %v62 = vmul.f32 %v39, %v51
  %v63 = vmul.f32 %v40, %v51
  %v64 = vmul.f32 %v41, %v51
  %v65 = vmul.f32 %v42, %v51
  %v66 = vmul.f32 %v43, %v51
  %v67 = vmul.f32 %v44, %v51
  %v68 = vmul.f32 %v45, %v51
  %v69 = vld [vmem:[%s2] sm:$0x1]
  %v71 = vlaneseq
  %v72 = vshrl.u32 %v71, 7
  %v73 = vsub.s32 0, %v72
  %v74 = vrot.slane %v69, %v73
  %v76 = vadd.f32 %v53, %v74
  %v77 = vadd.f32 %v54, %v74
  %v78 = vadd.f32 %v55, %v74
  %v79 = vadd.f32 %v56, %v74
  %v80 = vadd.f32 %v57, %v74
  %v81 = vadd.f32 %v58, %v74
  %v82 = vadd.f32 %v59, %v74
  %v83 = vadd.f32 %v60, %v74
  %v84 = vadd.f32 %v61, %v74
  %v85 = vadd.f32 %v62, %v74
  %v86 = vadd.f32 %v63, %v74
  %v87 = vadd.f32 %v64, %v74
  %v88 = vadd.f32 %v65, %v74
  %v89 = vadd.f32 %v66, %v74
  %v90 = vadd.f32 %v67, %v74
  %v91 = vadd.f32 %v68, %v74
  %v92 = vpack.c.bf16 %v77, %v76
  %v93 = vpack.c.bf16 %v79, %v78
  %v94 = vpack.c.bf16 %v81, %v80
  %v95 = vpack.c.bf16 %v83, %v82
  %v96 = vpack.c.bf16 %v85, %v84
  %v97 = vpack.c.bf16 %v87, %v86
  %v98 = vpack.c.bf16 %v89, %v88
  %v99 = vpack.c.bf16 %v91, %v90
  %v108 = vunpack.c.l.b16 %v92
  %v109 = vunpack.c.h.b16 %v92
  %v110 = vunpack.c.l.b16 %v93
  %v111 = vunpack.c.h.b16 %v93
  %v112 = vunpack.c.l.b16 %v94
  %v113 = vunpack.c.h.b16 %v94
  %v114 = vunpack.c.l.b16 %v95
  %v115 = vunpack.c.h.b16 %v95
  %v116 = vunpack.c.l.b16 %v96
  %v117 = vunpack.c.h.b16 %v96
  %v118 = vunpack.c.l.b16 %v97
  %v119 = vunpack.c.h.b16 %v97
  %v120 = vunpack.c.l.b16 %v98
  %v121 = vunpack.c.h.b16 %v98
  %v122 = vunpack.c.l.b16 %v99
  %v123 = vunpack.c.h.b16 %v99
  %v124 = vpack.c.b16 %v108, %v108
  %v125 = vpack.c.b16 %v109, %v109
  %v126 = vpack.c.b16 %v110, %v110
  %v127 = vpack.c.b16 %v111, %v111
  %v128 = vpack.c.b16 %v112, %v112
  %v129 = vpack.c.b16 %v113, %v113
  %v130 = vpack.c.b16 %v114, %v114
  %v131 = vpack.c.b16 %v115, %v115
  %v132 = vpack.c.b16 %v116, %v116
  %v133 = vpack.c.b16 %v117, %v117
  %v134 = vpack.c.b16 %v118, %v118
  %v135 = vpack.c.b16 %v119, %v119
  %v136 = vpack.c.b16 %v120, %v120
  %v137 = vpack.c.b16 %v121, %v121
  %v138 = vpack.c.b16 %v122, %v122
  %v139 = vpack.c.b16 %v123, %v123
  %156 = vst [vmem:[%s3] sm:$0xf] %v124
  %157 = vst [vmem:[%s3 + $0x4] sm:$0xf] %v125
  %158 = vst [vmem:[%s3 + $0x8] sm:$0xf] %v126
  %159 = vst [vmem:[%s3 + $0xc] sm:$0xf] %v127
  %160 = vst [vmem:[%s3 + $0x10] sm:$0xf] %v128
  %161 = vst [vmem:[%s3 + $0x14] sm:$0xf] %v129
  %162 = vst [vmem:[%s3 + $0x18] sm:$0xf] %v130
  %163 = vst [vmem:[%s3 + $0x1c] sm:$0xf] %v131
  %164 = vst [vmem:[%s3 + $0x20] sm:$0xf] %v132
  %165 = vst [vmem:[%s3 + $0x24] sm:$0xf] %v133
  %166 = vst [vmem:[%s3 + $0x28] sm:$0xf] %v134
  %167 = vst [vmem:[%s3 + $0x2c] sm:$0xf] %v135
  %168 = vst [vmem:[%s3 + $0x30] sm:$0xf] %v136
  %169 = vst [vmem:[%s3 + $0x34] sm:$0xf] %v137
  %170 = vst [vmem:[%s3 + $0x38] sm:$0xf] %v138
  %171 = vst [vmem:[%s3 + $0x3c] sm:$0xf] %v139
  // Predicated region
  $region14: #{_lambda_.22} parent=0 // pred_check
    _
  $region15: #{_lambda_.22} parent=0 // pred_check_branch
    %173 = sbr.rel (0) target = $region17
  $region16: #{_lambda_.22} parent=0 // pred_region
    _
  $region17: #{_lambda_.22} parent=0 // pred_fallthru
    _
  // Predicated region
  $region18: #{_lambda_.22} parent=0 // pred_check
    _
  $region19: #{_lambda_.22} parent=0 // pred_check_branch
    %175 = sbr.rel (0) target = $region21
  $region20: #{_lambda_.22} parent=0 // pred_region
    _
  $region21: #{_lambda_.22} parent=0 // pred_fallthru
    _

// kernel: _lambda_.20
$region0: #{_lambda_.20}
  #allocation0 [shape = 'u32[]', space=smem, size = 0x4, offset = 0x4, fixed_abs, tag = 'smem constant byte address 0x4 - core index']
  #allocation1 [shape = 'u32[144,128]{1,0:T(1,128)}', space=vmem, size = 0x12000, scoped, tag = 'internal scratch']
  %s0 = inlined_call_operand.vmem [shape: bf16[2,64,128], index: 0, kind: input, shape index: {}]
  %s1 = inlined_call_operand.vmem [shape: f32[1,128], index: 1, kind: input, shape index: {}]
  %s2 = inlined_call_operand.vmem [shape: f32[1,128], index: 2, kind: input, shape index: {}]
  %s3 = inlined_call_operand.vmem [shape: f32[128,8], index: 3, kind: input, shape index: {}]
  %s4 = inlined_call_operand.vmem [shape: f32[1,8], index: 4, kind: input, shape index: {}]
  %s5 = inlined_call_operand.vmem [shape: f32[8,128], index: 5, kind: input, shape index: {}]
  %s6 = inlined_call_operand.vmem [shape: f32[1,128], index: 6, kind: input, shape index: {}]
  %s7 = inlined_call_operand.vmem [shape: bf16[2,64,128], index: 7, kind: output, shape index: {}]
  %s8 = sld [smem:[#allocation0]]
  $region61: #{_lambda_.20} parent=0
    _
  %s10 = ssub.s32 1, %s8
  %s11 = scalar_select 0, %s10, %s8
  loop: start=0, step=1, limit=4
  $region2: #{_lambda_.20} parent=0 // loop_pre_header
    _
  $region3: #{_lambda_.20} parent=0 // loop_header
    %s13 = sphi 0, %s17
    %p14 = scmp.ge.s32.totalorder %s13, 4
    %s23 = sphi 0, %s25
    %s26 = sphi 0, %s23
    %s27 = sphi 0, %s26
    %s43 = sphi 0, %s27
    %s47 = sphi 0, %s47
    %s49 = sphi 0, %s47
    %s50 = sphi 0, %s49
    %s64 = sphi 0, %s50
    %s68 = sphi 0, %s68
    %s70 = sphi 0, %s68
    %s71 = sphi 0, %s70
    %s85 = sphi 0, %s71
    %s89 = sphi 0, %s89
    %s91 = sphi 0, %s89
    %s92 = sphi 0, %s91
    %s106 = sphi 0, %s92
    %s110 = sphi 0, %s110
    %s112 = sphi 0, %s110
    %s113 = sphi 0, %s112
    %s127 = sphi 0, %s113
    %s131 = sphi 0, %s131
    %s133 = sphi 0, %s131
    %s134 = sphi 0, %s133
    %s148 = sphi 0, %s134
    %s152 = sphi 0, %s152
    %s154 = sphi 0, %s152
    %s155 = sphi 0, %s154
    %s169 = sphi 0, %s155
    %s175 = sphi 0, %s177
    %s178 = sphi 0, %s175
    %s179 = sphi 0, %s178
    %s195 = sphi 0, %s179
  $region4: #{_lambda_.20} parent=0 // loop_header_branch
    %16 = sbr.rel (%p14) target = $region8
  $region5: #{_lambda_.20} parent=0 // loop_body
    %s18 = ssub.s32 %s13, 1
    %s19 = ssub.s32 %s13, 2
    %s20 = sadd.s32 %s13, 1
    %s21 = ssub.s32 %s13, %s20
    %p22 = scmp.eq.s32.totalorder %s21, 0
    %s24 = sadd.s32 %s23, 1
    %s25 = scalar_select %p22, %s23, %s24
    %p28 = pneg %p22
    %p29 = scmp.eq.s32.totalorder %s13, 1
    %p30 = por %p28, %p29
    %p31 = scmp.ne.s32.totalorder %s23, %s26
    %p32 = scmp.eq.s32.totalorder %s13, 0
    %p33 = por %p31, %p32
    %p34 = scmp.ne.s32.totalorder %s23, %s26
    %p35 = scmp.eq.s32.totalorder %s18, 1
    %p36 = por %p34, %p35
    %p37 = scmp.ne.s32.totalorder %s26, %s27
    %p38 = scmp.eq.s32.totalorder %s18, 0
    %p39 = por %p37, %p38
    %p40 = scmp.ne.s32.totalorder %s26, %s27
    %p41 = scmp.eq.s32.totalorder %s19, 1
    %p42 = por %p40, %p41
    %p44 = scmp.ne.s32.totalorder %s27, %s43
    %p45 = scmp.eq.s32.totalorder %s19, 0
    %p46 = por %p44, %p45
    %s48 = sadd.s32 %s47, 1
    %p51 = scmp.eq.s32.totalorder %s13, 1
    %p52 = scmp.ne.s32.totalorder %s47, %s49
    %p53 = scmp.eq.s32.totalorder %s13, 0
    %p54 = por %p52, %p53
    %p55 = scmp.ne.s32.totalorder %s47, %s49
    %p56 = scmp.eq.s32.totalorder %s18, 1
    %p57 = por %p55, %p56
    %p58 = scmp.ne.s32.totalorder %s49, %s50
    %p59 = scmp.eq.s32.totalorder %s18, 0
    %p60 = por %p58, %p59
    %p61 = scmp.ne.s32.totalorder %s49, %s50
    %p62 = scmp.eq.s32.totalorder %s19, 1
    %p63 = por %p61, %p62
    %p65 = scmp.ne.s32.totalorder %s50, %s64
    %p66 = scmp.eq.s32.totalorder %s19, 0
    %p67 = por %p65, %p66
    %s69 = sadd.s32 %s68, 1
    %p72 = scmp.eq.s32.totalorder %s13, 1
    %p73 = scmp.ne.s32.totalorder %s68, %s70
    %p74 = scmp.eq.s32.totalorder %s13, 0
    %p75 = por %p73, %p74
    %p76 = scmp.ne.s32.totalorder %s68, %s70
    %p77 = scmp.eq.s32.totalorder %s18, 1
    %p78 = por %p76, %p77
    %p79 = scmp.ne.s32.totalorder %s70, %s71
    %p80 = scmp.eq.s32.totalorder %s18, 0
    %p81 = por %p79, %p80
    %p82 = scmp.ne.s32.totalorder %s70, %s71
    %p83 = scmp.eq.s32.totalorder %s19, 1
    %p84 = por %p82, %p83
    %p86 = scmp.ne.s32.totalorder %s71, %s85
    %p87 = scmp.eq.s32.totalorder %s19, 0
    %p88 = por %p86, %p87
    %s90 = sadd.s32 %s89, 1
    %p93 = scmp.eq.s32.totalorder %s13, 1
    %p94 = scmp.ne.s32.totalorder %s89, %s91
    %p95 = scmp.eq.s32.totalorder %s13, 0
    %p96 = por %p94, %p95
    %p97 = scmp.ne.s32.totalorder %s89, %s91
    %p98 = scmp.eq.s32.totalorder %s18, 1
    %p99 = por %p97, %p98
    %p100 = scmp.ne.s32.totalorder %s91, %s92
    %p101 = scmp.eq.s32.totalorder %s18, 0
    %p102 = por %p100, %p101
    %p103 = scmp.ne.s32.totalorder %s91, %s92
    %p104 = scmp.eq.s32.totalorder %s19, 1
    %p105 = por %p103, %p104
    %p107 = scmp.ne.s32.totalorder %s92, %s106
    %p108 = scmp.eq.s32.totalorder %s19, 0
    %p109 = por %p107, %p108
    %s111 = sadd.s32 %s110, 1
    %p114 = scmp.eq.s32.totalorder %s13, 1
    %p115 = scmp.ne.s32.totalorder %s110, %s112
    %p116 = scmp.eq.s32.totalorder %s13, 0
    %p117 = por %p115, %p116
    %p118 = scmp.ne.s32.totalorder %s110, %s112
    %p119 = scmp.eq.s32.totalorder %s18, 1
    %p120 = por %p118, %p119
    %p121 = scmp.ne.s32.totalorder %s112, %s113
    %p122 = scmp.eq.s32.totalorder %s18, 0
    %p123 = por %p121, %p122
    %p124 = scmp.ne.s32.totalorder %s112, %s113
    %p125 = scmp.eq.s32.totalorder %s19, 1
    %p126 = por %p124, %p125
    %p128 = scmp.ne.s32.totalorder %s113, %s127
    %p129 = scmp.eq.s32.totalorder %s19, 0
    %p130 = por %p128, %p129
    %s132 = sadd.s32 %s131, 1
    %p135 = scmp.eq.s32.totalorder %s13, 1
    %p136 = scmp.ne.s32.totalorder %s131, %s133
    %p137 = scmp.eq.s32.totalorder %s13, 0
    %p138 = por %p136, %p137
    %p139 = scmp.ne.s32.totalorder %s131, %s133
    %p140 = scmp.eq.s32.totalorder %s18, 1
    %p141 = por %p139, %p140
    %p142 = scmp.ne.s32.totalorder %s133, %s134
    %p143 = scmp.eq.s32.totalorder %s18, 0
    %p144 = por %p142, %p143
    %p145 = scmp.ne.s32.totalorder %s133, %s134
    %p146 = scmp.eq.s32.totalorder %s19, 1
    %p147 = por %p145, %p146
    %p149 = scmp.ne.s32.totalorder %s134, %s148
    %p150 = scmp.eq.s32.totalorder %s19, 0
    %p151 = por %p149, %p150
    %s153 = sadd.s32 %s152, 1
    %p156 = scmp.eq.s32.totalorder %s13, 1
    %p157 = scmp.ne.s32.totalorder %s152, %s154
    %p158 = scmp.eq.s32.totalorder %s13, 0
    %p159 = por %p157, %p158
    %p160 = scmp.ne.s32.totalorder %s152, %s154
    %p161 = scmp.eq.s32.totalorder %s18, 1
    %p162 = por %p160, %p161
    %p163 = scmp.ne.s32.totalorder %s154, %s155
    %p164 = scmp.eq.s32.totalorder %s18, 0
    %p165 = por %p163, %p164
    %p166 = scmp.ne.s32.totalorder %s154, %s155
    %p167 = scmp.eq.s32.totalorder %s19, 1
    %p168 = por %p166, %p167
    %p170 = scmp.ne.s32.totalorder %s155, %s169
    %p171 = scmp.eq.s32.totalorder %s19, 0
    %p172 = por %p170, %p171
    %s173 = ssub.s32 %s13, %s20
    %p174 = scmp.eq.s32.totalorder %s173, 0
    %s176 = sadd.s32 %s175, 1
    %s177 = scalar_select %p174, %s175, %s176
    %p180 = pneg %p174
    %p181 = scmp.eq.s32.totalorder %s13, 1
    %p182 = por %p180, %p181
    %p183 = scmp.ne.s32.totalorder %s175, %s178
    %p184 = scmp.eq.s32.totalorder %s13, 0
    %p185 = por %p183, %p184
    %p186 = scmp.ne.s32.totalorder %s175, %s178
    %p187 = scmp.eq.s32.totalorder %s18, 1
    %p188 = por %p186, %p187
    %p189 = scmp.ne.s32.totalorder %s178, %s179
    %p190 = scmp.eq.s32.totalorder %s18, 0
    %p191 = por %p189, %p190
    %p192 = scmp.ne.s32.totalorder %s178, %s179
    %p193 = scmp.eq.s32.totalorder %s19, 1
    %p194 = por %p192, %p193
    %p196 = scmp.ne.s32.totalorder %s179, %s195
    %p197 = scmp.eq.s32.totalorder %s19, 0
    %p198 = por %p196, %p197
    %p199 = scmp.le.s32.totalorder 1, %s13
    %p200 = scmp.lt.s32.totalorder %s13, 3
    %p201 = pnand %p199, %p200
    %p202 = pneg %p201
    // Predicated region
    $region9: #{_lambda_.20} parent=5 // pred_check
      _
    $region10: #{_lambda_.20} parent=5 // pred_check_branch
      %204 = sbr.rel (%p201) target = $region12
    $region11: #{_lambda_.20} parent=5 // pred_region
      %s205 = ssub.s32 %s13, 1
      // Predicated region
      $region13: #{_lambda_.20} parent=11 // pred_check
        %p206 = pneg %p60
      $region14: #{_lambda_.20} parent=11 // pred_check_branch
        %208 = sbr.rel (%p206) target = $region16
      $region15: #{_lambda_.20} parent=11 // pred_region
        _
      $region16: #{_lambda_.20} parent=11 // pred_fallthru
        _
      // Predicated region
      $region17: #{_lambda_.20} parent=11 // pred_check
        %p209 = pneg %p81
      $region18: #{_lambda_.20} parent=11 // pred_check_branch
        %211 = sbr.rel (%p209) target = $region20
      $region19: #{_lambda_.20} parent=11 // pred_region
        _
      $region20: #{_lambda_.20} parent=11 // pred_fallthru
        _
      // Predicated region
      $region21: #{_lambda_.20} parent=11 // pred_check
        %p212 = pneg %p102
      $region22: #{_lambda_.20} parent=11 // pred_check_branch
        %214 = sbr.rel (%p212) target = $region24
      $region23: #{_lambda_.20} parent=11 // pred_region
        _
      $region24: #{_lambda_.20} parent=11 // pred_fallthru
        _
      // Predicated region
      $region25: #{_lambda_.20} parent=11 // pred_check
        %p215 = pneg %p123
      $region26: #{_lambda_.20} parent=11 // pred_check_branch
        %217 = sbr.rel (%p215) target = $region28
      $region27: #{_lambda_.20} parent=11 // pred_region
        _
      $region28: #{_lambda_.20} parent=11 // pred_fallthru
        _
      // Predicated region
      $region29: #{_lambda_.20} parent=11 // pred_check
        %p218 = pneg %p144
      $region30: #{_lambda_.20} parent=11 // pred_check_branch
        %220 = sbr.rel (%p218) target = $region32
      $region31: #{_lambda_.20} parent=11 // pred_region
        _
      $region32: #{_lambda_.20} parent=11 // pred_fallthru
        _
      // Predicated region
      $region33: #{_lambda_.20} parent=11 // pred_check
        %p221 = pneg %p165
      $region34: #{_lambda_.20} parent=11 // pred_check_branch
        %223 = sbr.rel (%p221) target = $region36
      $region35: #{_lambda_.20} parent=11 // pred_region
        _
      $region36: #{_lambda_.20} parent=11 // pred_fallthru
        _
    $region12: #{_lambda_.20} parent=5 // pred_fallthru
      _
    %p224 = scmp.lt.s32.totalorder %s13, 2
    // Predicated region
    $region37: #{_lambda_.20} parent=5 // pred_check
      %p225 = pneg %p224
    $region38: #{_lambda_.20} parent=5 // pred_check_branch
      %227 = sbr.rel (%p225) target = $region40
    $region39: #{_lambda_.20} parent=5 // pred_region
      // Predicated region
      $region41: #{_lambda_.20} parent=39 // pred_check
        %p228 = pneg %p33
      $region42: #{_lambda_.20} parent=39 // pred_check_branch
        %230 = sbr.rel (%p228) target = $region44
      $region43: #{_lambda_.20} parent=39 // pred_region
        %p231 = scmp.lt.s32.totalorder %s13, 1
        %s232 = scalar_select %p231, %s13, 1
        %s233 = smul.addr %s232, 8
        %s234 = smul.addr %s233, 4
        %s235 = scalar_lea.vmem %s0, %s234
      $region44: #{_lambda_.20} parent=39 // pred_fallthru
        _
    $region40: #{_lambda_.20} parent=5 // pred_fallthru
      _
    %p236 = scmp.le.s32.totalorder 1, %s13
    %p237 = scmp.lt.s32.totalorder %s13, 3
    %p238 = pnand %p236, %p237
    %p239 = pneg %p238
    // Predicated region
    $region45: #{_lambda_.20} parent=5 // pred_check
      _
    $region46: #{_lambda_.20} parent=5 // pred_check_branch
      %241 = sbr.rel (%p238) target = $region48
    $region47: #{_lambda_.20} parent=5 // pred_region
      %s242 = ssub.s32 %s13, 1
      %p243 = scmp.lt.s32.totalorder %s18, 1
      %s244 = scalar_select %p243, %s18, 1
      %s245 = smul.addr %s244, 8
      %s246 = smul.addr %s245, 4
      %s247 = scalar_lea.vmem %s0, %s246
      %p248 = pneg %p39
      %p249 = pneg %p36
      %p250 = pneg %p60
      %p251 = pneg %p57
      %p252 = pneg %p81
      %p253 = pneg %p78
      %p254 = pneg %p102
      %p255 = pneg %p99
      %p256 = pneg %p123
      %p257 = pneg %p120
      %p258 = pneg %p144
      %p259 = pneg %p141
      %p260 = pneg %p165
      %p261 = pneg %p162
      %p262 = pneg %p191
      %p263 = pneg %p188
      %p264 = scmp.lt.s32.totalorder %s18, 1
      %s265 = scalar_select %p264, %s18, 1
      %s266 = smul.addr %s265, 8
      %s267 = smul.addr %s266, 4
      %s268 = scalar_lea.vmem %s7, %s267
      %p269 = scmp.lt.s32.totalorder %s18, 1
      %s270 = scalar_select %p269, %s18, 1
      %s271 = smul.addr %s270, 8
      %s272 = smul.addr %s271, 4
      %s273 = scalar_lea.vmem %s0, %s272
      %p274 = scmp.lt.s32.totalorder %s18, 1
      %s275 = scalar_select %p274, %s18, 1
      %s276 = smul.addr %s275, 8
      %s277 = smul.addr %s276, 4
      %s278 = scalar_lea.vmem %s7, %s277
      %v279 = vld [vmem:[%s273] sm:$0xf]
      %v280 = vld [vmem:[%s273 + $0x4] sm:$0xf]
      %v281 = vld [vmem:[%s273 + $0x8] sm:$0xf]
      %v282 = vld [vmem:[%s273 + $0xc] sm:$0xf]
      %v283 = vld [vmem:[%s273 + $0x10] sm:$0xf]
      %v284 = vld [vmem:[%s273 + $0x14] sm:$0xf]
      %v285 = vld [vmem:[%s273 + $0x18] sm:$0xf]
      %v286 = vld [vmem:[%s273 + $0x1c] sm:$0xf]
      %v287 = vunpack.c.l.bf16 %v279
      %v288 = vunpack.c.l.bf16 %v280
      %v289 = vunpack.c.l.bf16 %v281
      %v290 = vunpack.c.l.bf16 %v282
      %v291 = vunpack.c.l.bf16 %v283
      %v292 = vunpack.c.l.bf16 %v284
      %v293 = vunpack.c.l.bf16 %v285
      %v294 = vunpack.c.l.bf16 %v286
      %v295 = vld [vmem:[%s1] sm:$0x1]
      %v297 = vlaneseq
      %v298 = vshrl.u32 %v297, 7
      %v299 = vsub.s32 0, %v298
      %v300 = vrot.slane %v295, %v299
      %v302 = vmul.f32 %v287, %v300
      %v303 = vmul.f32 %v288, %v300
      %v304 = vmul.f32 %v289, %v300
      %v305 = vmul.f32 %v290, %v300
      %v306 = vmul.f32 %v291, %v300
      %v307 = vmul.f32 %v292, %v300
      %v308 = vmul.f32 %v293, %v300
      %v309 = vmul.f32 %v294, %v300
      %v310 = vld [vmem:[%s2] sm:$0x1]
      %v312 = vlaneseq
      %v313 = vshrl.u32 %v312, 7
      %v314 = vsub.s32 0, %v313
      %v315 = vrot.slane %v310, %v314
      %v317 = vadd.f32 %v302, %v315
      %v318 = vadd.f32 %v303, %v315
      %v319 = vadd.f32 %v304, %v315
      %v320 = vadd.f32 %v305, %v315
      %v321 = vadd.f32 %v306, %v315
      %v322 = vadd.f32 %v307, %v315
      %v323 = vadd.f32 %v308, %v315
      %v324 = vadd.f32 %v309, %v315
      %v325 = vxor.u32 %v317, 2147483648
      %v326 = vxor.u32 %v318, 2147483648
      %v327 = vxor.u32 %v319, 2147483648
      %v328 = vxor.u32 %v320, 2147483648
      %v329 = vxor.u32 %v321, 2147483648
      %v330 = vxor.u32 %v322, 2147483648
      %v331 = vxor.u32 %v323, 2147483648
      %v332 = vxor.u32 %v324, 2147483648
      %v333 = vmul.f32 %v325, 1.442695
      %v334 = vpow.pop %v333
      %v335 = vmul.f32 %v326, 1.442695
      %v336 = vpow.pop %v335
      %v337 = vmul.f32 %v327, 1.442695
      %v338 = vpow.pop %v337
      %v339 = vmul.f32 %v328, 1.442695
      %v340 = vpow.pop %v339
      %v341 = vmul.f32 %v329, 1.442695
      %v342 = vpow.pop %v341
      %v343 = vmul.f32 %v330, 1.442695
      %v344 = vpow.pop %v343
      %v345 = vmul.f32 %v331, 1.442695
      %v346 = vpow.pop %v345
      %v347 = vmul.f32 %v332, 1.442695
      %v348 = vpow.pop %v347
      %v349 = vadd.f32 %v334, 1.0
      %v350 = vadd.f32 %v336, 1.0
      %v351 = vadd.f32 %v338, 1.0
      %v352 = vadd.f32 %v340, 1.0
      %v353 = vadd.f32 %v342, 1.0
      %v354 = vadd.f32 %v344, 1.0
      %v355 = vadd.f32 %v346, 1.0
      %v356 = vadd.f32 %v348, 1.0
      %v357 = vrcp.pop %v349
      %v358 = vmul.f32 1.0, %v357
      %v359 = vrcp.pop %v350
      %v360 = vmul.f32 1.0, %v359
      %v361 = vrcp.pop %v351
      %v362 = vmul.f32 1.0, %v361
      %v363 = vrcp.pop %v352
      %v364 = vmul.f32 1.0, %v363
      %v365 = vrcp.pop %v353
      %v366 = vmul.f32 1.0, %v365
      %v367 = vrcp.pop %v354
      %v368 = vmul.f32 1.0, %v367
      %v369 = vrcp.pop %v355
      %v370 = vmul.f32 1.0, %v369
      %v371 = vrcp.pop %v356
      %v372 = vmul.f32 1.0, %v371
      %v373 = vmul.f32 %v317, %v358
      %v374 = vmul.f32 %v318, %v360
      %v375 = vmul.f32 %v319, %v362
      %v376 = vmul.f32 %v320, %v364
      %v377 = vmul.f32 %v321, %v366
      %v378 = vmul.f32 %v322, %v368
      %v379 = vmul.f32 %v323, %v370
      %v380 = vmul.f32 %v324, %v372
      %v381 = vadd.f32 %v373, %v374
      %v382 = vadd.f32 %v381, %v375
      %v383 = vadd.f32 %v382, %v376
      %v384 = vadd.f32 %v383, %v377
      %v385 = vadd.f32 %v384, %v378
      %v386 = vadd.f32 %v385, %v379
      %v387 = vadd.f32 %v386, %v380
      %v388 = vrot.slane %v387, 4
      %v389 = vadd.f32 %v387, %v388
      %v390 = vrot.slane %v389, 2
      %v391 = vadd.f32 %v389, %v390
      %v392 = vrot.slane %v391, 1
      %v393 = vadd.f32 %v391, %v392
      %v394 = vrcp.pop 64.0
      %v395 = vmul.f32 %v393, %v394
      %v396 = vld [vmem:[%s3] sm:$0xff]
      %v397 = vld [vmem:[%s3 + $0x8] sm:$0xff]
      %v398 = vld [vmem:[%s3 + $0x10] sm:$0xff]
      %v399 = vld [vmem:[%s3 + $0x18] sm:$0xff]
      %v400 = vld [vmem:[%s3 + $0x20] sm:$0xff]
      %v401 = vld [vmem:[%s3 + $0x28] sm:$0xff]
      %v402 = vld [vmem:[%s3 + $0x30] sm:$0xff]
      %v403 = vld [vmem:[%s3 + $0x38] sm:$0xff]
      %v404 = vld [vmem:[%s3 + $0x40] sm:$0xff]
      %v405 = vld [vmem:[%s3 + $0x48] sm:$0xff]
      %v406 = vld [vmem:[%s3 + $0x50] sm:$0xff]
      %v407 = vld [vmem:[%s3 + $0x58] sm:$0xff]
      %v408 = vld [vmem:[%s3 + $0x60] sm:$0xff]
      %v409 = vld [vmem:[%s3 + $0x68] sm:$0xff]
      %v410 = vld [vmem:[%s3 + $0x70] sm:$0xff]
      %v411 = vld [vmem:[%s3 + $0x78] sm:$0xff]
      %v412 = vld [vmem:[%s4] sm:$0x1]
      %413 = vmatprep.subr.mxu0 0.0
      %414 = vmatpush1.msra.mxu0 %v411
      %415 = vmatprep.subr.mxu0 0.0
      %416 = vmatpush1.msra.mxu0 %v410
      %417 = vmatprep.subr.mxu0 0.0
      %418 = vmatpush1.msra.mxu0 %v409
      %419 = vmatprep.subr.mxu0 0.0
      %420 = vmatpush1.msra.mxu0 %v408
      %421 = vmatprep.subr.mxu0 0.0
      %422 = vmatpush1.msra.mxu0 %v407
      %423 = vmatprep.subr.mxu0 0.0
      %424 = vmatpush1.msra.mxu0 %v406
      %425 = vmatprep.subr.mxu0 0.0
      %426 = vmatpush1.msra.mxu0 %v405
      %427 = vmatprep.subr.mxu0 0.0
      %428 = vmatpush1.msra.mxu0 %v404
      %429 = vmatprep.subr.mxu0 0.0
      %430 = vmatpush1.msra.mxu0 %v403
      %431 = vmatprep.subr.mxu0 0.0
      %432 = vmatpush1.msra.mxu0 %v402
      %433 = vmatprep.subr.mxu0 0.0
      %434 = vmatpush1.msra.mxu0 %v401
      %435 = vmatprep.subr.mxu0 0.0
      %436 = vmatpush1.msra.mxu0 %v400
      %437 = vmatprep.subr.mxu0 0.0
      %438 = vmatpush1.msra.mxu0 %v399
      %439 = vmatprep.subr.mxu0 0.0
      %440 = vmatpush1.msra.mxu0 %v398
      %441 = vmatprep.subr.mxu0 0.0
      %442 = vmatpush1.msra.mxu0 %v397
      %443 = vmatprep.subr.mxu0 0.0
      %444 = vmatpush1.msra.mxu0 %v396
      %445 = vmatprep.subr.mxu0 0.0
      %446 = vmatpush2.msra.mxu0 0.0
      %447 = vmatprep.subr.mxu0 0.0
      %448 = vmatpush2.msra.mxu0 0.0
      %449 = vmatprep.subr.mxu0 0.0
      %450 = vmatpush2.msra.mxu0 0.0
      %451 = vmatprep.subr.mxu0 0.0
      %452 = vmatpush2.msra.mxu0 0.0
      %453 = vmatprep.subr.mxu0 0.0
      %454 = vmatpush2.msra.mxu0 0.0
      %455 = vmatprep.subr.mxu0 0.0
      %456 = vmatpush2.msra.mxu0 0.0
      %457 = vmatprep.subr.mxu0 0.0
      %458 = vmatpush2.msra.mxu0 0.0
      %459 = vmatprep.subr.mxu0 0.0
      %460 = vmatpush2.msra.mxu0 0.0
      %461 = vmatprep.subr.mxu0 0.0
      %462 = vmatpush2.msra.mxu0 0.0
      %463 = vmatprep.subr.mxu0 0.0
      %464 = vmatpush2.msra.mxu0 0.0
      %465 = vmatprep.subr.mxu0 0.0
      %466 = vmatpush2.msra.mxu0 0.0
      %467 = vmatprep.subr.mxu0 0.0
      %468 = vmatpush2.msra.mxu0 0.0
      %469 = vmatprep.subr.mxu0 0.0
      %470 = vmatpush2.msra.mxu0 0.0
      %471 = vmatprep.subr.mxu0 0.0
      %472 = vmatpush2.msra.mxu0 0.0
      %473 = vmatprep.subr.mxu0 0.0
      %474 = vmatpush2.msra.mxu0 0.0
      %475 = vmatprep.subr.mxu0 0.0
      %476 = vmatpush2.msra.mxu0 0.0
      %477 = vmatprep.mubr.f32.mxu0 0.0
      %478 = vmatmul.mubr.f32.gmra.mxu0 %v395
      %v479 = vpop.f32.mrf.mxu0
      %v480 = vadd.f32 %v412, %v479
      %v481 = vpop.f32.mrf.mxu0
      %482 = vdwg.mxu0
      %v483 = vxor.u32 %v480, 2147483648
      %v484 = vmul.f32 %v483, 1.442695
      %v485 = vpow.pop %v484
      %v486 = vadd.f32 %v485, 1.0
      %v487 = vrcp.pop %v486
      %v488 = vmul.f32 1.0, %v487
      %v489 = vmul.f32 %v480, %v488
      %v490 = vld [vmem:[%s5] sm:$0xff]
      %v491 = vld [vmem:[%s6] sm:$0x1]
      %vm492 = vcmask 64512
      %v494 = vsel %vm492, %v489, 0
      %496 = vmatprep.subr.mxu0 0.0
      %497 = vmatpush1.msra.mxu0 0.0
      %498 = vmatprep.subr.mxu0 0.0
      %499 = vmatpush1.msra.mxu0 0.0
      %500 = vmatprep.subr.mxu0 0.0
      %501 = vmatpush1.msra.mxu0 0.0
      %502 = vmatprep.subr.mxu0 0.0
      %503 = vmatpush1.msra.mxu0 0.0
      %504 = vmatprep.subr.mxu0 0.0
      %505 = vmatpush1.msra.mxu0 0.0
      %506 = vmatprep.subr.mxu0 0.0
      %507 = vmatpush1.msra.mxu0 0.0
      %508 = vmatprep.subr.mxu0 0.0
      %509 = vmatpush1.msra.mxu0 0.0
      %510 = vmatprep.subr.mxu0 0.0
      %511 = vmatpush1.msra.mxu0 0.0
      %512 = vmatprep.subr.mxu0 0.0
      %513 = vmatpush1.msra.mxu0 0.0
      %514 = vmatprep.subr.mxu0 0.0
      %515 = vmatpush1.msra.mxu0 0.0
      %516 = vmatprep.subr.mxu0 0.0
      %517 = vmatpush1.msra.mxu0 0.0
      %518 = vmatprep.subr.mxu0 0.0
      %519 = vmatpush1.msra.mxu0 0.0
      %520 = vmatprep.subr.mxu0 0.0
      %521 = vmatpush1.msra.mxu0 0.0
      %522 = vmatprep.subr.mxu0 0.0
      %523 = vmatpush1.msra.mxu0 0.0
      %524 = vmatprep.subr.mxu0 0.0
      %525 = vmatpush1.msra.mxu0 0.0
      %526 = vmatprep.subr.mxu0 0.0
      %527 = vmatpush1.msra.mxu0 %v490
      %528 = vmatprep.subr.mxu0 0.0
      %529 = vmatpush2.msra.mxu0 0.0
      %530 = vmatprep.subr.mxu0 0.0
      %531 = vmatpush2.msra.mxu0 0.0
      %532 = vmatprep.subr.mxu0 0.0
      %533 = vmatpush2.msra.mxu0 0.0
      %534 = vmatprep.subr.mxu0 0.0
      %535 = vmatpush2.msra.mxu0 0.0
      %536 = vmatprep.subr.mxu0 0.0
      %537 = vmatpush2.msra.mxu0 0.0
      %538 = vmatprep.subr.mxu0 0.0
      %539 = vmatpush2.msra.mxu0 0.0
      %540 = vmatprep.subr.mxu0 0.0
      %541 = vmatpush2.msra.mxu0 0.0
      %542 = vmatprep.subr.mxu0 0.0
      %543 = vmatpush2.msra.mxu0 0.0
      %544 = vmatprep.subr.mxu0 0.0
      %545 = vmatpush2.msra.mxu0 0.0
      %546 = vmatprep.subr.mxu0 0.0
      %547 = vmatpush2.msra.mxu0 0.0
      %548 = vmatprep.subr.mxu0 0.0
      %549 = vmatpush2.msra.mxu0 0.0
      %550 = vmatprep.subr.mxu0 0.0
      %551 = vmatpush2.msra.mxu0 0.0
      %552 = vmatprep.subr.mxu0 0.0
      %553 = vmatpush2.msra.mxu0 0.0
      %554 = vmatprep.subr.mxu0 0.0
      %555 = vmatpush2.msra.mxu0 0.0
      %556 = vmatprep.subr.mxu0 0.0
      %557 = vmatpush2.msra.mxu0 0.0
      %558 = vmatprep.subr.mxu0 0.0
      %559 = vmatpush2.msra.mxu0 0.0
      %560 = vmatprep.mubr.f32.mxu0 0.0
      %561 = vmatmul.mubr.f32.gmra.mxu0 %v494
      %v562 = vpop.f32.mrf.mxu0
      %v563 = vadd.f32 %v491, %v562
      %v564 = vpop.f32.mrf.mxu0
      %565 = vdwg.mxu0
      %v566 = vxor.u32 %v563, 2147483648
      %v567 = vmul.f32 %v566, 1.442695
      %v568 = vpow.pop %v567
      %v569 = vadd.f32 %v568, 1.0
      %v570 = vrcp.pop %v569
      %v571 = vmul.f32 1.0, %v570
      %v572 = vlaneseq
      %v573 = vshrl.u32 %v572, 7
      %v574 = vsub.s32 0, %v573
      %v575 = vrot.slane %v571, %v574
      %v576 = vmul.f32 %v373, %v575
      %v577 = vmul.f32 %v374, %v575
      %v578 = vmul.f32 %v375, %v575
      %v579 = vmul.f32 %v376, %v575
      %v580 = vmul.f32 %v377, %v575
      %v581 = vmul.f32 %v378, %v575
      %v582 = vmul.f32 %v379, %v575
      %v583 = vmul.f32 %v380, %v575
      %v584 = vpack.c.bf16 %v577, %v576
      %v585 = vpack.c.bf16 %v579, %v578
      %v586 = vpack.c.bf16 %v581, %v580
      %v587 = vpack.c.bf16 %v583, %v582
      %v592 = vunpack.c.l.b16 %v584
      %v593 = vunpack.c.h.b16 %v584
      %v594 = vunpack.c.l.b16 %v585
      %v595 = vunpack.c.h.b16 %v585
      %v596 = vunpack.c.l.b16 %v586
      %v597 = vunpack.c.h.b16 %v586
      %v598 = vunpack.c.l.b16 %v587
      %v599 = vunpack.c.h.b16 %v587
      %v600 = vpack.c.b16 %v592, %v592
      %v601 = vpack.c.b16 %v593, %v593
      %v602 = vpack.c.b16 %v594, %v594
      %v603 = vpack.c.b16 %v595, %v595
      %v604 = vpack.c.b16 %v596, %v596
      %v605 = vpack.c.b16 %v597, %v597
      %v606 = vpack.c.b16 %v598, %v598
      %v607 = vpack.c.b16 %v599, %v599
      %616 = vst [vmem:[%s278] sm:$0xf] %v600
      %617 = vst [vmem:[%s278 + $0x4] sm:$0xf] %v601
      %618 = vst [vmem:[%s278 + $0x8] sm:$0xf] %v602
      %619 = vst [vmem:[%s278 + $0xc] sm:$0xf] %v603
      %620 = vst [vmem:[%s278 + $0x10] sm:$0xf] %v604
      %621 = vst [vmem:[%s278 + $0x14] sm:$0xf] %v605
      %622 = vst [vmem:[%s278 + $0x18] sm:$0xf] %v606
      %623 = vst [vmem:[%s278 + $0x1c] sm:$0xf] %v607
      %p624 = scmp.lt.s32.totalorder %s18, 1
      %s625 = scalar_select %p624, %s18, 1
      %s626 = smul.addr %s625, 8
      %s627 = smul.addr %s626, 4
      %s628 = scalar_lea.vmem %s7, %s627
      // Predicated region
      $region49: #{_lambda_.20} parent=47 // pred_check
        %p629 = pneg %p188
      $region50: #{_lambda_.20} parent=47 // pred_check_branch
        %631 = sbr.rel (%p629) target = $region52
      $region51: #{_lambda_.20} parent=47 // pred_region
        _
      $region52: #{_lambda_.20} parent=47 // pred_fallthru
        _
    $region48: #{_lambda_.20} parent=5 // pred_fallthru
      _
    %p632 = scmp.le.s32.totalorder 2, %s13
    // Predicated region
    $region53: #{_lambda_.20} parent=5 // pred_check
      %p633 = pneg %p632
    $region54: #{_lambda_.20} parent=5 // pred_check_branch
      %635 = sbr.rel (%p633) target = $region56
    $region55: #{_lambda_.20} parent=5 // pred_region
      %s636 = ssub.s32 %s13, 2
      // Predicated region
      $region57: #{_lambda_.20} parent=55 // pred_check
        %p637 = pneg %p194
      $region58: #{_lambda_.20} parent=55 // pred_check_branch
        %639 = sbr.rel (%p637) target = $region60
      $region59: #{_lambda_.20} parent=55 // pred_region
        %p640 = scmp.lt.s32.totalorder %s19, 1
        %s641 = scalar_select %p640, %s19, 1
        %s642 = smul.addr %s641, 8
        %s643 = smul.addr %s642, 4
        %s644 = scalar_lea.vmem %s7, %s643
      $region60: #{_lambda_.20} parent=55 // pred_fallthru
        _
    $region56: #{_lambda_.20} parent=5 // pred_fallthru
      _
  $region6: #{_lambda_.20} parent=0 // loop_footer
    %s17 = sadd.s32 1, %s13
  $region7: #{_lambda_.20} parent=0 // loop_footer_branch
    %12 = sbr.rel target = $region3
  $region8: #{_lambda_.20} parent=0 // loop_exit
    _

// kernel: _lambda_.26
$region0: #{_lambda_.26}
  #allocation0 [shape = 'u32[]', space=smem, size = 0x4, offset = 0x4, fixed_abs, tag = 'smem constant byte address 0x4 - core index']
  #allocation1 [shape = 'u32[144,128]{1,0:T(1,128)}', space=vmem, size = 0x12000, scoped, tag = 'internal scratch']
  %s0 = inlined_call_operand.vmem [shape: bf16[32,128], index: 0, kind: input, shape index: {}]
  %s1 = inlined_call_operand.vmem [shape: bf16[128,128], index: 1, kind: input, shape index: {}]
  %s2 = inlined_call_operand.vmem [shape: bf16[32,128], index: 2, kind: output, shape index: {0}]
  %s3 = inlined_call_operand.vmem [shape: f32[1,2,128], index: 3, kind: output, shape index: {1}]
  %4 = xla_tuple %s2, %s3
  %s5 = sld [smem:[#allocation0]]
  $region26: #{_lambda_.26} parent=0
    _
  %s7 = ssub.s32 1, %s5
  %s8 = scalar_select 0, %s7, %s5
  // Predicated region
  $region2: #{_lambda_.26} parent=0 // pred_check
    _
  $region3: #{_lambda_.26} parent=0 // pred_check_branch
    %10 = sbr.rel (0) target = $region5
  $region4: #{_lambda_.26} parent=0 // pred_region
    _
  $region5: #{_lambda_.26} parent=0 // pred_fallthru
    _
  // Predicated region
  $region6: #{_lambda_.26} parent=0 // pred_check
    _
  $region7: #{_lambda_.26} parent=0 // pred_check_branch
    %12 = sbr.rel (0) target = $region9
  $region8: #{_lambda_.26} parent=0 // pred_region
    _
  $region9: #{_lambda_.26} parent=0 // pred_fallthru
    _
  %v14 = vld [vmem:[%s0] sm:$0xf]
  %v15 = vld [vmem:[%s0 + $0x4] sm:$0xf]
  %v16 = vld [vmem:[%s0 + $0x8] sm:$0xf]
  %v17 = vld [vmem:[%s0 + $0xc] sm:$0xf]
  %v18 = vld [vmem:[%s1] sm:$0xf]
  %v19 = vld [vmem:[%s1 + $0x4] sm:$0xf]
  %v20 = vld [vmem:[%s1 + $0x8] sm:$0xf]
  %v21 = vld [vmem:[%s1 + $0xc] sm:$0xf]
  %v22 = vld [vmem:[%s1 + $0x10] sm:$0xf]
  %v23 = vld [vmem:[%s1 + $0x14] sm:$0xf]
  %v24 = vld [vmem:[%s1 + $0x18] sm:$0xf]
  %v25 = vld [vmem:[%s1 + $0x1c] sm:$0xf]
  %v26 = vld [vmem:[%s1 + $0x20] sm:$0xf]
  %v27 = vld [vmem:[%s1 + $0x24] sm:$0xf]
  %v28 = vld [vmem:[%s1 + $0x28] sm:$0xf]
  %v29 = vld [vmem:[%s1 + $0x2c] sm:$0xf]
  %v30 = vld [vmem:[%s1 + $0x30] sm:$0xf]
  %v31 = vld [vmem:[%s1 + $0x34] sm:$0xf]
  %v32 = vld [vmem:[%s1 + $0x38] sm:$0xf]
  %v33 = vld [vmem:[%s1 + $0x3c] sm:$0xf]
  %v38 = vunpack.c.l.b16 %v14
  %v39 = vunpack.c.l.b16 %v15
  %v40 = vunpack.c.l.b16 %v16
  %v41 = vunpack.c.l.b16 %v17
  %v42 = vpack.c.b16 %v39, %v38
  %v43 = vpack.c.b16 %v41, %v40
  %v62 = vunpack.c.l.b16 %v18
  %v63 = vunpack.c.l.b16 %v19
  %v64 = vunpack.c.l.b16 %v20
  %v65 = vunpack.c.l.b16 %v21
  %v66 = vunpack.c.l.b16 %v22
  %v67 = vunpack.c.l.b16 %v23
  %v68 = vunpack.c.l.b16 %v24
  %v69 = vunpack.c.l.b16 %v25
  %v70 = vunpack.c.l.b16 %v26
  %v71 = vunpack.c.l.b16 %v27
  %v72 = vunpack.c.l.b16 %v28
  %v73 = vunpack.c.l.b16 %v29
  %v74 = vunpack.c.l.b16 %v30
  %v75 = vunpack.c.l.b16 %v31
  %v76 = vunpack.c.l.b16 %v32
  %v77 = vunpack.c.l.b16 %v33
  %v78 = vpack.c.b16 %v63, %v62
  %v79 = vpack.c.b16 %v65, %v64
  %v80 = vpack.c.b16 %v67, %v66
  %v81 = vpack.c.b16 %v69, %v68
  %v82 = vpack.c.b16 %v71, %v70
  %v83 = vpack.c.b16 %v73, %v72
  %v84 = vpack.c.b16 %v75, %v74
  %v85 = vpack.c.b16 %v77, %v76
  %94 = vmatprep.subr.bf16.mxu0 0
  %95 = vmatpush1.bf16.msra.mxu0 %v85
  %96 = vmatprep.subr.bf16.mxu0 0
  %97 = vmatpush1.bf16.msra.mxu0 %v84
  %98 = vmatprep.subr.bf16.mxu0 0
  %99 = vmatpush1.bf16.msra.mxu0 %v83
  %100 = vmatprep.subr.bf16.mxu0 0
  %101 = vmatpush1.bf16.msra.mxu0 %v82
  %102 = vmatprep.subr.bf16.mxu0 0
  %103 = vmatpush1.bf16.msra.mxu0 %v81
  %104 = vmatprep.subr.bf16.mxu0 0
  %105 = vmatpush1.bf16.msra.mxu0 %v80
  %106 = vmatprep.subr.bf16.mxu0 0
  %107 = vmatpush1.bf16.msra.mxu0 %v79
  %108 = vmatprep.subr.bf16.mxu0 0
  %109 = vmatpush1.bf16.msra.mxu0 %v78
  %110 = vmatprep.subr.bf16.mxu0 0
  %111 = vmatpush2.bf16.msra.mxu0 0
  %112 = vmatprep.subr.bf16.mxu0 0
  %113 = vmatpush2.bf16.msra.mxu0 0
  %114 = vmatprep.subr.bf16.mxu0 0
  %115 = vmatpush2.bf16.msra.mxu0 0
  %116 = vmatprep.subr.bf16.mxu0 0
  %117 = vmatpush2.bf16.msra.mxu0 0
  %118 = vmatprep.subr.bf16.mxu0 0
  %119 = vmatpush2.bf16.msra.mxu0 0
  %120 = vmatprep.subr.bf16.mxu0 0
  %121 = vmatpush2.bf16.msra.mxu0 0
  %122 = vmatprep.subr.bf16.mxu0 0
  %123 = vmatpush2.bf16.msra.mxu0 0
  %124 = vmatprep.subr.bf16.mxu0 0
  %125 = vmatpush2.bf16.msra.mxu0 0
  %126 = vmatprep.mubr.bf16.mxu0 0
  %127 = vmatmul.mubr.bf16.gmra.mxu0 %v42
  %v128 = vpop.f32.mrf.mxu0
  %v129 = vadd.f32 0.0, %v128
  %v130 = vpop.f32.mrf.mxu0
  %v131 = vpop.f32.mrf.mxu0
  %v132 = vadd.f32 0.0, %v131
  %v133 = vpop.f32.mrf.mxu0
  %134 = vmatprep.mubr.bf16.mxu0 0
  %135 = vmatmul.mubr.bf16.gmra.mxu0 %v43
  %v136 = vpop.f32.mrf.mxu0
  %v137 = vadd.f32 0.0, %v136
  %v138 = vpop.f32.mrf.mxu0
  %v139 = vpop.f32.mrf.mxu0
  %v140 = vadd.f32 0.0, %v139
  %v141 = vpop.f32.mrf.mxu0
  %142 = vdwg.mxu0
  %v143 = vpack.c.bf16 %v132, %v129
  %v144 = vpack.c.bf16 %v140, %v137
  %v147 = vunpack.c.l.b16 %v143
  %v148 = vunpack.c.h.b16 %v143
  %v149 = vunpack.c.l.b16 %v144
  %v150 = vunpack.c.h.b16 %v144
  %v151 = vpack.c.b16 %v147, %v147
  %v152 = vpack.c.b16 %v148, %v148
  %v153 = vpack.c.b16 %v149, %v149
  %v154 = vpack.c.b16 %v150, %v150
  %159 = vst [vmem:[%s2] sm:$0xf] %v151
  %160 = vst [vmem:[%s2 + $0x4] sm:$0xf] %v152
  %161 = vst [vmem:[%s2 + $0x8] sm:$0xf] %v153
  %162 = vst [vmem:[%s2 + $0xc] sm:$0xf] %v154
  %v163 = vadd.f32 %v129, %v132
  %v164 = vadd.f32 %v163, %v137
  %v165 = vadd.f32 %v164, %v140
  %v166 = vrot.slane %v165, 4
  %v167 = vadd.f32 %v165, %v166
  %v168 = vrot.slane %v167, 2
  %v169 = vadd.f32 %v167, %v168
  %v170 = vrot.slane %v169, 1
  %v171 = vadd.f32 %v169, %v170
  %172 = vst [vmem:[%s3] sm:$0x1] %v171
  %v173 = vmul.f32 %v129, %v129
  %v174 = vmul.f32 %v132, %v132
  %v175 = vmul.f32 %v137, %v137
  %v176 = vmul.f32 %v140, %v140
  %v177 = vadd.f32 %v173, %v174
  %v178 = vadd.f32 %v177, %v175
  %v179 = vadd.f32 %v178, %v176
  %v180 = vrot.slane %v179, 4
  %v181 = vadd.f32 %v179, %v180
  %v182 = vrot.slane %v181, 2
  %v183 = vadd.f32 %v181, %v182
  %v184 = vrot.slane %v183, 1
  %v185 = vadd.f32 %v183, %v184
  %186 = vst [vmem:[%s3 + $0x1] sm:$0x1] %v185
  // Predicated region
  $region10: #{_lambda_.26} parent=0 // pred_check
    _
  $region11: #{_lambda_.26} parent=0 // pred_check_branch
    %188 = sbr.rel (0) target = $region13
  $region12: #{_lambda_.26} parent=0 // pred_region
    _
  $region13: #{_lambda_.26} parent=0 // pred_fallthru
    _
  // Predicated region
  $region14: #{_lambda_.26} parent=0 // pred_check
    _
  $region15: #{_lambda_.26} parent=0 // pred_check_branch
    %190 = sbr.rel (0) target = $region17
  $region16: #{_lambda_.26} parent=0 // pred_region
    _
  $region17: #{_lambda_.26} parent=0 // pred_fallthru
    _
  // Predicated region
  $region18: #{_lambda_.26} parent=0 // pred_check
    _
  $region19: #{_lambda_.26} parent=0 // pred_check_branch
    %192 = sbr.rel (0) target = $region21
  $region20: #{_lambda_.26} parent=0 // pred_region
    _
  $region21: #{_lambda_.26} parent=0 // pred_fallthru
    _
  // Predicated region
  $region22: #{_lambda_.26} parent=0 // pred_check
    _
  $region23: #{_lambda_.26} parent=0 // pred_check_branch
    %194 = sbr.rel (0) target = $region25
  $region24: #{_lambda_.26} parent=0 // pred_region
    _
  $region25: #{_lambda_.26} parent=0 // pred_fallthru
    _

// kernel: _lambda_.25
$region0: #{_lambda_.25}
  #allocation0 [shape = 'u32[]', space=smem, size = 0x4, offset = 0x4, fixed_abs, tag = 'smem constant byte address 0x4 - core index']
  #allocation1 [shape = 'u32[144,128]{1,0:T(1,128)}', space=vmem, size = 0x12000, scoped, tag = 'internal scratch']
  %s0 = inlined_call_operand.vmem [shape: bf16[2,16,128], index: 0, kind: input, shape index: {}]
  %s1 = inlined_call_operand.vmem [shape: f32[1,128], index: 1, kind: input, shape index: {}]
  %s2 = inlined_call_operand.vmem [shape: f32[1,128], index: 2, kind: input, shape index: {}]
  %s3 = inlined_call_operand.vmem [shape: f32[128,4], index: 3, kind: input, shape index: {}]
  %s4 = inlined_call_operand.vmem [shape: f32[1,4], index: 4, kind: input, shape index: {}]
  %s5 = inlined_call_operand.vmem [shape: f32[4,128], index: 5, kind: input, shape index: {}]
  %s6 = inlined_call_operand.vmem [shape: f32[1,128], index: 6, kind: input, shape index: {}]
  %s7 = inlined_call_operand.vmem [shape: bf16[2,16,128], index: 7, kind: output, shape index: {}]
  %s8 = sld [smem:[#allocation0]]
  $region61: #{_lambda_.25} parent=0
    _
  %s10 = ssub.s32 1, %s8
  %s11 = scalar_select 0, %s10, %s8
  loop: start=0, step=1, limit=4
  $region2: #{_lambda_.25} parent=0 // loop_pre_header
    _
  $region3: #{_lambda_.25} parent=0 // loop_header
    %s13 = sphi 0, %s17
    %p14 = scmp.ge.s32.totalorder %s13, 4
    %s23 = sphi 0, %s25
    %s26 = sphi 0, %s23
    %s27 = sphi 0, %s26
    %s43 = sphi 0, %s27
    %s47 = sphi 0, %s47
    %s49 = sphi 0, %s47
    %s50 = sphi 0, %s49
    %s64 = sphi 0, %s50
    %s68 = sphi 0, %s68
    %s70 = sphi 0, %s68
    %s71 = sphi 0, %s70
    %s85 = sphi 0, %s71
    %s89 = sphi 0, %s89
    %s91 = sphi 0, %s89
    %s92 = sphi 0, %s91
    %s106 = sphi 0, %s92
    %s110 = sphi 0, %s110
    %s112 = sphi 0, %s110
    %s113 = sphi 0, %s112
    %s127 = sphi 0, %s113
    %s131 = sphi 0, %s131
    %s133 = sphi 0, %s131
    %s134 = sphi 0, %s133
    %s148 = sphi 0, %s134
    %s152 = sphi 0, %s152
    %s154 = sphi 0, %s152
    %s155 = sphi 0, %s154
    %s169 = sphi 0, %s155
    %s175 = sphi 0, %s177
    %s178 = sphi 0, %s175
    %s179 = sphi 0, %s178
    %s195 = sphi 0, %s179
  $region4: #{_lambda_.25} parent=0 // loop_header_branch
    %16 = sbr.rel (%p14) target = $region8
  $region5: #{_lambda_.25} parent=0 // loop_body
    %s18 = ssub.s32 %s13, 1
    %s19 = ssub.s32 %s13, 2
    %s20 = sadd.s32 %s13, 1
    %s21 = ssub.s32 %s13, %s20
    %p22 = scmp.eq.s32.totalorder %s21, 0
    %s24 = sadd.s32 %s23, 1
    %s25 = scalar_select %p22, %s23, %s24
    %p28 = pneg %p22
    %p29 = scmp.eq.s32.totalorder %s13, 1
    %p30 = por %p28, %p29
    %p31 = scmp.ne.s32.totalorder %s23, %s26
    %p32 = scmp.eq.s32.totalorder %s13, 0
    %p33 = por %p31, %p32
    %p34 = scmp.ne.s32.totalorder %s23, %s26
    %p35 = scmp.eq.s32.totalorder %s18, 1
    %p36 = por %p34, %p35
    %p37 = scmp.ne.s32.totalorder %s26, %s27
    %p38 = scmp.eq.s32.totalorder %s18, 0
    %p39 = por %p37, %p38
    %p40 = scmp.ne.s32.totalorder %s26, %s27
    %p41 = scmp.eq.s32.totalorder %s19, 1
    %p42 = por %p40, %p41
    %p44 = scmp.ne.s32.totalorder %s27, %s43
    %p45 = scmp.eq.s32.totalorder %s19, 0
    %p46 = por %p44, %p45
    %s48 = sadd.s32 %s47, 1
    %p51 = scmp.eq.s32.totalorder %s13, 1
    %p52 = scmp.ne.s32.totalorder %s47, %s49
    %p53 = scmp.eq.s32.totalorder %s13, 0
    %p54 = por %p52, %p53
    %p55 = scmp.ne.s32.totalorder %s47, %s49
    %p56 = scmp.eq.s32.totalorder %s18, 1
    %p57 = por %p55, %p56
    %p58 = scmp.ne.s32.totalorder %s49, %s50
    %p59 = scmp.eq.s32.totalorder %s18, 0
    %p60 = por %p58, %p59
    %p61 = scmp.ne.s32.totalorder %s49, %s50
    %p62 = scmp.eq.s32.totalorder %s19, 1
    %p63 = por %p61, %p62
    %p65 = scmp.ne.s32.totalorder %s50, %s64
    %p66 = scmp.eq.s32.totalorder %s19, 0
    %p67 = por %p65, %p66
    %s69 = sadd.s32 %s68, 1
    %p72 = scmp.eq.s32.totalorder %s13, 1
    %p73 = scmp.ne.s32.totalorder %s68, %s70
    %p74 = scmp.eq.s32.totalorder %s13, 0
    %p75 = por %p73, %p74
    %p76 = scmp.ne.s32.totalorder %s68, %s70
    %p77 = scmp.eq.s32.totalorder %s18, 1
    %p78 = por %p76, %p77
    %p79 = scmp.ne.s32.totalorder %s70, %s71
    %p80 = scmp.eq.s32.totalorder %s18, 0
    %p81 = por %p79, %p80
    %p82 = scmp.ne.s32.totalorder %s70, %s71
    %p83 = scmp.eq.s32.totalorder %s19, 1
    %p84 = por %p82, %p83
    %p86 = scmp.ne.s32.totalorder %s71, %s85
    %p87 = scmp.eq.s32.totalorder %s19, 0
    %p88 = por %p86, %p87
    %s90 = sadd.s32 %s89, 1
    %p93 = scmp.eq.s32.totalorder %s13, 1
    %p94 = scmp.ne.s32.totalorder %s89, %s91
    %p95 = scmp.eq.s32.totalorder %s13, 0
    %p96 = por %p94, %p95
    %p97 = scmp.ne.s32.totalorder %s89, %s91
    %p98 = scmp.eq.s32.totalorder %s18, 1
    %p99 = por %p97, %p98
    %p100 = scmp.ne.s32.totalorder %s91, %s92
    %p101 = scmp.eq.s32.totalorder %s18, 0
    %p102 = por %p100, %p101
    %p103 = scmp.ne.s32.totalorder %s91, %s92
    %p104 = scmp.eq.s32.totalorder %s19, 1
    %p105 = por %p103, %p104
    %p107 = scmp.ne.s32.totalorder %s92, %s106
    %p108 = scmp.eq.s32.totalorder %s19, 0
    %p109 = por %p107, %p108
    %s111 = sadd.s32 %s110, 1
    %p114 = scmp.eq.s32.totalorder %s13, 1
    %p115 = scmp.ne.s32.totalorder %s110, %s112
    %p116 = scmp.eq.s32.totalorder %s13, 0
    %p117 = por %p115, %p116
    %p118 = scmp.ne.s32.totalorder %s110, %s112
    %p119 = scmp.eq.s32.totalorder %s18, 1
    %p120 = por %p118, %p119
    %p121 = scmp.ne.s32.totalorder %s112, %s113
    %p122 = scmp.eq.s32.totalorder %s18, 0
    %p123 = por %p121, %p122
    %p124 = scmp.ne.s32.totalorder %s112, %s113
    %p125 = scmp.eq.s32.totalorder %s19, 1
    %p126 = por %p124, %p125
    %p128 = scmp.ne.s32.totalorder %s113, %s127
    %p129 = scmp.eq.s32.totalorder %s19, 0
    %p130 = por %p128, %p129
    %s132 = sadd.s32 %s131, 1
    %p135 = scmp.eq.s32.totalorder %s13, 1
    %p136 = scmp.ne.s32.totalorder %s131, %s133
    %p137 = scmp.eq.s32.totalorder %s13, 0
    %p138 = por %p136, %p137
    %p139 = scmp.ne.s32.totalorder %s131, %s133
    %p140 = scmp.eq.s32.totalorder %s18, 1
    %p141 = por %p139, %p140
    %p142 = scmp.ne.s32.totalorder %s133, %s134
    %p143 = scmp.eq.s32.totalorder %s18, 0
    %p144 = por %p142, %p143
    %p145 = scmp.ne.s32.totalorder %s133, %s134
    %p146 = scmp.eq.s32.totalorder %s19, 1
    %p147 = por %p145, %p146
    %p149 = scmp.ne.s32.totalorder %s134, %s148
    %p150 = scmp.eq.s32.totalorder %s19, 0
    %p151 = por %p149, %p150
    %s153 = sadd.s32 %s152, 1
    %p156 = scmp.eq.s32.totalorder %s13, 1
    %p157 = scmp.ne.s32.totalorder %s152, %s154
    %p158 = scmp.eq.s32.totalorder %s13, 0
    %p159 = por %p157, %p158
    %p160 = scmp.ne.s32.totalorder %s152, %s154
    %p161 = scmp.eq.s32.totalorder %s18, 1
    %p162 = por %p160, %p161
    %p163 = scmp.ne.s32.totalorder %s154, %s155
    %p164 = scmp.eq.s32.totalorder %s18, 0
    %p165 = por %p163, %p164
    %p166 = scmp.ne.s32.totalorder %s154, %s155
    %p167 = scmp.eq.s32.totalorder %s19, 1
    %p168 = por %p166, %p167
    %p170 = scmp.ne.s32.totalorder %s155, %s169
    %p171 = scmp.eq.s32.totalorder %s19, 0
    %p172 = por %p170, %p171
    %s173 = ssub.s32 %s13, %s20
    %p174 = scmp.eq.s32.totalorder %s173, 0
    %s176 = sadd.s32 %s175, 1
    %s177 = scalar_select %p174, %s175, %s176
    %p180 = pneg %p174
    %p181 = scmp.eq.s32.totalorder %s13, 1
    %p182 = por %p180, %p181
    %p183 = scmp.ne.s32.totalorder %s175, %s178
    %p184 = scmp.eq.s32.totalorder %s13, 0
    %p185 = por %p183, %p184
    %p186 = scmp.ne.s32.totalorder %s175, %s178
    %p187 = scmp.eq.s32.totalorder %s18, 1
    %p188 = por %p186, %p187
    %p189 = scmp.ne.s32.totalorder %s178, %s179
    %p190 = scmp.eq.s32.totalorder %s18, 0
    %p191 = por %p189, %p190
    %p192 = scmp.ne.s32.totalorder %s178, %s179
    %p193 = scmp.eq.s32.totalorder %s19, 1
    %p194 = por %p192, %p193
    %p196 = scmp.ne.s32.totalorder %s179, %s195
    %p197 = scmp.eq.s32.totalorder %s19, 0
    %p198 = por %p196, %p197
    %p199 = scmp.le.s32.totalorder 1, %s13
    %p200 = scmp.lt.s32.totalorder %s13, 3
    %p201 = pnand %p199, %p200
    %p202 = pneg %p201
    // Predicated region
    $region9: #{_lambda_.25} parent=5 // pred_check
      _
    $region10: #{_lambda_.25} parent=5 // pred_check_branch
      %204 = sbr.rel (%p201) target = $region12
    $region11: #{_lambda_.25} parent=5 // pred_region
      %s205 = ssub.s32 %s13, 1
      // Predicated region
      $region13: #{_lambda_.25} parent=11 // pred_check
        %p206 = pneg %p60
      $region14: #{_lambda_.25} parent=11 // pred_check_branch
        %208 = sbr.rel (%p206) target = $region16
      $region15: #{_lambda_.25} parent=11 // pred_region
        _
      $region16: #{_lambda_.25} parent=11 // pred_fallthru
        _
      // Predicated region
      $region17: #{_lambda_.25} parent=11 // pred_check
        %p209 = pneg %p81
      $region18: #{_lambda_.25} parent=11 // pred_check_branch
        %211 = sbr.rel (%p209) target = $region20
      $region19: #{_lambda_.25} parent=11 // pred_region
        _
      $region20: #{_lambda_.25} parent=11 // pred_fallthru
        _
      // Predicated region
      $region21: #{_lambda_.25} parent=11 // pred_check
        %p212 = pneg %p102
      $region22: #{_lambda_.25} parent=11 // pred_check_branch
        %214 = sbr.rel (%p212) target = $region24
      $region23: #{_lambda_.25} parent=11 // pred_region
        _
      $region24: #{_lambda_.25} parent=11 // pred_fallthru
        _
      // Predicated region
      $region25: #{_lambda_.25} parent=11 // pred_check
        %p215 = pneg %p123
      $region26: #{_lambda_.25} parent=11 // pred_check_branch
        %217 = sbr.rel (%p215) target = $region28
      $region27: #{_lambda_.25} parent=11 // pred_region
        _
      $region28: #{_lambda_.25} parent=11 // pred_fallthru
        _
      // Predicated region
      $region29: #{_lambda_.25} parent=11 // pred_check
        %p218 = pneg %p144
      $region30: #{_lambda_.25} parent=11 // pred_check_branch
        %220 = sbr.rel (%p218) target = $region32
      $region31: #{_lambda_.25} parent=11 // pred_region
        _
      $region32: #{_lambda_.25} parent=11 // pred_fallthru
        _
      // Predicated region
      $region33: #{_lambda_.25} parent=11 // pred_check
        %p221 = pneg %p165
      $region34: #{_lambda_.25} parent=11 // pred_check_branch
        %223 = sbr.rel (%p221) target = $region36
      $region35: #{_lambda_.25} parent=11 // pred_region
        _
      $region36: #{_lambda_.25} parent=11 // pred_fallthru
        _
    $region12: #{_lambda_.25} parent=5 // pred_fallthru
      _
    %p224 = scmp.lt.s32.totalorder %s13, 2
    // Predicated region
    $region37: #{_lambda_.25} parent=5 // pred_check
      %p225 = pneg %p224
    $region38: #{_lambda_.25} parent=5 // pred_check_branch
      %227 = sbr.rel (%p225) target = $region40
    $region39: #{_lambda_.25} parent=5 // pred_region
      // Predicated region
      $region41: #{_lambda_.25} parent=39 // pred_check
        %p228 = pneg %p33
      $region42: #{_lambda_.25} parent=39 // pred_check_branch
        %230 = sbr.rel (%p228) target = $region44
      $region43: #{_lambda_.25} parent=39 // pred_region
        %p231 = scmp.lt.s32.totalorder %s13, 1
        %s232 = scalar_select %p231, %s13, 1
        %s233 = smul.addr %s232, 2
        %s234 = smul.addr %s233, 4
        %s235 = scalar_lea.vmem %s0, %s234
      $region44: #{_lambda_.25} parent=39 // pred_fallthru
        _
    $region40: #{_lambda_.25} parent=5 // pred_fallthru
      _
    %p236 = scmp.le.s32.totalorder 1, %s13
    %p237 = scmp.lt.s32.totalorder %s13, 3
    %p238 = pnand %p236, %p237
    %p239 = pneg %p238
    // Predicated region
    $region45: #{_lambda_.25} parent=5 // pred_check
      _
    $region46: #{_lambda_.25} parent=5 // pred_check_branch
      %241 = sbr.rel (%p238) target = $region48
    $region47: #{_lambda_.25} parent=5 // pred_region
      %s242 = ssub.s32 %s13, 1
      %p243 = scmp.lt.s32.totalorder %s18, 1
      %s244 = scalar_select %p243, %s18, 1
      %s245 = smul.addr %s244, 2
      %s246 = smul.addr %s245, 4
      %s247 = scalar_lea.vmem %s0, %s246
      %p248 = pneg %p39
      %p249 = pneg %p36
      %p250 = pneg %p60
      %p251 = pneg %p57
      %p252 = pneg %p81
      %p253 = pneg %p78
      %p254 = pneg %p102
      %p255 = pneg %p99
      %p256 = pneg %p123
      %p257 = pneg %p120
      %p258 = pneg %p144
      %p259 = pneg %p141
      %p260 = pneg %p165
      %p261 = pneg %p162
      %p262 = pneg %p191
      %p263 = pneg %p188
      %p264 = scmp.lt.s32.totalorder %s18, 1
      %s265 = scalar_select %p264, %s18, 1
      %s266 = smul.addr %s265, 2
      %s267 = smul.addr %s266, 4
      %s268 = scalar_lea.vmem %s7, %s267
      %p269 = scmp.lt.s32.totalorder %s18, 1
      %s270 = scalar_select %p269, %s18, 1
      %s271 = smul.addr %s270, 2
      %s272 = smul.addr %s271, 4
      %s273 = scalar_lea.vmem %s0, %s272
      %p274 = scmp.lt.s32.totalorder %s18, 1
      %s275 = scalar_select %p274, %s18, 1
      %s276 = smul.addr %s275, 2
      %s277 = smul.addr %s276, 4
      %s278 = scalar_lea.vmem %s7, %s277
      %v279 = vld [vmem:[%s273] sm:$0xf]
      %v280 = vld [vmem:[%s273 + $0x4] sm:$0xf]
      %v281 = vunpack.c.l.bf16 %v279
      %v282 = vunpack.c.l.bf16 %v280
      %v283 = vld [vmem:[%s1] sm:$0x1]
      %v285 = vlaneseq
      %v286 = vshrl.u32 %v285, 7
      %v287 = vsub.s32 0, %v286
      %v288 = vrot.slane %v283, %v287
      %v290 = vmul.f32 %v281, %v288
      %v291 = vmul.f32 %v282, %v288
      %v292 = vld [vmem:[%s2] sm:$0x1]
      %v294 = vlaneseq
      %v295 = vshrl.u32 %v294, 7
      %v296 = vsub.s32 0, %v295
      %v297 = vrot.slane %v292, %v296
      %v299 = vadd.f32 %v290, %v297
      %v300 = vadd.f32 %v291, %v297
      %v301 = vxor.u32 %v299, 2147483648
      %v302 = vxor.u32 %v300, 2147483648
      %v303 = vmul.f32 %v301, 1.442695
      %v304 = vpow.pop %v303
      %v305 = vmul.f32 %v302, 1.442695
      %v306 = vpow.pop %v305
      %v307 = vadd.f32 %v304, 1.0
      %v308 = vadd.f32 %v306, 1.0
      %v309 = vrcp.pop %v307
      %v310 = vmul.f32 1.0, %v309
      %v311 = vrcp.pop %v308
      %v312 = vmul.f32 1.0, %v311
      %v313 = vmul.f32 %v299, %v310
      %v314 = vmul.f32 %v300, %v312
      %v315 = vadd.f32 %v313, %v314
      %v316 = vrot.slane %v315, 4
      %v317 = vadd.f32 %v315, %v316
      %v318 = vrot.slane %v317, 2
      %v319 = vadd.f32 %v317, %v318
      %v320 = vrot.slane %v319, 1
      %v321 = vadd.f32 %v319, %v320
      %v322 = vrcp.pop 16.0
      %v323 = vmul.f32 %v321, %v322
      %v324 = vld [vmem:[%s3] sm:$0xff]
      %v325 = vld [vmem:[%s3 + $0x8] sm:$0xff]
      %v326 = vld [vmem:[%s3 + $0x10] sm:$0xff]
      %v327 = vld [vmem:[%s3 + $0x18] sm:$0xff]
      %v328 = vld [vmem:[%s3 + $0x20] sm:$0xff]
      %v329 = vld [vmem:[%s3 + $0x28] sm:$0xff]
      %v330 = vld [vmem:[%s3 + $0x30] sm:$0xff]
      %v331 = vld [vmem:[%s3 + $0x38] sm:$0xff]
      %v332 = vld [vmem:[%s3 + $0x40] sm:$0xff]
      %v333 = vld [vmem:[%s3 + $0x48] sm:$0xff]
      %v334 = vld [vmem:[%s3 + $0x50] sm:$0xff]
      %v335 = vld [vmem:[%s3 + $0x58] sm:$0xff]
      %v336 = vld [vmem:[%s3 + $0x60] sm:$0xff]
      %v337 = vld [vmem:[%s3 + $0x68] sm:$0xff]
      %v338 = vld [vmem:[%s3 + $0x70] sm:$0xff]
      %v339 = vld [vmem:[%s3 + $0x78] sm:$0xff]
      %v340 = vld [vmem:[%s4] sm:$0x1]
      %341 = vmatprep.subr.mxu0 0.0
      %342 = vmatpush1.msra.mxu0 %v339
      %343 = vmatprep.subr.mxu0 0.0
      %344 = vmatpush1.msra.mxu0 %v338
      %345 = vmatprep.subr.mxu0 0.0
      %346 = vmatpush1.msra.mxu0 %v337
      %347 = vmatprep.subr.mxu0 0.0
      %348 = vmatpush1.msra.mxu0 %v336
      %349 = vmatprep.subr.mxu0 0.0
      %350 = vmatpush1.msra.mxu0 %v335
      %351 = vmatprep.subr.mxu0 0.0
      %352 = vmatpush1.msra.mxu0 %v334
      %353 = vmatprep.subr.mxu0 0.0
      %354 = vmatpush1.msra.mxu0 %v333
      %355 = vmatprep.subr.mxu0 0.0
      %356 = vmatpush1.msra.mxu0 %v332
      %357 = vmatprep.subr.mxu0 0.0
      %358 = vmatpush1.msra.mxu0 %v331
      %359 = vmatprep.subr.mxu0 0.0
      %360 = vmatpush1.msra.mxu0 %v330
      %361 = vmatprep.subr.mxu0 0.0
      %362 = vmatpush1.msra.mxu0 %v329
      %363 = vmatprep.subr.mxu0 0.0
      %364 = vmatpush1.msra.mxu0 %v328
      %365 = vmatprep.subr.mxu0 0.0
      %366 = vmatpush1.msra.mxu0 %v327
      %367 = vmatprep.subr.mxu0 0.0
      %368 = vmatpush1.msra.mxu0 %v326
      %369 = vmatprep.subr.mxu0 0.0
      %370 = vmatpush1.msra.mxu0 %v325
      %371 = vmatprep.subr.mxu0 0.0
      %372 = vmatpush1.msra.mxu0 %v324
      %373 = vmatprep.subr.mxu0 0.0
      %374 = vmatpush2.msra.mxu0 0.0
      %375 = vmatprep.subr.mxu0 0.0
      %376 = vmatpush2.msra.mxu0 0.0
      %377 = vmatprep.subr.mxu0 0.0
      %378 = vmatpush2.msra.mxu0 0.0
      %379 = vmatprep.subr.mxu0 0.0
      %380 = vmatpush2.msra.mxu0 0.0
      %381 = vmatprep.subr.mxu0 0.0
      %382 = vmatpush2.msra.mxu0 0.0
      %383 = vmatprep.subr.mxu0 0.0
      %384 = vmatpush2.msra.mxu0 0.0
      %385 = vmatprep.subr.mxu0 0.0
      %386 = vmatpush2.msra.mxu0 0.0
      %387 = vmatprep.subr.mxu0 0.0
      %388 = vmatpush2.msra.mxu0 0.0
      %389 = vmatprep.subr.mxu0 0.0
      %390 = vmatpush2.msra.mxu0 0.0
      %391 = vmatprep.subr.mxu0 0.0
      %392 = vmatpush2.msra.mxu0 0.0
      %393 = vmatprep.subr.mxu0 0.0
      %394 = vmatpush2.msra.mxu0 0.0
      %395 = vmatprep.subr.mxu0 0.0
      %396 = vmatpush2.msra.mxu0 0.0
      %397 = vmatprep.subr.mxu0 0.0
      %398 = vmatpush2.msra.mxu0 0.0
      %399 = vmatprep.subr.mxu0 0.0
      %400 = vmatpush2.msra.mxu0 0.0
      %401 = vmatprep.subr.mxu0 0.0
      %402 = vmatpush2.msra.mxu0 0.0
      %403 = vmatprep.subr.mxu0 0.0
      %404 = vmatpush2.msra.mxu0 0.0
      %405 = vmatprep.mubr.f32.mxu0 0.0
      %406 = vmatmul.mubr.f32.gmra.mxu0 %v323
      %v407 = vpop.f32.mrf.mxu0
      %v408 = vadd.f32 %v340, %v407
      %v409 = vpop.f32.mrf.mxu0
      %410 = vdwg.mxu0
      %v411 = vxor.u32 %v408, 2147483648
      %v412 = vmul.f32 %v411, 1.442695
      %v413 = vpow.pop %v412
      %v414 = vadd.f32 %v413, 1.0
      %v415 = vrcp.pop %v414
      %v416 = vmul.f32 1.0, %v415
      %v417 = vmul.f32 %v408, %v416
      %v418 = vld [vmem:[%s5] sm:$0xf]
      %v419 = vld [vmem:[%s6] sm:$0x1]
      %vm420 = vcmask 31744
      %v422 = vsel %vm420, %v417, 0
      %vm424 = vcmask 1043456
      %v426 = vsel %vm424, %v418, 0
      %428 = vmatprep.subr.mxu0 0.0
      %429 = vmatpush1.msra.mxu0 0.0
      %430 = vmatprep.subr.mxu0 0.0
      %431 = vmatpush1.msra.mxu0 0.0
      %432 = vmatprep.subr.mxu0 0.0
      %433 = vmatpush1.msra.mxu0 0.0
      %434 = vmatprep.subr.mxu0 0.0
      %435 = vmatpush1.msra.mxu0 0.0
      %436 = vmatprep.subr.mxu0 0.0
      %437 = vmatpush1.msra.mxu0 0.0
      %438 = vmatprep.subr.mxu0 0.0
      %439 = vmatpush1.msra.mxu0 0.0
      %440 = vmatprep.subr.mxu0 0.0
      %441 = vmatpush1.msra.mxu0 0.0
      %442 = vmatprep.subr.mxu0 0.0
      %443 = vmatpush1.msra.mxu0 0.0
      %444 = vmatprep.subr.mxu0 0.0
      %445 = vmatpush1.msra.mxu0 0.0
      %446 = vmatprep.subr.mxu0 0.0
      %447 = vmatpush1.msra.mxu0 0.0
      %448 = vmatprep.subr.mxu0 0.0
      %449 = vmatpush1.msra.mxu0 0.0
      %450 = vmatprep.subr.mxu0 0.0
      %451 = vmatpush1.msra.mxu0 0.0
      %452 = vmatprep.subr.mxu0 0.0
      %453 = vmatpush1.msra.mxu0 0.0
      %454 = vmatprep.subr.mxu0 0.0
      %455 = vmatpush1.msra.mxu0 0.0
      %456 = vmatprep.subr.mxu0 0.0
      %457 = vmatpush1.msra.mxu0 0.0
      %458 = vmatprep.subr.mxu0 0.0
      %459 = vmatpush1.msra.mxu0 %v426
      %460 = vmatprep.subr.mxu0 0.0
      %461 = vmatpush2.msra.mxu0 0.0
      %462 = vmatprep.subr.mxu0 0.0
      %463 = vmatpush2.msra.mxu0 0.0
      %464 = vmatprep.subr.mxu0 0.0
      %465 = vmatpush2.msra.mxu0 0.0
      %466 = vmatprep.subr.mxu0 0.0
      %467 = vmatpush2.msra.mxu0 0.0
      %468 = vmatprep.subr.mxu0 0.0
      %469 = vmatpush2.msra.mxu0 0.0
      %470 = vmatprep.subr.mxu0 0.0
      %471 = vmatpush2.msra.mxu0 0.0
      %472 = vmatprep.subr.mxu0 0.0
      %473 = vmatpush2.msra.mxu0 0.0
      %474 = vmatprep.subr.mxu0 0.0
      %475 = vmatpush2.msra.mxu0 0.0
      %476 = vmatprep.subr.mxu0 0.0
      %477 = vmatpush2.msra.mxu0 0.0
      %478 = vmatprep.subr.mxu0 0.0
      %479 = vmatpush2.msra.mxu0 0.0
      %480 = vmatprep.subr.mxu0 0.0
      %481 = vmatpush2.msra.mxu0 0.0
      %482 = vmatprep.subr.mxu0 0.0
      %483 = vmatpush2.msra.mxu0 0.0
      %484 = vmatprep.subr.mxu0 0.0
      %485 = vmatpush2.msra.mxu0 0.0
      %486 = vmatprep.subr.mxu0 0.0
      %487 = vmatpush2.msra.mxu0 0.0
      %488 = vmatprep.subr.mxu0 0.0
      %489 = vmatpush2.msra.mxu0 0.0
      %490 = vmatprep.subr.mxu0 0.0
      %491 = vmatpush2.msra.mxu0 0.0
      %492 = vmatprep.mubr.f32.mxu0 0.0
      %493 = vmatmul.mubr.f32.gmra.mxu0 %v422
      %v494 = vpop.f32.mrf.mxu0
      %v495 = vadd.f32 %v419, %v494
      %v496 = vpop.f32.mrf.mxu0
      %497 = vdwg.mxu0
      %v498 = vxor.u32 %v495, 2147483648
      %v499 = vmul.f32 %v498, 1.442695
      %v500 = vpow.pop %v499
      %v501 = vadd.f32 %v500, 1.0
      %v502 = vrcp.pop %v501
      %v503 = vmul.f32 1.0, %v502
      %v504 = vlaneseq
      %v505 = vshrl.u32 %v504, 7
      %v506 = vsub.s32 0, %v505
      %v507 = vrot.slane %v503, %v506
      %v508 = vmul.f32 %v313, %v507
      %v509 = vmul.f32 %v314, %v507
      %v510 = vpack.c.bf16 %v509, %v508
      %v512 = vunpack.c.l.b16 %v510
      %v513 = vunpack.c.h.b16 %v510
      %v514 = vpack.c.b16 %v512, %v512
      %v515 = vpack.c.b16 %v513, %v513
      %518 = vst [vmem:[%s278] sm:$0xf] %v514
      %519 = vst [vmem:[%s278 + $0x4] sm:$0xf] %v515
      %p520 = scmp.lt.s32.totalorder %s18, 1
      %s521 = scalar_select %p520, %s18, 1
      %s522 = smul.addr %s521, 2
      %s523 = smul.addr %s522, 4
      %s524 = scalar_lea.vmem %s7, %s523
      // Predicated region
      $region49: #{_lambda_.25} parent=47 // pred_check
        %p525 = pneg %p188
      $region50: #{_lambda_.25} parent=47 // pred_check_branch
        %527 = sbr.rel (%p525) target = $region52
      $region51: #{_lambda_.25} parent=47 // pred_region
        _
      $region52: #{_lambda_.25} parent=47 // pred_fallthru
        _
    $region48: #{_lambda_.25} parent=5 // pred_fallthru
      _
    %p528 = scmp.le.s32.totalorder 2, %s13
    // Predicated region
    $region53: #{_lambda_.25} parent=5 // pred_check
      %p529 = pneg %p528
    $region54: #{_lambda_.25} parent=5 // pred_check_branch
      %531 = sbr.rel (%p529) target = $region56
    $region55: #{_lambda_.25} parent=5 // pred_region
      %s532 = ssub.s32 %s13, 2
      // Predicated region
      $region57: #{_lambda_.25} parent=55 // pred_check
        %p533 = pneg %p194
      $region58: #{_lambda_.25} parent=55 // pred_check_branch
        %535 = sbr.rel (%p533) target = $region60
      $region59: #{_lambda_.25} parent=55 // pred_region
        %p536 = scmp.lt.s32.totalorder %s19, 1
        %s537 = scalar_select %p536, %s19, 1
        %s538 = smul.addr %s537, 2
        %s539 = smul.addr %s538, 4
        %s540 = scalar_lea.vmem %s7, %s539
      $region60: #{_lambda_.25} parent=55 // pred_fallthru
        _
    $region56: #{_lambda_.25} parent=5 // pred_fallthru
      _
  $region6: #{_lambda_.25} parent=0 // loop_footer
    %s17 = sadd.s32 1, %s13
  $region7: #{_lambda_.25} parent=0 // loop_footer_branch
    %12 = sbr.rel target = $region3
  $region8: #{_lambda_.25} parent=0 // loop_exit
    _

// kernel: _lambda_.27
$region0: #{_lambda_.27}
  #allocation0 [shape = 'u32[]', space=smem, size = 0x4, offset = 0x4, fixed_abs, tag = 'smem constant byte address 0x4 - core index']
  #allocation1 [shape = 'u32[144,128]{1,0:T(1,128)}', space=vmem, size = 0x12000, scoped, tag = 'internal scratch']
  %s0 = inlined_call_operand.vmem [shape: bf16[32,128], index: 0, kind: input, shape index: {}]
  %s1 = inlined_call_operand.vmem [shape: f32[1,128], index: 1, kind: input, shape index: {}]
  %s2 = inlined_call_operand.vmem [shape: f32[1,128], index: 2, kind: input, shape index: {}]
  %s3 = inlined_call_operand.vmem [shape: bf16[32,128], index: 3, kind: output, shape index: {}]
  %s4 = sld [smem:[#allocation0]]
  $region22: #{_lambda_.27} parent=0
    _
  %s6 = ssub.s32 1, %s4
  %s7 = scalar_select 0, %s6, %s4
  // Predicated region
  $region2: #{_lambda_.27} parent=0 // pred_check
    _
  $region3: #{_lambda_.27} parent=0 // pred_check_branch
    %9 = sbr.rel (0) target = $region5
  $region4: #{_lambda_.27} parent=0 // pred_region
    _
  $region5: #{_lambda_.27} parent=0 // pred_fallthru
    _
  // Predicated region
  $region6: #{_lambda_.27} parent=0 // pred_check
    _
  $region7: #{_lambda_.27} parent=0 // pred_check_branch
    %11 = sbr.rel (0) target = $region9
  $region8: #{_lambda_.27} parent=0 // pred_region
    _
  $region9: #{_lambda_.27} parent=0 // pred_fallthru
    _
  // Predicated region
  $region10: #{_lambda_.27} parent=0 // pred_check
    _
  $region11: #{_lambda_.27} parent=0 // pred_check_branch
    %13 = sbr.rel (0) target = $region13
  $region12: #{_lambda_.27} parent=0 // pred_region
    _
  $region13: #{_lambda_.27} parent=0 // pred_fallthru
    _
  %v14 = vld [vmem:[%s0] sm:$0xf]
  %v15 = vld [vmem:[%s0 + $0x4] sm:$0xf]
  %v16 = vld [vmem:[%s0 + $0x8] sm:$0xf]
  %v17 = vld [vmem:[%s0 + $0xc] sm:$0xf]
  %v18 = vunpack.c.l.bf16 %v14
  %v19 = vunpack.c.l.bf16 %v15
  %v20 = vunpack.c.l.bf16 %v16
  %v21 = vunpack.c.l.bf16 %v17
  %v22 = vld [vmem:[%s1] sm:$0x1]
  %v24 = vlaneseq
  %v25 = vshrl.u32 %v24, 7
  %v26 = vsub.s32 0, %v25
  %v27 = vrot.slane %v22, %v26
  %v29 = vmul.f32 %v18, %v27
  %v30 = vmul.f32 %v19, %v27
  %v31 = vmul.f32 %v20, %v27
  %v32 = vmul.f32 %v21, %v27
  %v33 = vld [vmem:[%s2] sm:$0x1]
  %v35 = vlaneseq
  %v36 = vshrl.u32 %v35, 7
  %v37 = vsub.s32 0, %v36
  %v38 = vrot.slane %v33, %v37
  %v40 = vadd.f32 %v29, %v38
  %v41 = vadd.f32 %v30, %v38
  %v42 = vadd.f32 %v31, %v38
  %v43 = vadd.f32 %v32, %v38
  %v44 = vpack.c.bf16 %v41, %v40
  %v45 = vpack.c.bf16 %v43, %v42
  %v48 = vunpack.c.l.b16 %v44
  %v49 = vunpack.c.h.b16 %v44
  %v50 = vunpack.c.l.b16 %v45
  %v51 = vunpack.c.h.b16 %v45
  %v52 = vpack.c.b16 %v48, %v48
  %v53 = vpack.c.b16 %v49, %v49
  %v54 = vpack.c.b16 %v50, %v50
  %v55 = vpack.c.b16 %v51, %v51
  %60 = vst [vmem:[%s3] sm:$0xf] %v52
  %61 = vst [vmem:[%s3 + $0x4] sm:$0xf] %v53
  %62 = vst [vmem:[%s3 + $0x8] sm:$0xf] %v54
  %63 = vst [vmem:[%s3 + $0xc] sm:$0xf] %v55
  // Predicated region
  $region14: #{_lambda_.27} parent=0 // pred_check
    _
  $region15: #{_lambda_.27} parent=0 // pred_check_branch
    %65 = sbr.rel (0) target = $region17
  $region16: #{_lambda_.27} parent=0 // pred_region
    _
  $region17: #{_lambda_.27} parent=0 // pred_fallthru
    _
  // Predicated region
  $region18: #{_lambda_.27} parent=0 // pred_check
    _
  $region19: #{_lambda_.27} parent=0 // pred_check_branch
    %67 = sbr.rel (0) target = $region21
  $region20: #{_lambda_.27} parent=0 // pred_region
    _
  $region21: #{_lambda_.27} parent=0 // pred_fallthru
    _

// kernel: _lambda_.24
$region0: #{_lambda_.24}
  #allocation0 [shape = 'u32[]', space=smem, size = 0x4, offset = 0x4, fixed_abs, tag = 'smem constant byte address 0x4 - core index']
  #allocation1 [shape = 'u32[144,128]{1,0:T(1,128)}', space=vmem, size = 0x12000, scoped, tag = 'internal scratch']
  #allocation2 [shape = 'f32[4,5,5,128]{3,2,1,0:T(8,128)}', space=vmem, size = 0x14000, scoped, tag = 'scratch operand']
  %s0 = inlined_call_operand.vmem [shape: bf16[2,4,5,5,128], index: 0, kind: input, shape index: {}]
  %s1 = inlined_call_operand.vmem [shape: f32[4,5,5,1], index: 1, kind: input, shape index: {}]
  %s2 = inlined_call_operand.vmem [shape: f32[1,128], index: 2, kind: input, shape index: {}]
  %s3 = inlined_call_operand.vmem [shape: f32[1,128], index: 3, kind: input, shape index: {}]
  %s4 = inlined_call_operand.vmem [shape: f32[9,128], index: 4, kind: input, shape index: {}]
  %s5 = inlined_call_operand.vmem [shape: bf16[2,4,4,128], index: 5, kind: output, shape index: {0}]
  %s6 = inlined_call_operand.vmem [shape: f32[2,2,128], index: 6, kind: output, shape index: {1}]
  %7 = xla_tuple %s5, %s6
  %s8 = sld [smem:[#allocation0]]
  $region61: #{_lambda_.24} parent=0
    _
  %s10 = ssub.s32 1, %s8
  %s11 = scalar_select 0, %s10, %s8
  loop: start=0, step=1, limit=4
  $region2: #{_lambda_.24} parent=0 // loop_pre_header
    _
  $region3: #{_lambda_.24} parent=0 // loop_header
    %s13 = sphi 0, %s17
    %p14 = scmp.ge.s32.totalorder %s13, 4
    %s23 = sphi 0, %s25
    %s26 = sphi 0, %s23
    %s27 = sphi 0, %s26
    %s43 = sphi 0, %s27
    %s47 = sphi 0, %s47
    %s49 = sphi 0, %s47
    %s50 = sphi 0, %s49
    %s64 = sphi 0, %s50
    %s68 = sphi 0, %s68
    %s70 = sphi 0, %s68
    %s71 = sphi 0, %s70
    %s85 = sphi 0, %s71
    %s89 = sphi 0, %s89
    %s91 = sphi 0, %s89
    %s92 = sphi 0, %s91
    %s106 = sphi 0, %s92
    %s110 = sphi 0, %s110
    %s112 = sphi 0, %s110
    %s113 = sphi 0, %s112
    %s127 = sphi 0, %s113
    %s133 = sphi 0, %s135
    %s136 = sphi 0, %s133
    %s137 = sphi 0, %s136
    %s153 = sphi 0, %s137
    %s159 = sphi 0, %s161
    %s162 = sphi 0, %s159
    %s163 = sphi 0, %s162
    %s179 = sphi 0, %s163
  $region4: #{_lambda_.24} parent=0 // loop_header_branch
    %16 = sbr.rel (%p14) target = $region8
  $region5: #{_lambda_.24} parent=0 // loop_body
    %s18 = ssub.s32 %s13, 1
    %s19 = ssub.s32 %s13, 2
    %s20 = sadd.s32 %s13, 1
    %s21 = ssub.s32 %s13, %s20
    %p22 = scmp.eq.s32.totalorder %s21, 0
    %s24 = sadd.s32 %s23, 1
    %s25 = scalar_select %p22, %s23, %s24
    %p28 = pneg %p22
    %p29 = scmp.eq.s32.totalorder %s13, 1
    %p30 = por %p28, %p29
    %p31 = scmp.ne.s32.totalorder %s23, %s26
    %p32 = scmp.eq.s32.totalorder %s13, 0
    %p33 = por %p31, %p32
    %p34 = scmp.ne.s32.totalorder %s23, %s26
    %p35 = scmp.eq.s32.totalorder %s18, 1
    %p36 = por %p34, %p35
    %p37 = scmp.ne.s32.totalorder %s26, %s27
    %p38 = scmp.eq.s32.totalorder %s18, 0
    %p39 = por %p37, %p38
    %p40 = scmp.ne.s32.totalorder %s26, %s27
    %p41 = scmp.eq.s32.totalorder %s19, 1
    %p42 = por %p40, %p41
    %p44 = scmp.ne.s32.totalorder %s27, %s43
    %p45 = scmp.eq.s32.totalorder %s19, 0
    %p46 = por %p44, %p45
    %s48 = sadd.s32 %s47, 1
    %p51 = scmp.eq.s32.totalorder %s13, 1
    %p52 = scmp.ne.s32.totalorder %s47, %s49
    %p53 = scmp.eq.s32.totalorder %s13, 0
    %p54 = por %p52, %p53
    %p55 = scmp.ne.s32.totalorder %s47, %s49
    %p56 = scmp.eq.s32.totalorder %s18, 1
    %p57 = por %p55, %p56
    %p58 = scmp.ne.s32.totalorder %s49, %s50
    %p59 = scmp.eq.s32.totalorder %s18, 0
    %p60 = por %p58, %p59
    %p61 = scmp.ne.s32.totalorder %s49, %s50
    %p62 = scmp.eq.s32.totalorder %s19, 1
    %p63 = por %p61, %p62
    %p65 = scmp.ne.s32.totalorder %s50, %s64
    %p66 = scmp.eq.s32.totalorder %s19, 0
    %p67 = por %p65, %p66
    %s69 = sadd.s32 %s68, 1
    %p72 = scmp.eq.s32.totalorder %s13, 1
    %p73 = scmp.ne.s32.totalorder %s68, %s70
    %p74 = scmp.eq.s32.totalorder %s13, 0
    %p75 = por %p73, %p74
    %p76 = scmp.ne.s32.totalorder %s68, %s70
    %p77 = scmp.eq.s32.totalorder %s18, 1
    %p78 = por %p76, %p77
    %p79 = scmp.ne.s32.totalorder %s70, %s71
    %p80 = scmp.eq.s32.totalorder %s18, 0
    %p81 = por %p79, %p80
    %p82 = scmp.ne.s32.totalorder %s70, %s71
    %p83 = scmp.eq.s32.totalorder %s19, 1
    %p84 = por %p82, %p83
    %p86 = scmp.ne.s32.totalorder %s71, %s85
    %p87 = scmp.eq.s32.totalorder %s19, 0
    %p88 = por %p86, %p87
    %s90 = sadd.s32 %s89, 1
    %p93 = scmp.eq.s32.totalorder %s13, 1
    %p94 = scmp.ne.s32.totalorder %s89, %s91
    %p95 = scmp.eq.s32.totalorder %s13, 0
    %p96 = por %p94, %p95
    %p97 = scmp.ne.s32.totalorder %s89, %s91
    %p98 = scmp.eq.s32.totalorder %s18, 1
    %p99 = por %p97, %p98
    %p100 = scmp.ne.s32.totalorder %s91, %s92
    %p101 = scmp.eq.s32.totalorder %s18, 0
    %p102 = por %p100, %p101
    %p103 = scmp.ne.s32.totalorder %s91, %s92
    %p104 = scmp.eq.s32.totalorder %s19, 1
    %p105 = por %p103, %p104
    %p107 = scmp.ne.s32.totalorder %s92, %s106
    %p108 = scmp.eq.s32.totalorder %s19, 0
    %p109 = por %p107, %p108
    %s111 = sadd.s32 %s110, 1
    %p114 = scmp.eq.s32.totalorder %s13, 1
    %p115 = scmp.ne.s32.totalorder %s110, %s112
    %p116 = scmp.eq.s32.totalorder %s13, 0
    %p117 = por %p115, %p116
    %p118 = scmp.ne.s32.totalorder %s110, %s112
    %p119 = scmp.eq.s32.totalorder %s18, 1
    %p120 = por %p118, %p119
    %p121 = scmp.ne.s32.totalorder %s112, %s113
    %p122 = scmp.eq.s32.totalorder %s18, 0
    %p123 = por %p121, %p122
    %p124 = scmp.ne.s32.totalorder %s112, %s113
    %p125 = scmp.eq.s32.totalorder %s19, 1
    %p126 = por %p124, %p125
    %p128 = scmp.ne.s32.totalorder %s113, %s127
    %p129 = scmp.eq.s32.totalorder %s19, 0
    %p130 = por %p128, %p129
    %s131 = ssub.s32 %s13, %s20
    %p132 = scmp.eq.s32.totalorder %s131, 0
    %s134 = sadd.s32 %s133, 1
    %s135 = scalar_select %p132, %s133, %s134
    %p138 = pneg %p132
    %p139 = scmp.eq.s32.totalorder %s13, 1
    %p140 = por %p138, %p139
    %p141 = scmp.ne.s32.totalorder %s133, %s136
    %p142 = scmp.eq.s32.totalorder %s13, 0
    %p143 = por %p141, %p142
    %p144 = scmp.ne.s32.totalorder %s133, %s136
    %p145 = scmp.eq.s32.totalorder %s18, 1
    %p146 = por %p144, %p145
    %p147 = scmp.ne.s32.totalorder %s136, %s137
    %p148 = scmp.eq.s32.totalorder %s18, 0
    %p149 = por %p147, %p148
    %p150 = scmp.ne.s32.totalorder %s136, %s137
    %p151 = scmp.eq.s32.totalorder %s19, 1
    %p152 = por %p150, %p151
    %p154 = scmp.ne.s32.totalorder %s137, %s153
    %p155 = scmp.eq.s32.totalorder %s19, 0
    %p156 = por %p154, %p155
    %s157 = ssub.s32 %s13, %s20
    %p158 = scmp.eq.s32.totalorder %s157, 0
    %s160 = sadd.s32 %s159, 1
    %s161 = scalar_select %p158, %s159, %s160
    %p164 = pneg %p158
    %p165 = scmp.eq.s32.totalorder %s13, 1
    %p166 = por %p164, %p165
    %p167 = scmp.ne.s32.totalorder %s159, %s162
    %p168 = scmp.eq.s32.totalorder %s13, 0
    %p169 = por %p167, %p168
    %p170 = scmp.ne.s32.totalorder %s159, %s162
    %p171 = scmp.eq.s32.totalorder %s18, 1
    %p172 = por %p170, %p171
    %p173 = scmp.ne.s32.totalorder %s162, %s163
    %p174 = scmp.eq.s32.totalorder %s18, 0
    %p175 = por %p173, %p174
    %p176 = scmp.ne.s32.totalorder %s162, %s163
    %p177 = scmp.eq.s32.totalorder %s19, 1
    %p178 = por %p176, %p177
    %p180 = scmp.ne.s32.totalorder %s163, %s179
    %p181 = scmp.eq.s32.totalorder %s19, 0
    %p182 = por %p180, %p181
    %p183 = scmp.le.s32.totalorder 1, %s13
    %p184 = scmp.lt.s32.totalorder %s13, 3
    %p185 = pnand %p183, %p184
    %p186 = pneg %p185
    // Predicated region
    $region9: #{_lambda_.24} parent=5 // pred_check
      _
    $region10: #{_lambda_.24} parent=5 // pred_check_branch
      %188 = sbr.rel (%p185) target = $region12
    $region11: #{_lambda_.24} parent=5 // pred_region
      %s189 = ssub.s32 %s13, 1
      // Predicated region
      $region13: #{_lambda_.24} parent=11 // pred_check
        %p190 = pneg %p60
      $region14: #{_lambda_.24} parent=11 // pred_check_branch
        %192 = sbr.rel (%p190) target = $region16
      $region15: #{_lambda_.24} parent=11 // pred_region
        _
      $region16: #{_lambda_.24} parent=11 // pred_fallthru
        _
      // Predicated region
      $region17: #{_lambda_.24} parent=11 // pred_check
        %p193 = pneg %p81
      $region18: #{_lambda_.24} parent=11 // pred_check_branch
        %195 = sbr.rel (%p193) target = $region20
      $region19: #{_lambda_.24} parent=11 // pred_region
        _
      $region20: #{_lambda_.24} parent=11 // pred_fallthru
        _
      // Predicated region
      $region21: #{_lambda_.24} parent=11 // pred_check
        %p196 = pneg %p102
      $region22: #{_lambda_.24} parent=11 // pred_check_branch
        %198 = sbr.rel (%p196) target = $region24
      $region23: #{_lambda_.24} parent=11 // pred_region
        _
      $region24: #{_lambda_.24} parent=11 // pred_fallthru
        _
      // Predicated region
      $region25: #{_lambda_.24} parent=11 // pred_check
        %p199 = pneg %p123
      $region26: #{_lambda_.24} parent=11 // pred_check_branch
        %201 = sbr.rel (%p199) target = $region28
      $region27: #{_lambda_.24} parent=11 // pred_region
        _
      $region28: #{_lambda_.24} parent=11 // pred_fallthru
        _
    $region12: #{_lambda_.24} parent=5 // pred_fallthru
      _
    %p202 = scmp.lt.s32.totalorder %s13, 2
    // Predicated region
    $region29: #{_lambda_.24} parent=5 // pred_check
      %p203 = pneg %p202
    $region30: #{_lambda_.24} parent=5 // pred_check_branch
      %205 = sbr.rel (%p203) target = $region32
    $region31: #{_lambda_.24} parent=5 // pred_region
      // Predicated region
      $region33: #{_lambda_.24} parent=31 // pred_check
        %p206 = pneg %p33
      $region34: #{_lambda_.24} parent=31 // pred_check_branch
        %208 = sbr.rel (%p206) target = $region36
      $region35: #{_lambda_.24} parent=31 // pred_region
        %p209 = scmp.lt.s32.totalorder %s13, 1
        %s210 = scalar_select %p209, %s13, 1
        %s211 = smul.addr %s210, 20
        %s212 = smul.addr %s211, 4
        %s213 = scalar_lea.vmem %s0, %s212
      $region36: #{_lambda_.24} parent=31 // pred_fallthru
        _
    $region32: #{_lambda_.24} parent=5 // pred_fallthru
      _
    %p214 = scmp.le.s32.totalorder 1, %s13
    %p215 = scmp.lt.s32.totalorder %s13, 3
    %p216 = pnand %p214, %p215
    %p217 = pneg %p216
    // Predicated region
    $region37: #{_lambda_.24} parent=5 // pred_check
      _
    $region38: #{_lambda_.24} parent=5 // pred_check_branch
      %219 = sbr.rel (%p216) target = $region40
    $region39: #{_lambda_.24} parent=5 // pred_region
      %s220 = ssub.s32 %s13, 1
      %p221 = scmp.lt.s32.totalorder %s18, 1
      %s222 = scalar_select %p221, %s18, 1
      %s223 = smul.addr %s222, 20
      %s224 = smul.addr %s223, 4
      %s225 = scalar_lea.vmem %s0, %s224
      %p226 = pneg %p39
      %p227 = pneg %p36
      %p228 = pneg %p60
      %p229 = pneg %p57
      %p230 = pneg %p81
      %p231 = pneg %p78
      %p232 = pneg %p102
      %p233 = pneg %p99
      %p234 = pneg %p123
      %p235 = pneg %p120
      %p236 = pneg %p149
      %p237 = pneg %p146
      %p238 = scmp.lt.s32.totalorder %s18, 1
      %s239 = scalar_select %p238, %s18, 1
      %s240 = smul.addr %s239, 4
      %s241 = smul.addr %s240, 2
      %s242 = scalar_lea.vmem %s5, %s241
      %p243 = pneg %p175
      %p244 = pneg %p172
      %p245 = scmp.lt.s32.totalorder %s18, 1
      %s246 = scalar_select %p245, %s18, 1
      %s247 = smul.addr %s246, 2
      %s248 = scalar_lea.vmem %s6, %s247
      %p249 = scmp.lt.s32.totalorder %s18, 1
      %s250 = scalar_select %p249, %s18, 1
      %s251 = smul.addr %s250, 20
      %s252 = smul.addr %s251, 4
      %s253 = scalar_lea.vmem %s0, %s252
      %p254 = scmp.lt.s32.totalorder %s18, 1
      %s255 = scalar_select %p254, %s18, 1
      %s256 = smul.addr %s255, 4
      %s257 = smul.addr %s256, 2
      %s258 = scalar_lea.vmem %s5, %s257
      %p259 = scmp.lt.s32.totalorder %s18, 1
      %s260 = scalar_select %p259, %s18, 1
      %s261 = smul.addr %s260, 2
      %s262 = scalar_lea.vmem %s6, %s261
      %v263 = vld [vmem:[%s253] sm:$0x7]
      %v264 = vld [vmem:[%s253 + $0x4] sm:$0x7]
      %v265 = vld [vmem:[%s253 + $0x8] sm:$0x7]
      %v266 = vld [vmem:[%s253 + $0xc] sm:$0x7]
      %v267 = vld [vmem:[%s253 + $0x10] sm:$0x7]
      %v268 = vunpack.c.l.bf16 %v263
      %v269 = vunpack.c.l.bf16 %v264
      %v270 = vunpack.c.l.bf16 %v265
      %v271 = vunpack.c.l.bf16 %v266
      %v272 = vunpack.c.l.bf16 %v267
      %v273 = vld [vmem:[%s2] sm:$0x1]
      %v275 = vlaneseq
      %v276 = vshrl.u32 %v275, 7
      %v277 = vsub.s32 0, %v276
      %v278 = vrot.slane %v273, %v277
      %v280 = vmul.f32 %v268, %v278
      %v281 = vmul.f32 %v269, %v278
      %v282 = vmul.f32 %v270, %v278
      %v283 = vmul.f32 %v271, %v278
      %v284 = vmul.f32 %v272, %v278
      %v285 = vld [vmem:[%s3] sm:$0x1]
      %v287 = vlaneseq
      %v288 = vshrl.u32 %v287, 7
      %v289 = vsub.s32 0, %v288
      %v290 = vrot.slane %v285, %v289
      %v292 = vadd.f32 %v280, %v290
      %v293 = vadd.f32 %v281, %v290
      %v294 = vadd.f32 %v282, %v290
      %v295 = vadd.f32 %v283, %v290
      %v296 = vadd.f32 %v284, %v290
      %v297 = vxor.u32 %v292, 2147483648
      %v298 = vxor.u32 %v293, 2147483648
      %v299 = vxor.u32 %v294, 2147483648
      %v300 = vxor.u32 %v295, 2147483648
      %v301 = vxor.u32 %v296, 2147483648
      %v302 = vmul.f32 %v297, 1.442695
      %v303 = vpow.pop %v302
      %v304 = vmul.f32 %v298, 1.442695
      %v305 = vpow.pop %v304
      %v306 = vmul.f32 %v299, 1.442695
      %v307 = vpow.pop %v306
      %v308 = vmul.f32 %v300, 1.442695
      %v309 = vpow.pop %v308
      %v310 = vmul.f32 %v301, 1.442695
      %v311 = vpow.pop %v310
      %v312 = vadd.f32 %v303, 1.0
      %v313 = vadd.f32 %v305, 1.0
      %v314 = vadd.f32 %v307, 1.0
      %v315 = vadd.f32 %v309, 1.0
      %v316 = vadd.f32 %v311, 1.0
      %v317 = vrcp.pop %v312
      %v318 = vmul.f32 1.0, %v317
      %v319 = vrcp.pop %v313
      %v320 = vmul.f32 1.0, %v319
      %v321 = vrcp.pop %v314
      %v322 = vmul.f32 1.0, %v321
      %v323 = vrcp.pop %v315
      %v324 = vmul.f32 1.0, %v323
      %v325 = vrcp.pop %v316
      %v326 = vmul.f32 1.0, %v325
      %v327 = vmul.f32 %v292, %v318
      %v328 = vmul.f32 %v293, %v320
      %v329 = vmul.f32 %v294, %v322
      %v330 = vmul.f32 %v295, %v324
      %v331 = vmul.f32 %v296, %v326
      %v332 = vld [vmem:[%s1] sm:$0x1f]
      %v333 = vld [vmem:[%s1 + $0x8] sm:$0x1f]
      %v334 = vld [vmem:[%s1 + $0x10] sm:$0x1f]
      %v335 = vld [vmem:[%s1 + $0x18] sm:$0x1f]
      %v336 = vld [vmem:[%s1 + $0x20] sm:$0x1f]
      %338 = vset.pattern.permute.xlu0 0
      %339 = vperm.xlu0 %338, %v332
      %v340 = vpop.permute.xlu0 %339
      %343 = vset.pattern.permute.xlu0 0
      %344 = vperm.xlu0 %343, %v333
      %v345 = vpop.permute.xlu0 %344
      %348 = vset.pattern.permute.xlu0 0
      %349 = vperm.xlu0 %348, %v334
      %v350 = vpop.permute.xlu0 %349
      %353 = vset.pattern.permute.xlu0 0
      %354 = vperm.xlu0 %353, %v335
      %v355 = vpop.permute.xlu0 %354
      %358 = vset.pattern.permute.xlu0 0
      %359 = vperm.xlu0 %358, %v336
      %v360 = vpop.permute.xlu0 %359
      %v362 = vmul.f32 %v327, %v340
      %v363 = vmul.f32 %v328, %v345
      %v364 = vmul.f32 %v329, %v350
      %v365 = vmul.f32 %v330, %v355
      %v366 = vmul.f32 %v331, %v360
      %367 = vst [vmem:[#allocation2] sm:$0x1f] %v362
      %368 = vst [vmem:[#allocation2 + $0x8] sm:$0x1f] %v363
      %369 = vst [vmem:[#allocation2 + $0x10] sm:$0x1f] %v364
      %370 = vst [vmem:[#allocation2 + $0x18] sm:$0x1f] %v365
      %371 = vst [vmem:[#allocation2 + $0x20] sm:$0x1f] %v366
      %s372 = scalar_lea.vmem %s253, 20
      %v373 = vld [vmem:[%s372] sm:$0x7]
      %v374 = vld [vmem:[%s372 + $0x4] sm:$0x7]
      %v375 = vld [vmem:[%s372 + $0x8] sm:$0x7]
      %v376 = vld [vmem:[%s372 + $0xc] sm:$0x7]
      %v377 = vld [vmem:[%s372 + $0x10] sm:$0x7]
      %v378 = vunpack.c.l.bf16 %v373
      %v379 = vunpack.c.l.bf16 %v374
      %v380 = vunpack.c.l.bf16 %v375
      %v381 = vunpack.c.l.bf16 %v376
      %v382 = vunpack.c.l.bf16 %v377
      %v383 = vld [vmem:[%s2] sm:$0x1]
      %v385 = vlaneseq
      %v386 = vshrl.u32 %v385, 7
      %v387 = vsub.s32 0, %v386
      %v388 = vrot.slane %v383, %v387
      %v390 = vmul.f32 %v378, %v388
      %v391 = vmul.f32 %v379, %v388
      %v392 = vmul.f32 %v380, %v388
      %v393 = vmul.f32 %v381, %v388
      %v394 = vmul.f32 %v382, %v388
      %v395 = vld [vmem:[%s3] sm:$0x1]
      %v397 = vlaneseq
      %v398 = vshrl.u32 %v397, 7
      %v399 = vsub.s32 0, %v398
      %v400 = vrot.slane %v395, %v399
      %v402 = vadd.f32 %v390, %v400
      %v403 = vadd.f32 %v391, %v400
      %v404 = vadd.f32 %v392, %v400
      %v405 = vadd.f32 %v393, %v400
      %v406 = vadd.f32 %v394, %v400
      %v407 = vxor.u32 %v402, 2147483648
      %v408 = vxor.u32 %v403, 2147483648
      %v409 = vxor.u32 %v404, 2147483648
      %v410 = vxor.u32 %v405, 2147483648
      %v411 = vxor.u32 %v406, 2147483648
      %v412 = vmul.f32 %v407, 1.442695
      %v413 = vpow.pop %v412
      %v414 = vmul.f32 %v408, 1.442695
      %v415 = vpow.pop %v414
      %v416 = vmul.f32 %v409, 1.442695
      %v417 = vpow.pop %v416
      %v418 = vmul.f32 %v410, 1.442695
      %v419 = vpow.pop %v418
      %v420 = vmul.f32 %v411, 1.442695
      %v421 = vpow.pop %v420
      %v422 = vadd.f32 %v413, 1.0
      %v423 = vadd.f32 %v415, 1.0
      %v424 = vadd.f32 %v417, 1.0
      %v425 = vadd.f32 %v419, 1.0
      %v426 = vadd.f32 %v421, 1.0
      %v427 = vrcp.pop %v422
      %v428 = vmul.f32 1.0, %v427
      %v429 = vrcp.pop %v423
      %v430 = vmul.f32 1.0, %v429
      %v431 = vrcp.pop %v424
      %v432 = vmul.f32 1.0, %v431
      %v433 = vrcp.pop %v425
      %v434 = vmul.f32 1.0, %v433
      %v435 = vrcp.pop %v426
      %v436 = vmul.f32 1.0, %v435
      %v437 = vmul.f32 %v402, %v428
      %v438 = vmul.f32 %v403, %v430
      %v439 = vmul.f32 %v404, %v432
      %v440 = vmul.f32 %v405, %v434
      %v441 = vmul.f32 %v406, %v436
      %s442 = scalar_lea.vmem %s1, 40
      %v443 = vld [vmem:[%s442] sm:$0x1f]
      %v444 = vld [vmem:[%s442 + $0x8] sm:$0x1f]
      %v445 = vld [vmem:[%s442 + $0x10] sm:$0x1f]
      %v446 = vld [vmem:[%s442 + $0x18] sm:$0x1f]
      %v447 = vld [vmem:[%s442 + $0x20] sm:$0x1f]
      %449 = vset.pattern.permute.xlu0 0
      %450 = vperm.xlu0 %449, %v443
      %v451 = vpop.permute.xlu0 %450
      %454 = vset.pattern.permute.xlu0 0
      %455 = vperm.xlu0 %454, %v444
      %v456 = vpop.permute.xlu0 %455
      %459 = vset.pattern.permute.xlu0 0
      %460 = vperm.xlu0 %459, %v445
      %v461 = vpop.permute.xlu0 %460
      %464 = vset.pattern.permute.xlu0 0
      %465 = vperm.xlu0 %464, %v446
      %v466 = vpop.permute.xlu0 %465
      %469 = vset.pattern.permute.xlu0 0
      %470 = vperm.xlu0 %469, %v447
      %v471 = vpop.permute.xlu0 %470
      %v473 = vmul.f32 %v437, %v451
      %v474 = vmul.f32 %v438, %v456
      %v475 = vmul.f32 %v439, %v461
      %v476 = vmul.f32 %v440, %v466
      %v477 = vmul.f32 %v441, %v471
      %s478 = scalar_lea.vmem [#allocation2], 40
      %479 = vst [vmem:[%s478] sm:$0x1f] %v473
      %480 = vst [vmem:[%s478 + $0x8] sm:$0x1f] %v474
      %481 = vst [vmem:[%s478 + $0x10] sm:$0x1f] %v475
      %482 = vst [vmem:[%s478 + $0x18] sm:$0x1f] %v476
      %483 = vst [vmem:[%s478 + $0x20] sm:$0x1f] %v477
      %s484 = scalar_lea.vmem %s253, 40
      %v485 = vld [vmem:[%s484] sm:$0x7]
      %v486 = vld [vmem:[%s484 + $0x4] sm:$0x7]
      %v487 = vld [vmem:[%s484 + $0x8] sm:$0x7]
      %v488 = vld [vmem:[%s484 + $0xc] sm:$0x7]
      %v489 = vld [vmem:[%s484 + $0x10] sm:$0x7]
      %v490 = vunpack.c.l.bf16 %v485
      %v491 = vunpack.c.l.bf16 %v486
      %v492 = vunpack.c.l.bf16 %v487
      %v493 = vunpack.c.l.bf16 %v488
      %v494 = vunpack.c.l.bf16 %v489
      %v495 = vld [vmem:[%s2] sm:$0x1]
      %v497 = vlaneseq
      %v498 = vshrl.u32 %v497, 7
      %v499 = vsub.s32 0, %v498
      %v500 = vrot.slane %v495, %v499
      %v502 = vmul.f32 %v490, %v500
      %v503 = vmul.f32 %v491, %v500
      %v504 = vmul.f32 %v492, %v500
      %v505 = vmul.f32 %v493, %v500
      %v506 = vmul.f32 %v494, %v500
      %v507 = vld [vmem:[%s3] sm:$0x1]
      %v509 = vlaneseq
      %v510 = vshrl.u32 %v509, 7
      %v511 = vsub.s32 0, %v510
      %v512 = vrot.slane %v507, %v511
      %v514 = vadd.f32 %v502, %v512
      %v515 = vadd.f32 %v503, %v512
      %v516 = vadd.f32 %v504, %v512
      %v517 = vadd.f32 %v505, %v512
      %v518 = vadd.f32 %v506, %v512
      %v519 = vxor.u32 %v514, 2147483648
      %v520 = vxor.u32 %v515, 2147483648
      %v521 = vxor.u32 %v516, 2147483648
      %v522 = vxor.u32 %v517, 2147483648
      %v523 = vxor.u32 %v518, 2147483648
      %v524 = vmul.f32 %v519, 1.442695
      %v525 = vpow.pop %v524
      %v526 = vmul.f32 %v520, 1.442695
      %v527 = vpow.pop %v526
      %v528 = vmul.f32 %v521, 1.442695
      %v529 = vpow.pop %v528
      %v530 = vmul.f32 %v522, 1.442695
      %v531 = vpow.pop %v530
      %v532 = vmul.f32 %v523, 1.442695
      %v533 = vpow.pop %v532
      %v534 = vadd.f32 %v525, 1.0
      %v535 = vadd.f32 %v527, 1.0
      %v536 = vadd.f32 %v529, 1.0
      %v537 = vadd.f32 %v531, 1.0
      %v538 = vadd.f32 %v533, 1.0
      %v539 = vrcp.pop %v534
      %v540 = vmul.f32 1.0, %v539
      %v541 = vrcp.pop %v535
      %v542 = vmul.f32 1.0, %v541
      %v543 = vrcp.pop %v536
      %v544 = vmul.f32 1.0, %v543
      %v545 = vrcp.pop %v537
      %v546 = vmul.f32 1.0, %v545
      %v547 = vrcp.pop %v538
      %v548 = vmul.f32 1.0, %v547
      %v549 = vmul.f32 %v514, %v540
      %v550 = vmul.f32 %v515, %v542
      %v551 = vmul.f32 %v516, %v544
      %v552 = vmul.f32 %v517, %v546
      %v553 = vmul.f32 %v518, %v548
      %s554 = scalar_lea.vmem %s1, 80
      %v555 = vld [vmem:[%s554] sm:$0x1f]
      %v556 = vld [vmem:[%s554 + $0x8] sm:$0x1f]
      %v557 = vld [vmem:[%s554 + $0x10] sm:$0x1f]
      %v558 = vld [vmem:[%s554 + $0x18] sm:$0x1f]
      %v559 = vld [vmem:[%s554 + $0x20] sm:$0x1f]
      %561 = vset.pattern.permute.xlu0 0
      %562 = vperm.xlu0 %561, %v555
      %v563 = vpop.permute.xlu0 %562
      %566 = vset.pattern.permute.xlu0 0
      %567 = vperm.xlu0 %566, %v556
      %v568 = vpop.permute.xlu0 %567
      %571 = vset.pattern.permute.xlu0 0
      %572 = vperm.xlu0 %571, %v557
      %v573 = vpop.permute.xlu0 %572
      %576 = vset.pattern.permute.xlu0 0
      %577 = vperm.xlu0 %576, %v558
      %v578 = vpop.permute.xlu0 %577
      %581 = vset.pattern.permute.xlu0 0
      %582 = vperm.xlu0 %581, %v559
      %v583 = vpop.permute.xlu0 %582
      %v585 = vmul.f32 %v549, %v563
      %v586 = vmul.f32 %v550, %v568
      %v587 = vmul.f32 %v551, %v573
      %v588 = vmul.f32 %v552, %v578
      %v589 = vmul.f32 %v553, %v583
      %s590 = scalar_lea.vmem [#allocation2], 80
      %591 = vst [vmem:[%s590] sm:$0x1f] %v585
      %592 = vst [vmem:[%s590 + $0x8] sm:$0x1f] %v586
      %593 = vst [vmem:[%s590 + $0x10] sm:$0x1f] %v587
      %594 = vst [vmem:[%s590 + $0x18] sm:$0x1f] %v588
      %595 = vst [vmem:[%s590 + $0x20] sm:$0x1f] %v589
      %s596 = scalar_lea.vmem %s253, 60
      %v597 = vld [vmem:[%s596] sm:$0x7]
      %v598 = vld [vmem:[%s596 + $0x4] sm:$0x7]
      %v599 = vld [vmem:[%s596 + $0x8] sm:$0x7]
      %v600 = vld [vmem:[%s596 + $0xc] sm:$0x7]
      %v601 = vld [vmem:[%s596 + $0x10] sm:$0x7]
      %v602 = vunpack.c.l.bf16 %v597
      %v603 = vunpack.c.l.bf16 %v598
      %v604 = vunpack.c.l.bf16 %v599
      %v605 = vunpack.c.l.bf16 %v600
      %v606 = vunpack.c.l.bf16 %v601
      %v607 = vld [vmem:[%s2] sm:$0x1]
      %v609 = vlaneseq
      %v610 = vshrl.u32 %v609, 7
      %v611 = vsub.s32 0, %v610
      %v612 = vrot.slane %v607, %v611
      %v614 = vmul.f32 %v602, %v612
      %v615 = vmul.f32 %v603, %v612
      %v616 = vmul.f32 %v604, %v612
      %v617 = vmul.f32 %v605, %v612
      %v618 = vmul.f32 %v606, %v612
      %v619 = vld [vmem:[%s3] sm:$0x1]
      %v621 = vlaneseq
      %v622 = vshrl.u32 %v621, 7
      %v623 = vsub.s32 0, %v622
      %v624 = vrot.slane %v619, %v623
      %v626 = vadd.f32 %v614, %v624
      %v627 = vadd.f32 %v615, %v624
      %v628 = vadd.f32 %v616, %v624
      %v629 = vadd.f32 %v617, %v624
      %v630 = vadd.f32 %v618, %v624
      %v631 = vxor.u32 %v626, 2147483648
      %v632 = vxor.u32 %v627, 2147483648
      %v633 = vxor.u32 %v628, 2147483648
      %v634 = vxor.u32 %v629, 2147483648
      %v635 = vxor.u32 %v630, 2147483648
      %v636 = vmul.f32 %v631, 1.442695
      %v637 = vpow.pop %v636
      %v638 = vmul.f32 %v632, 1.442695
      %v639 = vpow.pop %v638
      %v640 = vmul.f32 %v633, 1.442695
      %v641 = vpow.pop %v640
      %v642 = vmul.f32 %v634, 1.442695
      %v643 = vpow.pop %v642
      %v644 = vmul.f32 %v635, 1.442695
      %v645 = vpow.pop %v644
      %v646 = vadd.f32 %v637, 1.0
      %v647 = vadd.f32 %v639, 1.0
      %v648 = vadd.f32 %v641, 1.0
      %v649 = vadd.f32 %v643, 1.0
      %v650 = vadd.f32 %v645, 1.0
      %v651 = vrcp.pop %v646
      %v652 = vmul.f32 1.0, %v651
      %v653 = vrcp.pop %v647
      %v654 = vmul.f32 1.0, %v653
      %v655 = vrcp.pop %v648
      %v656 = vmul.f32 1.0, %v655
      %v657 = vrcp.pop %v649
      %v658 = vmul.f32 1.0, %v657
      %v659 = vrcp.pop %v650
      %v660 = vmul.f32 1.0, %v659
      %v661 = vmul.f32 %v626, %v652
      %v662 = vmul.f32 %v627, %v654
      %v663 = vmul.f32 %v628, %v656
      %v664 = vmul.f32 %v629, %v658
      %v665 = vmul.f32 %v630, %v660
      %s666 = scalar_lea.vmem %s1, 120
      %v667 = vld [vmem:[%s666] sm:$0x1f]
      %v668 = vld [vmem:[%s666 + $0x8] sm:$0x1f]
      %v669 = vld [vmem:[%s666 + $0x10] sm:$0x1f]
      %v670 = vld [vmem:[%s666 + $0x18] sm:$0x1f]
      %v671 = vld [vmem:[%s666 + $0x20] sm:$0x1f]
      %673 = vset.pattern.permute.xlu0 0
      %674 = vperm.xlu0 %673, %v667
      %v675 = vpop.permute.xlu0 %674
      %678 = vset.pattern.permute.xlu0 0
      %679 = vperm.xlu0 %678, %v668
      %v680 = vpop.permute.xlu0 %679
      %683 = vset.pattern.permute.xlu0 0
      %684 = vperm.xlu0 %683, %v669
      %v685 = vpop.permute.xlu0 %684
      %688 = vset.pattern.permute.xlu0 0
      %689 = vperm.xlu0 %688, %v670
      %v690 = vpop.permute.xlu0 %689
      %693 = vset.pattern.permute.xlu0 0
      %694 = vperm.xlu0 %693, %v671
      %v695 = vpop.permute.xlu0 %694
      %v697 = vmul.f32 %v661, %v675
      %v698 = vmul.f32 %v662, %v680
      %v699 = vmul.f32 %v663, %v685
      %v700 = vmul.f32 %v664, %v690
      %v701 = vmul.f32 %v665, %v695
      %s702 = scalar_lea.vmem [#allocation2], 120
      %703 = vst [vmem:[%s702] sm:$0x1f] %v697
      %704 = vst [vmem:[%s702 + $0x8] sm:$0x1f] %v698
      %705 = vst [vmem:[%s702 + $0x10] sm:$0x1f] %v699
      %706 = vst [vmem:[%s702 + $0x18] sm:$0x1f] %v700
      %707 = vst [vmem:[%s702 + $0x20] sm:$0x1f] %v701
      %v708 = vld [vmem:[#allocation2] sm:$0xf]
      %v709 = vld [vmem:[#allocation2 + $0x8] sm:$0xf]
      %v710 = vld [vmem:[#allocation2 + $0x10] sm:$0xf]
      %v711 = vld [vmem:[#allocation2 + $0x18] sm:$0xf]
      %v712 = vld [vmem:[%s4] sm:$0x1]
      %v713 = vlaneseq
      %v714 = vshrl.u32 %v713, 7
      %v715 = vsub.s32 0, %v714
      %v716 = vrot.slane %v712, %v715
      %v717 = vmul.f32 %v708, %v716
      %v718 = vmul.f32 %v709, %v716
      %v719 = vmul.f32 %v710, %v716
      %v720 = vmul.f32 %v711, %v716
      %v721 = vadd.f32 %v717, 0.0
      %v722 = vadd.f32 %v718, 0.0
      %v723 = vadd.f32 %v719, 0.0
      %v724 = vadd.f32 %v720, 0.0
      %v725 = vld [vmem:[%s478] sm:$0xf]
      %v726 = vld [vmem:[%s478 + $0x8] sm:$0xf]
      %v727 = vld [vmem:[%s478 + $0x10] sm:$0xf]
      %v728 = vld [vmem:[%s478 + $0x18] sm:$0xf]
      %v729 = vld [vmem:[%s4 + $0x1] sm:$0x1]
      %v730 = vlaneseq
      %v731 = vshrl.u32 %v730, 7
      %v732 = vsub.s32 0, %v731
      %v733 = vrot.slane %v729, %v732
      %v734 = vmul.f32 %v725, %v733
      %v735 = vmul.f32 %v726, %v733
      %v736 = vmul.f32 %v727, %v733
      %v737 = vmul.f32 %v728, %v733
      %v738 = vadd.f32 %v721, %v734
      %v739 = vadd.f32 %v722, %v735
      %v740 = vadd.f32 %v723, %v736
      %v741 = vadd.f32 %v724, %v737
      %v742 = vld [vmem:[#allocation2 + $0x1] sm:$0xf]
      %v743 = vld [vmem:[#allocation2 + $0x9] sm:$0xf]
      %v744 = vld [vmem:[#allocation2 + $0x11] sm:$0xf]
      %v745 = vld [vmem:[#allocation2 + $0x19] sm:$0xf]
      %v746 = vld [vmem:[%s4 + $0x2] sm:$0x1]
      %v747 = vlaneseq
      %v748 = vshrl.u32 %v747, 7
      %v749 = vsub.s32 0, %v748
      %v750 = vrot.slane %v746, %v749
      %v751 = vmul.f32 %v742, %v750
      %v752 = vmul.f32 %v743, %v750
      %v753 = vmul.f32 %v744, %v750
      %v754 = vmul.f32 %v745, %v750
      %v755 = vadd.f32 %v738, %v751
      %v756 = vadd.f32 %v739, %v752
      %v757 = vadd.f32 %v740, %v753
      %v758 = vadd.f32 %v741, %v754
      %v759 = vld [vmem:[%s590] sm:$0xf]
      %v760 = vld [vmem:[%s590 + $0x8] sm:$0xf]
      %v761 = vld [vmem:[%s590 + $0x10] sm:$0xf]
      %v762 = vld [vmem:[%s590 + $0x18] sm:$0xf]
      %v763 = vld [vmem:[%s4 + $0x3] sm:$0x1]
      %v764 = vlaneseq
      %v765 = vshrl.u32 %v764, 7
      %v766 = vsub.s32 0, %v765
      %v767 = vrot.slane %v763, %v766
      %v768 = vmul.f32 %v759, %v767
      %v769 = vmul.f32 %v760, %v767
      %v770 = vmul.f32 %v761, %v767
      %v771 = vmul.f32 %v762, %v767
      %v772 = vadd.f32 %v755, %v768
      %v773 = vadd.f32 %v756, %v769
      %v774 = vadd.f32 %v757, %v770
      %v775 = vadd.f32 %v758, %v771
      %v776 = vld [vmem:[%s702] sm:$0xf]
      %v777 = vld [vmem:[%s702 + $0x8] sm:$0xf]
      %v778 = vld [vmem:[%s702 + $0x10] sm:$0xf]
      %v779 = vld [vmem:[%s702 + $0x18] sm:$0xf]
      %v780 = vld [vmem:[%s4 + $0x4] sm:$0x1]
      %v781 = vlaneseq
      %v782 = vshrl.u32 %v781, 7
      %v783 = vsub.s32 0, %v782
      %v784 = vrot.slane %v780, %v783
      %v785 = vmul.f32 %v776, %v784
      %v786 = vmul.f32 %v777, %v784
      %v787 = vmul.f32 %v778, %v784
      %v788 = vmul.f32 %v779, %v784
      %v789 = vadd.f32 %v772, %v785
      %v790 = vadd.f32 %v773, %v786
      %v791 = vadd.f32 %v774, %v787
      %v792 = vadd.f32 %v775, %v788
      %v793 = vld [vmem:[%s590 + $0x1] sm:$0xf]
      %v794 = vld [vmem:[%s590 + $0x9] sm:$0xf]
      %v795 = vld [vmem:[%s590 + $0x11] sm:$0xf]
      %v796 = vld [vmem:[%s590 + $0x19] sm:$0xf]
      %v797 = vld [vmem:[%s4 + $0x5] sm:$0x1]
      %v798 = vlaneseq
      %v799 = vshrl.u32 %v798, 7
      %v800 = vsub.s32 0, %v799
      %v801 = vrot.slane %v797, %v800
      %v802 = vmul.f32 %v793, %v801
      %v803 = vmul.f32 %v794, %v801
      %v804 = vmul.f32 %v795, %v801
      %v805 = vmul.f32 %v796, %v801
      %v806 = vadd.f32 %v789, %v802
      %v807 = vadd.f32 %v790, %v803
      %v808 = vadd.f32 %v791, %v804
      %v809 = vadd.f32 %v792, %v805
      %s810 = scalar_lea.vmem [#allocation2], 8
      %v811 = vld [vmem:[%s810] sm:$0xf]
      %v812 = vld [vmem:[%s810 + $0x8] sm:$0xf]
      %v813 = vld [vmem:[%s810 + $0x10] sm:$0xf]
      %v814 = vld [vmem:[%s810 + $0x18] sm:$0xf]
      %v815 = vld [vmem:[%s4 + $0x6] sm:$0x1]
      %v816 = vlaneseq
      %v817 = vshrl.u32 %v816, 7
      %v818 = vsub.s32 0, %v817
      %v819 = vrot.slane %v815, %v818
      %v820 = vmul.f32 %v811, %v819
      %v821 = vmul.f32 %v812, %v819
      %v822 = vmul.f32 %v813, %v819
      %v823 = vmul.f32 %v814, %v819
      %v824 = vadd.f32 %v806, %v820
      %v825 = vadd.f32 %v807, %v821
      %v826 = vadd.f32 %v808, %v822
      %v827 = vadd.f32 %v809, %v823
      %s828 = scalar_lea.vmem [#allocation2], 48
      %v829 = vld [vmem:[%s828] sm:$0xf]
      %v830 = vld [vmem:[%s828 + $0x8] sm:$0xf]
      %v831 = vld [vmem:[%s828 + $0x10] sm:$0xf]
      %v832 = vld [vmem:[%s828 + $0x18] sm:$0xf]
      %v833 = vld [vmem:[%s4 + $0x7] sm:$0x1]
      %v834 = vlaneseq
      %v835 = vshrl.u32 %v834, 7
      %v836 = vsub.s32 0, %v835
      %v837 = vrot.slane %v833, %v836
      %v838 = vmul.f32 %v829, %v837
      %v839 = vmul.f32 %v830, %v837
      %v840 = vmul.f32 %v831, %v837
      %v841 = vmul.f32 %v832, %v837
      %v842 = vadd.f32 %v824, %v838
      %v843 = vadd.f32 %v825, %v839
      %v844 = vadd.f32 %v826, %v840
      %v845 = vadd.f32 %v827, %v841
      %v846 = vld [vmem:[%s810 + $0x1] sm:$0xf]
      %v847 = vld [vmem:[%s810 + $0x9] sm:$0xf]
      %v848 = vld [vmem:[%s810 + $0x11] sm:$0xf]
      %v849 = vld [vmem:[%s810 + $0x19] sm:$0xf]
      %v850 = vld [vmem:[%s4 + $0x8] sm:$0x1]
      %v851 = vlaneseq
      %v852 = vshrl.u32 %v851, 7
      %v853 = vsub.s32 0, %v852
      %v854 = vrot.slane %v850, %v853
      %v855 = vmul.f32 %v846, %v854
      %v856 = vmul.f32 %v847, %v854
      %v857 = vmul.f32 %v848, %v854
      %v858 = vmul.f32 %v849, %v854
      %v859 = vadd.f32 %v842, %v855
      %v860 = vadd.f32 %v843, %v856
      %v861 = vadd.f32 %v844, %v857
      %v862 = vadd.f32 %v845, %v858
      %v863 = vpack.c.bf16 %v859, %v859
      %v864 = vpack.c.bf16 %v860, %v860
      %v865 = vpack.c.bf16 %v861, %v861
      %v866 = vpack.c.bf16 %v862, %v862
      %867 = vst [vmem:[%s258] sm:$0x3] %v863
      %868 = vst [vmem:[%s258 + $0x2] sm:$0x3] %v864
      %869 = vst [vmem:[%s258 + $0x4] sm:$0x3] %v865
      %870 = vst [vmem:[%s258 + $0x6] sm:$0x3] %v866
      %v875 = vcombine.low %v859, %v860
      %v876 = vcombine.low %v861, %v862
      %v879 = vadd.f32 %v875, %v876
      %v880 = vrot.slane %v879, 4
      %v881 = vadd.f32 %v879, %v880
      %v882 = vrot.slane %v881, 2
      %v883 = vadd.f32 %v881, %v882
      %v884 = vrot.slane %v883, 1
      %v885 = vadd.f32 %v883, %v884
      %886 = vst [vmem:[%s262] sm:$0x1] %v885
      %v887 = vmul.f32 %v859, %v859
      %v888 = vmul.f32 %v860, %v860
      %v889 = vmul.f32 %v861, %v861
      %v890 = vmul.f32 %v862, %v862
      %v895 = vcombine.low %v887, %v888
      %v896 = vcombine.low %v889, %v890
      %v899 = vadd.f32 %v895, %v896
      %v900 = vrot.slane %v899, 4
      %v901 = vadd.f32 %v899, %v900
      %v902 = vrot.slane %v901, 2
      %v903 = vadd.f32 %v901, %v902
      %v904 = vrot.slane %v903, 1
      %v905 = vadd.f32 %v903, %v904
      %906 = vst [vmem:[%s262 + $0x1] sm:$0x1] %v905
      %p907 = scmp.lt.s32.totalorder %s18, 1
      %s908 = scalar_select %p907, %s18, 1
      %s909 = smul.addr %s908, 4
      %s910 = smul.addr %s909, 2
      %s911 = scalar_lea.vmem %s5, %s910
      %p912 = scmp.lt.s32.totalorder %s18, 1
      %s913 = scalar_select %p912, %s18, 1
      %s914 = smul.addr %s913, 2
      %s915 = scalar_lea.vmem %s6, %s914
      // Predicated region
      $region41: #{_lambda_.24} parent=39 // pred_check
        %p916 = pneg %p146
      $region42: #{_lambda_.24} parent=39 // pred_check_branch
        %918 = sbr.rel (%p916) target = $region44
      $region43: #{_lambda_.24} parent=39 // pred_region
        _
      $region44: #{_lambda_.24} parent=39 // pred_fallthru
        _
      // Predicated region
      $region45: #{_lambda_.24} parent=39 // pred_check
        %p919 = pneg %p172
      $region46: #{_lambda_.24} parent=39 // pred_check_branch
        %921 = sbr.rel (%p919) target = $region48
      $region47: #{_lambda_.24} parent=39 // pred_region
        _
      $region48: #{_lambda_.24} parent=39 // pred_fallthru
        _
    $region40: #{_lambda_.24} parent=5 // pred_fallthru
      _
    %p922 = scmp.le.s32.totalorder 2, %s13
    // Predicated region
    $region49: #{_lambda_.24} parent=5 // pred_check
      %p923 = pneg %p922
    $region50: #{_lambda_.24} parent=5 // pred_check_branch
      %925 = sbr.rel (%p923) target = $region52
    $region51: #{_lambda_.24} parent=5 // pred_region
      %s926 = ssub.s32 %s13, 2
      // Predicated region
      $region53: #{_lambda_.24} parent=51 // pred_check
        %p927 = pneg %p152
      $region54: #{_lambda_.24} parent=51 // pred_check_branch
        %929 = sbr.rel (%p927) target = $region56
      $region55: #{_lambda_.24} parent=51 // pred_region
        %p930 = scmp.lt.s32.totalorder %s19, 1
        %s931 = scalar_select %p930, %s19, 1
        %s932 = smul.addr %s931, 4
        %s933 = smul.addr %s932, 2
        %s934 = scalar_lea.vmem %s5, %s933
      $region56: #{_lambda_.24} parent=51 // pred_fallthru
        _
      // Predicated region
      $region57: #{_lambda_.24} parent=51 // pred_check
        %p935 = pneg %p178
      $region58: #{_lambda_.24} parent=51 // pred_check_branch
        %937 = sbr.rel (%p935) target = $region60
      $region59: #{_lambda_.24} parent=51 // pred_region
        %p938 = scmp.lt.s32.totalorder %s19, 1
        %s939 = scalar_select %p938, %s19, 1
        %s940 = smul.addr %s939, 2
        %s941 = scalar_lea.vmem %s6, %s940
      $region60: #{_lambda_.24} parent=51 // pred_fallthru
        _
    $region52: #{_lambda_.24} parent=5 // pred_fallthru
      _
  $region6: #{_lambda_.24} parent=0 // loop_footer
    %s17 = sadd.s32 1, %s13
  $region7: #{_lambda_.24} parent=0 // loop_footer_branch
    %12 = sbr.rel target = $region3
  $region8: #{_lambda_.24} parent=0 // loop_exit
    _

// kernel: _lambda_.29
$region0: #{_lambda_.29}
  #allocation0 [shape = 'u32[]', space=smem, size = 0x4, offset = 0x4, fixed_abs, tag = 'smem constant byte address 0x4 - core index']
  #allocation1 [shape = 'u32[144,128]{1,0:T(1,128)}', space=vmem, size = 0x12000, scoped, tag = 'internal scratch']
  #allocation2 [shape = 'f32[6,20,128]{2,1,0:T(8,128)}', space=vmem, size = 0x12000, scoped, tag = 'scratch operand']
  %s0 = inlined_call_operand.vmem [shape: bf16[2,4,4,128], index: 0, kind: input, shape index: {}]
  %s1 = inlined_call_operand.vmem [shape: f32[1,128], index: 1, kind: input, shape index: {}]
  %s2 = inlined_call_operand.vmem [shape: f32[1,128], index: 2, kind: input, shape index: {}]
  %s3 = inlined_call_operand.vmem [shape: f32[9,128], index: 3, kind: input, shape index: {}]
  %s4 = inlined_call_operand.vmem [shape: bf16[2,4,4,128], index: 4, kind: output, shape index: {0}]
  %s5 = inlined_call_operand.vmem [shape: f32[2,2,128], index: 5, kind: output, shape index: {1}]
  %6 = xla_tuple %s4, %s5
  %s7 = sld [smem:[#allocation0]]
  $region57: #{_lambda_.29} parent=0
    _
  %s9 = ssub.s32 1, %s7
  %s10 = scalar_select 0, %s9, %s7
  loop: start=0, step=1, limit=4
  $region2: #{_lambda_.29} parent=0 // loop_pre_header
    _
  $region3: #{_lambda_.29} parent=0 // loop_header
    %s12 = sphi 0, %s16
    %p13 = scmp.ge.s32.totalorder %s12, 4
    %s22 = sphi 0, %s24
    %s25 = sphi 0, %s22
    %s26 = sphi 0, %s25
    %s42 = sphi 0, %s26
    %s46 = sphi 0, %s46
    %s48 = sphi 0, %s46
    %s49 = sphi 0, %s48
    %s63 = sphi 0, %s49
    %s67 = sphi 0, %s67
    %s69 = sphi 0, %s67
    %s70 = sphi 0, %s69
    %s84 = sphi 0, %s70
    %s88 = sphi 0, %s88
    %s90 = sphi 0, %s88
    %s91 = sphi 0, %s90
    %s105 = sphi 0, %s91
    %s111 = sphi 0, %s113
    %s114 = sphi 0, %s111
    %s115 = sphi 0, %s114
    %s131 = sphi 0, %s115
    %s137 = sphi 0, %s139
    %s140 = sphi 0, %s137
    %s141 = sphi 0, %s140
    %s157 = sphi 0, %s141
  $region4: #{_lambda_.29} parent=0 // loop_header_branch
    %15 = sbr.rel (%p13) target = $region8
  $region5: #{_lambda_.29} parent=0 // loop_body
    %s17 = ssub.s32 %s12, 1
    %s18 = ssub.s32 %s12, 2
    %s19 = sadd.s32 %s12, 1
    %s20 = ssub.s32 %s12, %s19
    %p21 = scmp.eq.s32.totalorder %s20, 0
    %s23 = sadd.s32 %s22, 1
    %s24 = scalar_select %p21, %s22, %s23
    %p27 = pneg %p21
    %p28 = scmp.eq.s32.totalorder %s12, 1
    %p29 = por %p27, %p28
    %p30 = scmp.ne.s32.totalorder %s22, %s25
    %p31 = scmp.eq.s32.totalorder %s12, 0
    %p32 = por %p30, %p31
    %p33 = scmp.ne.s32.totalorder %s22, %s25
    %p34 = scmp.eq.s32.totalorder %s17, 1
    %p35 = por %p33, %p34
    %p36 = scmp.ne.s32.totalorder %s25, %s26
    %p37 = scmp.eq.s32.totalorder %s17, 0
    %p38 = por %p36, %p37
    %p39 = scmp.ne.s32.totalorder %s25, %s26
    %p40 = scmp.eq.s32.totalorder %s18, 1
    %p41 = por %p39, %p40
    %p43 = scmp.ne.s32.totalorder %s26, %s42
    %p44 = scmp.eq.s32.totalorder %s18, 0
    %p45 = por %p43, %p44
    %s47 = sadd.s32 %s46, 1
    %p50 = scmp.eq.s32.totalorder %s12, 1
    %p51 = scmp.ne.s32.totalorder %s46, %s48
    %p52 = scmp.eq.s32.totalorder %s12, 0
    %p53 = por %p51, %p52
    %p54 = scmp.ne.s32.totalorder %s46, %s48
    %p55 = scmp.eq.s32.totalorder %s17, 1
    %p56 = por %p54, %p55
    %p57 = scmp.ne.s32.totalorder %s48, %s49
    %p58 = scmp.eq.s32.totalorder %s17, 0
    %p59 = por %p57, %p58
    %p60 = scmp.ne.s32.totalorder %s48, %s49
    %p61 = scmp.eq.s32.totalorder %s18, 1
    %p62 = por %p60, %p61
    %p64 = scmp.ne.s32.totalorder %s49, %s63
    %p65 = scmp.eq.s32.totalorder %s18, 0
    %p66 = por %p64, %p65
    %s68 = sadd.s32 %s67, 1
    %p71 = scmp.eq.s32.totalorder %s12, 1
    %p72 = scmp.ne.s32.totalorder %s67, %s69
    %p73 = scmp.eq.s32.totalorder %s12, 0
    %p74 = por %p72, %p73
    %p75 = scmp.ne.s32.totalorder %s67, %s69
    %p76 = scmp.eq.s32.totalorder %s17, 1
    %p77 = por %p75, %p76
    %p78 = scmp.ne.s32.totalorder %s69, %s70
    %p79 = scmp.eq.s32.totalorder %s17, 0
    %p80 = por %p78, %p79
    %p81 = scmp.ne.s32.totalorder %s69, %s70
    %p82 = scmp.eq.s32.totalorder %s18, 1
    %p83 = por %p81, %p82
    %p85 = scmp.ne.s32.totalorder %s70, %s84
    %p86 = scmp.eq.s32.totalorder %s18, 0
    %p87 = por %p85, %p86
    %s89 = sadd.s32 %s88, 1
    %p92 = scmp.eq.s32.totalorder %s12, 1
    %p93 = scmp.ne.s32.totalorder %s88, %s90
    %p94 = scmp.eq.s32.totalorder %s12, 0
    %p95 = por %p93, %p94
    %p96 = scmp.ne.s32.totalorder %s88, %s90
    %p97 = scmp.eq.s32.totalorder %s17, 1
    %p98 = por %p96, %p97
    %p99 = scmp.ne.s32.totalorder %s90, %s91
    %p100 = scmp.eq.s32.totalorder %s17, 0
    %p101 = por %p99, %p100
    %p102 = scmp.ne.s32.totalorder %s90, %s91
    %p103 = scmp.eq.s32.totalorder %s18, 1
    %p104 = por %p102, %p103
    %p106 = scmp.ne.s32.totalorder %s91, %s105
    %p107 = scmp.eq.s32.totalorder %s18, 0
    %p108 = por %p106, %p107
    %s109 = ssub.s32 %s12, %s19
    %p110 = scmp.eq.s32.totalorder %s109, 0
    %s112 = sadd.s32 %s111, 1
    %s113 = scalar_select %p110, %s111, %s112
    %p116 = pneg %p110
    %p117 = scmp.eq.s32.totalorder %s12, 1
    %p118 = por %p116, %p117
    %p119 = scmp.ne.s32.totalorder %s111, %s114
    %p120 = scmp.eq.s32.totalorder %s12, 0
    %p121 = por %p119, %p120
    %p122 = scmp.ne.s32.totalorder %s111, %s114
    %p123 = scmp.eq.s32.totalorder %s17, 1
    %p124 = por %p122, %p123
    %p125 = scmp.ne.s32.totalorder %s114, %s115
    %p126 = scmp.eq.s32.totalorder %s17, 0
    %p127 = por %p125, %p126
    %p128 = scmp.ne.s32.totalorder %s114, %s115
    %p129 = scmp.eq.s32.totalorder %s18, 1
    %p130 = por %p128, %p129
    %p132 = scmp.ne.s32.totalorder %s115, %s131
    %p133 = scmp.eq.s32.totalorder %s18, 0
    %p134 = por %p132, %p133
    %s135 = ssub.s32 %s12, %s19
    %p136 = scmp.eq.s32.totalorder %s135, 0
    %s138 = sadd.s32 %s137, 1
    %s139 = scalar_select %p136, %s137, %s138
    %p142 = pneg %p136
    %p143 = scmp.eq.s32.totalorder %s12, 1
    %p144 = por %p142, %p143
    %p145 = scmp.ne.s32.totalorder %s137, %s140
    %p146 = scmp.eq.s32.totalorder %s12, 0
    %p147 = por %p145, %p146
    %p148 = scmp.ne.s32.totalorder %s137, %s140
    %p149 = scmp.eq.s32.totalorder %s17, 1
    %p150 = por %p148, %p149
    %p151 = scmp.ne.s32.totalorder %s140, %s141
    %p152 = scmp.eq.s32.totalorder %s17, 0
    %p153 = por %p151, %p152
    %p154 = scmp.ne.s32.totalorder %s140, %s141
    %p155 = scmp.eq.s32.totalorder %s18, 1
    %p156 = por %p154, %p155
    %p158 = scmp.ne.s32.totalorder %s141, %s157
    %p159 = scmp.eq.s32.totalorder %s18, 0
    %p160 = por %p158, %p159
    %p161 = scmp.le.s32.totalorder 1, %s12
    %p162 = scmp.lt.s32.totalorder %s12, 3
    %p163 = pnand %p161, %p162
    %p164 = pneg %p163
    // Predicated region
    $region9: #{_lambda_.29} parent=5 // pred_check
      _
    $region10: #{_lambda_.29} parent=5 // pred_check_branch
      %166 = sbr.rel (%p163) target = $region12
    $region11: #{_lambda_.29} parent=5 // pred_region
      %s167 = ssub.s32 %s12, 1
      // Predicated region
      $region13: #{_lambda_.29} parent=11 // pred_check
        %p168 = pneg %p59
      $region14: #{_lambda_.29} parent=11 // pred_check_branch
        %170 = sbr.rel (%p168) target = $region16
      $region15: #{_lambda_.29} parent=11 // pred_region
        _
      $region16: #{_lambda_.29} parent=11 // pred_fallthru
        _
      // Predicated region
      $region17: #{_lambda_.29} parent=11 // pred_check
        %p171 = pneg %p80
      $region18: #{_lambda_.29} parent=11 // pred_check_branch
        %173 = sbr.rel (%p171) target = $region20
      $region19: #{_lambda_.29} parent=11 // pred_region
        _
      $region20: #{_lambda_.29} parent=11 // pred_fallthru
        _
      // Predicated region
      $region21: #{_lambda_.29} parent=11 // pred_check
        %p174 = pneg %p101
      $region22: #{_lambda_.29} parent=11 // pred_check_branch
        %176 = sbr.rel (%p174) target = $region24
      $region23: #{_lambda_.29} parent=11 // pred_region
        _
      $region24: #{_lambda_.29} parent=11 // pred_fallthru
        _
    $region12: #{_lambda_.29} parent=5 // pred_fallthru
      _
    %p177 = scmp.lt.s32.totalorder %s12, 2
    // Predicated region
    $region25: #{_lambda_.29} parent=5 // pred_check
      %p178 = pneg %p177
    $region26: #{_lambda_.29} parent=5 // pred_check_branch
      %180 = sbr.rel (%p178) target = $region28
    $region27: #{_lambda_.29} parent=5 // pred_region
      // Predicated region
      $region29: #{_lambda_.29} parent=27 // pred_check
        %p181 = pneg %p32
      $region30: #{_lambda_.29} parent=27 // pred_check_branch
        %183 = sbr.rel (%p181) target = $region32
      $region31: #{_lambda_.29} parent=27 // pred_region
        %p184 = scmp.lt.s32.totalorder %s12, 1
        %s185 = scalar_select %p184, %s12, 1
        %s186 = smul.addr %s185, 4
        %s187 = smul.addr %s186, 2
        %s188 = scalar_lea.vmem %s0, %s187
      $region32: #{_lambda_.29} parent=27 // pred_fallthru
        _
    $region28: #{_lambda_.29} parent=5 // pred_fallthru
      _
    %p189 = scmp.le.s32.totalorder 1, %s12
    %p190 = scmp.lt.s32.totalorder %s12, 3
    %p191 = pnand %p189, %p190
    %p192 = pneg %p191
    // Predicated region
    $region33: #{_lambda_.29} parent=5 // pred_check
      _
    $region34: #{_lambda_.29} parent=5 // pred_check_branch
      %194 = sbr.rel (%p191) target = $region36
    $region35: #{_lambda_.29} parent=5 // pred_region
      %s195 = ssub.s32 %s12, 1
      %p196 = scmp.lt.s32.totalorder %s17, 1
      %s197 = scalar_select %p196, %s17, 1
      %s198 = smul.addr %s197, 4
      %s199 = smul.addr %s198, 2
      %s200 = scalar_lea.vmem %s0, %s199
      %p201 = pneg %p38
      %p202 = pneg %p35
      %p203 = pneg %p59
      %p204 = pneg %p56
      %p205 = pneg %p80
      %p206 = pneg %p77
      %p207 = pneg %p101
      %p208 = pneg %p98
      %p209 = pneg %p127
      %p210 = pneg %p124
      %p211 = scmp.lt.s32.totalorder %s17, 1
      %s212 = scalar_select %p211, %s17, 1
      %s213 = smul.addr %s212, 4
      %s214 = smul.addr %s213, 2
      %s215 = scalar_lea.vmem %s4, %s214
      %p216 = pneg %p153
      %p217 = pneg %p150
      %p218 = scmp.lt.s32.totalorder %s17, 1
      %s219 = scalar_select %p218, %s17, 1
      %s220 = smul.addr %s219, 2
      %s221 = scalar_lea.vmem %s5, %s220
      %p222 = scmp.lt.s32.totalorder %s17, 1
      %s223 = scalar_select %p222, %s17, 1
      %s224 = smul.addr %s223, 4
      %s225 = smul.addr %s224, 2
      %s226 = scalar_lea.vmem %s0, %s225
      %p227 = scmp.lt.s32.totalorder %s17, 1
      %s228 = scalar_select %p227, %s17, 1
      %s229 = smul.addr %s228, 4
      %s230 = smul.addr %s229, 2
      %s231 = scalar_lea.vmem %s4, %s230
      %p232 = scmp.lt.s32.totalorder %s17, 1
      %s233 = scalar_select %p232, %s17, 1
      %s234 = smul.addr %s233, 2
      %s235 = scalar_lea.vmem %s5, %s234
      %236 = vst [vmem:[#allocation2] sm:$0xff] 0.0
      %237 = vst [vmem:[#allocation2 + $0x8] sm:$0xff] 0.0
      %238 = vst [vmem:[#allocation2 + $0x10] sm:$0xf] 0.0
      %239 = vst [vmem:[#allocation2 + $0x18] sm:$0xff] 0.0
      %240 = vst [vmem:[#allocation2 + $0x20] sm:$0xff] 0.0
      %241 = vst [vmem:[#allocation2 + $0x28] sm:$0xf] 0.0
      %242 = vst [vmem:[#allocation2 + $0x30] sm:$0xff] 0.0
      %243 = vst [vmem:[#allocation2 + $0x38] sm:$0xff] 0.0
      %244 = vst [vmem:[#allocation2 + $0x40] sm:$0xf] 0.0
      %245 = vst [vmem:[#allocation2 + $0x48] sm:$0xff] 0.0
      %246 = vst [vmem:[#allocation2 + $0x50] sm:$0xff] 0.0
      %247 = vst [vmem:[#allocation2 + $0x58] sm:$0xf] 0.0
      %248 = vst [vmem:[#allocation2 + $0x60] sm:$0xff] 0.0
      %249 = vst [vmem:[#allocation2 + $0x68] sm:$0xff] 0.0
      %250 = vst [vmem:[#allocation2 + $0x70] sm:$0xf] 0.0
      %251 = vst [vmem:[#allocation2 + $0x78] sm:$0xff] 0.0
      %252 = vst [vmem:[#allocation2 + $0x80] sm:$0xff] 0.0
      %253 = vst [vmem:[#allocation2 + $0x88] sm:$0xf] 0.0
      %v254 = vld [vmem:[%s226] sm:$0x3]
      %v255 = vld [vmem:[%s226 + $0x2] sm:$0x3]
      %v256 = vld [vmem:[%s226 + $0x4] sm:$0x3]
      %v257 = vld [vmem:[%s226 + $0x6] sm:$0x3]
      %v258 = vunpack.c.l.bf16 %v254
      %v259 = vunpack.c.l.bf16 %v255
      %v260 = vunpack.c.l.bf16 %v256
      %v261 = vunpack.c.l.bf16 %v257
      %v262 = vld [vmem:[%s1] sm:$0x1]
      %v264 = vlaneseq
      %v265 = vshrl.u32 %v264, 7
      %v266 = vsub.s32 0, %v265
      %v267 = vrot.slane %v262, %v266
      %v269 = vmul.f32 %v258, %v267
      %v270 = vmul.f32 %v259, %v267
      %v271 = vmul.f32 %v260, %v267
      %v272 = vmul.f32 %v261, %v267
      %v273 = vld [vmem:[%s2] sm:$0x1]
      %v275 = vlaneseq
      %v276 = vshrl.u32 %v275, 7
      %v277 = vsub.s32 0, %v276
      %v278 = vrot.slane %v273, %v277
      %v280 = vadd.f32 %v269, %v278
      %v281 = vadd.f32 %v270, %v278
      %v282 = vadd.f32 %v271, %v278
      %v283 = vadd.f32 %v272, %v278
      %v284 = vxor.u32 %v280, 2147483648
      %v285 = vxor.u32 %v281, 2147483648
      %v286 = vxor.u32 %v282, 2147483648
      %v287 = vxor.u32 %v283, 2147483648
      %v288 = vmul.f32 %v284, 1.442695
      %v289 = vpow.pop %v288
      %v290 = vmul.f32 %v285, 1.442695
      %v291 = vpow.pop %v290
      %v292 = vmul.f32 %v286, 1.442695
      %v293 = vpow.pop %v292
      %v294 = vmul.f32 %v287, 1.442695
      %v295 = vpow.pop %v294
      %v296 = vadd.f32 %v289, 1.0
      %v297 = vadd.f32 %v291, 1.0
      %v298 = vadd.f32 %v293, 1.0
      %v299 = vadd.f32 %v295, 1.0
      %v300 = vrcp.pop %v296
      %v301 = vmul.f32 1.0, %v300
      %v302 = vrcp.pop %v297
      %v303 = vmul.f32 1.0, %v302
      %v304 = vrcp.pop %v298
      %v305 = vmul.f32 1.0, %v304
      %v306 = vrcp.pop %v299
      %v307 = vmul.f32 1.0, %v306
      %v308 = vmul.f32 %v280, %v301
      %v309 = vmul.f32 %v281, %v303
      %v310 = vmul.f32 %v282, %v305
      %v311 = vmul.f32 %v283, %v307
      %s312 = scalar_lea.vmem [#allocation2], 24
      %313 = vst [vmem:[%s312 + $0x8] sm:$0xf] %v308
      %314 = vst [vmem:[%s312 + $0x20] sm:$0xf] %v309
      %315 = vst [vmem:[%s312 + $0x38] sm:$0xf] %v310
      %316 = vst [vmem:[%s312 + $0x50] sm:$0xf] %v311
      %v317 = vld [vmem:[#allocation2 + $0x7] sm:$0xf]
      %v318 = vld [vmem:[#allocation2 + $0x1f] sm:$0xf]
      %v319 = vld [vmem:[#allocation2 + $0x37] sm:$0xf]
      %v320 = vld [vmem:[#allocation2 + $0x4f] sm:$0xf]
      %v321 = vld [vmem:[%s3] sm:$0x1]
      %v322 = vlaneseq
      %v323 = vshrl.u32 %v322, 7
      %v324 = vsub.s32 0, %v323
      %v325 = vrot.slane %v321, %v324
      %v326 = vmul.f32 %v317, %v325
      %v327 = vmul.f32 %v318, %v325
      %v328 = vmul.f32 %v319, %v325
      %v329 = vmul.f32 %v320, %v325
      %v330 = vadd.f32 %v326, 0.0
      %v331 = vadd.f32 %v327, 0.0
      %v332 = vadd.f32 %v328, 0.0
      %v333 = vadd.f32 %v329, 0.0
      %v334 = vld [vmem:[#allocation2 + $0x8] sm:$0xf]
      %v335 = vld [vmem:[#allocation2 + $0x20] sm:$0xf]
      %v336 = vld [vmem:[#allocation2 + $0x38] sm:$0xf]
      %v337 = vld [vmem:[#allocation2 + $0x50] sm:$0xf]
      %v338 = vld [vmem:[%s3 + $0x1] sm:$0x1]
      %v339 = vlaneseq
      %v340 = vshrl.u32 %v339, 7
      %v341 = vsub.s32 0, %v340
      %v342 = vrot.slane %v338, %v341
      %v343 = vmul.f32 %v334, %v342
      %v344 = vmul.f32 %v335, %v342
      %v345 = vmul.f32 %v336, %v342
      %v346 = vmul.f32 %v337, %v342
      %v347 = vadd.f32 %v330, %v343
      %v348 = vadd.f32 %v331, %v344
      %v349 = vadd.f32 %v332, %v345
      %v350 = vadd.f32 %v333, %v346
      %v351 = vld [vmem:[#allocation2 + $0x9] sm:$0xf]
      %v352 = vld [vmem:[#allocation2 + $0x21] sm:$0xf]
      %v353 = vld [vmem:[#allocation2 + $0x39] sm:$0xf]
      %v354 = vld [vmem:[#allocation2 + $0x51] sm:$0xf]
      %v355 = vld [vmem:[%s3 + $0x2] sm:$0x1]
      %v356 = vlaneseq
      %v357 = vshrl.u32 %v356, 7
      %v358 = vsub.s32 0, %v357
      %v359 = vrot.slane %v355, %v358
      %v360 = vmul.f32 %v351, %v359
      %v361 = vmul.f32 %v352, %v359
      %v362 = vmul.f32 %v353, %v359
      %v363 = vmul.f32 %v354, %v359
      %v364 = vadd.f32 %v347, %v360
      %v365 = vadd.f32 %v348, %v361
      %v366 = vadd.f32 %v349, %v362
      %v367 = vadd.f32 %v350, %v363
      %v368 = vld [vmem:[%s312 + $0x7] sm:$0xf]
      %v369 = vld [vmem:[%s312 + $0x1f] sm:$0xf]
      %v370 = vld [vmem:[%s312 + $0x37] sm:$0xf]
      %v371 = vld [vmem:[%s312 + $0x4f] sm:$0xf]
      %v372 = vld [vmem:[%s3 + $0x3] sm:$0x1]
      %v373 = vlaneseq
      %v374 = vshrl.u32 %v373, 7
      %v375 = vsub.s32 0, %v374
      %v376 = vrot.slane %v372, %v375
      %v377 = vmul.f32 %v368, %v376
      %v378 = vmul.f32 %v369, %v376
      %v379 = vmul.f32 %v370, %v376
      %v380 = vmul.f32 %v371, %v376
      %v381 = vadd.f32 %v364, %v377
      %v382 = vadd.f32 %v365, %v378
      %v383 = vadd.f32 %v366, %v379
      %v384 = vadd.f32 %v367, %v380
      %v385 = vld [vmem:[%s312 + $0x8] sm:$0xf]
      %v386 = vld [vmem:[%s312 + $0x20] sm:$0xf]
      %v387 = vld [vmem:[%s312 + $0x38] sm:$0xf]
      %v388 = vld [vmem:[%s312 + $0x50] sm:$0xf]
      %v389 = vld [vmem:[%s3 + $0x4] sm:$0x1]
      %v390 = vlaneseq
      %v391 = vshrl.u32 %v390, 7
      %v392 = vsub.s32 0, %v391
      %v393 = vrot.slane %v389, %v392
      %v394 = vmul.f32 %v385, %v393
      %v395 = vmul.f32 %v386, %v393
      %v396 = vmul.f32 %v387, %v393
      %v397 = vmul.f32 %v388, %v393
      %v398 = vadd.f32 %v381, %v394
      %v399 = vadd.f32 %v382, %v395
      %v400 = vadd.f32 %v383, %v396
      %v401 = vadd.f32 %v384, %v397
      %v402 = vld [vmem:[%s312 + $0x9] sm:$0xf]
      %v403 = vld [vmem:[%s312 + $0x21] sm:$0xf]
      %v404 = vld [vmem:[%s312 + $0x39] sm:$0xf]
      %v405 = vld [vmem:[%s312 + $0x51] sm:$0xf]
      %v406 = vld [vmem:[%s3 + $0x5] sm:$0x1]
      %v407 = vlaneseq
      %v408 = vshrl.u32 %v407, 7
      %v409 = vsub.s32 0, %v408
      %v410 = vrot.slane %v406, %v409
      %v411 = vmul.f32 %v402, %v410
      %v412 = vmul.f32 %v403, %v410
      %v413 = vmul.f32 %v404, %v410
      %v414 = vmul.f32 %v405, %v410
      %v415 = vadd.f32 %v398, %v411
      %v416 = vadd.f32 %v399, %v412
      %v417 = vadd.f32 %v400, %v413
      %v418 = vadd.f32 %v401, %v414
      %s419 = scalar_lea.vmem [#allocation2], 48
      %v420 = vld [vmem:[%s419 + $0x7] sm:$0xf]
      %v421 = vld [vmem:[%s419 + $0x1f] sm:$0xf]
      %v422 = vld [vmem:[%s419 + $0x37] sm:$0xf]
      %v423 = vld [vmem:[%s419 + $0x4f] sm:$0xf]
      %v424 = vld [vmem:[%s3 + $0x6] sm:$0x1]
      %v425 = vlaneseq
      %v426 = vshrl.u32 %v425, 7
      %v427 = vsub.s32 0, %v426
      %v428 = vrot.slane %v424, %v427
      %v429 = vmul.f32 %v420, %v428
      %v430 = vmul.f32 %v421, %v428
      %v431 = vmul.f32 %v422, %v428
      %v432 = vmul.f32 %v423, %v428
      %v433 = vadd.f32 %v415, %v429
      %v434 = vadd.f32 %v416, %v430
      %v435 = vadd.f32 %v417, %v431
      %v436 = vadd.f32 %v418, %v432
      %v437 = vld [vmem:[%s419 + $0x8] sm:$0xf]
      %v438 = vld [vmem:[%s419 + $0x20] sm:$0xf]
      %v439 = vld [vmem:[%s419 + $0x38] sm:$0xf]
      %v440 = vld [vmem:[%s419 + $0x50] sm:$0xf]
      %v441 = vld [vmem:[%s3 + $0x7] sm:$0x1]
      %v442 = vlaneseq
      %v443 = vshrl.u32 %v442, 7
      %v444 = vsub.s32 0, %v443
      %v445 = vrot.slane %v441, %v444
      %v446 = vmul.f32 %v437, %v445
      %v447 = vmul.f32 %v438, %v445
      %v448 = vmul.f32 %v439, %v445
      %v449 = vmul.f32 %v440, %v445
      %v450 = vadd.f32 %v433, %v446
      %v451 = vadd.f32 %v434, %v447
      %v452 = vadd.f32 %v435, %v448
      %v453 = vadd.f32 %v436, %v449
      %v454 = vld [vmem:[%s419 + $0x9] sm:$0xf]
      %v455 = vld [vmem:[%s419 + $0x21] sm:$0xf]
      %v456 = vld [vmem:[%s419 + $0x39] sm:$0xf]
      %v457 = vld [vmem:[%s419 + $0x51] sm:$0xf]
      %v458 = vld [vmem:[%s3 + $0x8] sm:$0x1]
      %v459 = vlaneseq
      %v460 = vshrl.u32 %v459, 7
      %v461 = vsub.s32 0, %v460
      %v462 = vrot.slane %v458, %v461
      %v463 = vmul.f32 %v454, %v462
      %v464 = vmul.f32 %v455, %v462
      %v465 = vmul.f32 %v456, %v462
      %v466 = vmul.f32 %v457, %v462
      %v467 = vadd.f32 %v450, %v463
      %v468 = vadd.f32 %v451, %v464
      %v469 = vadd.f32 %v452, %v465
      %v470 = vadd.f32 %v453, %v466
      %v471 = vpack.c.bf16 %v467, %v467
      %v472 = vpack.c.bf16 %v468, %v468
      %v473 = vpack.c.bf16 %v469, %v469
      %v474 = vpack.c.bf16 %v470, %v470
      %475 = vst [vmem:[%s231] sm:$0x3] %v471
      %476 = vst [vmem:[%s231 + $0x2] sm:$0x3] %v472
      %477 = vst [vmem:[%s231 + $0x4] sm:$0x3] %v473
      %478 = vst [vmem:[%s231 + $0x6] sm:$0x3] %v474
      %v483 = vcombine.low %v467, %v468
      %v484 = vcombine.low %v469, %v470
      %v487 = vadd.f32 %v483, %v484
      %v488 = vrot.slane %v487, 4
      %v489 = vadd.f32 %v487, %v488
      %v490 = vrot.slane %v489, 2
      %v491 = vadd.f32 %v489, %v490
      %v492 = vrot.slane %v491, 1
      %v493 = vadd.f32 %v491, %v492
      %494 = vst [vmem:[%s235] sm:$0x1] %v493
      %v495 = vmul.f32 %v467, %v467
      %v496 = vmul.f32 %v468, %v468
      %v497 = vmul.f32 %v469, %v469
      %v498 = vmul.f32 %v470, %v470
      %v503 = vcombine.low %v495, %v496
      %v504 = vcombine.low %v497, %v498
      %v507 = vadd.f32 %v503, %v504
      %v508 = vrot.slane %v507, 4
      %v509 = vadd.f32 %v507, %v508
      %v510 = vrot.slane %v509, 2
      %v511 = vadd.f32 %v509, %v510
      %v512 = vrot.slane %v511, 1
      %v513 = vadd.f32 %v511, %v512
      %514 = vst [vmem:[%s235 + $0x1] sm:$0x1] %v513
      %p515 = scmp.lt.s32.totalorder %s17, 1
      %s516 = scalar_select %p515, %s17, 1
      %s517 = smul.addr %s516, 4
      %s518 = smul.addr %s517, 2
      %s519 = scalar_lea.vmem %s4, %s518
      %p520 = scmp.lt.s32.totalorder %s17, 1
      %s521 = scalar_select %p520, %s17, 1
      %s522 = smul.addr %s521, 2
      %s523 = scalar_lea.vmem %s5, %s522
      // Predicated region
      $region37: #{_lambda_.29} parent=35 // pred_check
        %p524 = pneg %p124
      $region38: #{_lambda_.29} parent=35 // pred_check_branch
        %526 = sbr.rel (%p524) target = $region40
      $region39: #{_lambda_.29} parent=35 // pred_region
        _
      $region40: #{_lambda_.29} parent=35 // pred_fallthru
        _
      // Predicated region
      $region41: #{_lambda_.29} parent=35 // pred_check
        %p527 = pneg %p150
      $region42: #{_lambda_.29} parent=35 // pred_check_branch
        %529 = sbr.rel (%p527) target = $region44
      $region43: #{_lambda_.29} parent=35 // pred_region
        _
      $region44: #{_lambda_.29} parent=35 // pred_fallthru
        _
    $region36: #{_lambda_.29} parent=5 // pred_fallthru
      _
    %p530 = scmp.le.s32.totalorder 2, %s12
    // Predicated region
    $region45: #{_lambda_.29} parent=5 // pred_check
      %p531 = pneg %p530
    $region46: #{_lambda_.29} parent=5 // pred_check_branch
      %533 = sbr.rel (%p531) target = $region48
    $region47: #{_lambda_.29} parent=5 // pred_region
      %s534 = ssub.s32 %s12, 2
      // Predicated region
      $region49: #{_lambda_.29} parent=47 // pred_check
        %p535 = pneg %p130
      $region50: #{_lambda_.29} parent=47 // pred_check_branch
        %537 = sbr.rel (%p535) target = $region52
      $region51: #{_lambda_.29} parent=47 // pred_region
        %p538 = scmp.lt.s32.totalorder %s18, 1
        %s539 = scalar_select %p538, %s18, 1
        %s540 = smul.addr %s539, 4
        %s541 = smul.addr %s540, 2
        %s542 = scalar_lea.vmem %s4, %s541
      $region52: #{_lambda_.29} parent=47 // pred_fallthru
        _
      // Predicated region
      $region53: #{_lambda_.29} parent=47 // pred_check
        %p543 = pneg %p156
      $region54: #{_lambda_.29} parent=47 // pred_check_branch
        %545 = sbr.rel (%p543) target = $region56
      $region55: #{_lambda_.29} parent=47 // pred_region
        %p546 = scmp.lt.s32.totalorder %s18, 1
        %s547 = scalar_select %p546, %s18, 1
        %s548 = smul.addr %s547, 2
        %s549 = scalar_lea.vmem %s5, %s548
      $region56: #{_lambda_.29} parent=47 // pred_fallthru
        _
    $region48: #{_lambda_.29} parent=5 // pred_fallthru
      _
  $region6: #{_lambda_.29} parent=0 // loop_footer
    %s16 = sadd.s32 1, %s12
  $region7: #{_lambda_.29} parent=0 // loop_footer_branch
    %11 = sbr.rel target = $region3
  $region8: #{_lambda_.29} parent=0 // loop_exit
    _

// kernel: _lambda_.32
$region0: #{_lambda_.32}
  #allocation0 [shape = 'u32[]', space=smem, size = 0x4, offset = 0x4, fixed_abs, tag = 'smem constant byte address 0x4 - core index']
  #allocation1 [shape = 'u32[144,128]{1,0:T(1,128)}', space=vmem, size = 0x12000, scoped, tag = 'internal scratch']
  %s0 = inlined_call_operand.vmem [shape: bf16[32,128], index: 0, kind: input, shape index: {}]
  %s1 = inlined_call_operand.vmem [shape: f32[1,128], index: 1, kind: input, shape index: {}]
  %s2 = inlined_call_operand.vmem [shape: f32[1,128], index: 2, kind: input, shape index: {}]
  %s3 = inlined_call_operand.vmem [shape: bf16[32,128], index: 3, kind: input, shape index: {}]
  %s4 = inlined_call_operand.vmem [shape: bf16[32,128], index: 4, kind: output, shape index: {}]
  %s5 = sld [smem:[#allocation0]]
  $region26: #{_lambda_.32} parent=0
    _
  %s7 = ssub.s32 1, %s5
  %s8 = scalar_select 0, %s7, %s5
  // Predicated region
  $region2: #{_lambda_.32} parent=0 // pred_check
    _
  $region3: #{_lambda_.32} parent=0 // pred_check_branch
    %10 = sbr.rel (0) target = $region5
  $region4: #{_lambda_.32} parent=0 // pred_region
    _
  $region5: #{_lambda_.32} parent=0 // pred_fallthru
    _
  // Predicated region
  $region6: #{_lambda_.32} parent=0 // pred_check
    _
  $region7: #{_lambda_.32} parent=0 // pred_check_branch
    %12 = sbr.rel (0) target = $region9
  $region8: #{_lambda_.32} parent=0 // pred_region
    _
  $region9: #{_lambda_.32} parent=0 // pred_fallthru
    _
  // Predicated region
  $region10: #{_lambda_.32} parent=0 // pred_check
    _
  $region11: #{_lambda_.32} parent=0 // pred_check_branch
    %14 = sbr.rel (0) target = $region13
  $region12: #{_lambda_.32} parent=0 // pred_region
    _
  $region13: #{_lambda_.32} parent=0 // pred_fallthru
    _
  // Predicated region
  $region14: #{_lambda_.32} parent=0 // pred_check
    _
  $region15: #{_lambda_.32} parent=0 // pred_check_branch
    %16 = sbr.rel (0) target = $region17
  $region16: #{_lambda_.32} parent=0 // pred_region
    _
  $region17: #{_lambda_.32} parent=0 // pred_fallthru
    _
  %v17 = vld [vmem:[%s0] sm:$0xf]
  %v18 = vld [vmem:[%s0 + $0x4] sm:$0xf]
  %v19 = vld [vmem:[%s0 + $0x8] sm:$0xf]
  %v20 = vld [vmem:[%s0 + $0xc] sm:$0xf]
  %v21 = vunpack.c.l.bf16 %v17
  %v22 = vunpack.c.l.bf16 %v18
  %v23 = vunpack.c.l.bf16 %v19
  %v24 = vunpack.c.l.bf16 %v20
  %v25 = vld [vmem:[%s1] sm:$0x1]
  %v27 = vlaneseq
  %v28 = vshrl.u32 %v27, 7
  %v29 = vsub.s32 0, %v28
  %v30 = vrot.slane %v25, %v29
  %v32 = vmul.f32 %v21, %v30
  %v33 = vmul.f32 %v22, %v30
  %v34 = vmul.f32 %v23, %v30
  %v35 = vmul.f32 %v24, %v30
  %v36 = vld [vmem:[%s2] sm:$0x1]
  %v38 = vlaneseq
  %v39 = vshrl.u32 %v38, 7
  %v40 = vsub.s32 0, %v39
  %v41 = vrot.slane %v36, %v40
  %v43 = vadd.f32 %v32, %v41
  %v44 = vadd.f32 %v33, %v41
  %v45 = vadd.f32 %v34, %v41
  %v46 = vadd.f32 %v35, %v41
  %v47 = vld [vmem:[%s3] sm:$0xf]
  %v48 = vld [vmem:[%s3 + $0x4] sm:$0xf]
  %v49 = vld [vmem:[%s3 + $0x8] sm:$0xf]
  %v50 = vld [vmem:[%s3 + $0xc] sm:$0xf]
  %v51 = vunpack.c.l.bf16 %v47
  %v52 = vunpack.c.l.bf16 %v48
  %v53 = vunpack.c.l.bf16 %v49
  %v54 = vunpack.c.l.bf16 %v50
  %v55 = vadd.f32 %v43, %v51
  %v56 = vadd.f32 %v44, %v52
  %v57 = vadd.f32 %v45, %v53
  %v58 = vadd.f32 %v46, %v54
  %v59 = vpack.c.bf16 %v56, %v55
  %v60 = vpack.c.bf16 %v58, %v57
  %v63 = vunpack.c.l.b16 %v59
  %v64 = vunpack.c.h.b16 %v59
  %v65 = vunpack.c.l.b16 %v60
  %v66 = vunpack.c.h.b16 %v60
  %v67 = vpack.c.b16 %v63, %v63
  %v68 = vpack.c.b16 %v64, %v64
  %v69 = vpack.c.b16 %v65, %v65
  %v70 = vpack.c.b16 %v66, %v66
  %75 = vst [vmem:[%s4] sm:$0xf] %v67
  %76 = vst [vmem:[%s4 + $0x4] sm:$0xf] %v68
  %77 = vst [vmem:[%s4 + $0x8] sm:$0xf] %v69
  %78 = vst [vmem:[%s4 + $0xc] sm:$0xf] %v70
  // Predicated region
  $region18: #{_lambda_.32} parent=0 // pred_check
    _
  $region19: #{_lambda_.32} parent=0 // pred_check_branch
    %80 = sbr.rel (0) target = $region21
  $region20: #{_lambda_.32} parent=0 // pred_region
    _
  $region21: #{_lambda_.32} parent=0 // pred_fallthru
    _
  // Predicated region
  $region22: #{_lambda_.32} parent=0 // pred_check
    _
  $region23: #{_lambda_.32} parent=0 // pred_check_branch
    %82 = sbr.rel (0) target = $region25
  $region24: #{_lambda_.32} parent=0 // pred_region
    _
  $region25: #{_lambda_.32} parent=0 // pred_fallthru
    _

// kernel: _lambda_.30
$region0: #{_lambda_.30}
  #allocation0 [shape = 'u32[]', space=smem, size = 0x4, offset = 0x4, fixed_abs, tag = 'smem constant byte address 0x4 - core index']
  #allocation1 [shape = 'u32[144,128]{1,0:T(1,128)}', space=vmem, size = 0x12000, scoped, tag = 'internal scratch']
  %s0 = inlined_call_operand.vmem [shape: bf16[2,16,128], index: 0, kind: input, shape index: {}]
  %s1 = inlined_call_operand.vmem [shape: f32[1,128], index: 1, kind: input, shape index: {}]
  %s2 = inlined_call_operand.vmem [shape: f32[1,128], index: 2, kind: input, shape index: {}]
  %s3 = inlined_call_operand.vmem [shape: f32[128,6], index: 3, kind: input, shape index: {}]
  %s4 = inlined_call_operand.vmem [shape: f32[1,6], index: 4, kind: input, shape index: {}]
  %s5 = inlined_call_operand.vmem [shape: f32[6,128], index: 5, kind: input, shape index: {}]
  %s6 = inlined_call_operand.vmem [shape: f32[1,128], index: 6, kind: input, shape index: {}]
  %s7 = inlined_call_operand.vmem [shape: bf16[2,16,128], index: 7, kind: output, shape index: {}]
  %s8 = sld [smem:[#allocation0]]
  $region61: #{_lambda_.30} parent=0
    _
  %s10 = ssub.s32 1, %s8
  %s11 = scalar_select 0, %s10, %s8
  loop: start=0, step=1, limit=4
  $region2: #{_lambda_.30} parent=0 // loop_pre_header
    _
  $region3: #{_lambda_.30} parent=0 // loop_header
    %s13 = sphi 0, %s17
    %p14 = scmp.ge.s32.totalorder %s13, 4
    %s23 = sphi 0, %s25
    %s26 = sphi 0, %s23
    %s27 = sphi 0, %s26
    %s43 = sphi 0, %s27
    %s47 = sphi 0, %s47
    %s49 = sphi 0, %s47
    %s50 = sphi 0, %s49
    %s64 = sphi 0, %s50
    %s68 = sphi 0, %s68
    %s70 = sphi 0, %s68
    %s71 = sphi 0, %s70
    %s85 = sphi 0, %s71
    %s89 = sphi 0, %s89
    %s91 = sphi 0, %s89
    %s92 = sphi 0, %s91
    %s106 = sphi 0, %s92
    %s110 = sphi 0, %s110
    %s112 = sphi 0, %s110
    %s113 = sphi 0, %s112
    %s127 = sphi 0, %s113
    %s131 = sphi 0, %s131
    %s133 = sphi 0, %s131
    %s134 = sphi 0, %s133
    %s148 = sphi 0, %s134
    %s152 = sphi 0, %s152
    %s154 = sphi 0, %s152
    %s155 = sphi 0, %s154
    %s169 = sphi 0, %s155
    %s175 = sphi 0, %s177
    %s178 = sphi 0, %s175
    %s179 = sphi 0, %s178
    %s195 = sphi 0, %s179
  $region4: #{_lambda_.30} parent=0 // loop_header_branch
    %16 = sbr.rel (%p14) target = $region8
  $region5: #{_lambda_.30} parent=0 // loop_body
    %s18 = ssub.s32 %s13, 1
    %s19 = ssub.s32 %s13, 2
    %s20 = sadd.s32 %s13, 1
    %s21 = ssub.s32 %s13, %s20
    %p22 = scmp.eq.s32.totalorder %s21, 0
    %s24 = sadd.s32 %s23, 1
    %s25 = scalar_select %p22, %s23, %s24
    %p28 = pneg %p22
    %p29 = scmp.eq.s32.totalorder %s13, 1
    %p30 = por %p28, %p29
    %p31 = scmp.ne.s32.totalorder %s23, %s26
    %p32 = scmp.eq.s32.totalorder %s13, 0
    %p33 = por %p31, %p32
    %p34 = scmp.ne.s32.totalorder %s23, %s26
    %p35 = scmp.eq.s32.totalorder %s18, 1
    %p36 = por %p34, %p35
    %p37 = scmp.ne.s32.totalorder %s26, %s27
    %p38 = scmp.eq.s32.totalorder %s18, 0
    %p39 = por %p37, %p38
    %p40 = scmp.ne.s32.totalorder %s26, %s27
    %p41 = scmp.eq.s32.totalorder %s19, 1
    %p42 = por %p40, %p41
    %p44 = scmp.ne.s32.totalorder %s27, %s43
    %p45 = scmp.eq.s32.totalorder %s19, 0
    %p46 = por %p44, %p45
    %s48 = sadd.s32 %s47, 1
    %p51 = scmp.eq.s32.totalorder %s13, 1
    %p52 = scmp.ne.s32.totalorder %s47, %s49
    %p53 = scmp.eq.s32.totalorder %s13, 0
    %p54 = por %p52, %p53
    %p55 = scmp.ne.s32.totalorder %s47, %s49
    %p56 = scmp.eq.s32.totalorder %s18, 1
    %p57 = por %p55, %p56
    %p58 = scmp.ne.s32.totalorder %s49, %s50
    %p59 = scmp.eq.s32.totalorder %s18, 0
    %p60 = por %p58, %p59
    %p61 = scmp.ne.s32.totalorder %s49, %s50
    %p62 = scmp.eq.s32.totalorder %s19, 1
    %p63 = por %p61, %p62
    %p65 = scmp.ne.s32.totalorder %s50, %s64
    %p66 = scmp.eq.s32.totalorder %s19, 0
    %p67 = por %p65, %p66
    %s69 = sadd.s32 %s68, 1
    %p72 = scmp.eq.s32.totalorder %s13, 1
    %p73 = scmp.ne.s32.totalorder %s68, %s70
    %p74 = scmp.eq.s32.totalorder %s13, 0
    %p75 = por %p73, %p74
    %p76 = scmp.ne.s32.totalorder %s68, %s70
    %p77 = scmp.eq.s32.totalorder %s18, 1
    %p78 = por %p76, %p77
    %p79 = scmp.ne.s32.totalorder %s70, %s71
    %p80 = scmp.eq.s32.totalorder %s18, 0
    %p81 = por %p79, %p80
    %p82 = scmp.ne.s32.totalorder %s70, %s71
    %p83 = scmp.eq.s32.totalorder %s19, 1
    %p84 = por %p82, %p83
    %p86 = scmp.ne.s32.totalorder %s71, %s85
    %p87 = scmp.eq.s32.totalorder %s19, 0
    %p88 = por %p86, %p87
    %s90 = sadd.s32 %s89, 1
    %p93 = scmp.eq.s32.totalorder %s13, 1
    %p94 = scmp.ne.s32.totalorder %s89, %s91
    %p95 = scmp.eq.s32.totalorder %s13, 0
    %p96 = por %p94, %p95
    %p97 = scmp.ne.s32.totalorder %s89, %s91
    %p98 = scmp.eq.s32.totalorder %s18, 1
    %p99 = por %p97, %p98
    %p100 = scmp.ne.s32.totalorder %s91, %s92
    %p101 = scmp.eq.s32.totalorder %s18, 0
    %p102 = por %p100, %p101
    %p103 = scmp.ne.s32.totalorder %s91, %s92
    %p104 = scmp.eq.s32.totalorder %s19, 1
    %p105 = por %p103, %p104
    %p107 = scmp.ne.s32.totalorder %s92, %s106
    %p108 = scmp.eq.s32.totalorder %s19, 0
    %p109 = por %p107, %p108
    %s111 = sadd.s32 %s110, 1
    %p114 = scmp.eq.s32.totalorder %s13, 1
    %p115 = scmp.ne.s32.totalorder %s110, %s112
    %p116 = scmp.eq.s32.totalorder %s13, 0
    %p117 = por %p115, %p116
    %p118 = scmp.ne.s32.totalorder %s110, %s112
    %p119 = scmp.eq.s32.totalorder %s18, 1
    %p120 = por %p118, %p119
    %p121 = scmp.ne.s32.totalorder %s112, %s113
    %p122 = scmp.eq.s32.totalorder %s18, 0
    %p123 = por %p121, %p122
    %p124 = scmp.ne.s32.totalorder %s112, %s113
    %p125 = scmp.eq.s32.totalorder %s19, 1
    %p126 = por %p124, %p125
    %p128 = scmp.ne.s32.totalorder %s113, %s127
    %p129 = scmp.eq.s32.totalorder %s19, 0
    %p130 = por %p128, %p129
    %s132 = sadd.s32 %s131, 1
    %p135 = scmp.eq.s32.totalorder %s13, 1
    %p136 = scmp.ne.s32.totalorder %s131, %s133
    %p137 = scmp.eq.s32.totalorder %s13, 0
    %p138 = por %p136, %p137
    %p139 = scmp.ne.s32.totalorder %s131, %s133
    %p140 = scmp.eq.s32.totalorder %s18, 1
    %p141 = por %p139, %p140
    %p142 = scmp.ne.s32.totalorder %s133, %s134
    %p143 = scmp.eq.s32.totalorder %s18, 0
    %p144 = por %p142, %p143
    %p145 = scmp.ne.s32.totalorder %s133, %s134
    %p146 = scmp.eq.s32.totalorder %s19, 1
    %p147 = por %p145, %p146
    %p149 = scmp.ne.s32.totalorder %s134, %s148
    %p150 = scmp.eq.s32.totalorder %s19, 0
    %p151 = por %p149, %p150
    %s153 = sadd.s32 %s152, 1
    %p156 = scmp.eq.s32.totalorder %s13, 1
    %p157 = scmp.ne.s32.totalorder %s152, %s154
    %p158 = scmp.eq.s32.totalorder %s13, 0
    %p159 = por %p157, %p158
    %p160 = scmp.ne.s32.totalorder %s152, %s154
    %p161 = scmp.eq.s32.totalorder %s18, 1
    %p162 = por %p160, %p161
    %p163 = scmp.ne.s32.totalorder %s154, %s155
    %p164 = scmp.eq.s32.totalorder %s18, 0
    %p165 = por %p163, %p164
    %p166 = scmp.ne.s32.totalorder %s154, %s155
    %p167 = scmp.eq.s32.totalorder %s19, 1
    %p168 = por %p166, %p167
    %p170 = scmp.ne.s32.totalorder %s155, %s169
    %p171 = scmp.eq.s32.totalorder %s19, 0
    %p172 = por %p170, %p171
    %s173 = ssub.s32 %s13, %s20
    %p174 = scmp.eq.s32.totalorder %s173, 0
    %s176 = sadd.s32 %s175, 1
    %s177 = scalar_select %p174, %s175, %s176
    %p180 = pneg %p174
    %p181 = scmp.eq.s32.totalorder %s13, 1
    %p182 = por %p180, %p181
    %p183 = scmp.ne.s32.totalorder %s175, %s178
    %p184 = scmp.eq.s32.totalorder %s13, 0
    %p185 = por %p183, %p184
    %p186 = scmp.ne.s32.totalorder %s175, %s178
    %p187 = scmp.eq.s32.totalorder %s18, 1
    %p188 = por %p186, %p187
    %p189 = scmp.ne.s32.totalorder %s178, %s179
    %p190 = scmp.eq.s32.totalorder %s18, 0
    %p191 = por %p189, %p190
    %p192 = scmp.ne.s32.totalorder %s178, %s179
    %p193 = scmp.eq.s32.totalorder %s19, 1
    %p194 = por %p192, %p193
    %p196 = scmp.ne.s32.totalorder %s179, %s195
    %p197 = scmp.eq.s32.totalorder %s19, 0
    %p198 = por %p196, %p197
    %p199 = scmp.le.s32.totalorder 1, %s13
    %p200 = scmp.lt.s32.totalorder %s13, 3
    %p201 = pnand %p199, %p200
    %p202 = pneg %p201
    // Predicated region
    $region9: #{_lambda_.30} parent=5 // pred_check
      _
    $region10: #{_lambda_.30} parent=5 // pred_check_branch
      %204 = sbr.rel (%p201) target = $region12
    $region11: #{_lambda_.30} parent=5 // pred_region
      %s205 = ssub.s32 %s13, 1
      // Predicated region
      $region13: #{_lambda_.30} parent=11 // pred_check
        %p206 = pneg %p60
      $region14: #{_lambda_.30} parent=11 // pred_check_branch
        %208 = sbr.rel (%p206) target = $region16
      $region15: #{_lambda_.30} parent=11 // pred_region
        _
      $region16: #{_lambda_.30} parent=11 // pred_fallthru
        _
      // Predicated region
      $region17: #{_lambda_.30} parent=11 // pred_check
        %p209 = pneg %p81
      $region18: #{_lambda_.30} parent=11 // pred_check_branch
        %211 = sbr.rel (%p209) target = $region20
      $region19: #{_lambda_.30} parent=11 // pred_region
        _
      $region20: #{_lambda_.30} parent=11 // pred_fallthru
        _
      // Predicated region
      $region21: #{_lambda_.30} parent=11 // pred_check
        %p212 = pneg %p102
      $region22: #{_lambda_.30} parent=11 // pred_check_branch
        %214 = sbr.rel (%p212) target = $region24
      $region23: #{_lambda_.30} parent=11 // pred_region
        _
      $region24: #{_lambda_.30} parent=11 // pred_fallthru
        _
      // Predicated region
      $region25: #{_lambda_.30} parent=11 // pred_check
        %p215 = pneg %p123
      $region26: #{_lambda_.30} parent=11 // pred_check_branch
        %217 = sbr.rel (%p215) target = $region28
      $region27: #{_lambda_.30} parent=11 // pred_region
        _
      $region28: #{_lambda_.30} parent=11 // pred_fallthru
        _
      // Predicated region
      $region29: #{_lambda_.30} parent=11 // pred_check
        %p218 = pneg %p144
      $region30: #{_lambda_.30} parent=11 // pred_check_branch
        %220 = sbr.rel (%p218) target = $region32
      $region31: #{_lambda_.30} parent=11 // pred_region
        _
      $region32: #{_lambda_.30} parent=11 // pred_fallthru
        _
      // Predicated region
      $region33: #{_lambda_.30} parent=11 // pred_check
        %p221 = pneg %p165
      $region34: #{_lambda_.30} parent=11 // pred_check_branch
        %223 = sbr.rel (%p221) target = $region36
      $region35: #{_lambda_.30} parent=11 // pred_region
        _
      $region36: #{_lambda_.30} parent=11 // pred_fallthru
        _
    $region12: #{_lambda_.30} parent=5 // pred_fallthru
      _
    %p224 = scmp.lt.s32.totalorder %s13, 2
    // Predicated region
    $region37: #{_lambda_.30} parent=5 // pred_check
      %p225 = pneg %p224
    $region38: #{_lambda_.30} parent=5 // pred_check_branch
      %227 = sbr.rel (%p225) target = $region40
    $region39: #{_lambda_.30} parent=5 // pred_region
      // Predicated region
      $region41: #{_lambda_.30} parent=39 // pred_check
        %p228 = pneg %p33
      $region42: #{_lambda_.30} parent=39 // pred_check_branch
        %230 = sbr.rel (%p228) target = $region44
      $region43: #{_lambda_.30} parent=39 // pred_region
        %p231 = scmp.lt.s32.totalorder %s13, 1
        %s232 = scalar_select %p231, %s13, 1
        %s233 = smul.addr %s232, 2
        %s234 = smul.addr %s233, 4
        %s235 = scalar_lea.vmem %s0, %s234
      $region44: #{_lambda_.30} parent=39 // pred_fallthru
        _
    $region40: #{_lambda_.30} parent=5 // pred_fallthru
      _
    %p236 = scmp.le.s32.totalorder 1, %s13
    %p237 = scmp.lt.s32.totalorder %s13, 3
    %p238 = pnand %p236, %p237
    %p239 = pneg %p238
    // Predicated region
    $region45: #{_lambda_.30} parent=5 // pred_check
      _
    $region46: #{_lambda_.30} parent=5 // pred_check_branch
      %241 = sbr.rel (%p238) target = $region48
    $region47: #{_lambda_.30} parent=5 // pred_region
      %s242 = ssub.s32 %s13, 1
      %p243 = scmp.lt.s32.totalorder %s18, 1
      %s244 = scalar_select %p243, %s18, 1
      %s245 = smul.addr %s244, 2
      %s246 = smul.addr %s245, 4
      %s247 = scalar_lea.vmem %s0, %s246
      %p248 = pneg %p39
      %p249 = pneg %p36
      %p250 = pneg %p60
      %p251 = pneg %p57
      %p252 = pneg %p81
      %p253 = pneg %p78
      %p254 = pneg %p102
      %p255 = pneg %p99
      %p256 = pneg %p123
      %p257 = pneg %p120
      %p258 = pneg %p144
      %p259 = pneg %p141
      %p260 = pneg %p165
      %p261 = pneg %p162
      %p262 = pneg %p191
      %p263 = pneg %p188
      %p264 = scmp.lt.s32.totalorder %s18, 1
      %s265 = scalar_select %p264, %s18, 1
      %s266 = smul.addr %s265, 2
      %s267 = smul.addr %s266, 4
      %s268 = scalar_lea.vmem %s7, %s267
      %p269 = scmp.lt.s32.totalorder %s18, 1
      %s270 = scalar_select %p269, %s18, 1
      %s271 = smul.addr %s270, 2
      %s272 = smul.addr %s271, 4
      %s273 = scalar_lea.vmem %s0, %s272
      %p274 = scmp.lt.s32.totalorder %s18, 1
      %s275 = scalar_select %p274, %s18, 1
      %s276 = smul.addr %s275, 2
      %s277 = smul.addr %s276, 4
      %s278 = scalar_lea.vmem %s7, %s277
      %v279 = vld [vmem:[%s273] sm:$0xf]
      %v280 = vld [vmem:[%s273 + $0x4] sm:$0xf]
      %v281 = vunpack.c.l.bf16 %v279
      %v282 = vunpack.c.l.bf16 %v280
      %v283 = vld [vmem:[%s1] sm:$0x1]
      %v285 = vlaneseq
      %v286 = vshrl.u32 %v285, 7
      %v287 = vsub.s32 0, %v286
      %v288 = vrot.slane %v283, %v287
      %v290 = vmul.f32 %v281, %v288
      %v291 = vmul.f32 %v282, %v288
      %v292 = vld [vmem:[%s2] sm:$0x1]
      %v294 = vlaneseq
      %v295 = vshrl.u32 %v294, 7
      %v296 = vsub.s32 0, %v295
      %v297 = vrot.slane %v292, %v296
      %v299 = vadd.f32 %v290, %v297
      %v300 = vadd.f32 %v291, %v297
      %v301 = vxor.u32 %v299, 2147483648
      %v302 = vxor.u32 %v300, 2147483648
      %v303 = vmul.f32 %v301, 1.442695
      %v304 = vpow.pop %v303
      %v305 = vmul.f32 %v302, 1.442695
      %v306 = vpow.pop %v305
      %v307 = vadd.f32 %v304, 1.0
      %v308 = vadd.f32 %v306, 1.0
      %v309 = vrcp.pop %v307
      %v310 = vmul.f32 1.0, %v309
      %v311 = vrcp.pop %v308
      %v312 = vmul.f32 1.0, %v311
      %v313 = vmul.f32 %v299, %v310
      %v314 = vmul.f32 %v300, %v312
      %v315 = vadd.f32 %v313, %v314
      %v316 = vrot.slane %v315, 4
      %v317 = vadd.f32 %v315, %v316
      %v318 = vrot.slane %v317, 2
      %v319 = vadd.f32 %v317, %v318
      %v320 = vrot.slane %v319, 1
      %v321 = vadd.f32 %v319, %v320
      %v322 = vrcp.pop 16.0
      %v323 = vmul.f32 %v321, %v322
      %v324 = vld [vmem:[%s3] sm:$0xff]
      %v325 = vld [vmem:[%s3 + $0x8] sm:$0xff]
      %v326 = vld [vmem:[%s3 + $0x10] sm:$0xff]
      %v327 = vld [vmem:[%s3 + $0x18] sm:$0xff]
      %v328 = vld [vmem:[%s3 + $0x20] sm:$0xff]
      %v329 = vld [vmem:[%s3 + $0x28] sm:$0xff]
      %v330 = vld [vmem:[%s3 + $0x30] sm:$0xff]
      %v331 = vld [vmem:[%s3 + $0x38] sm:$0xff]
      %v332 = vld [vmem:[%s3 + $0x40] sm:$0xff]
      %v333 = vld [vmem:[%s3 + $0x48] sm:$0xff]
      %v334 = vld [vmem:[%s3 + $0x50] sm:$0xff]
      %v335 = vld [vmem:[%s3 + $0x58] sm:$0xff]
      %v336 = vld [vmem:[%s3 + $0x60] sm:$0xff]
      %v337 = vld [vmem:[%s3 + $0x68] sm:$0xff]
      %v338 = vld [vmem:[%s3 + $0x70] sm:$0xff]
      %v339 = vld [vmem:[%s3 + $0x78] sm:$0xff]
      %v340 = vld [vmem:[%s4] sm:$0x1]
      %341 = vmatprep.subr.mxu0 0.0
      %342 = vmatpush1.msra.mxu0 %v339
      %343 = vmatprep.subr.mxu0 0.0
      %344 = vmatpush1.msra.mxu0 %v338
      %345 = vmatprep.subr.mxu0 0.0
      %346 = vmatpush1.msra.mxu0 %v337
      %347 = vmatprep.subr.mxu0 0.0
      %348 = vmatpush1.msra.mxu0 %v336
      %349 = vmatprep.subr.mxu0 0.0
      %350 = vmatpush1.msra.mxu0 %v335
      %351 = vmatprep.subr.mxu0 0.0
      %352 = vmatpush1.msra.mxu0 %v334
      %353 = vmatprep.subr.mxu0 0.0
      %354 = vmatpush1.msra.mxu0 %v333
      %355 = vmatprep.subr.mxu0 0.0
      %356 = vmatpush1.msra.mxu0 %v332
      %357 = vmatprep.subr.mxu0 0.0
      %358 = vmatpush1.msra.mxu0 %v331
      %359 = vmatprep.subr.mxu0 0.0
      %360 = vmatpush1.msra.mxu0 %v330
      %361 = vmatprep.subr.mxu0 0.0
      %362 = vmatpush1.msra.mxu0 %v329
      %363 = vmatprep.subr.mxu0 0.0
      %364 = vmatpush1.msra.mxu0 %v328
      %365 = vmatprep.subr.mxu0 0.0
      %366 = vmatpush1.msra.mxu0 %v327
      %367 = vmatprep.subr.mxu0 0.0
      %368 = vmatpush1.msra.mxu0 %v326
      %369 = vmatprep.subr.mxu0 0.0
      %370 = vmatpush1.msra.mxu0 %v325
      %371 = vmatprep.subr.mxu0 0.0
      %372 = vmatpush1.msra.mxu0 %v324
      %373 = vmatprep.subr.mxu0 0.0
      %374 = vmatpush2.msra.mxu0 0.0
      %375 = vmatprep.subr.mxu0 0.0
      %376 = vmatpush2.msra.mxu0 0.0
      %377 = vmatprep.subr.mxu0 0.0
      %378 = vmatpush2.msra.mxu0 0.0
      %379 = vmatprep.subr.mxu0 0.0
      %380 = vmatpush2.msra.mxu0 0.0
      %381 = vmatprep.subr.mxu0 0.0
      %382 = vmatpush2.msra.mxu0 0.0
      %383 = vmatprep.subr.mxu0 0.0
      %384 = vmatpush2.msra.mxu0 0.0
      %385 = vmatprep.subr.mxu0 0.0
      %386 = vmatpush2.msra.mxu0 0.0
      %387 = vmatprep.subr.mxu0 0.0
      %388 = vmatpush2.msra.mxu0 0.0
      %389 = vmatprep.subr.mxu0 0.0
      %390 = vmatpush2.msra.mxu0 0.0
      %391 = vmatprep.subr.mxu0 0.0
      %392 = vmatpush2.msra.mxu0 0.0
      %393 = vmatprep.subr.mxu0 0.0
      %394 = vmatpush2.msra.mxu0 0.0
      %395 = vmatprep.subr.mxu0 0.0
      %396 = vmatpush2.msra.mxu0 0.0
      %397 = vmatprep.subr.mxu0 0.0
      %398 = vmatpush2.msra.mxu0 0.0
      %399 = vmatprep.subr.mxu0 0.0
      %400 = vmatpush2.msra.mxu0 0.0
      %401 = vmatprep.subr.mxu0 0.0
      %402 = vmatpush2.msra.mxu0 0.0
      %403 = vmatprep.subr.mxu0 0.0
      %404 = vmatpush2.msra.mxu0 0.0
      %405 = vmatprep.mubr.f32.mxu0 0.0
      %406 = vmatmul.mubr.f32.gmra.mxu0 %v323
      %v407 = vpop.f32.mrf.mxu0
      %v408 = vadd.f32 %v340, %v407
      %v409 = vpop.f32.mrf.mxu0
      %410 = vdwg.mxu0
      %v411 = vxor.u32 %v408, 2147483648
      %v412 = vmul.f32 %v411, 1.442695
      %v413 = vpow.pop %v412
      %v414 = vadd.f32 %v413, 1.0
      %v415 = vrcp.pop %v414
      %v416 = vmul.f32 1.0, %v415
      %v417 = vmul.f32 %v408, %v416
      %v418 = vld [vmem:[%s5] sm:$0x3f]
      %v419 = vld [vmem:[%s6] sm:$0x1]
      %vm420 = vcmask 48128
      %v422 = vsel %vm420, %v417, 0
      %vm424 = vcmask 1045504
      %v426 = vsel %vm424, %v418, 0
      %428 = vmatprep.subr.mxu0 0.0
      %429 = vmatpush1.msra.mxu0 0.0
      %430 = vmatprep.subr.mxu0 0.0
      %431 = vmatpush1.msra.mxu0 0.0
      %432 = vmatprep.subr.mxu0 0.0
      %433 = vmatpush1.msra.mxu0 0.0
      %434 = vmatprep.subr.mxu0 0.0
      %435 = vmatpush1.msra.mxu0 0.0
      %436 = vmatprep.subr.mxu0 0.0
      %437 = vmatpush1.msra.mxu0 0.0
      %438 = vmatprep.subr.mxu0 0.0
      %439 = vmatpush1.msra.mxu0 0.0
      %440 = vmatprep.subr.mxu0 0.0
      %441 = vmatpush1.msra.mxu0 0.0
      %442 = vmatprep.subr.mxu0 0.0
      %443 = vmatpush1.msra.mxu0 0.0
      %444 = vmatprep.subr.mxu0 0.0
      %445 = vmatpush1.msra.mxu0 0.0
      %446 = vmatprep.subr.mxu0 0.0
      %447 = vmatpush1.msra.mxu0 0.0
      %448 = vmatprep.subr.mxu0 0.0
      %449 = vmatpush1.msra.mxu0 0.0
      %450 = vmatprep.subr.mxu0 0.0
      %451 = vmatpush1.msra.mxu0 0.0
      %452 = vmatprep.subr.mxu0 0.0
      %453 = vmatpush1.msra.mxu0 0.0
      %454 = vmatprep.subr.mxu0 0.0
      %455 = vmatpush1.msra.mxu0 0.0
      %456 = vmatprep.subr.mxu0 0.0
      %457 = vmatpush1.msra.mxu0 0.0
      %458 = vmatprep.subr.mxu0 0.0
      %459 = vmatpush1.msra.mxu0 %v426
      %460 = vmatprep.subr.mxu0 0.0
      %461 = vmatpush2.msra.mxu0 0.0
      %462 = vmatprep.subr.mxu0 0.0
      %463 = vmatpush2.msra.mxu0 0.0
      %464 = vmatprep.subr.mxu0 0.0
      %465 = vmatpush2.msra.mxu0 0.0
      %466 = vmatprep.subr.mxu0 0.0
      %467 = vmatpush2.msra.mxu0 0.0
      %468 = vmatprep.subr.mxu0 0.0
      %469 = vmatpush2.msra.mxu0 0.0
      %470 = vmatprep.subr.mxu0 0.0
      %471 = vmatpush2.msra.mxu0 0.0
      %472 = vmatprep.subr.mxu0 0.0
      %473 = vmatpush2.msra.mxu0 0.0
      %474 = vmatprep.subr.mxu0 0.0
      %475 = vmatpush2.msra.mxu0 0.0
      %476 = vmatprep.subr.mxu0 0.0
      %477 = vmatpush2.msra.mxu0 0.0
      %478 = vmatprep.subr.mxu0 0.0
      %479 = vmatpush2.msra.mxu0 0.0
      %480 = vmatprep.subr.mxu0 0.0
      %481 = vmatpush2.msra.mxu0 0.0
      %482 = vmatprep.subr.mxu0 0.0
      %483 = vmatpush2.msra.mxu0 0.0
      %484 = vmatprep.subr.mxu0 0.0
      %485 = vmatpush2.msra.mxu0 0.0
      %486 = vmatprep.subr.mxu0 0.0
      %487 = vmatpush2.msra.mxu0 0.0
      %488 = vmatprep.subr.mxu0 0.0
      %489 = vmatpush2.msra.mxu0 0.0
      %490 = vmatprep.subr.mxu0 0.0
      %491 = vmatpush2.msra.mxu0 0.0
      %492 = vmatprep.mubr.f32.mxu0 0.0
      %493 = vmatmul.mubr.f32.gmra.mxu0 %v422
      %v494 = vpop.f32.mrf.mxu0
      %v495 = vadd.f32 %v419, %v494
      %v496 = vpop.f32.mrf.mxu0
      %497 = vdwg.mxu0
      %v498 = vxor.u32 %v495, 2147483648
      %v499 = vmul.f32 %v498, 1.442695
      %v500 = vpow.pop %v499
      %v501 = vadd.f32 %v500, 1.0
      %v502 = vrcp.pop %v501
      %v503 = vmul.f32 1.0, %v502
      %v504 = vlaneseq
      %v505 = vshrl.u32 %v504, 7
      %v506 = vsub.s32 0, %v505
      %v507 = vrot.slane %v503, %v506
      %v508 = vmul.f32 %v313, %v507
      %v509 = vmul.f32 %v314, %v507
      %v510 = vpack.c.bf16 %v509, %v508
      %v512 = vunpack.c.l.b16 %v510
      %v513 = vunpack.c.h.b16 %v510
      %v514 = vpack.c.b16 %v512, %v512
      %v515 = vpack.c.b16 %v513, %v513
      %518 = vst [vmem:[%s278] sm:$0xf] %v514
      %519 = vst [vmem:[%s278 + $0x4] sm:$0xf] %v515
      %p520 = scmp.lt.s32.totalorder %s18, 1
      %s521 = scalar_select %p520, %s18, 1
      %s522 = smul.addr %s521, 2
      %s523 = smul.addr %s522, 4
      %s524 = scalar_lea.vmem %s7, %s523
      // Predicated region
      $region49: #{_lambda_.30} parent=47 // pred_check
        %p525 = pneg %p188
      $region50: #{_lambda_.30} parent=47 // pred_check_branch
        %527 = sbr.rel (%p525) target = $region52
      $region51: #{_lambda_.30} parent=47 // pred_region
        _
      $region52: #{_lambda_.30} parent=47 // pred_fallthru
        _
    $region48: #{_lambda_.30} parent=5 // pred_fallthru
      _
    %p528 = scmp.le.s32.totalorder 2, %s13
    // Predicated region
    $region53: #{_lambda_.30} parent=5 // pred_check
      %p529 = pneg %p528
    $region54: #{_lambda_.30} parent=5 // pred_check_branch
      %531 = sbr.rel (%p529) target = $region56
    $region55: #{_lambda_.30} parent=5 // pred_region
      %s532 = ssub.s32 %s13, 2
      // Predicated region
      $region57: #{_lambda_.30} parent=55 // pred_check
        %p533 = pneg %p194
      $region58: #{_lambda_.30} parent=55 // pred_check_branch
        %535 = sbr.rel (%p533) target = $region60
      $region59: #{_lambda_.30} parent=55 // pred_region
        %p536 = scmp.lt.s32.totalorder %s19, 1
        %s537 = scalar_select %p536, %s19, 1
        %s538 = smul.addr %s537, 2
        %s539 = smul.addr %s538, 4
        %s540 = scalar_lea.vmem %s7, %s539
      $region60: #{_lambda_.30} parent=55 // pred_fallthru
        _
    $region56: #{_lambda_.30} parent=5 // pred_fallthru
      _
  $region6: #{_lambda_.30} parent=0 // loop_footer
    %s17 = sadd.s32 1, %s13
  $region7: #{_lambda_.30} parent=0 // loop_footer_branch
    %12 = sbr.rel target = $region3
  $region8: #{_lambda_.30} parent=0 // loop_exit
    _

// kernel: _lambda_.33
$region0: #{_lambda_.33}
  #allocation0 [shape = 'u32[]', space=smem, size = 0x4, offset = 0x4, fixed_abs, tag = 'smem constant byte address 0x4 - core index']
  #allocation1 [shape = 'u32[144,128]{1,0:T(1,128)}', space=vmem, size = 0x12000, scoped, tag = 'internal scratch']
  %s0 = inlined_call_operand.vmem [shape: bf16[2,16,128], index: 0, kind: input, shape index: {}]
  %s1 = inlined_call_operand.vmem [shape: f32[128,10], index: 1, kind: input, shape index: {}]
  %s2 = inlined_call_operand.vmem [shape: f32[1,10], index: 2, kind: input, shape index: {}]
  %s3 = inlined_call_operand.hbm [shape: f32[2,10], index: 3, kind: output, shape index: {}]
  %s4 = sld [smem:[#allocation0]]
  $region22: #{_lambda_.33} parent=0
    _
  %s6 = ssub.s32 1, %s4
  %s7 = scalar_select 0, %s6, %s4
  $region1: #{_lambda_.33} parent=0
    #allocation2 [shape = 'u8[1024]{0}', space=vmem, size = 0x400, scoped, tag = 'output window, operand 0, single buffered']
    #allocation3 [shape = 's32[1]{0}', space=sflag, size = 0x4, scoped, tag = 'scoped memory for _lambda_.33']
    %8 = vsyncpa [#allocation3], 0
    // Predicated region
    $region2: #{_lambda_.33} parent=1 // pred_check
      _
    $region3: #{_lambda_.33} parent=1 // pred_check_branch
      %10 = sbr.rel (0) target = $region5
    $region4: #{_lambda_.33} parent=1 // pred_region
      _
    $region5: #{_lambda_.33} parent=1 // pred_fallthru
      _
    // Predicated region
    $region6: #{_lambda_.33} parent=1 // pred_check
      _
    $region7: #{_lambda_.33} parent=1 // pred_check_branch
      %12 = sbr.rel (0) target = $region9
    $region8: #{_lambda_.33} parent=1 // pred_region
      _
    $region9: #{_lambda_.33} parent=1 // pred_fallthru
      _
    // Predicated region
    $region10: #{_lambda_.33} parent=1 // pred_check
      _
    $region11: #{_lambda_.33} parent=1 // pred_check_branch
      %14 = sbr.rel (0) target = $region13
    $region12: #{_lambda_.33} parent=1 // pred_region
      _
    $region13: #{_lambda_.33} parent=1 // pred_fallthru
      _
    %v15 = vld [vmem:[%s0] sm:$0xf]
    %v16 = vld [vmem:[%s0 + $0x4] sm:$0xf]
    %v17 = vld [vmem:[%s0 + $0x8] sm:$0xf]
    %v18 = vld [vmem:[%s0 + $0xc] sm:$0xf]
    %v19 = vunpack.c.l.bf16 %v15
    %v20 = vunpack.c.l.bf16 %v16
    %v21 = vunpack.c.l.bf16 %v17
    %v22 = vunpack.c.l.bf16 %v18
    %v23 = vadd.f32 %v19, %v20
    %v24 = vrot.slane %v23, 4
    %v25 = vadd.f32 %v23, %v24
    %v26 = vrot.slane %v25, 2
    %v27 = vadd.f32 %v25, %v26
    %v28 = vrot.slane %v27, 1
    %v29 = vadd.f32 %v27, %v28
    %v30 = vadd.f32 %v21, %v22
    %v31 = vrot.slane %v30, 4
    %v32 = vadd.f32 %v30, %v31
    %v33 = vrot.slane %v32, 2
    %v34 = vadd.f32 %v32, %v33
    %v35 = vrot.slane %v34, 1
    %v36 = vadd.f32 %v34, %v35
    %v37 = vrcp.pop 16.0
    %v38 = vmul.f32 %v29, %v37
    %v39 = vmul.f32 %v36, %v37
    %v40 = vld [vmem:[%s1] sm:$0xff]
    %v41 = vld [vmem:[%s1 + $0x8] sm:$0xff]
    %v42 = vld [vmem:[%s1 + $0x10] sm:$0xff]
    %v43 = vld [vmem:[%s1 + $0x18] sm:$0xff]
    %v44 = vld [vmem:[%s1 + $0x20] sm:$0xff]
    %v45 = vld [vmem:[%s1 + $0x28] sm:$0xff]
    %v46 = vld [vmem:[%s1 + $0x30] sm:$0xff]
    %v47 = vld [vmem:[%s1 + $0x38] sm:$0xff]
    %v48 = vld [vmem:[%s1 + $0x40] sm:$0xff]
    %v49 = vld [vmem:[%s1 + $0x48] sm:$0xff]
    %v50 = vld [vmem:[%s1 + $0x50] sm:$0xff]
    %v51 = vld [vmem:[%s1 + $0x58] sm:$0xff]
    %v52 = vld [vmem:[%s1 + $0x60] sm:$0xff]
    %v53 = vld [vmem:[%s1 + $0x68] sm:$0xff]
    %v54 = vld [vmem:[%s1 + $0x70] sm:$0xff]
    %v55 = vld [vmem:[%s1 + $0x78] sm:$0xff]
    %v56 = vld [vmem:[%s2] sm:$0x1]
    %v58 = vlaneseq
    %v59 = vshrl.u32 %v58, 7
    %v60 = vsub.s32 0, %v59
    %v61 = vrot.slane %v56, %v60
    %vm65 = vcmask 1041409
    %v66 = vsel %vm65, %v39, %v38
    %68 = vmatprep.subr.mxu0 0.0
    %69 = vmatpush1.msra.mxu0 %v55
    %70 = vmatprep.subr.mxu0 0.0
    %71 = vmatpush1.msra.mxu0 %v54
    %72 = vmatprep.subr.mxu0 0.0
    %73 = vmatpush1.msra.mxu0 %v53
    %74 = vmatprep.subr.mxu0 0.0
    %75 = vmatpush1.msra.mxu0 %v52
    %76 = vmatprep.subr.mxu0 0.0
    %77 = vmatpush1.msra.mxu0 %v51
    %78 = vmatprep.subr.mxu0 0.0
    %79 = vmatpush1.msra.mxu0 %v50
    %80 = vmatprep.subr.mxu0 0.0
    %81 = vmatpush1.msra.mxu0 %v49
    %82 = vmatprep.subr.mxu0 0.0
    %83 = vmatpush1.msra.mxu0 %v48
    %84 = vmatprep.subr.mxu0 0.0
    %85 = vmatpush1.msra.mxu0 %v47
    %86 = vmatprep.subr.mxu0 0.0
    %87 = vmatpush1.msra.mxu0 %v46
    %88 = vmatprep.subr.mxu0 0.0
    %89 = vmatpush1.msra.mxu0 %v45
    %90 = vmatprep.subr.mxu0 0.0
    %91 = vmatpush1.msra.mxu0 %v44
    %92 = vmatprep.subr.mxu0 0.0
    %93 = vmatpush1.msra.mxu0 %v43
    %94 = vmatprep.subr.mxu0 0.0
    %95 = vmatpush1.msra.mxu0 %v42
    %96 = vmatprep.subr.mxu0 0.0
    %97 = vmatpush1.msra.mxu0 %v41
    %98 = vmatprep.subr.mxu0 0.0
    %99 = vmatpush1.msra.mxu0 %v40
    %100 = vmatprep.subr.mxu0 0.0
    %101 = vmatpush2.msra.mxu0 0.0
    %102 = vmatprep.subr.mxu0 0.0
    %103 = vmatpush2.msra.mxu0 0.0
    %104 = vmatprep.subr.mxu0 0.0
    %105 = vmatpush2.msra.mxu0 0.0
    %106 = vmatprep.subr.mxu0 0.0
    %107 = vmatpush2.msra.mxu0 0.0
    %108 = vmatprep.subr.mxu0 0.0
    %109 = vmatpush2.msra.mxu0 0.0
    %110 = vmatprep.subr.mxu0 0.0
    %111 = vmatpush2.msra.mxu0 0.0
    %112 = vmatprep.subr.mxu0 0.0
    %113 = vmatpush2.msra.mxu0 0.0
    %114 = vmatprep.subr.mxu0 0.0
    %115 = vmatpush2.msra.mxu0 0.0
    %116 = vmatprep.subr.mxu0 0.0
    %117 = vmatpush2.msra.mxu0 0.0
    %118 = vmatprep.subr.mxu0 0.0
    %119 = vmatpush2.msra.mxu0 0.0
    %120 = vmatprep.subr.mxu0 0.0
    %121 = vmatpush2.msra.mxu0 0.0
    %122 = vmatprep.subr.mxu0 0.0
    %123 = vmatpush2.msra.mxu0 0.0
    %124 = vmatprep.subr.mxu0 0.0
    %125 = vmatpush2.msra.mxu0 0.0
    %126 = vmatprep.subr.mxu0 0.0
    %127 = vmatpush2.msra.mxu0 0.0
    %128 = vmatprep.subr.mxu0 0.0
    %129 = vmatpush2.msra.mxu0 0.0
    %130 = vmatprep.subr.mxu0 0.0
    %131 = vmatpush2.msra.mxu0 0.0
    %132 = vmatprep.mubr.f32.mxu0 0.0
    %133 = vmatmul.mubr.f32.gmra.mxu0 %v66
    %v134 = vpop.f32.mrf.mxu0
    %v135 = vadd.f32 %v61, %v134
    %v136 = vpop.f32.mrf.mxu0
    %137 = vdwg.mxu0
    %vm138 = vcmask 74752
    %139 = vst.msk [vmem:[#allocation2] sm:$0x3] %vm138, %v135
    // Predicated region
    $region14: #{_lambda_.33} parent=1 // pred_check
      _
    $region15: #{_lambda_.33} parent=1 // pred_check_branch
      %141 = sbr.rel (0) target = $region17
    $region16: #{_lambda_.33} parent=1 // pred_region
      %s143 = ssub.s32 32, 32
      %144 = vsyncadd [#allocation3], %s143
      %s146 = sshll.u32 [#allocation2], 4
      %s147 = int_to_ptr.vmem [resolvable:$true] %s146
      %149 = dma.vmem_to_hbm [thread:$0]  %s147, 32, %s3, [#allocation3]
    $region17: #{_lambda_.33} parent=1 // pred_fallthru
      _
    // Predicated region
    $region18: #{_lambda_.33} parent=1 // pred_check
      _
    $region19: #{_lambda_.33} parent=1 // pred_check_branch
      %151 = sbr.rel (0) target = $region21
    $region20: #{_lambda_.33} parent=1 // pred_region
      %152 = dma.done [#allocation3], 32
    $region21: #{_lambda_.33} parent=1 // pred_fallthru
      _
    %153 = vsyncpa [#allocation3], 1

</llo_original>
